<compile_context>
chip_gen: v7x
topology: tpu7x:2x2x1
jax: 0.10.0
libtpu: 0.0.40
codegen_flags: <defaults>
</compile_context>

<pallas_src>
import functools

import jax
import jax.numpy as jnp
from jax.experimental import pallas as pl
from jax.experimental.pallas import tpu as pltpu

NEG_SLOPE = 0.2


def _upresblock_kernel(x_ref, w1_ref, b1_ref, w2_ref, b2_ref, o_ref,
                       xpad_ref, col_ref, *, precision):
    """Fused conv3x3 -> LeakyReLU(0.2) -> conv3x3 -> +x for one batch element.

    x_ref   : (1, H, W, C)    NHWC input tile (original dtype)
    w*_ref  : (3, 3*C, C)     folded conv weights, w[dh, dw*C + ci, co]
    b*_ref  : (1, C)          conv bias (f32)
    o_ref   : (1, H, W, C)    NHWC output tile (same dtype as input)
    xpad_ref: VMEM (H+2, W+2, C) matmul-dtype zero-halo scratch
    col_ref : VMEM (H, W, 3*C)   matmul-dtype per-dh im2col scratch
    """
    H, W, C = x_ref.shape[1], x_ref.shape[2], x_ref.shape[3]

    # Zero only the 1-pixel halo strips.  The interior is fully overwritten
    # below and the halo is never written, so no full-buffer re-zero is
    # needed.  Done every grid step on purpose (per-core cold scratch under
    # the "parallel" axis).
    xpad_ref[0] = jnp.zeros((W + 2, C), xpad_ref.dtype)
    xpad_ref[H + 1] = jnp.zeros((W + 2, C), xpad_ref.dtype)
    xpad_ref[:, 0:1, :] = jnp.zeros((H + 2, 1, C), xpad_ref.dtype)
    xpad_ref[:, W + 1:W + 2, :] = jnp.zeros((H + 2, 1, C), xpad_ref.dtype)

    def conv3x3(w_ref, b_ref):
        # Three accumulating MXU matmuls with K = 3*C (one per dh).  Lane
        # offsets (multiples of C) keep the tap copies unmasked; the patch
        # buffer stays in matmul dtype so no whole-buffer cast is needed.
        acc = None
        for dh in range(3):
            for dw in range(3):
                col_ref[:, :, dw * C:(dw + 1) * C] = xpad_ref[dh:dh + H,
                                                              dw:dw + W, :]
            patches = col_ref[...].reshape(H * W, 3 * C)
            part = jnp.dot(patches, w_ref[dh],
                           preferred_element_type=jnp.float32,
                           precision=precision)
            acc = part if acc is None else acc + part
        return acc + b_ref[0]                        # (H*W, C) float32

    # ---- conv1 on x (single cast to matmul dtype at the interior write) ----
    xpad_ref[1:H + 1, 1:W + 1, :] = x_ref[0].astype(xpad_ref.dtype)
    y = conv3x3(w1_ref, b1_ref)
    y = jnp.maximum(y, NEG_SLOPE * y)                # LeakyReLU(0.2), f32

    # ---- conv2 on y (reuse the same padded scratch; halo is still zero) ----
    xpad_ref[1:H + 1, 1:W + 1, :] = y.reshape(H, W, C).astype(xpad_ref.dtype)
    z = conv3x3(w2_ref, b2_ref)                      # (H*W, C) float32

    # ---- residual add in f32; emit in the input/output dtype ----
    out = x_ref[0].astype(jnp.float32) + z.reshape(H, W, C)
    o_ref[0] = out.astype(o_ref.dtype)


def upresblock_nhwc(x_nhwc, w1, b1, w2, b2, *, matmul_dtype=jnp.bfloat16):
    """Fast path: NHWC in / NHWC out, no layout or dtype changes outside.

    w1, w2 are HWIO (3, 3, C, C); b1, b2 are (C,).  matmul_dtype=bfloat16
    (default) keeps f32 accumulation and an f32 epilogue.
    """
    N, H, W, C = x_nhwc.shape
    mm = jnp.dtype(matmul_dtype)
    # Fold HWIO weights to (3, 3*C, C): row within a dh block = dw*C + ci.
    w1f = w1.reshape(3, 3 * C, C).astype(mm)
    w2f = w2.reshape(3, 3 * C, C).astype(mm)
    b1r = b1.reshape(1, C).astype(jnp.float32)
    b2r = b2.reshape(1, C).astype(jnp.float32)

    precision = (jax.lax.Precision.HIGHEST if mm == jnp.dtype(jnp.float32)
                 else jax.lax.Precision.DEFAULT)
    kernel = functools.partial(_upresblock_kernel, precision=precision)

    # Explicit scoped-VMEM limit with headroom (matters on v5e at 16 MiB
    # default, and on v6e/v7x at 32 MiB once spatial grows).
    act_b = jnp.dtype(x_nhwc.dtype).itemsize
    mm_b = mm.itemsize
    est = (4 * H * W * C * act_b                 # in + out blocks, 2x buffered
           + 4 * 9 * C * C * mm_b                # w1 + w2, 2x buffered
           + (H + 2) * (W + 2) * C * mm_b        # zero-halo scratch
           + H * W * 3 * C * mm_b)               # im2col scratch
    vmem_limit = int(min(max(2 * est + (8 << 20), 32 << 20), 100 << 20))

    return pl.pallas_call(
        kernel,
        out_shape=jax.ShapeDtypeStruct((N, H, W, C), x_nhwc.dtype),
        grid_spec=pltpu.PrefetchScalarGridSpec(
            num_scalar_prefetch=0,
            grid=(N,),
            in_specs=[
                pl.BlockSpec((1, H, W, C), lambda n: (n, 0, 0, 0)),
                pl.BlockSpec((3, 3 * C, C), lambda n: (0, 0, 0)),
                pl.BlockSpec((1, C), lambda n: (0, 0)),
                pl.BlockSpec((3, 3 * C, C), lambda n: (0, 0, 0)),
                pl.BlockSpec((1, C), lambda n: (0, 0)),
            ],
            out_specs=pl.BlockSpec((1, H, W, C), lambda n: (n, 0, 0, 0)),
            scratch_shapes=[
                pltpu.VMEM((H + 2, W + 2, C), matmul_dtype),  # zero-halo pad
                pltpu.VMEM((H, W, 3 * C), matmul_dtype),      # im2col buffer
            ],
        ),
        compiler_params=pltpu.CompilerParams(
            dimension_semantics=("parallel",),
            vmem_limit_bytes=vmem_limit),
    )(x_nhwc, w1f, b1r, w2f, b2r)


def upresblock(x_nchw, w1, b1, w2, b2, **kwargs):
    """PyTorch-layout (NCHW) parity wrapper around the NHWC fast path."""
    x = jnp.transpose(x_nchw, (0, 2, 3, 1))
    out = upresblock_nhwc(x, w1, b1, w2, b2, **kwargs)
    return jnp.transpose(out, (0, 3, 1, 2))


def _reference_nchw(x_nchw, w1, b1, w2, b2):
    """Pure-JAX reference (lax conv, highest precision) for correctness."""
    x = jnp.transpose(x_nchw, (0, 2, 3, 1)).astype(jnp.float32)
    dn = jax.lax.conv_dimension_numbers(x.shape, w1.shape,
                                        ('NHWC', 'HWIO', 'NHWC'))
    hp = jax.lax.Precision.HIGHEST
    y = jax.lax.conv_general_dilated(x, w1, (1, 1), 'SAME',
                                     dimension_numbers=dn, precision=hp) + b1
    y = jnp.where(y >= 0, y, NEG_SLOPE * y)
    y = jax.lax.conv_general_dilated(y, w2, (1, 1), 'SAME',
                                     dimension_numbers=dn, precision=hp) + b2
    return jnp.transpose(x + y, (0, 3, 1, 2))


if __name__ == "__main__":
    key = jax.random.PRNGKey(0)
    # Lane-dense DFDNet-style channel count; H*W = 256 fills the MXU M side.
    N, C, H, W = 2, 128, 16, 16
    k_x, k_w1, k_b1, k_w2, k_b2 = jax.random.split(key, 5)

    # PyTorch module shapes: Conv2d(C, C, 3, 1, 1); weights given in HWIO.
    x = jax.random.normal(k_x, (N, C, H, W), dtype=jnp.float32)            # NCHW
    w1 = jax.random.normal(k_w1, (3, 3, C, C), dtype=jnp.float32) * 0.05   # HWIO
    b1 = jax.random.normal(k_b1, (C,), dtype=jnp.float32) * 0.05
    w2 = jax.random.normal(k_w2, (3, 3, C, C), dtype=jnp.float32) * 0.05   # HWIO
    b2 = jax.random.normal(k_b2, (C,), dtype=jnp.float32) * 0.05

    ref = jax.block_until_ready(_reference_nchw(x, w1, b1, w2, b2))

    # Default fast path: bf16 MXU inputs, f32 accumulation + f32 epilogue.
    out_bf16 = jax.block_until_ready(upresblock(x, w1, b1, w2, b2))
    assert out_bf16.shape == (N, C, H, W)
    err_bf16 = jnp.max(jnp.abs(out_bf16 - ref))
    assert jnp.allclose(out_bf16, ref, atol=1e-1, rtol=5e-2), (
        f"bf16 path mismatch: max abs err {err_bf16}")

    # f32 path (Precision.HIGHEST matmuls) for tighter parity with reference.
    out_f32 = jax.block_until_ready(
        upresblock(x, w1, b1, w2, b2, matmul_dtype=jnp.float32))
    err_f32 = jnp.max(jnp.abs(out_f32 - ref))
    assert jnp.allclose(out_f32, ref, atol=1e-2, rtol=1e-3), (
        f"f32 path mismatch: max abs err {err_f32}")

    print("KERNEL_OK")
</pallas_src>

<mosaic_0001>
module attributes {stable_mosaic.version = 11 : i64} {
  func.func @_upresblock_kernel(%arg0: i32, %arg1: memref<1x16x16x128xf32, #tpu.memory_space<vmem>>, %arg2: memref<3x384x128xbf16, #tpu.memory_space<vmem>>, %arg3: memref<1x128xf32, #tpu.memory_space<vmem>>, %arg4: memref<3x384x128xbf16, #tpu.memory_space<vmem>>, %arg5: memref<1x128xf32, #tpu.memory_space<vmem>>, %arg6: memref<1x16x16x128xf32, #tpu.memory_space<vmem>>, %arg7: memref<18x18x128xbf16, #tpu.memory_space<vmem>>, %arg8: memref<16x16x384xbf16, #tpu.memory_space<vmem>>) attributes {dimension_semantics = [#tpu.dimension_semantics<parallel>], iteration_bounds = array<i64: 2>, scalar_prefetch = 0 : i64, scratch_operands = 2 : i64, tpu.core_type = #tpu.core_type<tc>, window_params = [{transform_indices = @transform_0, window_bounds = array<i64: 1, 16, 16, 128>}, {pipeline_mode = #tpu.pipeline_mode<synchronous>, transform_indices = @transform_1, window_bounds = array<i64: 3, 384, 128>}, {pipeline_mode = #tpu.pipeline_mode<synchronous>, transform_indices = @transform_2, window_bounds = array<i64: 1, 128>}, {pipeline_mode = #tpu.pipeline_mode<synchronous>, transform_indices = @transform_3, window_bounds = array<i64: 3, 384, 128>}, {pipeline_mode = #tpu.pipeline_mode<synchronous>, transform_indices = @transform_4, window_bounds = array<i64: 1, 128>}, {transform_indices = @transform_5, window_bounds = array<i64: 1, 16, 16, 128>}]} {
    %cst = arith.constant 0.000000e+00 : bf16
    %0 = vector.broadcast %cst : bf16 to vector<18x128xbf16>
    %c0 = arith.constant 0 : index
    %c0_0 = arith.constant 0 : index
    %c0_1 = arith.constant 0 : index
    %1 = vector.load %arg7[%c0, %c0_0, %c0_1] : memref<18x18x128xbf16, #tpu.memory_space<vmem>>, vector<1x18x128xbf16>
    %2 = vector.shape_cast %1 : vector<1x18x128xbf16> to vector<18x128xbf16>
    %3 = vector.shape_cast %0 : vector<18x128xbf16> to vector<1x18x128xbf16>
    tpu.vector_store %arg7[%c0, %c0_0, %c0_1], %3 {strides = array<i32>} : memref<18x18x128xbf16, #tpu.memory_space<vmem>>, vector<1x18x128xbf16>,
    %cst_2 = arith.constant 0.000000e+00 : bf16
    %4 = vector.broadcast %cst_2 : bf16 to vector<18x128xbf16>
    %c17 = arith.constant 17 : index
    %c0_3 = arith.constant 0 : index
    %c0_4 = arith.constant 0 : index
    %5 = vector.load %arg7[%c17, %c0_3, %c0_4] : memref<18x18x128xbf16, #tpu.memory_space<vmem>>, vector<1x18x128xbf16>
    %6 = vector.shape_cast %5 : vector<1x18x128xbf16> to vector<18x128xbf16>
    %7 = vector.shape_cast %4 : vector<18x128xbf16> to vector<1x18x128xbf16>
    tpu.vector_store %arg7[%c17, %c0_3, %c0_4], %7 {strides = array<i32>} : memref<18x18x128xbf16, #tpu.memory_space<vmem>>, vector<1x18x128xbf16>,
    %cst_5 = arith.constant 0.000000e+00 : bf16
    %8 = vector.broadcast %cst_5 : bf16 to vector<18x1x128xbf16>
    %c0_6 = arith.constant 0 : index
    %c0_7 = arith.constant 0 : index
    %c0_8 = arith.constant 0 : index
    %9 = vector.load %arg7[%c0_6, %c0_7, %c0_8] : memref<18x18x128xbf16, #tpu.memory_space<vmem>>, vector<18x1x128xbf16>
    tpu.vector_store %arg7[%c0_6, %c0_7, %c0_8], %8 {strides = array<i32>} : memref<18x18x128xbf16, #tpu.memory_space<vmem>>, vector<18x1x128xbf16>,
    %cst_9 = arith.constant 0.000000e+00 : bf16
    %10 = vector.broadcast %cst_9 : bf16 to vector<18x1x128xbf16>
    %c0_10 = arith.constant 0 : index
    %c17_11 = arith.constant 17 : index
    %c0_12 = arith.constant 0 : index
    %11 = vector.load %arg7[%c0_10, %c17_11, %c0_12] : memref<18x18x128xbf16, #tpu.memory_space<vmem>>, vector<18x1x128xbf16>
    tpu.vector_store %arg7[%c0_10, %c17_11, %c0_12], %10 {strides = array<i32>} : memref<18x18x128xbf16, #tpu.memory_space<vmem>>, vector<18x1x128xbf16>,
    %c0_13 = arith.constant 0 : index
    %c0_14 = arith.constant 0 : index
    %c0_15 = arith.constant 0 : index
    %c0_16 = arith.constant 0 : index
    %12 = vector.load %arg1[%c0_13, %c0_14, %c0_15, %c0_16] : memref<1x16x16x128xf32, #tpu.memory_space<vmem>>, vector<1x16x16x128xf32>
    %13 = vector.shape_cast %12 : vector<1x16x16x128xf32> to vector<16x16x128xf32>
    %14 = arith.truncf %13 : vector<16x16x128xf32> to vector<16x16x128xbf16>
    %c1 = arith.constant 1 : index
    %c1_17 = arith.constant 1 : index
    %c0_18 = arith.constant 0 : index
    %15 = vector.load %arg7[%c1, %c1_17, %c0_18] : memref<18x18x128xbf16, #tpu.memory_space<vmem>>, vector<16x16x128xbf16>
    tpu.vector_store %arg7[%c1, %c1_17, %c0_18], %14 {strides = array<i32>} : memref<18x18x128xbf16, #tpu.memory_space<vmem>>, vector<16x16x128xbf16>,
    %c0_19 = arith.constant 0 : index
    %c0_20 = arith.constant 0 : index
    %c0_21 = arith.constant 0 : index
    %16 = vector.load %arg7[%c0_19, %c0_20, %c0_21] : memref<18x18x128xbf16, #tpu.memory_space<vmem>>, vector<16x16x128xbf16>
    %c0_22 = arith.constant 0 : index
    %c0_23 = arith.constant 0 : index
    %c0_24 = arith.constant 0 : index
    %17 = vector.load %arg8[%c0_22, %c0_23, %c0_24] : memref<16x16x384xbf16, #tpu.memory_space<vmem>>, vector<16x16x128xbf16>
    tpu.vector_store %arg8[%c0_22, %c0_23, %c0_24], %16 {strides = array<i32>} : memref<16x16x384xbf16, #tpu.memory_space<vmem>>, vector<16x16x128xbf16>,
    %c0_25 = arith.constant 0 : index
    %c1_26 = arith.constant 1 : index
    %c0_27 = arith.constant 0 : index
    %18 = vector.load %arg7[%c0_25, %c1_26, %c0_27] : memref<18x18x128xbf16, #tpu.memory_space<vmem>>, vector<16x16x128xbf16>
    %c0_28 = arith.constant 0 : index
    %c0_29 = arith.constant 0 : index
    %c128 = arith.constant 128 : index
    %19 = vector.load %arg8[%c0_28, %c0_29, %c128] : memref<16x16x384xbf16, #tpu.memory_space<vmem>>, vector<16x16x128xbf16>
    tpu.vector_store %arg8[%c0_28, %c0_29, %c128], %18 {strides = array<i32>} : memref<16x16x384xbf16, #tpu.memory_space<vmem>>, vector<16x16x128xbf16>,
    %c0_30 = arith.constant 0 : index
    %c2 = arith.constant 2 : index
    %c0_31 = arith.constant 0 : index
    %20 = vector.load %arg7[%c0_30, %c2, %c0_31] : memref<18x18x128xbf16, #tpu.memory_space<vmem>>, vector<16x16x128xbf16>
    %c0_32 = arith.constant 0 : index
    %c0_33 = arith.constant 0 : index
    %c256 = arith.constant 256 : index
    %21 = vector.load %arg8[%c0_32, %c0_33, %c256] : memref<16x16x384xbf16, #tpu.memory_space<vmem>>, vector<16x16x128xbf16>
    tpu.vector_store %arg8[%c0_32, %c0_33, %c256], %20 {strides = array<i32>} : memref<16x16x384xbf16, #tpu.memory_space<vmem>>, vector<16x16x128xbf16>,
    %c0_34 = arith.constant 0 : index
    %c0_35 = arith.constant 0 : index
    %c0_36 = arith.constant 0 : index
    %22 = vector.load %arg8[%c0_34, %c0_35, %c0_36] : memref<16x16x384xbf16, #tpu.memory_space<vmem>>, vector<16x16x384xbf16>
    %23 = vector.shape_cast %22 : vector<16x16x384xbf16> to vector<256x384xbf16>
    %c0_37 = arith.constant 0 : index
    %c0_38 = arith.constant 0 : index
    %c0_39 = arith.constant 0 : index
    %24 = vector.load %arg2[%c0_37, %c0_38, %c0_39] : memref<3x384x128xbf16, #tpu.memory_space<vmem>>, vector<1x384x128xbf16>
    %25 = vector.shape_cast %24 : vector<1x384x128xbf16> to vector<384x128xbf16>
    %cst_40 = arith.constant dense<0.000000e+00> : vector<256x128xf32>
    %26 = tpu.matmul %23, %25, %cst_40 {dimension_numbers = #tpu.dot_dimension_numbers<[1], [0], [0], [1], [0, 0, 1, 1], [], []>} : vector<256x384xbf16>, vector<384x128xbf16>, vector<256x128xf32> -> vector<256x128xf32>
    %c1_41 = arith.constant 1 : index
    %c0_42 = arith.constant 0 : index
    %c0_43 = arith.constant 0 : index
    %27 = vector.load %arg7[%c1_41, %c0_42, %c0_43] : memref<18x18x128xbf16, #tpu.memory_space<vmem>>, vector<16x16x128xbf16>
    %c0_44 = arith.constant 0 : index
    %c0_45 = arith.constant 0 : index
    %c0_46 = arith.constant 0 : index
    %28 = vector.load %arg8[%c0_44, %c0_45, %c0_46] : memref<16x16x384xbf16, #tpu.memory_space<vmem>>, vector<16x16x128xbf16>
    tpu.vector_store %arg8[%c0_44, %c0_45, %c0_46], %27 {strides = array<i32>} : memref<16x16x384xbf16, #tpu.memory_space<vmem>>, vector<16x16x128xbf16>,
    %c1_47 = arith.constant 1 : index
    %c1_48 = arith.constant 1 : index
    %c0_49 = arith.constant 0 : index
    %29 = vector.load %arg7[%c1_47, %c1_48, %c0_49] : memref<18x18x128xbf16, #tpu.memory_space<vmem>>, vector<16x16x128xbf16>
    %c0_50 = arith.constant 0 : index
    %c0_51 = arith.constant 0 : index
    %c128_52 = arith.constant 128 : index
    %30 = vector.load %arg8[%c0_50, %c0_51, %c128_52] : memref<16x16x384xbf16, #tpu.memory_space<vmem>>, vector<16x16x128xbf16>
    tpu.vector_store %arg8[%c0_50, %c0_51, %c128_52], %29 {strides = array<i32>} : memref<16x16x384xbf16, #tpu.memory_space<vmem>>, vector<16x16x128xbf16>,
    %c1_53 = arith.constant 1 : index
    %c2_54 = arith.constant 2 : index
    %c0_55 = arith.constant 0 : index
    %31 = vector.load %arg7[%c1_53, %c2_54, %c0_55] : memref<18x18x128xbf16, #tpu.memory_space<vmem>>, vector<16x16x128xbf16>
    %c0_56 = arith.constant 0 : index
    %c0_57 = arith.constant 0 : index
    %c256_58 = arith.constant 256 : index
    %32 = vector.load %arg8[%c0_56, %c0_57, %c256_58] : memref<16x16x384xbf16, #tpu.memory_space<vmem>>, vector<16x16x128xbf16>
    tpu.vector_store %arg8[%c0_56, %c0_57, %c256_58], %31 {strides = array<i32>} : memref<16x16x384xbf16, #tpu.memory_space<vmem>>, vector<16x16x128xbf16>,
    %c0_59 = arith.constant 0 : index
    %c0_60 = arith.constant 0 : index
    %c0_61 = arith.constant 0 : index
    %33 = vector.load %arg8[%c0_59, %c0_60, %c0_61] : memref<16x16x384xbf16, #tpu.memory_space<vmem>>, vector<16x16x384xbf16>
    %34 = vector.shape_cast %33 : vector<16x16x384xbf16> to vector<256x384xbf16>
    %c1_62 = arith.constant 1 : index
    %c0_63 = arith.constant 0 : index
    %c0_64 = arith.constant 0 : index
    %35 = vector.load %arg2[%c1_62, %c0_63, %c0_64] : memref<3x384x128xbf16, #tpu.memory_space<vmem>>, vector<1x384x128xbf16>
    %36 = vector.shape_cast %35 : vector<1x384x128xbf16> to vector<384x128xbf16>
    %cst_65 = arith.constant dense<0.000000e+00> : vector<256x128xf32>
    %37 = tpu.matmul %34, %36, %cst_65 {dimension_numbers = #tpu.dot_dimension_numbers<[1], [0], [0], [1], [0, 0, 1, 1], [], []>} : vector<256x384xbf16>, vector<384x128xbf16>, vector<256x128xf32> -> vector<256x128xf32>
    %38 = arith.addf %26, %37 : vector<256x128xf32>
    %c2_66 = arith.constant 2 : index
    %c0_67 = arith.constant 0 : index
    %c0_68 = arith.constant 0 : index
    %39 = vector.load %arg7[%c2_66, %c0_67, %c0_68] : memref<18x18x128xbf16, #tpu.memory_space<vmem>>, vector<16x16x128xbf16>
    %c0_69 = arith.constant 0 : index
    %c0_70 = arith.constant 0 : index
    %c0_71 = arith.constant 0 : index
    %40 = vector.load %arg8[%c0_69, %c0_70, %c0_71] : memref<16x16x384xbf16, #tpu.memory_space<vmem>>, vector<16x16x128xbf16>
    tpu.vector_store %arg8[%c0_69, %c0_70, %c0_71], %39 {strides = array<i32>} : memref<16x16x384xbf16, #tpu.memory_space<vmem>>, vector<16x16x128xbf16>,
    %c2_72 = arith.constant 2 : index
    %c1_73 = arith.constant 1 : index
    %c0_74 = arith.constant 0 : index
    %41 = vector.load %arg7[%c2_72, %c1_73, %c0_74] : memref<18x18x128xbf16, #tpu.memory_space<vmem>>, vector<16x16x128xbf16>
    %c0_75 = arith.constant 0 : index
    %c0_76 = arith.constant 0 : index
    %c128_77 = arith.constant 128 : index
    %42 = vector.load %arg8[%c0_75, %c0_76, %c128_77] : memref<16x16x384xbf16, #tpu.memory_space<vmem>>, vector<16x16x128xbf16>
    tpu.vector_store %arg8[%c0_75, %c0_76, %c128_77], %41 {strides = array<i32>} : memref<16x16x384xbf16, #tpu.memory_space<vmem>>, vector<16x16x128xbf16>,
    %c2_78 = arith.constant 2 : index
    %c2_79 = arith.constant 2 : index
    %c0_80 = arith.constant 0 : index
    %43 = vector.load %arg7[%c2_78, %c2_79, %c0_80] : memref<18x18x128xbf16, #tpu.memory_space<vmem>>, vector<16x16x128xbf16>
    %c0_81 = arith.constant 0 : index
    %c0_82 = arith.constant 0 : index
    %c256_83 = arith.constant 256 : index
    %44 = vector.load %arg8[%c0_81, %c0_82, %c256_83] : memref<16x16x384xbf16, #tpu.memory_space<vmem>>, vector<16x16x128xbf16>
    tpu.vector_store %arg8[%c0_81, %c0_82, %c256_83], %43 {strides = array<i32>} : memref<16x16x384xbf16, #tpu.memory_space<vmem>>, vector<16x16x128xbf16>,
    %c0_84 = arith.constant 0 : index
    %c0_85 = arith.constant 0 : index
    %c0_86 = arith.constant 0 : index
    %45 = vector.load %arg8[%c0_84, %c0_85, %c0_86] : memref<16x16x384xbf16, #tpu.memory_space<vmem>>, vector<16x16x384xbf16>
    %46 = vector.shape_cast %45 : vector<16x16x384xbf16> to vector<256x384xbf16>
    %c2_87 = arith.constant 2 : index
    %c0_88 = arith.constant 0 : index
    %c0_89 = arith.constant 0 : index
    %47 = vector.load %arg2[%c2_87, %c0_88, %c0_89] : memref<3x384x128xbf16, #tpu.memory_space<vmem>>, vector<1x384x128xbf16>
    %48 = vector.shape_cast %47 : vector<1x384x128xbf16> to vector<384x128xbf16>
    %cst_90 = arith.constant dense<0.000000e+00> : vector<256x128xf32>
    %49 = tpu.matmul %46, %48, %cst_90 {dimension_numbers = #tpu.dot_dimension_numbers<[1], [0], [0], [1], [0, 0, 1, 1], [], []>} : vector<256x384xbf16>, vector<384x128xbf16>, vector<256x128xf32> -> vector<256x128xf32>
    %50 = arith.addf %38, %49 : vector<256x128xf32>
    %c0_91 = arith.constant 0 : index
    %c0_92 = arith.constant 0 : index
    %51 = vector.load %arg3[%c0_91, %c0_92] : memref<1x128xf32, #tpu.memory_space<vmem>>, vector<1x128xf32>
    %52 = vector.shape_cast %51 : vector<1x128xf32> to vector<128xf32>
    %53 = vector.shape_cast %52 : vector<128xf32> to vector<1x128xf32>
    %54 = vector.broadcast %53 : vector<1x128xf32> to vector<256x128xf32>
    %55 = arith.addf %50, %54 : vector<256x128xf32>
    %cst_93 = arith.constant 2.000000e-01 : f32
    %56 = vector.broadcast %cst_93 : f32 to vector<256x128xf32>
    %57 = arith.mulf %56, %55 : vector<256x128xf32>
    %58 = arith.maximumf %55, %57 : vector<256x128xf32>
    %59 = vector.shape_cast %58 : vector<256x128xf32> to vector<16x16x128xf32>
    %60 = arith.truncf %59 : vector<16x16x128xf32> to vector<16x16x128xbf16>
    %c1_94 = arith.constant 1 : index
    %c1_95 = arith.constant 1 : index
    %c0_96 = arith.constant 0 : index
    %61 = vector.load %arg7[%c1_94, %c1_95, %c0_96] : memref<18x18x128xbf16, #tpu.memory_space<vmem>>, vector<16x16x128xbf16>
    tpu.vector_store %arg7[%c1_94, %c1_95, %c0_96], %60 {strides = array<i32>} : memref<18x18x128xbf16, #tpu.memory_space<vmem>>, vector<16x16x128xbf16>,
    %c0_97 = arith.constant 0 : index
    %c0_98 = arith.constant 0 : index
    %c0_99 = arith.constant 0 : index
    %62 = vector.load %arg7[%c0_97, %c0_98, %c0_99] : memref<18x18x128xbf16, #tpu.memory_space<vmem>>, vector<16x16x128xbf16>
    %c0_100 = arith.constant 0 : index
    %c0_101 = arith.constant 0 : index
    %c0_102 = arith.constant 0 : index
    %63 = vector.load %arg8[%c0_100, %c0_101, %c0_102] : memref<16x16x384xbf16, #tpu.memory_space<vmem>>, vector<16x16x128xbf16>
    tpu.vector_store %arg8[%c0_100, %c0_101, %c0_102], %62 {strides = array<i32>} : memref<16x16x384xbf16, #tpu.memory_space<vmem>>, vector<16x16x128xbf16>,
    %c0_103 = arith.constant 0 : index
    %c1_104 = arith.constant 1 : index
    %c0_105 = arith.constant 0 : index
    %64 = vector.load %arg7[%c0_103, %c1_104, %c0_105] : memref<18x18x128xbf16, #tpu.memory_space<vmem>>, vector<16x16x128xbf16>
    %c0_106 = arith.constant 0 : index
    %c0_107 = arith.constant 0 : index
    %c128_108 = arith.constant 128 : index
    %65 = vector.load %arg8[%c0_106, %c0_107, %c128_108] : memref<16x16x384xbf16, #tpu.memory_space<vmem>>, vector<16x16x128xbf16>
    tpu.vector_store %arg8[%c0_106, %c0_107, %c128_108], %64 {strides = array<i32>} : memref<16x16x384xbf16, #tpu.memory_space<vmem>>, vector<16x16x128xbf16>,
    %c0_109 = arith.constant 0 : index
    %c2_110 = arith.constant 2 : index
    %c0_111 = arith.constant 0 : index
    %66 = vector.load %arg7[%c0_109, %c2_110, %c0_111] : memref<18x18x128xbf16, #tpu.memory_space<vmem>>, vector<16x16x128xbf16>
    %c0_112 = arith.constant 0 : index
    %c0_113 = arith.constant 0 : index
    %c256_114 = arith.constant 256 : index
    %67 = vector.load %arg8[%c0_112, %c0_113, %c256_114] : memref<16x16x384xbf16, #tpu.memory_space<vmem>>, vector<16x16x128xbf16>
    tpu.vector_store %arg8[%c0_112, %c0_113, %c256_114], %66 {strides = array<i32>} : memref<16x16x384xbf16, #tpu.memory_space<vmem>>, vector<16x16x128xbf16>,
    %c0_115 = arith.constant 0 : index
    %c0_116 = arith.constant 0 : index
    %c0_117 = arith.constant 0 : index
    %68 = vector.load %arg8[%c0_115, %c0_116, %c0_117] : memref<16x16x384xbf16, #tpu.memory_space<vmem>>, vector<16x16x384xbf16>
    %69 = vector.shape_cast %68 : vector<16x16x384xbf16> to vector<256x384xbf16>
    %c0_118 = arith.constant 0 : index
    %c0_119 = arith.constant 0 : index
    %c0_120 = arith.constant 0 : index
    %70 = vector.load %arg4[%c0_118, %c0_119, %c0_120] : memref<3x384x128xbf16, #tpu.memory_space<vmem>>, vector<1x384x128xbf16>
    %71 = vector.shape_cast %70 : vector<1x384x128xbf16> to vector<384x128xbf16>
    %cst_121 = arith.constant dense<0.000000e+00> : vector<256x128xf32>
    %72 = tpu.matmul %69, %71, %cst_121 {dimension_numbers = #tpu.dot_dimension_numbers<[1], [0], [0], [1], [0, 0, 1, 1], [], []>} : vector<256x384xbf16>, vector<384x128xbf16>, vector<256x128xf32> -> vector<256x128xf32>
    %c1_122 = arith.constant 1 : index
    %c0_123 = arith.constant 0 : index
    %c0_124 = arith.constant 0 : index
    %73 = vector.load %arg7[%c1_122, %c0_123, %c0_124] : memref<18x18x128xbf16, #tpu.memory_space<vmem>>, vector<16x16x128xbf16>
    %c0_125 = arith.constant 0 : index
    %c0_126 = arith.constant 0 : index
    %c0_127 = arith.constant 0 : index
    %74 = vector.load %arg8[%c0_125, %c0_126, %c0_127] : memref<16x16x384xbf16, #tpu.memory_space<vmem>>, vector<16x16x128xbf16>
    tpu.vector_store %arg8[%c0_125, %c0_126, %c0_127], %73 {strides = array<i32>} : memref<16x16x384xbf16, #tpu.memory_space<vmem>>, vector<16x16x128xbf16>,
    %c1_128 = arith.constant 1 : index
    %c1_129 = arith.constant 1 : index
    %c0_130 = arith.constant 0 : index
    %75 = vector.load %arg7[%c1_128, %c1_129, %c0_130] : memref<18x18x128xbf16, #tpu.memory_space<vmem>>, vector<16x16x128xbf16>
    %c0_131 = arith.constant 0 : index
    %c0_132 = arith.constant 0 : index
    %c128_133 = arith.constant 128 : index
    %76 = vector.load %arg8[%c0_131, %c0_132, %c128_133] : memref<16x16x384xbf16, #tpu.memory_space<vmem>>, vector<16x16x128xbf16>
    tpu.vector_store %arg8[%c0_131, %c0_132, %c128_133], %75 {strides = array<i32>} : memref<16x16x384xbf16, #tpu.memory_space<vmem>>, vector<16x16x128xbf16>,
    %c1_134 = arith.constant 1 : index
    %c2_135 = arith.constant 2 : index
    %c0_136 = arith.constant 0 : index
    %77 = vector.load %arg7[%c1_134, %c2_135, %c0_136] : memref<18x18x128xbf16, #tpu.memory_space<vmem>>, vector<16x16x128xbf16>
    %c0_137 = arith.constant 0 : index
    %c0_138 = arith.constant 0 : index
    %c256_139 = arith.constant 256 : index
    %78 = vector.load %arg8[%c0_137, %c0_138, %c256_139] : memref<16x16x384xbf16, #tpu.memory_space<vmem>>, vector<16x16x128xbf16>
    tpu.vector_store %arg8[%c0_137, %c0_138, %c256_139], %77 {strides = array<i32>} : memref<16x16x384xbf16, #tpu.memory_space<vmem>>, vector<16x16x128xbf16>,
    %c0_140 = arith.constant 0 : index
    %c0_141 = arith.constant 0 : index
    %c0_142 = arith.constant 0 : index
    %79 = vector.load %arg8[%c0_140, %c0_141, %c0_142] : memref<16x16x384xbf16, #tpu.memory_space<vmem>>, vector<16x16x384xbf16>
    %80 = vector.shape_cast %79 : vector<16x16x384xbf16> to vector<256x384xbf16>
    %c1_143 = arith.constant 1 : index
    %c0_144 = arith.constant 0 : index
    %c0_145 = arith.constant 0 : index
    %81 = vector.load %arg4[%c1_143, %c0_144, %c0_145] : memref<3x384x128xbf16, #tpu.memory_space<vmem>>, vector<1x384x128xbf16>
    %82 = vector.shape_cast %81 : vector<1x384x128xbf16> to vector<384x128xbf16>
    %cst_146 = arith.constant dense<0.000000e+00> : vector<256x128xf32>
    %83 = tpu.matmul %80, %82, %cst_146 {dimension_numbers = #tpu.dot_dimension_numbers<[1], [0], [0], [1], [0, 0, 1, 1], [], []>} : vector<256x384xbf16>, vector<384x128xbf16>, vector<256x128xf32> -> vector<256x128xf32>
    %84 = arith.addf %72, %83 : vector<256x128xf32>
    %c2_147 = arith.constant 2 : index
    %c0_148 = arith.constant 0 : index
    %c0_149 = arith.constant 0 : index
    %85 = vector.load %arg7[%c2_147, %c0_148, %c0_149] : memref<18x18x128xbf16, #tpu.memory_space<vmem>>, vector<16x16x128xbf16>
    %c0_150 = arith.constant 0 : index
    %c0_151 = arith.constant 0 : index
    %c0_152 = arith.constant 0 : index
    %86 = vector.load %arg8[%c0_150, %c0_151, %c0_152] : memref<16x16x384xbf16, #tpu.memory_space<vmem>>, vector<16x16x128xbf16>
    tpu.vector_store %arg8[%c0_150, %c0_151, %c0_152], %85 {strides = array<i32>} : memref<16x16x384xbf16, #tpu.memory_space<vmem>>, vector<16x16x128xbf16>,
    %c2_153 = arith.constant 2 : index
    %c1_154 = arith.constant 1 : index
    %c0_155 = arith.constant 0 : index
    %87 = vector.load %arg7[%c2_153, %c1_154, %c0_155] : memref<18x18x128xbf16, #tpu.memory_space<vmem>>, vector<16x16x128xbf16>
    %c0_156 = arith.constant 0 : index
    %c0_157 = arith.constant 0 : index
    %c128_158 = arith.constant 128 : index
    %88 = vector.load %arg8[%c0_156, %c0_157, %c128_158] : memref<16x16x384xbf16, #tpu.memory_space<vmem>>, vector<16x16x128xbf16>
    tpu.vector_store %arg8[%c0_156, %c0_157, %c128_158], %87 {strides = array<i32>} : memref<16x16x384xbf16, #tpu.memory_space<vmem>>, vector<16x16x128xbf16>,
    %c2_159 = arith.constant 2 : index
    %c2_160 = arith.constant 2 : index
    %c0_161 = arith.constant 0 : index
    %89 = vector.load %arg7[%c2_159, %c2_160, %c0_161] : memref<18x18x128xbf16, #tpu.memory_space<vmem>>, vector<16x16x128xbf16>
    %c0_162 = arith.constant 0 : index
    %c0_163 = arith.constant 0 : index
    %c256_164 = arith.constant 256 : index
    %90 = vector.load %arg8[%c0_162, %c0_163, %c256_164] : memref<16x16x384xbf16, #tpu.memory_space<vmem>>, vector<16x16x128xbf16>
    tpu.vector_store %arg8[%c0_162, %c0_163, %c256_164], %89 {strides = array<i32>} : memref<16x16x384xbf16, #tpu.memory_space<vmem>>, vector<16x16x128xbf16>,
    %c0_165 = arith.constant 0 : index
    %c0_166 = arith.constant 0 : index
    %c0_167 = arith.constant 0 : index
    %91 = vector.load %arg8[%c0_165, %c0_166, %c0_167] : memref<16x16x384xbf16, #tpu.memory_space<vmem>>, vector<16x16x384xbf16>
    %92 = vector.shape_cast %91 : vector<16x16x384xbf16> to vector<256x384xbf16>
    %c2_168 = arith.constant 2 : index
    %c0_169 = arith.constant 0 : index
    %c0_170 = arith.constant 0 : index
    %93 = vector.load %arg4[%c2_168, %c0_169, %c0_170] : memref<3x384x128xbf16, #tpu.memory_space<vmem>>, vector<1x384x128xbf16>
    %94 = vector.shape_cast %93 : vector<1x384x128xbf16> to vector<384x128xbf16>
    %cst_171 = arith.constant dense<0.000000e+00> : vector<256x128xf32>
    %95 = tpu.matmul %92, %94, %cst_171 {dimension_numbers = #tpu.dot_dimension_numbers<[1], [0], [0], [1], [0, 0, 1, 1], [], []>} : vector<256x384xbf16>, vector<384x128xbf16>, vector<256x128xf32> -> vector<256x128xf32>
    %96 = arith.addf %84, %95 : vector<256x128xf32>
    %c0_172 = arith.constant 0 : index
    %c0_173 = arith.constant 0 : index
    %97 = vector.load %arg5[%c0_172, %c0_173] : memref<1x128xf32, #tpu.memory_space<vmem>>, vector<1x128xf32>
    %98 = vector.shape_cast %97 : vector<1x128xf32> to vector<128xf32>
    %99 = vector.shape_cast %98 : vector<128xf32> to vector<1x128xf32>
    %100 = vector.broadcast %99 : vector<1x128xf32> to vector<256x128xf32>
    %101 = arith.addf %96, %100 : vector<256x128xf32>
    %c0_174 = arith.constant 0 : index
    %c0_175 = arith.constant 0 : index
    %c0_176 = arith.constant 0 : index
    %c0_177 = arith.constant 0 : index
    %102 = vector.load %arg1[%c0_174, %c0_175, %c0_176, %c0_177] : memref<1x16x16x128xf32, #tpu.memory_space<vmem>>, vector<1x16x16x128xf32>
    %103 = vector.shape_cast %102 : vector<1x16x16x128xf32> to vector<16x16x128xf32>
    %104 = vector.shape_cast %101 : vector<256x128xf32> to vector<16x16x128xf32>
    %105 = arith.addf %103, %104 : vector<16x16x128xf32>
    %c0_178 = arith.constant 0 : index
    %c0_179 = arith.constant 0 : index
    %c0_180 = arith.constant 0 : index
    %c0_181 = arith.constant 0 : index
    %106 = vector.load %arg6[%c0_178, %c0_179, %c0_180, %c0_181] : memref<1x16x16x128xf32, #tpu.memory_space<vmem>>, vector<1x16x16x128xf32>
    %107 = vector.shape_cast %106 : vector<1x16x16x128xf32> to vector<16x16x128xf32>
    %108 = vector.shape_cast %105 : vector<16x16x128xf32> to vector<1x16x16x128xf32>
    tpu.vector_store %arg6[%c0_178, %c0_179, %c0_180, %c0_181], %108 {strides = array<i32>} : memref<1x16x16x128xf32, #tpu.memory_space<vmem>>, vector<1x16x16x128xf32>,
    return
  }
  func.func @transform_0(%arg0: i32) -> (i32, i32, i32, i32) {
    %c0_i32 = arith.constant 0 : i32
    %c0_i32_0 = arith.constant 0 : i32
    %c0_i32_1 = arith.constant 0 : i32
    %c0_i32_2 = arith.constant 0 : i32
    return %arg0, %c0_i32, %c0_i32_0, %c0_i32_1 : i32, i32, i32, i32
  }
  func.func @transform_1(%arg0: i32) -> (i32, i32, i32) {
    %c0_i32 = arith.constant 0 : i32
    %c0_i32_0 = arith.constant 0 : i32
    %c0_i32_1 = arith.constant 0 : i32
    %c0_i32_2 = arith.constant 0 : i32
    return %c0_i32, %c0_i32_0, %c0_i32_1 : i32, i32, i32
  }
  func.func @transform_2(%arg0: i32) -> (i32, i32) {
    %c0_i32 = arith.constant 0 : i32
    %c0_i32_0 = arith.constant 0 : i32
    %c0_i32_1 = arith.constant 0 : i32
    return %c0_i32, %c0_i32_0 : i32, i32
  }
  func.func @transform_3(%arg0: i32) -> (i32, i32, i32) {
    %c0_i32 = arith.constant 0 : i32
    %c0_i32_0 = arith.constant 0 : i32
    %c0_i32_1 = arith.constant 0 : i32
    %c0_i32_2 = arith.constant 0 : i32
    return %c0_i32, %c0_i32_0, %c0_i32_1 : i32, i32, i32
  }
  func.func @transform_4(%arg0: i32) -> (i32, i32) {
    %c0_i32 = arith.constant 0 : i32
    %c0_i32_0 = arith.constant 0 : i32
    %c0_i32_1 = arith.constant 0 : i32
    return %c0_i32, %c0_i32_0 : i32, i32
  }
  func.func @transform_5(%arg0: i32) -> (i32, i32, i32, i32) {
    %c0_i32 = arith.constant 0 : i32
    %c0_i32_0 = arith.constant 0 : i32
    %c0_i32_1 = arith.constant 0 : i32
    %c0_i32_2 = arith.constant 0 : i32
    return %arg0, %c0_i32, %c0_i32_0, %c0_i32_1 : i32, i32, i32, i32
  }
}

</mosaic_0001>

<llo_original>
// kernel: tpu_custom_call.1
$region0: #{tpu_custom_call.1}
  #allocation0 [shape = 'u32[]', space=smem, size = 0x4, offset = 0x4, fixed_abs, tag = 'smem constant byte address 0x4 - core index']
  #allocation1 [shape = 'u32[144,128]{1,0:T(1,128)}', space=vmem, size = 0x12000, scoped, tag = 'internal scratch']
  #allocation2 [shape = 'bf16[18,18,128]{2,1,0:T(8,128)(2,1)}', space=vmem, size = 0x1b000, scoped, tag = 'scratch operand']
  #allocation3 [shape = 'bf16[16,16,384]{2,1,0:T(16,128)(2,1)}', space=vmem, size = 0x30000, scoped, tag = 'scratch operand']
  %s0 = inlined_call_operand.hbm [shape: f32[2,16,16,128], index: 0, kind: input, shape index: {}]
  %s1 = inlined_call_operand.hbm [shape: bf16[3,384,128], index: 1, kind: input, shape index: {}]
  %s2 = inlined_call_operand.vmem [shape: f32[1,128], index: 2, kind: input, shape index: {}]
  %s3 = inlined_call_operand.hbm [shape: bf16[3,384,128], index: 3, kind: input, shape index: {}]
  %s4 = inlined_call_operand.vmem [shape: f32[1,128], index: 4, kind: input, shape index: {}]
  %s5 = inlined_call_operand.hbm [shape: f32[2,16,16,128], index: 5, kind: output, shape index: {}]
  %s6 = sld [smem:[#allocation0]]
  $region65: #{tpu_custom_call.1} parent=0
    _
  %s8 = ssub.s32 1, %s6
  %s9 = scalar_select 0, %s8, %s6
  $region1: #{tpu_custom_call.1} parent=0
    #allocation4 [shape = 'u8[262144]{0}', space=vmem, size = 0x40000, scoped, tag = 'input window, operand 0']
    #allocation5 [shape = 's32[2]{0}', space=sflag, size = 0x8, scoped, tag = 'scoped memory for tpu_custom_call.1']
    #allocation6 [shape = 's32[2]{0}', space=sflag, size = 0x8, scoped, tag = 'scoped memory for tpu_custom_call.1']
    #allocation7 [shape = 'u8[294912]{0}', space=vmem, size = 0x48000, scoped, tag = 'input window, operand 1, single buffered']
    #allocation8 [shape = 's32[1]{0}', space=sflag, size = 0x4, scoped, tag = 'scoped memory for tpu_custom_call.1']
    #allocation9 [shape = 'u8[294912]{0}', space=vmem, size = 0x48000, scoped, tag = 'input window, operand 3, single buffered']
    #allocation10 [shape = 'u8[262144]{0}', space=vmem, size = 0x40000, scoped, tag = 'output window, operand 0']
    %10 = vsyncpa [#allocation5], 0
    %s11 = scalar_lea.sflag [#allocation5], 1
    %12 = vsyncpa %s11, 0
    %13 = vsyncpa [#allocation8], 0
    %14 = vsyncpa [#allocation6], 0
    %s15 = scalar_lea.sflag [#allocation6], 1
    %16 = vsyncpa %s15, 0
    loop: start=0, step=1, limit=4
    $region2: #{tpu_custom_call.1} parent=1 // loop_pre_header
      _
    $region3: #{tpu_custom_call.1} parent=1 // loop_header
      %s18 = sphi 0, %s22
      %p19 = scmp.ge.s32.totalorder %s18, 4
      %s28 = sphi 0, %s30
      %s31 = sphi 0, %s28
      %s32 = sphi 0, %s31
      %s48 = sphi 0, %s32
      %s52 = sphi 0, %s52
      %s54 = sphi 0, %s52
      %s55 = sphi 0, %s54
      %s69 = sphi 0, %s55
      %s73 = sphi 0, %s73
      %s75 = sphi 0, %s73
      %s76 = sphi 0, %s75
      %s90 = sphi 0, %s76
      %s94 = sphi 0, %s94
      %s96 = sphi 0, %s94
      %s97 = sphi 0, %s96
      %s111 = sphi 0, %s97
      %s115 = sphi 0, %s115
      %s117 = sphi 0, %s115
      %s118 = sphi 0, %s117
      %s132 = sphi 0, %s118
      %s138 = sphi 0, %s140
      %s141 = sphi 0, %s138
      %s142 = sphi 0, %s141
      %s158 = sphi 0, %s142
    $region4: #{tpu_custom_call.1} parent=1 // loop_header_branch
      %21 = sbr.rel (%p19) target = $region8
    $region5: #{tpu_custom_call.1} parent=1 // loop_body
      %s23 = ssub.s32 %s18, 1
      %s24 = ssub.s32 %s18, 2
      %s25 = sadd.s32 %s18, 1
      %s26 = ssub.s32 %s18, %s25
      %p27 = scmp.eq.s32.totalorder %s26, 0
      %s29 = sadd.s32 %s28, 1
      %s30 = scalar_select %p27, %s28, %s29
      %p33 = pneg %p27
      %p34 = scmp.eq.s32.totalorder %s18, 1
      %p35 = por %p33, %p34
      %p36 = scmp.ne.s32.totalorder %s28, %s31
      %p37 = scmp.eq.s32.totalorder %s18, 0
      %p38 = por %p36, %p37
      %p39 = scmp.ne.s32.totalorder %s28, %s31
      %p40 = scmp.eq.s32.totalorder %s23, 1
      %p41 = por %p39, %p40
      %p42 = scmp.ne.s32.totalorder %s31, %s32
      %p43 = scmp.eq.s32.totalorder %s23, 0
      %p44 = por %p42, %p43
      %p45 = scmp.ne.s32.totalorder %s31, %s32
      %p46 = scmp.eq.s32.totalorder %s24, 1
      %p47 = por %p45, %p46
      %p49 = scmp.ne.s32.totalorder %s32, %s48
      %p50 = scmp.eq.s32.totalorder %s24, 0
      %p51 = por %p49, %p50
      %s53 = sadd.s32 %s52, 1
      %p56 = scmp.eq.s32.totalorder %s18, 1
      %p57 = scmp.ne.s32.totalorder %s52, %s54
      %p58 = scmp.eq.s32.totalorder %s18, 0
      %p59 = por %p57, %p58
      %p60 = scmp.ne.s32.totalorder %s52, %s54
      %p61 = scmp.eq.s32.totalorder %s23, 1
      %p62 = por %p60, %p61
      %p63 = scmp.ne.s32.totalorder %s54, %s55
      %p64 = scmp.eq.s32.totalorder %s23, 0
      %p65 = por %p63, %p64
      %p66 = scmp.ne.s32.totalorder %s54, %s55
      %p67 = scmp.eq.s32.totalorder %s24, 1
      %p68 = por %p66, %p67
      %p70 = scmp.ne.s32.totalorder %s55, %s69
      %p71 = scmp.eq.s32.totalorder %s24, 0
      %p72 = por %p70, %p71
      %s74 = sadd.s32 %s73, 1
      %p77 = scmp.eq.s32.totalorder %s18, 1
      %p78 = scmp.ne.s32.totalorder %s73, %s75
      %p79 = scmp.eq.s32.totalorder %s18, 0
      %p80 = por %p78, %p79
      %p81 = scmp.ne.s32.totalorder %s73, %s75
      %p82 = scmp.eq.s32.totalorder %s23, 1
      %p83 = por %p81, %p82
      %p84 = scmp.ne.s32.totalorder %s75, %s76
      %p85 = scmp.eq.s32.totalorder %s23, 0
      %p86 = por %p84, %p85
      %p87 = scmp.ne.s32.totalorder %s75, %s76
      %p88 = scmp.eq.s32.totalorder %s24, 1
      %p89 = por %p87, %p88
      %p91 = scmp.ne.s32.totalorder %s76, %s90
      %p92 = scmp.eq.s32.totalorder %s24, 0
      %p93 = por %p91, %p92
      %s95 = sadd.s32 %s94, 1
      %p98 = scmp.eq.s32.totalorder %s18, 1
      %p99 = scmp.ne.s32.totalorder %s94, %s96
      %p100 = scmp.eq.s32.totalorder %s18, 0
      %p101 = por %p99, %p100
      %p102 = scmp.ne.s32.totalorder %s94, %s96
      %p103 = scmp.eq.s32.totalorder %s23, 1
      %p104 = por %p102, %p103
      %p105 = scmp.ne.s32.totalorder %s96, %s97
      %p106 = scmp.eq.s32.totalorder %s23, 0
      %p107 = por %p105, %p106
      %p108 = scmp.ne.s32.totalorder %s96, %s97
      %p109 = scmp.eq.s32.totalorder %s24, 1
      %p110 = por %p108, %p109
      %p112 = scmp.ne.s32.totalorder %s97, %s111
      %p113 = scmp.eq.s32.totalorder %s24, 0
      %p114 = por %p112, %p113
      %s116 = sadd.s32 %s115, 1
      %p119 = scmp.eq.s32.totalorder %s18, 1
      %p120 = scmp.ne.s32.totalorder %s115, %s117
      %p121 = scmp.eq.s32.totalorder %s18, 0
      %p122 = por %p120, %p121
      %p123 = scmp.ne.s32.totalorder %s115, %s117
      %p124 = scmp.eq.s32.totalorder %s23, 1
      %p125 = por %p123, %p124
      %p126 = scmp.ne.s32.totalorder %s117, %s118
      %p127 = scmp.eq.s32.totalorder %s23, 0
      %p128 = por %p126, %p127
      %p129 = scmp.ne.s32.totalorder %s117, %s118
      %p130 = scmp.eq.s32.totalorder %s24, 1
      %p131 = por %p129, %p130
      %p133 = scmp.ne.s32.totalorder %s118, %s132
      %p134 = scmp.eq.s32.totalorder %s24, 0
      %p135 = por %p133, %p134
      %s136 = ssub.s32 %s18, %s25
      %p137 = scmp.eq.s32.totalorder %s136, 0
      %s139 = sadd.s32 %s138, 1
      %s140 = scalar_select %p137, %s138, %s139
      %p143 = pneg %p137
      %p144 = scmp.eq.s32.totalorder %s18, 1
      %p145 = por %p143, %p144
      %p146 = scmp.ne.s32.totalorder %s138, %s141
      %p147 = scmp.eq.s32.totalorder %s18, 0
      %p148 = por %p146, %p147
      %p149 = scmp.ne.s32.totalorder %s138, %s141
      %p150 = scmp.eq.s32.totalorder %s23, 1
      %p151 = por %p149, %p150
      %p152 = scmp.ne.s32.totalorder %s141, %s142
      %p153 = scmp.eq.s32.totalorder %s23, 0
      %p154 = por %p152, %p153
      %p155 = scmp.ne.s32.totalorder %s141, %s142
      %p156 = scmp.eq.s32.totalorder %s24, 1
      %p157 = por %p155, %p156
      %p159 = scmp.ne.s32.totalorder %s142, %s158
      %p160 = scmp.eq.s32.totalorder %s24, 0
      %p161 = por %p159, %p160
      %p162 = scmp.le.s32.totalorder 1, %s18
      %p163 = scmp.lt.s32.totalorder %s18, 3
      %p164 = pnand %p162, %p163
      %p165 = pneg %p164
      // Predicated region
      $region9: #{tpu_custom_call.1} parent=5 // pred_check
        _
      $region10: #{tpu_custom_call.1} parent=5 // pred_check_branch
        %167 = sbr.rel (%p164) target = $region12
      $region11: #{tpu_custom_call.1} parent=5 // pred_region
        %s168 = ssub.s32 %s18, 1
        // Predicated region
        $region13: #{tpu_custom_call.1} parent=11 // pred_check
          %p169 = pneg %p65
        $region14: #{tpu_custom_call.1} parent=11 // pred_check_branch
          %171 = sbr.rel (%p169) target = $region16
        $region15: #{tpu_custom_call.1} parent=11 // pred_region
          %s173 = ssub.s32 9216, 9216
          %174 = vsyncadd [#allocation8], %s173
          %s175 = sshll.u32 [#allocation7], 4
          %s176 = int_to_ptr.vmem [resolvable:$true] %s175
          %181 = dma.hbm_to_vmem [thread:$0]  %s1, 9216, %s176, [#allocation8], 64, 64, 4
        $region16: #{tpu_custom_call.1} parent=11 // pred_fallthru
          _
        // Predicated region
        $region17: #{tpu_custom_call.1} parent=11 // pred_check
          %p182 = pneg %p86
        $region18: #{tpu_custom_call.1} parent=11 // pred_check_branch
          %184 = sbr.rel (%p182) target = $region20
        $region19: #{tpu_custom_call.1} parent=11 // pred_region
          _
        $region20: #{tpu_custom_call.1} parent=11 // pred_fallthru
          _
        // Predicated region
        $region21: #{tpu_custom_call.1} parent=11 // pred_check
          %p185 = pneg %p107
        $region22: #{tpu_custom_call.1} parent=11 // pred_check_branch
          %187 = sbr.rel (%p185) target = $region24
        $region23: #{tpu_custom_call.1} parent=11 // pred_region
          %s189 = ssub.s32 9216, 9216
          %190 = vsyncadd [#allocation8], %s189
          %s191 = sshll.u32 [#allocation9], 4
          %s192 = int_to_ptr.vmem [resolvable:$true] %s191
          %197 = dma.hbm_to_vmem [thread:$0]  %s3, 9216, %s192, [#allocation8], 64, 64, 4
        $region24: #{tpu_custom_call.1} parent=11 // pred_fallthru
          _
        // Predicated region
        $region25: #{tpu_custom_call.1} parent=11 // pred_check
          %p198 = pneg %p128
        $region26: #{tpu_custom_call.1} parent=11 // pred_check_branch
          %200 = sbr.rel (%p198) target = $region28
        $region27: #{tpu_custom_call.1} parent=11 // pred_region
          _
        $region28: #{tpu_custom_call.1} parent=11 // pred_fallthru
          _
      $region12: #{tpu_custom_call.1} parent=5 // pred_fallthru
        _
      %p201 = scmp.lt.s32.totalorder %s18, 2
      // Predicated region
      $region29: #{tpu_custom_call.1} parent=5 // pred_check
        %p202 = pneg %p201
      $region30: #{tpu_custom_call.1} parent=5 // pred_check_branch
        %204 = sbr.rel (%p202) target = $region32
      $region31: #{tpu_custom_call.1} parent=5 // pred_region
        // Predicated region
        $region33: #{tpu_custom_call.1} parent=31 // pred_check
          %p205 = pneg %p38
        $region34: #{tpu_custom_call.1} parent=31 // pred_check_branch
          %207 = sbr.rel (%p205) target = $region36
        $region35: #{tpu_custom_call.1} parent=31 // pred_region
          %s208 = sand.u32 %s28, 1
          %s209 = scalar_lea.sflag [#allocation5], %s208
          %s210 = sand.u32 %s28, 1
          %s211 = smul.addr %s210, 256
          %s212 = scalar_lea.vmem [#allocation4], %s211
          %s214 = ssub.s32 4096, 4096
          %215 = vsyncadd %s209, %s214
          %s216 = smul.addr %s18, 32
          %s217 = smul.addr %s216, 128
          %s218 = scalar_lea.hbm %s0, %s217
          %s219 = sshll.u32 %s212, 4
          %s220 = int_to_ptr.vmem [resolvable:$true] %s219
          %225 = dma.hbm_to_vmem [thread:$0]  %s218, 4096, %s220, %s209, 128, 128, 8
        $region36: #{tpu_custom_call.1} parent=31 // pred_fallthru
          _
      $region32: #{tpu_custom_call.1} parent=5 // pred_fallthru
        _
      %p226 = scmp.le.s32.totalorder 1, %s18
      %p227 = scmp.lt.s32.totalorder %s18, 3
      %p228 = pnand %p226, %p227
      %p229 = pneg %p228
      // Predicated region
      $region37: #{tpu_custom_call.1} parent=5 // pred_check
        _
      $region38: #{tpu_custom_call.1} parent=5 // pred_check_branch
        %231 = sbr.rel (%p228) target = $region40
      $region39: #{tpu_custom_call.1} parent=5 // pred_region
        %s232 = ssub.s32 %s18, 1
        %s233 = sand.u32 %s31, 1
        %s234 = scalar_lea.sflag [#allocation5], %s233
        %s235 = sand.u32 %s31, 1
        %s236 = smul.addr %s235, 256
        %s237 = scalar_lea.vmem [#allocation4], %s236
        // Predicated region
        $region41: #{tpu_custom_call.1} parent=39 // pred_check
          %p238 = pneg %p44
        $region42: #{tpu_custom_call.1} parent=39 // pred_check_branch
          %240 = sbr.rel (%p238) target = $region44
        $region43: #{tpu_custom_call.1} parent=39 // pred_region
          %241 = dma.done %s234, 4096
        $region44: #{tpu_custom_call.1} parent=39 // pred_fallthru
          _
        // Predicated region
        $region45: #{tpu_custom_call.1} parent=39 // pred_check
          %p242 = pneg %p65
        $region46: #{tpu_custom_call.1} parent=39 // pred_check_branch
          %244 = sbr.rel (%p242) target = $region48
        $region47: #{tpu_custom_call.1} parent=39 // pred_region
          %245 = dma.done [#allocation8], 9216
        $region48: #{tpu_custom_call.1} parent=39 // pred_fallthru
          _
        // Predicated region
        $region49: #{tpu_custom_call.1} parent=39 // pred_check
          %p246 = pneg %p107
        $region50: #{tpu_custom_call.1} parent=39 // pred_check_branch
          %248 = sbr.rel (%p246) target = $region52
        $region51: #{tpu_custom_call.1} parent=39 // pred_region
          %249 = dma.done [#allocation8], 9216
        $region52: #{tpu_custom_call.1} parent=39 // pred_fallthru
          _
        %s250 = sand.u32 %s31, 1
        %s251 = scalar_lea.sflag [#allocation5], %s250
        %s252 = sand.u32 %s31, 1
        %s253 = smul.addr %s252, 256
        %s254 = scalar_lea.vmem [#allocation4], %s253
        %p255 = pneg %p44
        %p256 = pneg %p41
        %p257 = pneg %p65
        %p258 = pneg %p62
        %p259 = pneg %p86
        %p260 = pneg %p83
        %p261 = pneg %p107
        %p262 = pneg %p104
        %p263 = pneg %p128
        %p264 = pneg %p125
        %p265 = pneg %p154
        %p266 = pneg %p151
        %s267 = sand.u32 %s141, 1
        %s268 = scalar_lea.sflag [#allocation6], %s267
        %s269 = sand.u32 %s141, 1
        %s270 = smul.addr %s269, 256
        %s271 = scalar_lea.vmem [#allocation10], %s270
        %273 = vst [vmem:[#allocation2] sm:$0xf] 0
        %274 = vst [vmem:[#allocation2 + $0x4] sm:$0xf] 0
        %275 = vst [vmem:[#allocation2 + $0x8] sm:$0x1] 0
        %s276 = scalar_lea.vmem [#allocation2], 204
        %277 = vst [vmem:[%s276] sm:$0xf] 0
        %278 = vst [vmem:[%s276 + $0x4] sm:$0xf] 0
        %279 = vst [vmem:[%s276 + $0x8] sm:$0x1] 0
        %vm280 = vcmask 1040384
        %vm281 = vsmask.f32 256
        %vm282 = vmand %vm280, %vm281
        %v283 = vld [vmem:[#allocation2] sm:$0x1]
        %v284 = vsel %vm282, 0, %v283
        %285 = vst [vmem:[#allocation2] sm:$0x1] %v284
        %v286 = vld [vmem:[#allocation2 + $0xc] sm:$0x1]
        %v287 = vsel %vm282, 0, %v286
        %288 = vst [vmem:[#allocation2 + $0xc] sm:$0x1] %v287
        %v289 = vld [vmem:[#allocation2 + $0x18] sm:$0x1]
        %v290 = vsel %vm282, 0, %v289
        %291 = vst [vmem:[#allocation2 + $0x18] sm:$0x1] %v290
        %v292 = vld [vmem:[#allocation2 + $0x24] sm:$0x1]
        %v293 = vsel %vm282, 0, %v292
        %294 = vst [vmem:[#allocation2 + $0x24] sm:$0x1] %v293
        %v295 = vld [vmem:[#allocation2 + $0x30] sm:$0x1]
        %v296 = vsel %vm282, 0, %v295
        %297 = vst [vmem:[#allocation2 + $0x30] sm:$0x1] %v296
        %v298 = vld [vmem:[#allocation2 + $0x3c] sm:$0x1]
        %v299 = vsel %vm282, 0, %v298
        %300 = vst [vmem:[#allocation2 + $0x3c] sm:$0x1] %v299
        %v301 = vld [vmem:[#allocation2 + $0x48] sm:$0x1]
        %v302 = vsel %vm282, 0, %v301
        %303 = vst [vmem:[#allocation2 + $0x48] sm:$0x1] %v302
        %v304 = vld [vmem:[#allocation2 + $0x54] sm:$0x1]
        %v305 = vsel %vm282, 0, %v304
        %306 = vst [vmem:[#allocation2 + $0x54] sm:$0x1] %v305
        %v307 = vld [vmem:[#allocation2 + $0x60] sm:$0x1]
        %v308 = vsel %vm282, 0, %v307
        %309 = vst [vmem:[#allocation2 + $0x60] sm:$0x1] %v308
        %v310 = vld [vmem:[#allocation2 + $0x6c] sm:$0x1]
        %v311 = vsel %vm282, 0, %v310
        %312 = vst [vmem:[#allocation2 + $0x6c] sm:$0x1] %v311
        %v313 = vld [vmem:[#allocation2 + $0x78] sm:$0x1]
        %v314 = vsel %vm282, 0, %v313
        %315 = vst [vmem:[#allocation2 + $0x78] sm:$0x1] %v314
        %v316 = vld [vmem:[#allocation2 + $0x84] sm:$0x1]
        %v317 = vsel %vm282, 0, %v316
        %318 = vst [vmem:[#allocation2 + $0x84] sm:$0x1] %v317
        %v319 = vld [vmem:[#allocation2 + $0x90] sm:$0x1]
        %v320 = vsel %vm282, 0, %v319
        %321 = vst [vmem:[#allocation2 + $0x90] sm:$0x1] %v320
        %v322 = vld [vmem:[#allocation2 + $0x9c] sm:$0x1]
        %v323 = vsel %vm282, 0, %v322
        %324 = vst [vmem:[#allocation2 + $0x9c] sm:$0x1] %v323
        %v325 = vld [vmem:[#allocation2 + $0xa8] sm:$0x1]
        %v326 = vsel %vm282, 0, %v325
        %327 = vst [vmem:[#allocation2 + $0xa8] sm:$0x1] %v326
        %v328 = vld [vmem:[#allocation2 + $0xb4] sm:$0x1]
        %v329 = vsel %vm282, 0, %v328
        %330 = vst [vmem:[#allocation2 + $0xb4] sm:$0x1] %v329
        %v331 = vld [vmem:[#allocation2 + $0xc0] sm:$0x1]
        %v332 = vsel %vm282, 0, %v331
        %333 = vst [vmem:[#allocation2 + $0xc0] sm:$0x1] %v332
        %v334 = vld [vmem:[#allocation2 + $0xcc] sm:$0x1]
        %v335 = vsel %vm282, 0, %v334
        %336 = vst [vmem:[#allocation2 + $0xcc] sm:$0x1] %v335
        %vm337 = vsmask.f32 7938
        %vm338 = vmand %vm280, %vm337
        %v339 = vld [vmem:[#allocation2 + $0x8] sm:$0x1]
        %v340 = vsel %vm338, 0, %v339
        %341 = vst [vmem:[#allocation2 + $0x8] sm:$0x1] %v340
        %v342 = vld [vmem:[#allocation2 + $0x14] sm:$0x1]
        %v343 = vsel %vm338, 0, %v342
        %344 = vst [vmem:[#allocation2 + $0x14] sm:$0x1] %v343
        %v345 = vld [vmem:[#allocation2 + $0x20] sm:$0x1]
        %v346 = vsel %vm338, 0, %v345
        %347 = vst [vmem:[#allocation2 + $0x20] sm:$0x1] %v346
        %v348 = vld [vmem:[#allocation2 + $0x2c] sm:$0x1]
        %v349 = vsel %vm338, 0, %v348
        %350 = vst [vmem:[#allocation2 + $0x2c] sm:$0x1] %v349
        %v351 = vld [vmem:[#allocation2 + $0x38] sm:$0x1]
        %v352 = vsel %vm338, 0, %v351
        %353 = vst [vmem:[#allocation2 + $0x38] sm:$0x1] %v352
        %v354 = vld [vmem:[#allocation2 + $0x44] sm:$0x1]
        %v355 = vsel %vm338, 0, %v354
        %356 = vst [vmem:[#allocation2 + $0x44] sm:$0x1] %v355
        %v357 = vld [vmem:[#allocation2 + $0x50] sm:$0x1]
        %v358 = vsel %vm338, 0, %v357
        %359 = vst [vmem:[#allocation2 + $0x50] sm:$0x1] %v358
        %v360 = vld [vmem:[#allocation2 + $0x5c] sm:$0x1]
        %v361 = vsel %vm338, 0, %v360
        %362 = vst [vmem:[#allocation2 + $0x5c] sm:$0x1] %v361
        %v363 = vld [vmem:[#allocation2 + $0x68] sm:$0x1]
        %v364 = vsel %vm338, 0, %v363
        %365 = vst [vmem:[#allocation2 + $0x68] sm:$0x1] %v364
        %v366 = vld [vmem:[#allocation2 + $0x74] sm:$0x1]
        %v367 = vsel %vm338, 0, %v366
        %368 = vst [vmem:[#allocation2 + $0x74] sm:$0x1] %v367
        %v369 = vld [vmem:[#allocation2 + $0x80] sm:$0x1]
        %v370 = vsel %vm338, 0, %v369
        %371 = vst [vmem:[#allocation2 + $0x80] sm:$0x1] %v370
        %v372 = vld [vmem:[#allocation2 + $0x8c] sm:$0x1]
        %v373 = vsel %vm338, 0, %v372
        %374 = vst [vmem:[#allocation2 + $0x8c] sm:$0x1] %v373
        %v375 = vld [vmem:[#allocation2 + $0x98] sm:$0x1]
        %v376 = vsel %vm338, 0, %v375
        %377 = vst [vmem:[#allocation2 + $0x98] sm:$0x1] %v376
        %v378 = vld [vmem:[#allocation2 + $0xa4] sm:$0x1]
        %v379 = vsel %vm338, 0, %v378
        %380 = vst [vmem:[#allocation2 + $0xa4] sm:$0x1] %v379
        %v381 = vld [vmem:[#allocation2 + $0xb0] sm:$0x1]
        %v382 = vsel %vm338, 0, %v381
        %383 = vst [vmem:[#allocation2 + $0xb0] sm:$0x1] %v382
        %v384 = vld [vmem:[#allocation2 + $0xbc] sm:$0x1]
        %v385 = vsel %vm338, 0, %v384
        %386 = vst [vmem:[#allocation2 + $0xbc] sm:$0x1] %v385
        %v387 = vld [vmem:[#allocation2 + $0xc8] sm:$0x1]
        %v388 = vsel %vm338, 0, %v387
        %389 = vst [vmem:[#allocation2 + $0xc8] sm:$0x1] %v388
        %v390 = vld [vmem:[#allocation2 + $0xd4] sm:$0x1]
        %v391 = vsel %vm338, 0, %v390
        %392 = vst [vmem:[#allocation2 + $0xd4] sm:$0x1] %v391
        %v393 = vld [vmem:[%s237] sm:$0xff]
        %v394 = vld [vmem:[%s237 + $0x8] sm:$0xff]
        %v395 = vld [vmem:[%s237 + $0x10] sm:$0xff]
        %v396 = vld [vmem:[%s237 + $0x18] sm:$0xff]
        %v397 = vld [vmem:[%s237 + $0x20] sm:$0xff]
        %v398 = vld [vmem:[%s237 + $0x28] sm:$0xff]
        %v399 = vld [vmem:[%s237 + $0x30] sm:$0xff]
        %v400 = vld [vmem:[%s237 + $0x38] sm:$0xff]
        %v401 = vld [vmem:[%s237 + $0x40] sm:$0xff]
        %v402 = vld [vmem:[%s237 + $0x48] sm:$0xff]
        %v403 = vld [vmem:[%s237 + $0x50] sm:$0xff]
        %v404 = vld [vmem:[%s237 + $0x58] sm:$0xff]
        %v405 = vld [vmem:[%s237 + $0x60] sm:$0xff]
        %v406 = vld [vmem:[%s237 + $0x68] sm:$0xff]
        %v407 = vld [vmem:[%s237 + $0x70] sm:$0xff]
        %v408 = vld [vmem:[%s237 + $0x78] sm:$0xff]
        %v409 = vld [vmem:[%s237 + $0x80] sm:$0xff]
        %v410 = vld [vmem:[%s237 + $0x88] sm:$0xff]
        %v411 = vld [vmem:[%s237 + $0x90] sm:$0xff]
        %v412 = vld [vmem:[%s237 + $0x98] sm:$0xff]
        %v413 = vld [vmem:[%s237 + $0xa0] sm:$0xff]
        %v414 = vld [vmem:[%s237 + $0xa8] sm:$0xff]
        %v415 = vld [vmem:[%s237 + $0xb0] sm:$0xff]
        %v416 = vld [vmem:[%s237 + $0xb8] sm:$0xff]
        %v417 = vld [vmem:[%s237 + $0xc0] sm:$0xff]
        %v418 = vld [vmem:[%s237 + $0xc8] sm:$0xff]
        %v419 = vld [vmem:[%s237 + $0xd0] sm:$0xff]
        %v420 = vld [vmem:[%s237 + $0xd8] sm:$0xff]
        %v421 = vld [vmem:[%s237 + $0xe0] sm:$0xff]
        %v422 = vld [vmem:[%s237 + $0xe8] sm:$0xff]
        %v423 = vld [vmem:[%s237 + $0xf0] sm:$0xff]
        %v424 = vld [vmem:[%s237 + $0xf8] sm:$0xff]
        %v425 = vpack.c.bf16 %v394, %v393
        %v426 = vpack.c.bf16 %v396, %v395
        %v427 = vpack.c.bf16 %v398, %v397
        %v428 = vpack.c.bf16 %v400, %v399
        %v429 = vpack.c.bf16 %v402, %v401
        %v430 = vpack.c.bf16 %v404, %v403
        %v431 = vpack.c.bf16 %v406, %v405
        %v432 = vpack.c.bf16 %v408, %v407
        %v433 = vpack.c.bf16 %v410, %v409
        %v434 = vpack.c.bf16 %v412, %v411
        %v435 = vpack.c.bf16 %v414, %v413
        %v436 = vpack.c.bf16 %v416, %v415
        %v437 = vpack.c.bf16 %v418, %v417
        %v438 = vpack.c.bf16 %v420, %v419
        %v439 = vpack.c.bf16 %v422, %v421
        %v440 = vpack.c.bf16 %v424, %v423
        %v457 = vunpack.c.l.b16 %v425
        %v458 = vunpack.c.h.b16 %v425
        %v459 = vunpack.c.l.b16 %v426
        %v460 = vunpack.c.h.b16 %v426
        %v461 = vunpack.c.l.b16 %v427
        %v462 = vunpack.c.h.b16 %v427
        %v463 = vunpack.c.l.b16 %v428
        %v464 = vunpack.c.h.b16 %v428
        %v465 = vunpack.c.l.b16 %v429
        %v466 = vunpack.c.h.b16 %v429
        %v467 = vunpack.c.l.b16 %v430
        %v468 = vunpack.c.h.b16 %v430
        %v469 = vunpack.c.l.b16 %v431
        %v470 = vunpack.c.h.b16 %v431
        %v471 = vunpack.c.l.b16 %v432
        %v472 = vunpack.c.h.b16 %v432
        %v473 = vunpack.c.l.b16 %v433
        %v474 = vunpack.c.h.b16 %v433
        %v475 = vunpack.c.l.b16 %v434
        %v476 = vunpack.c.h.b16 %v434
        %v477 = vunpack.c.l.b16 %v435
        %v478 = vunpack.c.h.b16 %v435
        %v479 = vunpack.c.l.b16 %v436
        %v480 = vunpack.c.h.b16 %v436
        %v481 = vunpack.c.l.b16 %v437
        %v482 = vunpack.c.h.b16 %v437
        %v483 = vunpack.c.l.b16 %v438
        %v484 = vunpack.c.h.b16 %v438
        %v485 = vunpack.c.l.b16 %v439
        %v486 = vunpack.c.h.b16 %v439
        %v487 = vunpack.c.l.b16 %v440
        %v488 = vunpack.c.h.b16 %v440
        %v489 = vpack.c.b16 %v457, %v457
        %v490 = vpack.c.b16 %v458, %v458
        %v491 = vpack.c.b16 %v459, %v459
        %v492 = vpack.c.b16 %v460, %v460
        %v493 = vpack.c.b16 %v461, %v461
        %v494 = vpack.c.b16 %v462, %v462
        %v495 = vpack.c.b16 %v463, %v463
        %v496 = vpack.c.b16 %v464, %v464
        %v497 = vpack.c.b16 %v465, %v465
        %v498 = vpack.c.b16 %v466, %v466
        %v499 = vpack.c.b16 %v467, %v467
        %v500 = vpack.c.b16 %v468, %v468
        %v501 = vpack.c.b16 %v469, %v469
        %v502 = vpack.c.b16 %v470, %v470
        %v503 = vpack.c.b16 %v471, %v471
        %v504 = vpack.c.b16 %v472, %v472
        %v505 = vpack.c.b16 %v473, %v473
        %v506 = vpack.c.b16 %v474, %v474
        %v507 = vpack.c.b16 %v475, %v475
        %v508 = vpack.c.b16 %v476, %v476
        %v509 = vpack.c.b16 %v477, %v477
        %v510 = vpack.c.b16 %v478, %v478
        %v511 = vpack.c.b16 %v479, %v479
        %v512 = vpack.c.b16 %v480, %v480
        %v513 = vpack.c.b16 %v481, %v481
        %v514 = vpack.c.b16 %v482, %v482
        %v515 = vpack.c.b16 %v483, %v483
        %v516 = vpack.c.b16 %v484, %v484
        %v517 = vpack.c.b16 %v485, %v485
        %v518 = vpack.c.b16 %v486, %v486
        %v519 = vpack.c.b16 %v487, %v487
        %v520 = vpack.c.b16 %v488, %v488
        %vm521 = vsmask.f32 4368
        %vm522 = vmor %vm281, %vm521
        %v524 = vshrl.u32 %v489, 16
        %v526 = vrot.slane %v524, 7
        %v527 = vshll.u32 %v489, 16
        %v529 = vor.u32 %v526, %v527
        %v530 = vrot.slane %v526, 4
        %v532 = vshrl.u32 %v490, 16
        %v534 = vrot.slane %v532, 7
        %v535 = vshll.u32 %v490, 16
        %v537 = vor.u32 %v534, %v535
        %v538 = vsel %vm522, %v530, %v537
        %v539 = vrot.slane %v534, 4
        %v541 = vshrl.u32 %v491, 16
        %v543 = vrot.slane %v541, 7
        %v544 = vshll.u32 %v491, 16
        %v546 = vor.u32 %v543, %v544
        %v547 = vrot.slane %v543, 4
        %v549 = vshrl.u32 %v492, 16
        %v551 = vrot.slane %v549, 7
        %v552 = vshll.u32 %v492, 16
        %v554 = vor.u32 %v551, %v552
        %v555 = vsel %vm522, %v547, %v554
        %v556 = vrot.slane %v551, 4
        %v558 = vshrl.u32 %v493, 16
        %v560 = vrot.slane %v558, 7
        %v561 = vshll.u32 %v493, 16
        %v563 = vor.u32 %v560, %v561
        %v564 = vrot.slane %v560, 4
        %v566 = vshrl.u32 %v494, 16
        %v568 = vrot.slane %v566, 7
        %v569 = vshll.u32 %v494, 16
        %v571 = vor.u32 %v568, %v569
        %v572 = vsel %vm522, %v564, %v571
        %v573 = vrot.slane %v568, 4
        %v575 = vshrl.u32 %v495, 16
        %v577 = vrot.slane %v575, 7
        %v578 = vshll.u32 %v495, 16
        %v580 = vor.u32 %v577, %v578
        %v581 = vrot.slane %v577, 4
        %v583 = vshrl.u32 %v496, 16
        %v585 = vrot.slane %v583, 7
        %v586 = vshll.u32 %v496, 16
        %v588 = vor.u32 %v585, %v586
        %v589 = vsel %vm522, %v581, %v588
        %v590 = vrot.slane %v585, 4
        %v592 = vshrl.u32 %v497, 16
        %v594 = vrot.slane %v592, 7
        %v595 = vshll.u32 %v497, 16
        %v597 = vor.u32 %v594, %v595
        %v598 = vrot.slane %v594, 4
        %v600 = vshrl.u32 %v498, 16
        %v602 = vrot.slane %v600, 7
        %v603 = vshll.u32 %v498, 16
        %v605 = vor.u32 %v602, %v603
        %v606 = vsel %vm522, %v598, %v605
        %v607 = vrot.slane %v602, 4
        %v609 = vshrl.u32 %v499, 16
        %v611 = vrot.slane %v609, 7
        %v612 = vshll.u32 %v499, 16
        %v614 = vor.u32 %v611, %v612
        %v615 = vrot.slane %v611, 4
        %v617 = vshrl.u32 %v500, 16
        %v619 = vrot.slane %v617, 7
        %v620 = vshll.u32 %v500, 16
        %v622 = vor.u32 %v619, %v620
        %v623 = vsel %vm522, %v615, %v622
        %v624 = vrot.slane %v619, 4
        %v626 = vshrl.u32 %v501, 16
        %v628 = vrot.slane %v626, 7
        %v629 = vshll.u32 %v501, 16
        %v631 = vor.u32 %v628, %v629
        %v632 = vrot.slane %v628, 4
        %v634 = vshrl.u32 %v502, 16
        %v636 = vrot.slane %v634, 7
        %v637 = vshll.u32 %v502, 16
        %v639 = vor.u32 %v636, %v637
        %v640 = vsel %vm522, %v632, %v639
        %v641 = vrot.slane %v636, 4
        %v643 = vshrl.u32 %v503, 16
        %v645 = vrot.slane %v643, 7
        %v646 = vshll.u32 %v503, 16
        %v648 = vor.u32 %v645, %v646
        %v649 = vrot.slane %v645, 4
        %v651 = vshrl.u32 %v504, 16
        %v653 = vrot.slane %v651, 7
        %v654 = vshll.u32 %v504, 16
        %v656 = vor.u32 %v653, %v654
        %v657 = vsel %vm522, %v649, %v656
        %v658 = vrot.slane %v653, 4
        %v660 = vshrl.u32 %v505, 16
        %v662 = vrot.slane %v660, 7
        %v663 = vshll.u32 %v505, 16
        %v665 = vor.u32 %v662, %v663
        %v666 = vrot.slane %v662, 4
        %v668 = vshrl.u32 %v506, 16
        %v670 = vrot.slane %v668, 7
        %v671 = vshll.u32 %v506, 16
        %v673 = vor.u32 %v670, %v671
        %v674 = vsel %vm522, %v666, %v673
        %v675 = vrot.slane %v670, 4
        %v677 = vshrl.u32 %v507, 16
        %v679 = vrot.slane %v677, 7
        %v680 = vshll.u32 %v507, 16
        %v682 = vor.u32 %v679, %v680
        %v683 = vrot.slane %v679, 4
        %v685 = vshrl.u32 %v508, 16
        %v687 = vrot.slane %v685, 7
        %v688 = vshll.u32 %v508, 16
        %v690 = vor.u32 %v687, %v688
        %v691 = vsel %vm522, %v683, %v690
        %v692 = vrot.slane %v687, 4
        %v694 = vshrl.u32 %v509, 16
        %v696 = vrot.slane %v694, 7
        %v697 = vshll.u32 %v509, 16
        %v699 = vor.u32 %v696, %v697
        %v700 = vrot.slane %v696, 4
        %v702 = vshrl.u32 %v510, 16
        %v704 = vrot.slane %v702, 7
        %v705 = vshll.u32 %v510, 16
        %v707 = vor.u32 %v704, %v705
        %v708 = vsel %vm522, %v700, %v707
        %v709 = vrot.slane %v704, 4
        %v711 = vshrl.u32 %v511, 16
        %v713 = vrot.slane %v711, 7
        %v714 = vshll.u32 %v511, 16
        %v716 = vor.u32 %v713, %v714
        %v717 = vrot.slane %v713, 4
        %v719 = vshrl.u32 %v512, 16
        %v721 = vrot.slane %v719, 7
        %v722 = vshll.u32 %v512, 16
        %v724 = vor.u32 %v721, %v722
        %v725 = vsel %vm522, %v717, %v724
        %v726 = vrot.slane %v721, 4
        %v728 = vshrl.u32 %v513, 16
        %v730 = vrot.slane %v728, 7
        %v731 = vshll.u32 %v513, 16
        %v733 = vor.u32 %v730, %v731
        %v734 = vrot.slane %v730, 4
        %v736 = vshrl.u32 %v514, 16
        %v738 = vrot.slane %v736, 7
        %v739 = vshll.u32 %v514, 16
        %v741 = vor.u32 %v738, %v739
        %v742 = vsel %vm522, %v734, %v741
        %v743 = vrot.slane %v738, 4
        %v745 = vshrl.u32 %v515, 16
        %v747 = vrot.slane %v745, 7
        %v748 = vshll.u32 %v515, 16
        %v750 = vor.u32 %v747, %v748
        %v751 = vrot.slane %v747, 4
        %v753 = vshrl.u32 %v516, 16
        %v755 = vrot.slane %v753, 7
        %v756 = vshll.u32 %v516, 16
        %v758 = vor.u32 %v755, %v756
        %v759 = vsel %vm522, %v751, %v758
        %v760 = vrot.slane %v755, 4
        %v762 = vshrl.u32 %v517, 16
        %v764 = vrot.slane %v762, 7
        %v765 = vshll.u32 %v517, 16
        %v767 = vor.u32 %v764, %v765
        %v768 = vrot.slane %v764, 4
        %v770 = vshrl.u32 %v518, 16
        %v772 = vrot.slane %v770, 7
        %v773 = vshll.u32 %v518, 16
        %v775 = vor.u32 %v772, %v773
        %v776 = vsel %vm522, %v768, %v775
        %v777 = vrot.slane %v772, 4
        %v779 = vshrl.u32 %v519, 16
        %v781 = vrot.slane %v779, 7
        %v782 = vshll.u32 %v519, 16
        %v784 = vor.u32 %v781, %v782
        %v785 = vrot.slane %v781, 4
        %v787 = vshrl.u32 %v520, 16
        %v789 = vrot.slane %v787, 7
        %v790 = vshll.u32 %v520, 16
        %v792 = vor.u32 %v789, %v790
        %v793 = vsel %vm522, %v785, %v792
        %v794 = vrot.slane %v789, 4
        %s843 = scalar_lea.vmem [#allocation2], 12
        %vm844 = vcmask 1043456
        %vm845 = vmand %vm844, %vm337
        %v846 = vld [vmem:[%s843] sm:$0xf]
        %v847 = vsel %vm845, %v529, %v846
        %848 = vst [vmem:[%s843] sm:$0xf] %v847
        %849 = vst [vmem:[%s843 + $0x4] sm:$0xf] %v538
        %v850 = vld [vmem:[%s843 + $0x8] sm:$0x1]
        %v851 = vsel %vm282, %v539, %v850
        %852 = vst [vmem:[%s843 + $0x8] sm:$0x1] %v851
        %v853 = vld [vmem:[%s843 + $0xc] sm:$0xf]
        %v854 = vsel %vm845, %v546, %v853
        %855 = vst [vmem:[%s843 + $0xc] sm:$0xf] %v854
        %856 = vst [vmem:[%s843 + $0x10] sm:$0xf] %v555
        %v857 = vld [vmem:[%s843 + $0x14] sm:$0x1]
        %v858 = vsel %vm282, %v556, %v857
        %859 = vst [vmem:[%s843 + $0x14] sm:$0x1] %v858
        %v860 = vld [vmem:[%s843 + $0x18] sm:$0xf]
        %v861 = vsel %vm845, %v563, %v860
        %862 = vst [vmem:[%s843 + $0x18] sm:$0xf] %v861
        %863 = vst [vmem:[%s843 + $0x1c] sm:$0xf] %v572
        %v864 = vld [vmem:[%s843 + $0x20] sm:$0x1]
        %v865 = vsel %vm282, %v573, %v864
        %866 = vst [vmem:[%s843 + $0x20] sm:$0x1] %v865
        %v867 = vld [vmem:[%s843 + $0x24] sm:$0xf]
        %v868 = vsel %vm845, %v580, %v867
        %869 = vst [vmem:[%s843 + $0x24] sm:$0xf] %v868
        %870 = vst [vmem:[%s843 + $0x28] sm:$0xf] %v589
        %v871 = vld [vmem:[%s843 + $0x2c] sm:$0x1]
        %v872 = vsel %vm282, %v590, %v871
        %873 = vst [vmem:[%s843 + $0x2c] sm:$0x1] %v872
        %v874 = vld [vmem:[%s843 + $0x30] sm:$0xf]
        %v875 = vsel %vm845, %v597, %v874
        %876 = vst [vmem:[%s843 + $0x30] sm:$0xf] %v875
        %877 = vst [vmem:[%s843 + $0x34] sm:$0xf] %v606
        %v878 = vld [vmem:[%s843 + $0x38] sm:$0x1]
        %v879 = vsel %vm282, %v607, %v878
        %880 = vst [vmem:[%s843 + $0x38] sm:$0x1] %v879
        %v881 = vld [vmem:[%s843 + $0x3c] sm:$0xf]
        %v882 = vsel %vm845, %v614, %v881
        %883 = vst [vmem:[%s843 + $0x3c] sm:$0xf] %v882
        %884 = vst [vmem:[%s843 + $0x40] sm:$0xf] %v623
        %v885 = vld [vmem:[%s843 + $0x44] sm:$0x1]
        %v886 = vsel %vm282, %v624, %v885
        %887 = vst [vmem:[%s843 + $0x44] sm:$0x1] %v886
        %v888 = vld [vmem:[%s843 + $0x48] sm:$0xf]
        %v889 = vsel %vm845, %v631, %v888
        %890 = vst [vmem:[%s843 + $0x48] sm:$0xf] %v889
        %891 = vst [vmem:[%s843 + $0x4c] sm:$0xf] %v640
        %v892 = vld [vmem:[%s843 + $0x50] sm:$0x1]
        %v893 = vsel %vm282, %v641, %v892
        %894 = vst [vmem:[%s843 + $0x50] sm:$0x1] %v893
        %v895 = vld [vmem:[%s843 + $0x54] sm:$0xf]
        %v896 = vsel %vm845, %v648, %v895
        %897 = vst [vmem:[%s843 + $0x54] sm:$0xf] %v896
        %898 = vst [vmem:[%s843 + $0x58] sm:$0xf] %v657
        %v899 = vld [vmem:[%s843 + $0x5c] sm:$0x1]
        %v900 = vsel %vm282, %v658, %v899
        %901 = vst [vmem:[%s843 + $0x5c] sm:$0x1] %v900
        %v902 = vld [vmem:[%s843 + $0x60] sm:$0xf]
        %v903 = vsel %vm845, %v665, %v902
        %904 = vst [vmem:[%s843 + $0x60] sm:$0xf] %v903
        %905 = vst [vmem:[%s843 + $0x64] sm:$0xf] %v674
        %v906 = vld [vmem:[%s843 + $0x68] sm:$0x1]
        %v907 = vsel %vm282, %v675, %v906
        %908 = vst [vmem:[%s843 + $0x68] sm:$0x1] %v907
        %v909 = vld [vmem:[%s843 + $0x6c] sm:$0xf]
        %v910 = vsel %vm845, %v682, %v909
        %911 = vst [vmem:[%s843 + $0x6c] sm:$0xf] %v910
        %912 = vst [vmem:[%s843 + $0x70] sm:$0xf] %v691
        %v913 = vld [vmem:[%s843 + $0x74] sm:$0x1]
        %v914 = vsel %vm282, %v692, %v913
        %915 = vst [vmem:[%s843 + $0x74] sm:$0x1] %v914
        %v916 = vld [vmem:[%s843 + $0x78] sm:$0xf]
        %v917 = vsel %vm845, %v699, %v916
        %918 = vst [vmem:[%s843 + $0x78] sm:$0xf] %v917
        %919 = vst [vmem:[%s843 + $0x7c] sm:$0xf] %v708
        %v920 = vld [vmem:[%s843 + $0x80] sm:$0x1]
        %v921 = vsel %vm282, %v709, %v920
        %922 = vst [vmem:[%s843 + $0x80] sm:$0x1] %v921
        %v923 = vld [vmem:[%s843 + $0x84] sm:$0xf]
        %v924 = vsel %vm845, %v716, %v923
        %925 = vst [vmem:[%s843 + $0x84] sm:$0xf] %v924
        %926 = vst [vmem:[%s843 + $0x88] sm:$0xf] %v725
        %v927 = vld [vmem:[%s843 + $0x8c] sm:$0x1]
        %v928 = vsel %vm282, %v726, %v927
        %929 = vst [vmem:[%s843 + $0x8c] sm:$0x1] %v928
        %v930 = vld [vmem:[%s843 + $0x90] sm:$0xf]
        %v931 = vsel %vm845, %v733, %v930
        %932 = vst [vmem:[%s843 + $0x90] sm:$0xf] %v931
        %933 = vst [vmem:[%s843 + $0x94] sm:$0xf] %v742
        %v934 = vld [vmem:[%s843 + $0x98] sm:$0x1]
        %v935 = vsel %vm282, %v743, %v934
        %936 = vst [vmem:[%s843 + $0x98] sm:$0x1] %v935
        %v937 = vld [vmem:[%s843 + $0x9c] sm:$0xf]
        %v938 = vsel %vm845, %v750, %v937
        %939 = vst [vmem:[%s843 + $0x9c] sm:$0xf] %v938
        %940 = vst [vmem:[%s843 + $0xa0] sm:$0xf] %v759
        %v941 = vld [vmem:[%s843 + $0xa4] sm:$0x1]
        %v942 = vsel %vm282, %v760, %v941
        %943 = vst [vmem:[%s843 + $0xa4] sm:$0x1] %v942
        %v944 = vld [vmem:[%s843 + $0xa8] sm:$0xf]
        %v945 = vsel %vm845, %v767, %v944
        %946 = vst [vmem:[%s843 + $0xa8] sm:$0xf] %v945
        %947 = vst [vmem:[%s843 + $0xac] sm:$0xf] %v776
        %v948 = vld [vmem:[%s843 + $0xb0] sm:$0x1]
        %v949 = vsel %vm282, %v777, %v948
        %950 = vst [vmem:[%s843 + $0xb0] sm:$0x1] %v949
        %v951 = vld [vmem:[%s843 + $0xb4] sm:$0xf]
        %v952 = vsel %vm845, %v784, %v951
        %953 = vst [vmem:[%s843 + $0xb4] sm:$0xf] %v952
        %954 = vst [vmem:[%s843 + $0xb8] sm:$0xf] %v793
        %v955 = vld [vmem:[%s843 + $0xbc] sm:$0x1]
        %v956 = vsel %vm282, %v794, %v955
        %957 = vst [vmem:[%s843 + $0xbc] sm:$0x1] %v956
        %v958 = vld [vmem:[#allocation2] sm:$0xf]
        %v959 = vld [vmem:[#allocation2 + $0x4] sm:$0xf]
        %v960 = vld [vmem:[#allocation2 + $0xc] sm:$0xf]
        %v961 = vld [vmem:[#allocation2 + $0x10] sm:$0xf]
        %v962 = vld [vmem:[#allocation2 + $0x18] sm:$0xf]
        %v963 = vld [vmem:[#allocation2 + $0x1c] sm:$0xf]
        %v964 = vld [vmem:[#allocation2 + $0x24] sm:$0xf]
        %v965 = vld [vmem:[#allocation2 + $0x28] sm:$0xf]
        %v966 = vld [vmem:[#allocation2 + $0x30] sm:$0xf]
        %v967 = vld [vmem:[#allocation2 + $0x34] sm:$0xf]
        %v968 = vld [vmem:[#allocation2 + $0x3c] sm:$0xf]
        %v969 = vld [vmem:[#allocation2 + $0x40] sm:$0xf]
        %v970 = vld [vmem:[#allocation2 + $0x48] sm:$0xf]
        %v971 = vld [vmem:[#allocation2 + $0x4c] sm:$0xf]
        %v972 = vld [vmem:[#allocation2 + $0x54] sm:$0xf]
        %v973 = vld [vmem:[#allocation2 + $0x58] sm:$0xf]
        %v974 = vld [vmem:[#allocation2 + $0x60] sm:$0xf]
        %v975 = vld [vmem:[#allocation2 + $0x64] sm:$0xf]
        %v976 = vld [vmem:[#allocation2 + $0x6c] sm:$0xf]
        %v977 = vld [vmem:[#allocation2 + $0x70] sm:$0xf]
        %v978 = vld [vmem:[#allocation2 + $0x78] sm:$0xf]
        %v979 = vld [vmem:[#allocation2 + $0x7c] sm:$0xf]
        %v980 = vld [vmem:[#allocation2 + $0x84] sm:$0xf]
        %v981 = vld [vmem:[#allocation2 + $0x88] sm:$0xf]
        %v982 = vld [vmem:[#allocation2 + $0x90] sm:$0xf]
        %v983 = vld [vmem:[#allocation2 + $0x94] sm:$0xf]
        %v984 = vld [vmem:[#allocation2 + $0x9c] sm:$0xf]
        %v985 = vld [vmem:[#allocation2 + $0xa0] sm:$0xf]
        %v986 = vld [vmem:[#allocation2 + $0xa8] sm:$0xf]
        %v987 = vld [vmem:[#allocation2 + $0xac] sm:$0xf]
        %v988 = vld [vmem:[#allocation2 + $0xb4] sm:$0xf]
        %v989 = vld [vmem:[#allocation2 + $0xb8] sm:$0xf]
        %v1022 = vunpack.c.l.b16 %v958
        %v1023 = vunpack.c.l.b16 %v959
        %v1024 = vunpack.c.l.b16 %v960
        %v1025 = vunpack.c.l.b16 %v961
        %v1026 = vunpack.c.l.b16 %v962
        %v1027 = vunpack.c.l.b16 %v963
        %v1028 = vunpack.c.l.b16 %v964
        %v1029 = vunpack.c.l.b16 %v965
        %v1030 = vunpack.c.l.b16 %v966
        %v1031 = vunpack.c.l.b16 %v967
        %v1032 = vunpack.c.l.b16 %v968
        %v1033 = vunpack.c.l.b16 %v969
        %v1034 = vunpack.c.l.b16 %v970
        %v1035 = vunpack.c.l.b16 %v971
        %v1036 = vunpack.c.l.b16 %v972
        %v1037 = vunpack.c.l.b16 %v973
        %v1038 = vunpack.c.l.b16 %v974
        %v1039 = vunpack.c.l.b16 %v975
        %v1040 = vunpack.c.l.b16 %v976
        %v1041 = vunpack.c.l.b16 %v977
        %v1042 = vunpack.c.l.b16 %v978
        %v1043 = vunpack.c.l.b16 %v979
        %v1044 = vunpack.c.l.b16 %v980
        %v1045 = vunpack.c.l.b16 %v981
        %v1046 = vunpack.c.l.b16 %v982
        %v1047 = vunpack.c.l.b16 %v983
        %v1048 = vunpack.c.l.b16 %v984
        %v1049 = vunpack.c.l.b16 %v985
        %v1050 = vunpack.c.l.b16 %v986
        %v1051 = vunpack.c.l.b16 %v987
        %v1052 = vunpack.c.l.b16 %v988
        %v1053 = vunpack.c.l.b16 %v989
        %v1054 = vpack.c.b16 %v1023, %v1022
        %v1055 = vpack.c.b16 %v1025, %v1024
        %v1056 = vpack.c.b16 %v1027, %v1026
        %v1057 = vpack.c.b16 %v1029, %v1028
        %v1058 = vpack.c.b16 %v1031, %v1030
        %v1059 = vpack.c.b16 %v1033, %v1032
        %v1060 = vpack.c.b16 %v1035, %v1034
        %v1061 = vpack.c.b16 %v1037, %v1036
        %v1062 = vpack.c.b16 %v1039, %v1038
        %v1063 = vpack.c.b16 %v1041, %v1040
        %v1064 = vpack.c.b16 %v1043, %v1042
        %v1065 = vpack.c.b16 %v1045, %v1044
        %v1066 = vpack.c.b16 %v1047, %v1046
        %v1067 = vpack.c.b16 %v1049, %v1048
        %v1068 = vpack.c.b16 %v1051, %v1050
        %v1069 = vpack.c.b16 %v1053, %v1052
        %1086 = vst [vmem:[#allocation3] sm:$0xff] %v1054
        %1087 = vst [vmem:[#allocation3 + $0x18] sm:$0xff] %v1055
        %1088 = vst [vmem:[#allocation3 + $0x30] sm:$0xff] %v1056
        %1089 = vst [vmem:[#allocation3 + $0x48] sm:$0xff] %v1057
        %1090 = vst [vmem:[#allocation3 + $0x60] sm:$0xff] %v1058
        %1091 = vst [vmem:[#allocation3 + $0x78] sm:$0xff] %v1059
        %1092 = vst [vmem:[#allocation3 + $0x90] sm:$0xff] %v1060
        %1093 = vst [vmem:[#allocation3 + $0xa8] sm:$0xff] %v1061
        %1094 = vst [vmem:[#allocation3 + $0xc0] sm:$0xff] %v1062
        %1095 = vst [vmem:[#allocation3 + $0xd8] sm:$0xff] %v1063
        %1096 = vst [vmem:[#allocation3 + $0xf0] sm:$0xff] %v1064
        %1097 = vst [vmem:[#allocation3 + $0x108] sm:$0xff] %v1065
        %1098 = vst [vmem:[#allocation3 + $0x120] sm:$0xff] %v1066
        %1099 = vst [vmem:[#allocation3 + $0x138] sm:$0xff] %v1067
        %1100 = vst [vmem:[#allocation3 + $0x150] sm:$0xff] %v1068
        %1101 = vst [vmem:[#allocation3 + $0x168] sm:$0xff] %v1069
        %v1102 = vld [vmem:[#allocation2] sm:$0xf]
        %v1103 = vld [vmem:[#allocation2 + $0x4] sm:$0xf]
        %v1104 = vld [vmem:[#allocation2 + $0x8] sm:$0x1]
        %v1105 = vld [vmem:[#allocation2 + $0xc] sm:$0xf]
        %v1106 = vld [vmem:[#allocation2 + $0x10] sm:$0xf]
        %v1107 = vld [vmem:[#allocation2 + $0x14] sm:$0x1]
        %v1108 = vld [vmem:[#allocation2 + $0x18] sm:$0xf]
        %v1109 = vld [vmem:[#allocation2 + $0x1c] sm:$0xf]
        %v1110 = vld [vmem:[#allocation2 + $0x20] sm:$0x1]
        %v1111 = vld [vmem:[#allocation2 + $0x24] sm:$0xf]
        %v1112 = vld [vmem:[#allocation2 + $0x28] sm:$0xf]
        %v1113 = vld [vmem:[#allocation2 + $0x2c] sm:$0x1]
        %v1114 = vld [vmem:[#allocation2 + $0x30] sm:$0xf]
        %v1115 = vld [vmem:[#allocation2 + $0x34] sm:$0xf]
        %v1116 = vld [vmem:[#allocation2 + $0x38] sm:$0x1]
        %v1117 = vld [vmem:[#allocation2 + $0x3c] sm:$0xf]
        %v1118 = vld [vmem:[#allocation2 + $0x40] sm:$0xf]
        %v1119 = vld [vmem:[#allocation2 + $0x44] sm:$0x1]
        %v1120 = vld [vmem:[#allocation2 + $0x48] sm:$0xf]
        %v1121 = vld [vmem:[#allocation2 + $0x4c] sm:$0xf]
        %v1122 = vld [vmem:[#allocation2 + $0x50] sm:$0x1]
        %v1123 = vld [vmem:[#allocation2 + $0x54] sm:$0xf]
        %v1124 = vld [vmem:[#allocation2 + $0x58] sm:$0xf]
        %v1125 = vld [vmem:[#allocation2 + $0x5c] sm:$0x1]
        %v1126 = vld [vmem:[#allocation2 + $0x60] sm:$0xf]
        %v1127 = vld [vmem:[#allocation2 + $0x64] sm:$0xf]
        %v1128 = vld [vmem:[#allocation2 + $0x68] sm:$0x1]
        %v1129 = vld [vmem:[#allocation2 + $0x6c] sm:$0xf]
        %v1130 = vld [vmem:[#allocation2 + $0x70] sm:$0xf]
        %v1131 = vld [vmem:[#allocation2 + $0x74] sm:$0x1]
        %v1132 = vld [vmem:[#allocation2 + $0x78] sm:$0xf]
        %v1133 = vld [vmem:[#allocation2 + $0x7c] sm:$0xf]
        %v1134 = vld [vmem:[#allocation2 + $0x80] sm:$0x1]
        %v1135 = vld [vmem:[#allocation2 + $0x84] sm:$0xf]
        %v1136 = vld [vmem:[#allocation2 + $0x88] sm:$0xf]
        %v1137 = vld [vmem:[#allocation2 + $0x8c] sm:$0x1]
        %v1138 = vld [vmem:[#allocation2 + $0x90] sm:$0xf]
        %v1139 = vld [vmem:[#allocation2 + $0x94] sm:$0xf]
        %v1140 = vld [vmem:[#allocation2 + $0x98] sm:$0x1]
        %v1141 = vld [vmem:[#allocation2 + $0x9c] sm:$0xf]
        %v1142 = vld [vmem:[#allocation2 + $0xa0] sm:$0xf]
        %v1143 = vld [vmem:[#allocation2 + $0xa4] sm:$0x1]
        %v1144 = vld [vmem:[#allocation2 + $0xa8] sm:$0xf]
        %v1145 = vld [vmem:[#allocation2 + $0xac] sm:$0xf]
        %v1146 = vld [vmem:[#allocation2 + $0xb0] sm:$0x1]
        %v1147 = vld [vmem:[#allocation2 + $0xb4] sm:$0xf]
        %v1148 = vld [vmem:[#allocation2 + $0xb8] sm:$0xf]
        %v1149 = vld [vmem:[#allocation2 + $0xbc] sm:$0x1]
        %v1198 = vunpack.c.l.b16 %v1102
        %v1199 = vunpack.c.l.b16 %v1103
        %v1200 = vunpack.c.l.b16 %v1104
        %v1201 = vunpack.c.l.b16 %v1105
        %v1202 = vunpack.c.l.b16 %v1106
        %v1203 = vunpack.c.l.b16 %v1107
        %v1204 = vunpack.c.l.b16 %v1108
        %v1205 = vunpack.c.l.b16 %v1109
        %v1206 = vunpack.c.l.b16 %v1110
        %v1207 = vunpack.c.l.b16 %v1111
        %v1208 = vunpack.c.l.b16 %v1112
        %v1209 = vunpack.c.l.b16 %v1113
        %v1210 = vunpack.c.l.b16 %v1114
        %v1211 = vunpack.c.l.b16 %v1115
        %v1212 = vunpack.c.l.b16 %v1116
        %v1213 = vunpack.c.l.b16 %v1117
        %v1214 = vunpack.c.l.b16 %v1118
        %v1215 = vunpack.c.l.b16 %v1119
        %v1216 = vunpack.c.l.b16 %v1120
        %v1217 = vunpack.c.l.b16 %v1121
        %v1218 = vunpack.c.l.b16 %v1122
        %v1219 = vunpack.c.l.b16 %v1123
        %v1220 = vunpack.c.l.b16 %v1124
        %v1221 = vunpack.c.l.b16 %v1125
        %v1222 = vunpack.c.l.b16 %v1126
        %v1223 = vunpack.c.l.b16 %v1127
        %v1224 = vunpack.c.l.b16 %v1128
        %v1225 = vunpack.c.l.b16 %v1129
        %v1226 = vunpack.c.l.b16 %v1130
        %v1227 = vunpack.c.l.b16 %v1131
        %v1228 = vunpack.c.l.b16 %v1132
        %v1229 = vunpack.c.l.b16 %v1133
        %v1230 = vunpack.c.l.b16 %v1134
        %v1231 = vunpack.c.l.b16 %v1135
        %v1232 = vunpack.c.l.b16 %v1136
        %v1233 = vunpack.c.l.b16 %v1137
        %v1234 = vunpack.c.l.b16 %v1138
        %v1235 = vunpack.c.l.b16 %v1139
        %v1236 = vunpack.c.l.b16 %v1140
        %v1237 = vunpack.c.l.b16 %v1141
        %v1238 = vunpack.c.l.b16 %v1142
        %v1239 = vunpack.c.l.b16 %v1143
        %v1240 = vunpack.c.l.b16 %v1144
        %v1241 = vunpack.c.l.b16 %v1145
        %v1242 = vunpack.c.l.b16 %v1146
        %v1243 = vunpack.c.l.b16 %v1147
        %v1244 = vunpack.c.l.b16 %v1148
        %v1245 = vunpack.c.l.b16 %v1149
        %v1246 = vpack.c.b16 %v1199, %v1198
        %v1247 = vpack.c.b16 %v1200, %v1200
        %v1248 = vpack.c.b16 %v1202, %v1201
        %v1249 = vpack.c.b16 %v1203, %v1203
        %v1250 = vpack.c.b16 %v1205, %v1204
        %v1251 = vpack.c.b16 %v1206, %v1206
        %v1252 = vpack.c.b16 %v1208, %v1207
        %v1253 = vpack.c.b16 %v1209, %v1209
        %v1254 = vpack.c.b16 %v1211, %v1210
        %v1255 = vpack.c.b16 %v1212, %v1212
        %v1256 = vpack.c.b16 %v1214, %v1213
        %v1257 = vpack.c.b16 %v1215, %v1215
        %v1258 = vpack.c.b16 %v1217, %v1216
        %v1259 = vpack.c.b16 %v1218, %v1218
        %v1260 = vpack.c.b16 %v1220, %v1219
        %v1261 = vpack.c.b16 %v1221, %v1221
        %v1262 = vpack.c.b16 %v1223, %v1222
        %v1263 = vpack.c.b16 %v1224, %v1224
        %v1264 = vpack.c.b16 %v1226, %v1225
        %v1265 = vpack.c.b16 %v1227, %v1227
        %v1266 = vpack.c.b16 %v1229, %v1228
        %v1267 = vpack.c.b16 %v1230, %v1230
        %v1268 = vpack.c.b16 %v1232, %v1231
        %v1269 = vpack.c.b16 %v1233, %v1233
        %v1270 = vpack.c.b16 %v1235, %v1234
        %v1271 = vpack.c.b16 %v1236, %v1236
        %v1272 = vpack.c.b16 %v1238, %v1237
        %v1273 = vpack.c.b16 %v1239, %v1239
        %v1274 = vpack.c.b16 %v1241, %v1240
        %v1275 = vpack.c.b16 %v1242, %v1242
        %v1276 = vpack.c.b16 %v1244, %v1243
        %v1277 = vpack.c.b16 %v1245, %v1245
        %vm1278 = vsmask.f32 7424
        %v1280 = vshrl.u32 %v1246, 16
        %v1282 = vshll.u32 %v1246, 16
        %v1284 = vrot.slane %v1282, 1
        %v1285 = vor.u32 %v1280, %v1284
        %v1287 = vshll.u32 %v1247, 16
        %v1289 = vrot.slane %v1287, 1
        %v1290 = vsel %vm1278, %v1285, %v1289
        %v1292 = vshrl.u32 %v1248, 16
        %v1294 = vshll.u32 %v1248, 16
        %v1296 = vrot.slane %v1294, 1
        %v1297 = vor.u32 %v1292, %v1296
        %v1299 = vshll.u32 %v1249, 16
        %v1301 = vrot.slane %v1299, 1
        %v1302 = vsel %vm1278, %v1297, %v1301
        %v1304 = vshrl.u32 %v1250, 16
        %v1306 = vshll.u32 %v1250, 16
        %v1308 = vrot.slane %v1306, 1
        %v1309 = vor.u32 %v1304, %v1308
        %v1311 = vshll.u32 %v1251, 16
        %v1313 = vrot.slane %v1311, 1
        %v1314 = vsel %vm1278, %v1309, %v1313
        %v1316 = vshrl.u32 %v1252, 16
        %v1318 = vshll.u32 %v1252, 16
        %v1320 = vrot.slane %v1318, 1
        %v1321 = vor.u32 %v1316, %v1320
        %v1323 = vshll.u32 %v1253, 16
        %v1325 = vrot.slane %v1323, 1
        %v1326 = vsel %vm1278, %v1321, %v1325
        %v1328 = vshrl.u32 %v1254, 16
        %v1330 = vshll.u32 %v1254, 16
        %v1332 = vrot.slane %v1330, 1
        %v1333 = vor.u32 %v1328, %v1332
        %v1335 = vshll.u32 %v1255, 16
        %v1337 = vrot.slane %v1335, 1
        %v1338 = vsel %vm1278, %v1333, %v1337
        %v1340 = vshrl.u32 %v1256, 16
        %v1342 = vshll.u32 %v1256, 16
        %v1344 = vrot.slane %v1342, 1
        %v1345 = vor.u32 %v1340, %v1344
        %v1347 = vshll.u32 %v1257, 16
        %v1349 = vrot.slane %v1347, 1
        %v1350 = vsel %vm1278, %v1345, %v1349
        %v1352 = vshrl.u32 %v1258, 16
        %v1354 = vshll.u32 %v1258, 16
        %v1356 = vrot.slane %v1354, 1
        %v1357 = vor.u32 %v1352, %v1356
        %v1359 = vshll.u32 %v1259, 16
        %v1361 = vrot.slane %v1359, 1
        %v1362 = vsel %vm1278, %v1357, %v1361
        %v1364 = vshrl.u32 %v1260, 16
        %v1366 = vshll.u32 %v1260, 16
        %v1368 = vrot.slane %v1366, 1
        %v1369 = vor.u32 %v1364, %v1368
        %v1371 = vshll.u32 %v1261, 16
        %v1373 = vrot.slane %v1371, 1
        %v1374 = vsel %vm1278, %v1369, %v1373
        %v1376 = vshrl.u32 %v1262, 16
        %v1378 = vshll.u32 %v1262, 16
        %v1380 = vrot.slane %v1378, 1
        %v1381 = vor.u32 %v1376, %v1380
        %v1383 = vshll.u32 %v1263, 16
        %v1385 = vrot.slane %v1383, 1
        %v1386 = vsel %vm1278, %v1381, %v1385
        %v1388 = vshrl.u32 %v1264, 16
        %v1390 = vshll.u32 %v1264, 16
        %v1392 = vrot.slane %v1390, 1
        %v1393 = vor.u32 %v1388, %v1392
        %v1395 = vshll.u32 %v1265, 16
        %v1397 = vrot.slane %v1395, 1
        %v1398 = vsel %vm1278, %v1393, %v1397
        %v1400 = vshrl.u32 %v1266, 16
        %v1402 = vshll.u32 %v1266, 16
        %v1404 = vrot.slane %v1402, 1
        %v1405 = vor.u32 %v1400, %v1404
        %v1407 = vshll.u32 %v1267, 16
        %v1409 = vrot.slane %v1407, 1
        %v1410 = vsel %vm1278, %v1405, %v1409
        %v1412 = vshrl.u32 %v1268, 16
        %v1414 = vshll.u32 %v1268, 16
        %v1416 = vrot.slane %v1414, 1
        %v1417 = vor.u32 %v1412, %v1416
        %v1419 = vshll.u32 %v1269, 16
        %v1421 = vrot.slane %v1419, 1
        %v1422 = vsel %vm1278, %v1417, %v1421
        %v1424 = vshrl.u32 %v1270, 16
        %v1426 = vshll.u32 %v1270, 16
        %v1428 = vrot.slane %v1426, 1
        %v1429 = vor.u32 %v1424, %v1428
        %v1431 = vshll.u32 %v1271, 16
        %v1433 = vrot.slane %v1431, 1
        %v1434 = vsel %vm1278, %v1429, %v1433
        %v1436 = vshrl.u32 %v1272, 16
        %v1438 = vshll.u32 %v1272, 16
        %v1440 = vrot.slane %v1438, 1
        %v1441 = vor.u32 %v1436, %v1440
        %v1443 = vshll.u32 %v1273, 16
        %v1445 = vrot.slane %v1443, 1
        %v1446 = vsel %vm1278, %v1441, %v1445
        %v1448 = vshrl.u32 %v1274, 16
        %v1450 = vshll.u32 %v1274, 16
        %v1452 = vrot.slane %v1450, 1
        %v1453 = vor.u32 %v1448, %v1452
        %v1455 = vshll.u32 %v1275, 16
        %v1457 = vrot.slane %v1455, 1
        %v1458 = vsel %vm1278, %v1453, %v1457
        %v1460 = vshrl.u32 %v1276, 16
        %v1462 = vshll.u32 %v1276, 16
        %v1464 = vrot.slane %v1462, 1
        %v1465 = vor.u32 %v1460, %v1464
        %v1467 = vshll.u32 %v1277, 16
        %v1469 = vrot.slane %v1467, 1
        %v1470 = vsel %vm1278, %v1465, %v1469
        %1487 = vst [vmem:[#allocation3 + $0x8] sm:$0xff] %v1290
        %1488 = vst [vmem:[#allocation3 + $0x20] sm:$0xff] %v1302
        %1489 = vst [vmem:[#allocation3 + $0x38] sm:$0xff] %v1314
        %1490 = vst [vmem:[#allocation3 + $0x50] sm:$0xff] %v1326
        %1491 = vst [vmem:[#allocation3 + $0x68] sm:$0xff] %v1338
        %1492 = vst [vmem:[#allocation3 + $0x80] sm:$0xff] %v1350
        %1493 = vst [vmem:[#allocation3 + $0x98] sm:$0xff] %v1362
        %1494 = vst [vmem:[#allocation3 + $0xb0] sm:$0xff] %v1374
        %1495 = vst [vmem:[#allocation3 + $0xc8] sm:$0xff] %v1386
        %1496 = vst [vmem:[#allocation3 + $0xe0] sm:$0xff] %v1398
        %1497 = vst [vmem:[#allocation3 + $0xf8] sm:$0xff] %v1410
        %1498 = vst [vmem:[#allocation3 + $0x110] sm:$0xff] %v1422
        %1499 = vst [vmem:[#allocation3 + $0x128] sm:$0xff] %v1434
        %1500 = vst [vmem:[#allocation3 + $0x140] sm:$0xff] %v1446
        %1501 = vst [vmem:[#allocation3 + $0x158] sm:$0xff] %v1458
        %1502 = vst [vmem:[#allocation3 + $0x170] sm:$0xff] %v1470
        %v1503 = vld [vmem:[#allocation2] sm:$0xe]
        %v1504 = vld [vmem:[#allocation2 + $0x4] sm:$0xf]
        %v1505 = vld [vmem:[#allocation2 + $0x8] sm:$0x1]
        %v1506 = vld [vmem:[#allocation2 + $0xc] sm:$0xe]
        %v1507 = vld [vmem:[#allocation2 + $0x10] sm:$0xf]
        %v1508 = vld [vmem:[#allocation2 + $0x14] sm:$0x1]
        %v1509 = vld [vmem:[#allocation2 + $0x18] sm:$0xe]
        %v1510 = vld [vmem:[#allocation2 + $0x1c] sm:$0xf]
        %v1511 = vld [vmem:[#allocation2 + $0x20] sm:$0x1]
        %v1512 = vld [vmem:[#allocation2 + $0x24] sm:$0xe]
        %v1513 = vld [vmem:[#allocation2 + $0x28] sm:$0xf]
        %v1514 = vld [vmem:[#allocation2 + $0x2c] sm:$0x1]
        %v1515 = vld [vmem:[#allocation2 + $0x30] sm:$0xe]
        %v1516 = vld [vmem:[#allocation2 + $0x34] sm:$0xf]
        %v1517 = vld [vmem:[#allocation2 + $0x38] sm:$0x1]
        %v1518 = vld [vmem:[#allocation2 + $0x3c] sm:$0xe]
        %v1519 = vld [vmem:[#allocation2 + $0x40] sm:$0xf]
        %v1520 = vld [vmem:[#allocation2 + $0x44] sm:$0x1]
        %v1521 = vld [vmem:[#allocation2 + $0x48] sm:$0xe]
        %v1522 = vld [vmem:[#allocation2 + $0x4c] sm:$0xf]
        %v1523 = vld [vmem:[#allocation2 + $0x50] sm:$0x1]
        %v1524 = vld [vmem:[#allocation2 + $0x54] sm:$0xe]
        %v1525 = vld [vmem:[#allocation2 + $0x58] sm:$0xf]
        %v1526 = vld [vmem:[#allocation2 + $0x5c] sm:$0x1]
        %v1527 = vld [vmem:[#allocation2 + $0x60] sm:$0xe]
        %v1528 = vld [vmem:[#allocation2 + $0x64] sm:$0xf]
        %v1529 = vld [vmem:[#allocation2 + $0x68] sm:$0x1]
        %v1530 = vld [vmem:[#allocation2 + $0x6c] sm:$0xe]
        %v1531 = vld [vmem:[#allocation2 + $0x70] sm:$0xf]
        %v1532 = vld [vmem:[#allocation2 + $0x74] sm:$0x1]
        %v1533 = vld [vmem:[#allocation2 + $0x78] sm:$0xe]
        %v1534 = vld [vmem:[#allocation2 + $0x7c] sm:$0xf]
        %v1535 = vld [vmem:[#allocation2 + $0x80] sm:$0x1]
        %v1536 = vld [vmem:[#allocation2 + $0x84] sm:$0xe]
        %v1537 = vld [vmem:[#allocation2 + $0x88] sm:$0xf]
        %v1538 = vld [vmem:[#allocation2 + $0x8c] sm:$0x1]
        %v1539 = vld [vmem:[#allocation2 + $0x90] sm:$0xe]
        %v1540 = vld [vmem:[#allocation2 + $0x94] sm:$0xf]
        %v1541 = vld [vmem:[#allocation2 + $0x98] sm:$0x1]
        %v1542 = vld [vmem:[#allocation2 + $0x9c] sm:$0xe]
        %v1543 = vld [vmem:[#allocation2 + $0xa0] sm:$0xf]
        %v1544 = vld [vmem:[#allocation2 + $0xa4] sm:$0x1]
        %v1545 = vld [vmem:[#allocation2 + $0xa8] sm:$0xe]
        %v1546 = vld [vmem:[#allocation2 + $0xac] sm:$0xf]
        %v1547 = vld [vmem:[#allocation2 + $0xb0] sm:$0x1]
        %v1548 = vld [vmem:[#allocation2 + $0xb4] sm:$0xe]
        %v1549 = vld [vmem:[#allocation2 + $0xb8] sm:$0xf]
        %v1550 = vld [vmem:[#allocation2 + $0xbc] sm:$0x1]
        %v1599 = vunpack.c.l.b16 %v1503
        %v1600 = vunpack.c.l.b16 %v1504
        %v1601 = vunpack.c.l.b16 %v1505
        %v1602 = vunpack.c.l.b16 %v1506
        %v1603 = vunpack.c.l.b16 %v1507
        %v1604 = vunpack.c.l.b16 %v1508
        %v1605 = vunpack.c.l.b16 %v1509
        %v1606 = vunpack.c.l.b16 %v1510
        %v1607 = vunpack.c.l.b16 %v1511
        %v1608 = vunpack.c.l.b16 %v1512
        %v1609 = vunpack.c.l.b16 %v1513
        %v1610 = vunpack.c.l.b16 %v1514
        %v1611 = vunpack.c.l.b16 %v1515
        %v1612 = vunpack.c.l.b16 %v1516
        %v1613 = vunpack.c.l.b16 %v1517
        %v1614 = vunpack.c.l.b16 %v1518
        %v1615 = vunpack.c.l.b16 %v1519
        %v1616 = vunpack.c.l.b16 %v1520
        %v1617 = vunpack.c.l.b16 %v1521
        %v1618 = vunpack.c.l.b16 %v1522
        %v1619 = vunpack.c.l.b16 %v1523
        %v1620 = vunpack.c.l.b16 %v1524
        %v1621 = vunpack.c.l.b16 %v1525
        %v1622 = vunpack.c.l.b16 %v1526
        %v1623 = vunpack.c.l.b16 %v1527
        %v1624 = vunpack.c.l.b16 %v1528
        %v1625 = vunpack.c.l.b16 %v1529
        %v1626 = vunpack.c.l.b16 %v1530
        %v1627 = vunpack.c.l.b16 %v1531
        %v1628 = vunpack.c.l.b16 %v1532
        %v1629 = vunpack.c.l.b16 %v1533
        %v1630 = vunpack.c.l.b16 %v1534
        %v1631 = vunpack.c.l.b16 %v1535
        %v1632 = vunpack.c.l.b16 %v1536
        %v1633 = vunpack.c.l.b16 %v1537
        %v1634 = vunpack.c.l.b16 %v1538
        %v1635 = vunpack.c.l.b16 %v1539
        %v1636 = vunpack.c.l.b16 %v1540
        %v1637 = vunpack.c.l.b16 %v1541
        %v1638 = vunpack.c.l.b16 %v1542
        %v1639 = vunpack.c.l.b16 %v1543
        %v1640 = vunpack.c.l.b16 %v1544
        %v1641 = vunpack.c.l.b16 %v1545
        %v1642 = vunpack.c.l.b16 %v1546
        %v1643 = vunpack.c.l.b16 %v1547
        %v1644 = vunpack.c.l.b16 %v1548
        %v1645 = vunpack.c.l.b16 %v1549
        %v1646 = vunpack.c.l.b16 %v1550
        %v1647 = vpack.c.b16 %v1600, %v1599
        %v1648 = vpack.c.b16 %v1601, %v1601
        %v1649 = vpack.c.b16 %v1603, %v1602
        %v1650 = vpack.c.b16 %v1604, %v1604
        %v1651 = vpack.c.b16 %v1606, %v1605
        %v1652 = vpack.c.b16 %v1607, %v1607
        %v1653 = vpack.c.b16 %v1609, %v1608
        %v1654 = vpack.c.b16 %v1610, %v1610
        %v1655 = vpack.c.b16 %v1612, %v1611
        %v1656 = vpack.c.b16 %v1613, %v1613
        %v1657 = vpack.c.b16 %v1615, %v1614
        %v1658 = vpack.c.b16 %v1616, %v1616
        %v1659 = vpack.c.b16 %v1618, %v1617
        %v1660 = vpack.c.b16 %v1619, %v1619
        %v1661 = vpack.c.b16 %v1621, %v1620
        %v1662 = vpack.c.b16 %v1622, %v1622
        %v1663 = vpack.c.b16 %v1624, %v1623
        %v1664 = vpack.c.b16 %v1625, %v1625
        %v1665 = vpack.c.b16 %v1627, %v1626
        %v1666 = vpack.c.b16 %v1628, %v1628
        %v1667 = vpack.c.b16 %v1630, %v1629
        %v1668 = vpack.c.b16 %v1631, %v1631
        %v1669 = vpack.c.b16 %v1633, %v1632
        %v1670 = vpack.c.b16 %v1634, %v1634
        %v1671 = vpack.c.b16 %v1636, %v1635
        %v1672 = vpack.c.b16 %v1637, %v1637
        %v1673 = vpack.c.b16 %v1639, %v1638
        %v1674 = vpack.c.b16 %v1640, %v1640
        %v1675 = vpack.c.b16 %v1642, %v1641
        %v1676 = vpack.c.b16 %v1643, %v1643
        %v1677 = vpack.c.b16 %v1645, %v1644
        %v1678 = vpack.c.b16 %v1646, %v1646
        %vm1679 = vcmask 1046528
        %v1680 = vrot.slane %v1647, 1
        %v1681 = vrot.slane %v1648, 1
        %v1682 = vsel %vm1679, %v1680, %v1681
        %v1683 = vrot.slane %v1649, 1
        %v1684 = vrot.slane %v1650, 1
        %v1685 = vsel %vm1679, %v1683, %v1684
        %v1686 = vrot.slane %v1651, 1
        %v1687 = vrot.slane %v1652, 1
        %v1688 = vsel %vm1679, %v1686, %v1687
        %v1689 = vrot.slane %v1653, 1
        %v1690 = vrot.slane %v1654, 1
        %v1691 = vsel %vm1679, %v1689, %v1690
        %v1692 = vrot.slane %v1655, 1
        %v1693 = vrot.slane %v1656, 1
        %v1694 = vsel %vm1679, %v1692, %v1693
        %v1695 = vrot.slane %v1657, 1
        %v1696 = vrot.slane %v1658, 1
        %v1697 = vsel %vm1679, %v1695, %v1696
        %v1698 = vrot.slane %v1659, 1
        %v1699 = vrot.slane %v1660, 1
        %v1700 = vsel %vm1679, %v1698, %v1699
        %v1701 = vrot.slane %v1661, 1
        %v1702 = vrot.slane %v1662, 1
        %v1703 = vsel %vm1679, %v1701, %v1702
        %v1704 = vrot.slane %v1663, 1
        %v1705 = vrot.slane %v1664, 1
        %v1706 = vsel %vm1679, %v1704, %v1705
        %v1707 = vrot.slane %v1665, 1
        %v1708 = vrot.slane %v1666, 1
        %v1709 = vsel %vm1679, %v1707, %v1708
        %v1710 = vrot.slane %v1667, 1
        %v1711 = vrot.slane %v1668, 1
        %v1712 = vsel %vm1679, %v1710, %v1711
        %v1713 = vrot.slane %v1669, 1
        %v1714 = vrot.slane %v1670, 1
        %v1715 = vsel %vm1679, %v1713, %v1714
        %v1716 = vrot.slane %v1671, 1
        %v1717 = vrot.slane %v1672, 1
        %v1718 = vsel %vm1679, %v1716, %v1717
        %v1719 = vrot.slane %v1673, 1
        %v1720 = vrot.slane %v1674, 1
        %v1721 = vsel %vm1679, %v1719, %v1720
        %v1722 = vrot.slane %v1675, 1
        %v1723 = vrot.slane %v1676, 1
        %v1724 = vsel %vm1679, %v1722, %v1723
        %v1725 = vrot.slane %v1677, 1
        %v1726 = vrot.slane %v1678, 1
        %v1727 = vsel %vm1679, %v1725, %v1726
        %1744 = vst [vmem:[#allocation3 + $0x10] sm:$0xff] %v1682
        %1745 = vst [vmem:[#allocation3 + $0x28] sm:$0xff] %v1685
        %1746 = vst [vmem:[#allocation3 + $0x40] sm:$0xff] %v1688
        %1747 = vst [vmem:[#allocation3 + $0x58] sm:$0xff] %v1691
        %1748 = vst [vmem:[#allocation3 + $0x70] sm:$0xff] %v1694
        %1749 = vst [vmem:[#allocation3 + $0x88] sm:$0xff] %v1697
        %1750 = vst [vmem:[#allocation3 + $0xa0] sm:$0xff] %v1700
        %1751 = vst [vmem:[#allocation3 + $0xb8] sm:$0xff] %v1703
        %1752 = vst [vmem:[#allocation3 + $0xd0] sm:$0xff] %v1706
        %1753 = vst [vmem:[#allocation3 + $0xe8] sm:$0xff] %v1709
        %1754 = vst [vmem:[#allocation3 + $0x100] sm:$0xff] %v1712
        %1755 = vst [vmem:[#allocation3 + $0x118] sm:$0xff] %v1715
        %1756 = vst [vmem:[#allocation3 + $0x130] sm:$0xff] %v1718
        %1757 = vst [vmem:[#allocation3 + $0x148] sm:$0xff] %v1721
        %1758 = vst [vmem:[#allocation3 + $0x160] sm:$0xff] %v1724
        %1759 = vst [vmem:[#allocation3 + $0x178] sm:$0xff] %v1727
        %v1760 = vld [vmem:[#allocation3] sm:$0xff]
        %v1761 = vld [vmem:[#allocation3 + $0x8] sm:$0xff]
        %v1762 = vld [vmem:[#allocation3 + $0x10] sm:$0xff]
        %v1763 = vld [vmem:[#allocation3 + $0x18] sm:$0xff]
        %v1764 = vld [vmem:[#allocation3 + $0x20] sm:$0xff]
        %v1765 = vld [vmem:[#allocation3 + $0x28] sm:$0xff]
        %v1766 = vld [vmem:[#allocation3 + $0x30] sm:$0xff]
        %v1767 = vld [vmem:[#allocation3 + $0x38] sm:$0xff]
        %v1768 = vld [vmem:[#allocation3 + $0x40] sm:$0xff]
        %v1769 = vld [vmem:[#allocation3 + $0x48] sm:$0xff]
        %v1770 = vld [vmem:[#allocation3 + $0x50] sm:$0xff]
        %v1771 = vld [vmem:[#allocation3 + $0x58] sm:$0xff]
        %v1772 = vld [vmem:[#allocation3 + $0x60] sm:$0xff]
        %v1773 = vld [vmem:[#allocation3 + $0x68] sm:$0xff]
        %v1774 = vld [vmem:[#allocation3 + $0x70] sm:$0xff]
        %v1775 = vld [vmem:[#allocation3 + $0x78] sm:$0xff]
        %v1776 = vld [vmem:[#allocation3 + $0x80] sm:$0xff]
        %v1777 = vld [vmem:[#allocation3 + $0x88] sm:$0xff]
        %v1778 = vld [vmem:[#allocation3 + $0x90] sm:$0xff]
        %v1779 = vld [vmem:[#allocation3 + $0x98] sm:$0xff]
        %v1780 = vld [vmem:[#allocation3 + $0xa0] sm:$0xff]
        %v1781 = vld [vmem:[#allocation3 + $0xa8] sm:$0xff]
        %v1782 = vld [vmem:[#allocation3 + $0xb0] sm:$0xff]
        %v1783 = vld [vmem:[#allocation3 + $0xb8] sm:$0xff]
        %v1784 = vld [vmem:[#allocation3 + $0xc0] sm:$0xff]
        %v1785 = vld [vmem:[#allocation3 + $0xc8] sm:$0xff]
        %v1786 = vld [vmem:[#allocation3 + $0xd0] sm:$0xff]
        %v1787 = vld [vmem:[#allocation3 + $0xd8] sm:$0xff]
        %v1788 = vld [vmem:[#allocation3 + $0xe0] sm:$0xff]
        %v1789 = vld [vmem:[#allocation3 + $0xe8] sm:$0xff]
        %v1790 = vld [vmem:[#allocation3 + $0xf0] sm:$0xff]
        %v1791 = vld [vmem:[#allocation3 + $0xf8] sm:$0xff]
        %v1792 = vld [vmem:[#allocation3 + $0x100] sm:$0xff]
        %v1793 = vld [vmem:[#allocation3 + $0x108] sm:$0xff]
        %v1794 = vld [vmem:[#allocation3 + $0x110] sm:$0xff]
        %v1795 = vld [vmem:[#allocation3 + $0x118] sm:$0xff]
        %v1796 = vld [vmem:[#allocation3 + $0x120] sm:$0xff]
        %v1797 = vld [vmem:[#allocation3 + $0x128] sm:$0xff]
        %v1798 = vld [vmem:[#allocation3 + $0x130] sm:$0xff]
        %v1799 = vld [vmem:[#allocation3 + $0x138] sm:$0xff]
        %v1800 = vld [vmem:[#allocation3 + $0x140] sm:$0xff]
        %v1801 = vld [vmem:[#allocation3 + $0x148] sm:$0xff]
        %v1802 = vld [vmem:[#allocation3 + $0x150] sm:$0xff]
        %v1803 = vld [vmem:[#allocation3 + $0x158] sm:$0xff]
        %v1804 = vld [vmem:[#allocation3 + $0x160] sm:$0xff]
        %v1805 = vld [vmem:[#allocation3 + $0x168] sm:$0xff]
        %v1806 = vld [vmem:[#allocation3 + $0x170] sm:$0xff]
        %v1807 = vld [vmem:[#allocation3 + $0x178] sm:$0xff]
        %v1808 = vld [vmem:[#allocation7] sm:$0xf]
        %v1809 = vld [vmem:[#allocation7 + $0x4] sm:$0xf]
        %v1810 = vld [vmem:[#allocation7 + $0x8] sm:$0xf]
        %v1811 = vld [vmem:[#allocation7 + $0xc] sm:$0xf]
        %v1812 = vld [vmem:[#allocation7 + $0x10] sm:$0xf]
        %v1813 = vld [vmem:[#allocation7 + $0x14] sm:$0xf]
        %v1814 = vld [vmem:[#allocation7 + $0x18] sm:$0xf]
        %v1815 = vld [vmem:[#allocation7 + $0x1c] sm:$0xf]
        %v1816 = vld [vmem:[#allocation7 + $0x20] sm:$0xf]
        %v1817 = vld [vmem:[#allocation7 + $0x24] sm:$0xf]
        %v1818 = vld [vmem:[#allocation7 + $0x28] sm:$0xf]
        %v1819 = vld [vmem:[#allocation7 + $0x2c] sm:$0xf]
        %v1820 = vld [vmem:[#allocation7 + $0x30] sm:$0xf]
        %v1821 = vld [vmem:[#allocation7 + $0x34] sm:$0xf]
        %v1822 = vld [vmem:[#allocation7 + $0x38] sm:$0xf]
        %v1823 = vld [vmem:[#allocation7 + $0x3c] sm:$0xf]
        %v1824 = vld [vmem:[#allocation7 + $0x40] sm:$0xf]
        %v1825 = vld [vmem:[#allocation7 + $0x44] sm:$0xf]
        %v1826 = vld [vmem:[#allocation7 + $0x48] sm:$0xf]
        %v1827 = vld [vmem:[#allocation7 + $0x4c] sm:$0xf]
        %v1828 = vld [vmem:[#allocation7 + $0x50] sm:$0xf]
        %v1829 = vld [vmem:[#allocation7 + $0x54] sm:$0xf]
        %v1830 = vld [vmem:[#allocation7 + $0x58] sm:$0xf]
        %v1831 = vld [vmem:[#allocation7 + $0x5c] sm:$0xf]
        %v1832 = vld [vmem:[#allocation7 + $0x60] sm:$0xf]
        %v1833 = vld [vmem:[#allocation7 + $0x64] sm:$0xf]
        %v1834 = vld [vmem:[#allocation7 + $0x68] sm:$0xf]
        %v1835 = vld [vmem:[#allocation7 + $0x6c] sm:$0xf]
        %v1836 = vld [vmem:[#allocation7 + $0x70] sm:$0xf]
        %v1837 = vld [vmem:[#allocation7 + $0x74] sm:$0xf]
        %v1838 = vld [vmem:[#allocation7 + $0x78] sm:$0xf]
        %v1839 = vld [vmem:[#allocation7 + $0x7c] sm:$0xf]
        %v1840 = vld [vmem:[#allocation7 + $0x80] sm:$0xf]
        %v1841 = vld [vmem:[#allocation7 + $0x84] sm:$0xf]
        %v1842 = vld [vmem:[#allocation7 + $0x88] sm:$0xf]
        %v1843 = vld [vmem:[#allocation7 + $0x8c] sm:$0xf]
        %v1844 = vld [vmem:[#allocation7 + $0x90] sm:$0xf]
        %v1845 = vld [vmem:[#allocation7 + $0x94] sm:$0xf]
        %v1846 = vld [vmem:[#allocation7 + $0x98] sm:$0xf]
        %v1847 = vld [vmem:[#allocation7 + $0x9c] sm:$0xf]
        %v1848 = vld [vmem:[#allocation7 + $0xa0] sm:$0xf]
        %v1849 = vld [vmem:[#allocation7 + $0xa4] sm:$0xf]
        %v1850 = vld [vmem:[#allocation7 + $0xa8] sm:$0xf]
        %v1851 = vld [vmem:[#allocation7 + $0xac] sm:$0xf]
        %v1852 = vld [vmem:[#allocation7 + $0xb0] sm:$0xf]
        %v1853 = vld [vmem:[#allocation7 + $0xb4] sm:$0xf]
        %v1854 = vld [vmem:[#allocation7 + $0xb8] sm:$0xf]
        %v1855 = vld [vmem:[#allocation7 + $0xbc] sm:$0xf]
        %v1856 = vld [vmem:[%s843] sm:$0xf]
        %v1857 = vld [vmem:[%s843 + $0x4] sm:$0xf]
        %v1858 = vld [vmem:[%s843 + $0xc] sm:$0xf]
        %v1859 = vld [vmem:[%s843 + $0x10] sm:$0xf]
        %v1860 = vld [vmem:[%s843 + $0x18] sm:$0xf]
        %v1861 = vld [vmem:[%s843 + $0x1c] sm:$0xf]
        %v1862 = vld [vmem:[%s843 + $0x24] sm:$0xf]
        %v1863 = vld [vmem:[%s843 + $0x28] sm:$0xf]
        %v1864 = vld [vmem:[%s843 + $0x30] sm:$0xf]
        %v1865 = vld [vmem:[%s843 + $0x34] sm:$0xf]
        %v1866 = vld [vmem:[%s843 + $0x3c] sm:$0xf]
        %v1867 = vld [vmem:[%s843 + $0x40] sm:$0xf]
        %v1868 = vld [vmem:[%s843 + $0x48] sm:$0xf]
        %v1869 = vld [vmem:[%s843 + $0x4c] sm:$0xf]
        %v1870 = vld [vmem:[%s843 + $0x54] sm:$0xf]
        %v1871 = vld [vmem:[%s843 + $0x58] sm:$0xf]
        %v1872 = vld [vmem:[%s843 + $0x60] sm:$0xf]
        %v1873 = vld [vmem:[%s843 + $0x64] sm:$0xf]
        %v1874 = vld [vmem:[%s843 + $0x6c] sm:$0xf]
        %v1875 = vld [vmem:[%s843 + $0x70] sm:$0xf]
        %v1876 = vld [vmem:[%s843 + $0x78] sm:$0xf]
        %v1877 = vld [vmem:[%s843 + $0x7c] sm:$0xf]
        %v1878 = vld [vmem:[%s843 + $0x84] sm:$0xf]
        %v1879 = vld [vmem:[%s843 + $0x88] sm:$0xf]
        %v1880 = vld [vmem:[%s843 + $0x90] sm:$0xf]
        %v1881 = vld [vmem:[%s843 + $0x94] sm:$0xf]
        %v1882 = vld [vmem:[%s843 + $0x9c] sm:$0xf]
        %v1883 = vld [vmem:[%s843 + $0xa0] sm:$0xf]
        %v1884 = vld [vmem:[%s843 + $0xa8] sm:$0xf]
        %v1885 = vld [vmem:[%s843 + $0xac] sm:$0xf]
        %v1886 = vld [vmem:[%s843 + $0xb4] sm:$0xf]
        %v1887 = vld [vmem:[%s843 + $0xb8] sm:$0xf]
        %v1920 = vunpack.c.l.b16 %v1856
        %v1921 = vunpack.c.l.b16 %v1857
        %v1922 = vunpack.c.l.b16 %v1858
        %v1923 = vunpack.c.l.b16 %v1859
        %v1924 = vunpack.c.l.b16 %v1860
        %v1925 = vunpack.c.l.b16 %v1861
        %v1926 = vunpack.c.l.b16 %v1862
        %v1927 = vunpack.c.l.b16 %v1863
        %v1928 = vunpack.c.l.b16 %v1864
        %v1929 = vunpack.c.l.b16 %v1865
        %v1930 = vunpack.c.l.b16 %v1866
        %v1931 = vunpack.c.l.b16 %v1867
        %v1932 = vunpack.c.l.b16 %v1868
        %v1933 = vunpack.c.l.b16 %v1869
        %v1934 = vunpack.c.l.b16 %v1870
        %v1935 = vunpack.c.l.b16 %v1871
        %v1936 = vunpack.c.l.b16 %v1872
        %v1937 = vunpack.c.l.b16 %v1873
        %v1938 = vunpack.c.l.b16 %v1874
        %v1939 = vunpack.c.l.b16 %v1875
        %v1940 = vunpack.c.l.b16 %v1876
        %v1941 = vunpack.c.l.b16 %v1877
        %v1942 = vunpack.c.l.b16 %v1878
        %v1943 = vunpack.c.l.b16 %v1879
        %v1944 = vunpack.c.l.b16 %v1880
        %v1945 = vunpack.c.l.b16 %v1881
        %v1946 = vunpack.c.l.b16 %v1882
        %v1947 = vunpack.c.l.b16 %v1883
        %v1948 = vunpack.c.l.b16 %v1884
        %v1949 = vunpack.c.l.b16 %v1885
        %v1950 = vunpack.c.l.b16 %v1886
        %v1951 = vunpack.c.l.b16 %v1887
        %v1952 = vpack.c.b16 %v1921, %v1920
        %v1953 = vpack.c.b16 %v1923, %v1922
        %v1954 = vpack.c.b16 %v1925, %v1924
        %v1955 = vpack.c.b16 %v1927, %v1926
        %v1956 = vpack.c.b16 %v1929, %v1928
        %v1957 = vpack.c.b16 %v1931, %v1930
        %v1958 = vpack.c.b16 %v1933, %v1932
        %v1959 = vpack.c.b16 %v1935, %v1934
        %v1960 = vpack.c.b16 %v1937, %v1936
        %v1961 = vpack.c.b16 %v1939, %v1938
        %v1962 = vpack.c.b16 %v1941, %v1940
        %v1963 = vpack.c.b16 %v1943, %v1942
        %v1964 = vpack.c.b16 %v1945, %v1944
        %v1965 = vpack.c.b16 %v1947, %v1946
        %v1966 = vpack.c.b16 %v1949, %v1948
        %v1967 = vpack.c.b16 %v1951, %v1950
        %1984 = vst [vmem:[#allocation3] sm:$0xff] %v1952
        %1985 = vst [vmem:[#allocation3 + $0x18] sm:$0xff] %v1953
        %1986 = vst [vmem:[#allocation3 + $0x30] sm:$0xff] %v1954
        %1987 = vst [vmem:[#allocation3 + $0x48] sm:$0xff] %v1955
        %1988 = vst [vmem:[#allocation3 + $0x60] sm:$0xff] %v1956
        %1989 = vst [vmem:[#allocation3 + $0x78] sm:$0xff] %v1957
        %1990 = vst [vmem:[#allocation3 + $0x90] sm:$0xff] %v1958
        %1991 = vst [vmem:[#allocation3 + $0xa8] sm:$0xff] %v1959
        %1992 = vst [vmem:[#allocation3 + $0xc0] sm:$0xff] %v1960
        %1993 = vst [vmem:[#allocation3 + $0xd8] sm:$0xff] %v1961
        %1994 = vst [vmem:[#allocation3 + $0xf0] sm:$0xff] %v1962
        %1995 = vst [vmem:[#allocation3 + $0x108] sm:$0xff] %v1963
        %1996 = vst [vmem:[#allocation3 + $0x120] sm:$0xff] %v1964
        %1997 = vst [vmem:[#allocation3 + $0x138] sm:$0xff] %v1965
        %1998 = vst [vmem:[#allocation3 + $0x150] sm:$0xff] %v1966
        %1999 = vst [vmem:[#allocation3 + $0x168] sm:$0xff] %v1967
        %v2000 = vld [vmem:[%s843] sm:$0xf]
        %v2001 = vld [vmem:[%s843 + $0x4] sm:$0xf]
        %v2002 = vld [vmem:[%s843 + $0x8] sm:$0x1]
        %v2003 = vld [vmem:[%s843 + $0xc] sm:$0xf]
        %v2004 = vld [vmem:[%s843 + $0x10] sm:$0xf]
        %v2005 = vld [vmem:[%s843 + $0x14] sm:$0x1]
        %v2006 = vld [vmem:[%s843 + $0x18] sm:$0xf]
        %v2007 = vld [vmem:[%s843 + $0x1c] sm:$0xf]
        %v2008 = vld [vmem:[%s843 + $0x20] sm:$0x1]
        %v2009 = vld [vmem:[%s843 + $0x24] sm:$0xf]
        %v2010 = vld [vmem:[%s843 + $0x28] sm:$0xf]
        %v2011 = vld [vmem:[%s843 + $0x2c] sm:$0x1]
        %v2012 = vld [vmem:[%s843 + $0x30] sm:$0xf]
        %v2013 = vld [vmem:[%s843 + $0x34] sm:$0xf]
        %v2014 = vld [vmem:[%s843 + $0x38] sm:$0x1]
        %v2015 = vld [vmem:[%s843 + $0x3c] sm:$0xf]
        %v2016 = vld [vmem:[%s843 + $0x40] sm:$0xf]
        %v2017 = vld [vmem:[%s843 + $0x44] sm:$0x1]
        %v2018 = vld [vmem:[%s843 + $0x48] sm:$0xf]
        %v2019 = vld [vmem:[%s843 + $0x4c] sm:$0xf]
        %v2020 = vld [vmem:[%s843 + $0x50] sm:$0x1]
        %v2021 = vld [vmem:[%s843 + $0x54] sm:$0xf]
        %v2022 = vld [vmem:[%s843 + $0x58] sm:$0xf]
        %v2023 = vld [vmem:[%s843 + $0x5c] sm:$0x1]
        %v2024 = vld [vmem:[%s843 + $0x60] sm:$0xf]
        %v2025 = vld [vmem:[%s843 + $0x64] sm:$0xf]
        %v2026 = vld [vmem:[%s843 + $0x68] sm:$0x1]
        %v2027 = vld [vmem:[%s843 + $0x6c] sm:$0xf]
        %v2028 = vld [vmem:[%s843 + $0x70] sm:$0xf]
        %v2029 = vld [vmem:[%s843 + $0x74] sm:$0x1]
        %v2030 = vld [vmem:[%s843 + $0x78] sm:$0xf]
        %v2031 = vld [vmem:[%s843 + $0x7c] sm:$0xf]
        %v2032 = vld [vmem:[%s843 + $0x80] sm:$0x1]
        %v2033 = vld [vmem:[%s843 + $0x84] sm:$0xf]
        %v2034 = vld [vmem:[%s843 + $0x88] sm:$0xf]
        %v2035 = vld [vmem:[%s843 + $0x8c] sm:$0x1]
        %v2036 = vld [vmem:[%s843 + $0x90] sm:$0xf]
        %v2037 = vld [vmem:[%s843 + $0x94] sm:$0xf]
        %v2038 = vld [vmem:[%s843 + $0x98] sm:$0x1]
        %v2039 = vld [vmem:[%s843 + $0x9c] sm:$0xf]
        %v2040 = vld [vmem:[%s843 + $0xa0] sm:$0xf]
        %v2041 = vld [vmem:[%s843 + $0xa4] sm:$0x1]
        %v2042 = vld [vmem:[%s843 + $0xa8] sm:$0xf]
        %v2043 = vld [vmem:[%s843 + $0xac] sm:$0xf]
        %v2044 = vld [vmem:[%s843 + $0xb0] sm:$0x1]
        %v2045 = vld [vmem:[%s843 + $0xb4] sm:$0xf]
        %v2046 = vld [vmem:[%s843 + $0xb8] sm:$0xf]
        %v2047 = vld [vmem:[%s843 + $0xbc] sm:$0x1]
        %v2096 = vunpack.c.l.b16 %v2000
        %v2097 = vunpack.c.l.b16 %v2001
        %v2098 = vunpack.c.l.b16 %v2002
        %v2099 = vunpack.c.l.b16 %v2003
        %v2100 = vunpack.c.l.b16 %v2004
        %v2101 = vunpack.c.l.b16 %v2005
        %v2102 = vunpack.c.l.b16 %v2006
        %v2103 = vunpack.c.l.b16 %v2007
        %v2104 = vunpack.c.l.b16 %v2008
        %v2105 = vunpack.c.l.b16 %v2009
        %v2106 = vunpack.c.l.b16 %v2010
        %v2107 = vunpack.c.l.b16 %v2011
        %v2108 = vunpack.c.l.b16 %v2012
        %v2109 = vunpack.c.l.b16 %v2013
        %v2110 = vunpack.c.l.b16 %v2014
        %v2111 = vunpack.c.l.b16 %v2015
        %v2112 = vunpack.c.l.b16 %v2016
        %v2113 = vunpack.c.l.b16 %v2017
        %v2114 = vunpack.c.l.b16 %v2018
        %v2115 = vunpack.c.l.b16 %v2019
        %v2116 = vunpack.c.l.b16 %v2020
        %v2117 = vunpack.c.l.b16 %v2021
        %v2118 = vunpack.c.l.b16 %v2022
        %v2119 = vunpack.c.l.b16 %v2023
        %v2120 = vunpack.c.l.b16 %v2024
        %v2121 = vunpack.c.l.b16 %v2025
        %v2122 = vunpack.c.l.b16 %v2026
        %v2123 = vunpack.c.l.b16 %v2027
        %v2124 = vunpack.c.l.b16 %v2028
        %v2125 = vunpack.c.l.b16 %v2029
        %v2126 = vunpack.c.l.b16 %v2030
        %v2127 = vunpack.c.l.b16 %v2031
        %v2128 = vunpack.c.l.b16 %v2032
        %v2129 = vunpack.c.l.b16 %v2033
        %v2130 = vunpack.c.l.b16 %v2034
        %v2131 = vunpack.c.l.b16 %v2035
        %v2132 = vunpack.c.l.b16 %v2036
        %v2133 = vunpack.c.l.b16 %v2037
        %v2134 = vunpack.c.l.b16 %v2038
        %v2135 = vunpack.c.l.b16 %v2039
        %v2136 = vunpack.c.l.b16 %v2040
        %v2137 = vunpack.c.l.b16 %v2041
        %v2138 = vunpack.c.l.b16 %v2042
        %v2139 = vunpack.c.l.b16 %v2043
        %v2140 = vunpack.c.l.b16 %v2044
        %v2141 = vunpack.c.l.b16 %v2045
        %v2142 = vunpack.c.l.b16 %v2046
        %v2143 = vunpack.c.l.b16 %v2047
        %v2144 = vpack.c.b16 %v2097, %v2096
        %v2145 = vpack.c.b16 %v2098, %v2098
        %v2146 = vpack.c.b16 %v2100, %v2099
        %v2147 = vpack.c.b16 %v2101, %v2101
        %v2148 = vpack.c.b16 %v2103, %v2102
        %v2149 = vpack.c.b16 %v2104, %v2104
        %v2150 = vpack.c.b16 %v2106, %v2105
        %v2151 = vpack.c.b16 %v2107, %v2107
        %v2152 = vpack.c.b16 %v2109, %v2108
        %v2153 = vpack.c.b16 %v2110, %v2110
        %v2154 = vpack.c.b16 %v2112, %v2111
        %v2155 = vpack.c.b16 %v2113, %v2113
        %v2156 = vpack.c.b16 %v2115, %v2114
        %v2157 = vpack.c.b16 %v2116, %v2116
        %v2158 = vpack.c.b16 %v2118, %v2117
        %v2159 = vpack.c.b16 %v2119, %v2119
        %v2160 = vpack.c.b16 %v2121, %v2120
        %v2161 = vpack.c.b16 %v2122, %v2122
        %v2162 = vpack.c.b16 %v2124, %v2123
        %v2163 = vpack.c.b16 %v2125, %v2125
        %v2164 = vpack.c.b16 %v2127, %v2126
        %v2165 = vpack.c.b16 %v2128, %v2128
        %v2166 = vpack.c.b16 %v2130, %v2129
        %v2167 = vpack.c.b16 %v2131, %v2131
        %v2168 = vpack.c.b16 %v2133, %v2132
        %v2169 = vpack.c.b16 %v2134, %v2134
        %v2170 = vpack.c.b16 %v2136, %v2135
        %v2171 = vpack.c.b16 %v2137, %v2137
        %v2172 = vpack.c.b16 %v2139, %v2138
        %v2173 = vpack.c.b16 %v2140, %v2140
        %v2174 = vpack.c.b16 %v2142, %v2141
        %v2175 = vpack.c.b16 %v2143, %v2143
        %v2177 = vshrl.u32 %v2144, 16
        %v2179 = vshll.u32 %v2144, 16
        %v2181 = vrot.slane %v2179, 1
        %v2182 = vor.u32 %v2177, %v2181
        %v2184 = vshll.u32 %v2145, 16
        %v2186 = vrot.slane %v2184, 1
        %v2187 = vsel %vm1278, %v2182, %v2186
        %v2189 = vshrl.u32 %v2146, 16
        %v2191 = vshll.u32 %v2146, 16
        %v2193 = vrot.slane %v2191, 1
        %v2194 = vor.u32 %v2189, %v2193
        %v2196 = vshll.u32 %v2147, 16
        %v2198 = vrot.slane %v2196, 1
        %v2199 = vsel %vm1278, %v2194, %v2198
        %v2201 = vshrl.u32 %v2148, 16
        %v2203 = vshll.u32 %v2148, 16
        %v2205 = vrot.slane %v2203, 1
        %v2206 = vor.u32 %v2201, %v2205
        %v2208 = vshll.u32 %v2149, 16
        %v2210 = vrot.slane %v2208, 1
        %v2211 = vsel %vm1278, %v2206, %v2210
        %v2213 = vshrl.u32 %v2150, 16
        %v2215 = vshll.u32 %v2150, 16
        %v2217 = vrot.slane %v2215, 1
        %v2218 = vor.u32 %v2213, %v2217
        %v2220 = vshll.u32 %v2151, 16
        %v2222 = vrot.slane %v2220, 1
        %v2223 = vsel %vm1278, %v2218, %v2222
        %v2225 = vshrl.u32 %v2152, 16
        %v2227 = vshll.u32 %v2152, 16
        %v2229 = vrot.slane %v2227, 1
        %v2230 = vor.u32 %v2225, %v2229
        %v2232 = vshll.u32 %v2153, 16
        %v2234 = vrot.slane %v2232, 1
        %v2235 = vsel %vm1278, %v2230, %v2234
        %v2237 = vshrl.u32 %v2154, 16
        %v2239 = vshll.u32 %v2154, 16
        %v2241 = vrot.slane %v2239, 1
        %v2242 = vor.u32 %v2237, %v2241
        %v2244 = vshll.u32 %v2155, 16
        %v2246 = vrot.slane %v2244, 1
        %v2247 = vsel %vm1278, %v2242, %v2246
        %v2249 = vshrl.u32 %v2156, 16
        %v2251 = vshll.u32 %v2156, 16
        %v2253 = vrot.slane %v2251, 1
        %v2254 = vor.u32 %v2249, %v2253
        %v2256 = vshll.u32 %v2157, 16
        %v2258 = vrot.slane %v2256, 1
        %v2259 = vsel %vm1278, %v2254, %v2258
        %v2261 = vshrl.u32 %v2158, 16
        %v2263 = vshll.u32 %v2158, 16
        %v2265 = vrot.slane %v2263, 1
        %v2266 = vor.u32 %v2261, %v2265
        %v2268 = vshll.u32 %v2159, 16
        %v2270 = vrot.slane %v2268, 1
        %v2271 = vsel %vm1278, %v2266, %v2270
        %v2273 = vshrl.u32 %v2160, 16
        %v2275 = vshll.u32 %v2160, 16
        %v2277 = vrot.slane %v2275, 1
        %v2278 = vor.u32 %v2273, %v2277
        %v2280 = vshll.u32 %v2161, 16
        %v2282 = vrot.slane %v2280, 1
        %v2283 = vsel %vm1278, %v2278, %v2282
        %v2285 = vshrl.u32 %v2162, 16
        %v2287 = vshll.u32 %v2162, 16
        %v2289 = vrot.slane %v2287, 1
        %v2290 = vor.u32 %v2285, %v2289
        %v2292 = vshll.u32 %v2163, 16
        %v2294 = vrot.slane %v2292, 1
        %v2295 = vsel %vm1278, %v2290, %v2294
        %v2297 = vshrl.u32 %v2164, 16
        %v2299 = vshll.u32 %v2164, 16
        %v2301 = vrot.slane %v2299, 1
        %v2302 = vor.u32 %v2297, %v2301
        %v2304 = vshll.u32 %v2165, 16
        %v2306 = vrot.slane %v2304, 1
        %v2307 = vsel %vm1278, %v2302, %v2306
        %v2309 = vshrl.u32 %v2166, 16
        %v2311 = vshll.u32 %v2166, 16
        %v2313 = vrot.slane %v2311, 1
        %v2314 = vor.u32 %v2309, %v2313
        %v2316 = vshll.u32 %v2167, 16
        %v2318 = vrot.slane %v2316, 1
        %v2319 = vsel %vm1278, %v2314, %v2318
        %v2321 = vshrl.u32 %v2168, 16
        %v2323 = vshll.u32 %v2168, 16
        %v2325 = vrot.slane %v2323, 1
        %v2326 = vor.u32 %v2321, %v2325
        %v2328 = vshll.u32 %v2169, 16
        %v2330 = vrot.slane %v2328, 1
        %v2331 = vsel %vm1278, %v2326, %v2330
        %v2333 = vshrl.u32 %v2170, 16
        %v2335 = vshll.u32 %v2170, 16
        %v2337 = vrot.slane %v2335, 1
        %v2338 = vor.u32 %v2333, %v2337
        %v2340 = vshll.u32 %v2171, 16
        %v2342 = vrot.slane %v2340, 1
        %v2343 = vsel %vm1278, %v2338, %v2342
        %v2345 = vshrl.u32 %v2172, 16
        %v2347 = vshll.u32 %v2172, 16
        %v2349 = vrot.slane %v2347, 1
        %v2350 = vor.u32 %v2345, %v2349
        %v2352 = vshll.u32 %v2173, 16
        %v2354 = vrot.slane %v2352, 1
        %v2355 = vsel %vm1278, %v2350, %v2354
        %v2357 = vshrl.u32 %v2174, 16
        %v2359 = vshll.u32 %v2174, 16
        %v2361 = vrot.slane %v2359, 1
        %v2362 = vor.u32 %v2357, %v2361
        %v2364 = vshll.u32 %v2175, 16
        %v2366 = vrot.slane %v2364, 1
        %v2367 = vsel %vm1278, %v2362, %v2366
        %2384 = vst [vmem:[#allocation3 + $0x8] sm:$0xff] %v2187
        %2385 = vst [vmem:[#allocation3 + $0x20] sm:$0xff] %v2199
        %2386 = vst [vmem:[#allocation3 + $0x38] sm:$0xff] %v2211
        %2387 = vst [vmem:[#allocation3 + $0x50] sm:$0xff] %v2223
        %2388 = vst [vmem:[#allocation3 + $0x68] sm:$0xff] %v2235
        %2389 = vst [vmem:[#allocation3 + $0x80] sm:$0xff] %v2247
        %2390 = vst [vmem:[#allocation3 + $0x98] sm:$0xff] %v2259
        %2391 = vst [vmem:[#allocation3 + $0xb0] sm:$0xff] %v2271
        %2392 = vst [vmem:[#allocation3 + $0xc8] sm:$0xff] %v2283
        %2393 = vst [vmem:[#allocation3 + $0xe0] sm:$0xff] %v2295
        %2394 = vst [vmem:[#allocation3 + $0xf8] sm:$0xff] %v2307
        %2395 = vst [vmem:[#allocation3 + $0x110] sm:$0xff] %v2319
        %2396 = vst [vmem:[#allocation3 + $0x128] sm:$0xff] %v2331
        %2397 = vst [vmem:[#allocation3 + $0x140] sm:$0xff] %v2343
        %2398 = vst [vmem:[#allocation3 + $0x158] sm:$0xff] %v2355
        %2399 = vst [vmem:[#allocation3 + $0x170] sm:$0xff] %v2367
        %v2400 = vld [vmem:[%s843] sm:$0xe]
        %v2401 = vld [vmem:[%s843 + $0x4] sm:$0xf]
        %v2402 = vld [vmem:[%s843 + $0x8] sm:$0x1]
        %v2403 = vld [vmem:[%s843 + $0xc] sm:$0xe]
        %v2404 = vld [vmem:[%s843 + $0x10] sm:$0xf]
        %v2405 = vld [vmem:[%s843 + $0x14] sm:$0x1]
        %v2406 = vld [vmem:[%s843 + $0x18] sm:$0xe]
        %v2407 = vld [vmem:[%s843 + $0x1c] sm:$0xf]
        %v2408 = vld [vmem:[%s843 + $0x20] sm:$0x1]
        %v2409 = vld [vmem:[%s843 + $0x24] sm:$0xe]
        %v2410 = vld [vmem:[%s843 + $0x28] sm:$0xf]
        %v2411 = vld [vmem:[%s843 + $0x2c] sm:$0x1]
        %v2412 = vld [vmem:[%s843 + $0x30] sm:$0xe]
        %v2413 = vld [vmem:[%s843 + $0x34] sm:$0xf]
        %v2414 = vld [vmem:[%s843 + $0x38] sm:$0x1]
        %v2415 = vld [vmem:[%s843 + $0x3c] sm:$0xe]
        %v2416 = vld [vmem:[%s843 + $0x40] sm:$0xf]
        %v2417 = vld [vmem:[%s843 + $0x44] sm:$0x1]
        %v2418 = vld [vmem:[%s843 + $0x48] sm:$0xe]
        %v2419 = vld [vmem:[%s843 + $0x4c] sm:$0xf]
        %v2420 = vld [vmem:[%s843 + $0x50] sm:$0x1]
        %v2421 = vld [vmem:[%s843 + $0x54] sm:$0xe]
        %v2422 = vld [vmem:[%s843 + $0x58] sm:$0xf]
        %v2423 = vld [vmem:[%s843 + $0x5c] sm:$0x1]
        %v2424 = vld [vmem:[%s843 + $0x60] sm:$0xe]
        %v2425 = vld [vmem:[%s843 + $0x64] sm:$0xf]
        %v2426 = vld [vmem:[%s843 + $0x68] sm:$0x1]
        %v2427 = vld [vmem:[%s843 + $0x6c] sm:$0xe]
        %v2428 = vld [vmem:[%s843 + $0x70] sm:$0xf]
        %v2429 = vld [vmem:[%s843 + $0x74] sm:$0x1]
        %v2430 = vld [vmem:[%s843 + $0x78] sm:$0xe]
        %v2431 = vld [vmem:[%s843 + $0x7c] sm:$0xf]
        %v2432 = vld [vmem:[%s843 + $0x80] sm:$0x1]
        %v2433 = vld [vmem:[%s843 + $0x84] sm:$0xe]
        %v2434 = vld [vmem:[%s843 + $0x88] sm:$0xf]
        %v2435 = vld [vmem:[%s843 + $0x8c] sm:$0x1]
        %v2436 = vld [vmem:[%s843 + $0x90] sm:$0xe]
        %v2437 = vld [vmem:[%s843 + $0x94] sm:$0xf]
        %v2438 = vld [vmem:[%s843 + $0x98] sm:$0x1]
        %v2439 = vld [vmem:[%s843 + $0x9c] sm:$0xe]
        %v2440 = vld [vmem:[%s843 + $0xa0] sm:$0xf]
        %v2441 = vld [vmem:[%s843 + $0xa4] sm:$0x1]
        %v2442 = vld [vmem:[%s843 + $0xa8] sm:$0xe]
        %v2443 = vld [vmem:[%s843 + $0xac] sm:$0xf]
        %v2444 = vld [vmem:[%s843 + $0xb0] sm:$0x1]
        %v2445 = vld [vmem:[%s843 + $0xb4] sm:$0xe]
        %v2446 = vld [vmem:[%s843 + $0xb8] sm:$0xf]
        %v2447 = vld [vmem:[%s843 + $0xbc] sm:$0x1]
        %v2496 = vunpack.c.l.b16 %v2400
        %v2497 = vunpack.c.l.b16 %v2401
        %v2498 = vunpack.c.l.b16 %v2402
        %v2499 = vunpack.c.l.b16 %v2403
        %v2500 = vunpack.c.l.b16 %v2404
        %v2501 = vunpack.c.l.b16 %v2405
        %v2502 = vunpack.c.l.b16 %v2406
        %v2503 = vunpack.c.l.b16 %v2407
        %v2504 = vunpack.c.l.b16 %v2408
        %v2505 = vunpack.c.l.b16 %v2409
        %v2506 = vunpack.c.l.b16 %v2410
        %v2507 = vunpack.c.l.b16 %v2411
        %v2508 = vunpack.c.l.b16 %v2412
        %v2509 = vunpack.c.l.b16 %v2413
        %v2510 = vunpack.c.l.b16 %v2414
        %v2511 = vunpack.c.l.b16 %v2415
        %v2512 = vunpack.c.l.b16 %v2416
        %v2513 = vunpack.c.l.b16 %v2417
        %v2514 = vunpack.c.l.b16 %v2418
        %v2515 = vunpack.c.l.b16 %v2419
        %v2516 = vunpack.c.l.b16 %v2420
        %v2517 = vunpack.c.l.b16 %v2421
        %v2518 = vunpack.c.l.b16 %v2422
        %v2519 = vunpack.c.l.b16 %v2423
        %v2520 = vunpack.c.l.b16 %v2424
        %v2521 = vunpack.c.l.b16 %v2425
        %v2522 = vunpack.c.l.b16 %v2426
        %v2523 = vunpack.c.l.b16 %v2427
        %v2524 = vunpack.c.l.b16 %v2428
        %v2525 = vunpack.c.l.b16 %v2429
        %v2526 = vunpack.c.l.b16 %v2430
        %v2527 = vunpack.c.l.b16 %v2431
        %v2528 = vunpack.c.l.b16 %v2432
        %v2529 = vunpack.c.l.b16 %v2433
        %v2530 = vunpack.c.l.b16 %v2434
        %v2531 = vunpack.c.l.b16 %v2435
        %v2532 = vunpack.c.l.b16 %v2436
        %v2533 = vunpack.c.l.b16 %v2437
        %v2534 = vunpack.c.l.b16 %v2438
        %v2535 = vunpack.c.l.b16 %v2439
        %v2536 = vunpack.c.l.b16 %v2440
        %v2537 = vunpack.c.l.b16 %v2441
        %v2538 = vunpack.c.l.b16 %v2442
        %v2539 = vunpack.c.l.b16 %v2443
        %v2540 = vunpack.c.l.b16 %v2444
        %v2541 = vunpack.c.l.b16 %v2445
        %v2542 = vunpack.c.l.b16 %v2446
        %v2543 = vunpack.c.l.b16 %v2447
        %v2544 = vpack.c.b16 %v2497, %v2496
        %v2545 = vpack.c.b16 %v2498, %v2498
        %v2546 = vpack.c.b16 %v2500, %v2499
        %v2547 = vpack.c.b16 %v2501, %v2501
        %v2548 = vpack.c.b16 %v2503, %v2502
        %v2549 = vpack.c.b16 %v2504, %v2504
        %v2550 = vpack.c.b16 %v2506, %v2505
        %v2551 = vpack.c.b16 %v2507, %v2507
        %v2552 = vpack.c.b16 %v2509, %v2508
        %v2553 = vpack.c.b16 %v2510, %v2510
        %v2554 = vpack.c.b16 %v2512, %v2511
        %v2555 = vpack.c.b16 %v2513, %v2513
        %v2556 = vpack.c.b16 %v2515, %v2514
        %v2557 = vpack.c.b16 %v2516, %v2516
        %v2558 = vpack.c.b16 %v2518, %v2517
        %v2559 = vpack.c.b16 %v2519, %v2519
        %v2560 = vpack.c.b16 %v2521, %v2520
        %v2561 = vpack.c.b16 %v2522, %v2522
        %v2562 = vpack.c.b16 %v2524, %v2523
        %v2563 = vpack.c.b16 %v2525, %v2525
        %v2564 = vpack.c.b16 %v2527, %v2526
        %v2565 = vpack.c.b16 %v2528, %v2528
        %v2566 = vpack.c.b16 %v2530, %v2529
        %v2567 = vpack.c.b16 %v2531, %v2531
        %v2568 = vpack.c.b16 %v2533, %v2532
        %v2569 = vpack.c.b16 %v2534, %v2534
        %v2570 = vpack.c.b16 %v2536, %v2535
        %v2571 = vpack.c.b16 %v2537, %v2537
        %v2572 = vpack.c.b16 %v2539, %v2538
        %v2573 = vpack.c.b16 %v2540, %v2540
        %v2574 = vpack.c.b16 %v2542, %v2541
        %v2575 = vpack.c.b16 %v2543, %v2543
        %v2576 = vrot.slane %v2544, 1
        %v2577 = vrot.slane %v2545, 1
        %v2578 = vsel %vm1679, %v2576, %v2577
        %v2579 = vrot.slane %v2546, 1
        %v2580 = vrot.slane %v2547, 1
        %v2581 = vsel %vm1679, %v2579, %v2580
        %v2582 = vrot.slane %v2548, 1
        %v2583 = vrot.slane %v2549, 1
        %v2584 = vsel %vm1679, %v2582, %v2583
        %v2585 = vrot.slane %v2550, 1
        %v2586 = vrot.slane %v2551, 1
        %v2587 = vsel %vm1679, %v2585, %v2586
        %v2588 = vrot.slane %v2552, 1
        %v2589 = vrot.slane %v2553, 1
        %v2590 = vsel %vm1679, %v2588, %v2589
        %v2591 = vrot.slane %v2554, 1
        %v2592 = vrot.slane %v2555, 1
        %v2593 = vsel %vm1679, %v2591, %v2592
        %v2594 = vrot.slane %v2556, 1
        %v2595 = vrot.slane %v2557, 1
        %v2596 = vsel %vm1679, %v2594, %v2595
        %v2597 = vrot.slane %v2558, 1
        %v2598 = vrot.slane %v2559, 1
        %v2599 = vsel %vm1679, %v2597, %v2598
        %v2600 = vrot.slane %v2560, 1
        %v2601 = vrot.slane %v2561, 1
        %v2602 = vsel %vm1679, %v2600, %v2601
        %v2603 = vrot.slane %v2562, 1
        %v2604 = vrot.slane %v2563, 1
        %v2605 = vsel %vm1679, %v2603, %v2604
        %v2606 = vrot.slane %v2564, 1
        %v2607 = vrot.slane %v2565, 1
        %v2608 = vsel %vm1679, %v2606, %v2607
        %v2609 = vrot.slane %v2566, 1
        %v2610 = vrot.slane %v2567, 1
        %v2611 = vsel %vm1679, %v2609, %v2610
        %v2612 = vrot.slane %v2568, 1
        %v2613 = vrot.slane %v2569, 1
        %v2614 = vsel %vm1679, %v2612, %v2613
        %v2615 = vrot.slane %v2570, 1
        %v2616 = vrot.slane %v2571, 1
        %v2617 = vsel %vm1679, %v2615, %v2616
        %v2618 = vrot.slane %v2572, 1
        %v2619 = vrot.slane %v2573, 1
        %v2620 = vsel %vm1679, %v2618, %v2619
        %v2621 = vrot.slane %v2574, 1
        %v2622 = vrot.slane %v2575, 1
        %v2623 = vsel %vm1679, %v2621, %v2622
        %2640 = vst [vmem:[#allocation3 + $0x10] sm:$0xff] %v2578
        %2641 = vst [vmem:[#allocation3 + $0x28] sm:$0xff] %v2581
        %2642 = vst [vmem:[#allocation3 + $0x40] sm:$0xff] %v2584
        %2643 = vst [vmem:[#allocation3 + $0x58] sm:$0xff] %v2587
        %2644 = vst [vmem:[#allocation3 + $0x70] sm:$0xff] %v2590
        %2645 = vst [vmem:[#allocation3 + $0x88] sm:$0xff] %v2593
        %2646 = vst [vmem:[#allocation3 + $0xa0] sm:$0xff] %v2596
        %2647 = vst [vmem:[#allocation3 + $0xb8] sm:$0xff] %v2599
        %2648 = vst [vmem:[#allocation3 + $0xd0] sm:$0xff] %v2602
        %2649 = vst [vmem:[#allocation3 + $0xe8] sm:$0xff] %v2605
        %2650 = vst [vmem:[#allocation3 + $0x100] sm:$0xff] %v2608
        %2651 = vst [vmem:[#allocation3 + $0x118] sm:$0xff] %v2611
        %2652 = vst [vmem:[#allocation3 + $0x130] sm:$0xff] %v2614
        %2653 = vst [vmem:[#allocation3 + $0x148] sm:$0xff] %v2617
        %2654 = vst [vmem:[#allocation3 + $0x160] sm:$0xff] %v2620
        %2655 = vst [vmem:[#allocation3 + $0x178] sm:$0xff] %v2623
        %v2656 = vld [vmem:[#allocation3] sm:$0xff]
        %v2657 = vld [vmem:[#allocation3 + $0x8] sm:$0xff]
        %v2658 = vld [vmem:[#allocation3 + $0x10] sm:$0xff]
        %v2659 = vld [vmem:[#allocation3 + $0x18] sm:$0xff]
        %v2660 = vld [vmem:[#allocation3 + $0x20] sm:$0xff]
        %v2661 = vld [vmem:[#allocation3 + $0x28] sm:$0xff]
        %v2662 = vld [vmem:[#allocation3 + $0x30] sm:$0xff]
        %v2663 = vld [vmem:[#allocation3 + $0x38] sm:$0xff]
        %v2664 = vld [vmem:[#allocation3 + $0x40] sm:$0xff]
        %v2665 = vld [vmem:[#allocation3 + $0x48] sm:$0xff]
        %v2666 = vld [vmem:[#allocation3 + $0x50] sm:$0xff]
        %v2667 = vld [vmem:[#allocation3 + $0x58] sm:$0xff]
        %v2668 = vld [vmem:[#allocation3 + $0x60] sm:$0xff]
        %v2669 = vld [vmem:[#allocation3 + $0x68] sm:$0xff]
        %v2670 = vld [vmem:[#allocation3 + $0x70] sm:$0xff]
        %v2671 = vld [vmem:[#allocation3 + $0x78] sm:$0xff]
        %v2672 = vld [vmem:[#allocation3 + $0x80] sm:$0xff]
        %v2673 = vld [vmem:[#allocation3 + $0x88] sm:$0xff]
        %v2674 = vld [vmem:[#allocation3 + $0x90] sm:$0xff]
        %v2675 = vld [vmem:[#allocation3 + $0x98] sm:$0xff]
        %v2676 = vld [vmem:[#allocation3 + $0xa0] sm:$0xff]
        %v2677 = vld [vmem:[#allocation3 + $0xa8] sm:$0xff]
        %v2678 = vld [vmem:[#allocation3 + $0xb0] sm:$0xff]
        %v2679 = vld [vmem:[#allocation3 + $0xb8] sm:$0xff]
        %v2680 = vld [vmem:[#allocation3 + $0xc0] sm:$0xff]
        %v2681 = vld [vmem:[#allocation3 + $0xc8] sm:$0xff]
        %v2682 = vld [vmem:[#allocation3 + $0xd0] sm:$0xff]
        %v2683 = vld [vmem:[#allocation3 + $0xd8] sm:$0xff]
        %v2684 = vld [vmem:[#allocation3 + $0xe0] sm:$0xff]
        %v2685 = vld [vmem:[#allocation3 + $0xe8] sm:$0xff]
        %v2686 = vld [vmem:[#allocation3 + $0xf0] sm:$0xff]
        %v2687 = vld [vmem:[#allocation3 + $0xf8] sm:$0xff]
        %v2688 = vld [vmem:[#allocation3 + $0x100] sm:$0xff]
        %v2689 = vld [vmem:[#allocation3 + $0x108] sm:$0xff]
        %v2690 = vld [vmem:[#allocation3 + $0x110] sm:$0xff]
        %v2691 = vld [vmem:[#allocation3 + $0x118] sm:$0xff]
        %v2692 = vld [vmem:[#allocation3 + $0x120] sm:$0xff]
        %v2693 = vld [vmem:[#allocation3 + $0x128] sm:$0xff]
        %v2694 = vld [vmem:[#allocation3 + $0x130] sm:$0xff]
        %v2695 = vld [vmem:[#allocation3 + $0x138] sm:$0xff]
        %v2696 = vld [vmem:[#allocation3 + $0x140] sm:$0xff]
        %v2697 = vld [vmem:[#allocation3 + $0x148] sm:$0xff]
        %v2698 = vld [vmem:[#allocation3 + $0x150] sm:$0xff]
        %v2699 = vld [vmem:[#allocation3 + $0x158] sm:$0xff]
        %v2700 = vld [vmem:[#allocation3 + $0x160] sm:$0xff]
        %v2701 = vld [vmem:[#allocation3 + $0x168] sm:$0xff]
        %v2702 = vld [vmem:[#allocation3 + $0x170] sm:$0xff]
        %v2703 = vld [vmem:[#allocation3 + $0x178] sm:$0xff]
        %s2704 = scalar_lea.vmem [#allocation7], 192
        %v2705 = vld [vmem:[%s2704] sm:$0xf]
        %v2706 = vld [vmem:[%s2704 + $0x4] sm:$0xf]
        %v2707 = vld [vmem:[%s2704 + $0x8] sm:$0xf]
        %v2708 = vld [vmem:[%s2704 + $0xc] sm:$0xf]
        %v2709 = vld [vmem:[%s2704 + $0x10] sm:$0xf]
        %v2710 = vld [vmem:[%s2704 + $0x14] sm:$0xf]
        %v2711 = vld [vmem:[%s2704 + $0x18] sm:$0xf]
        %v2712 = vld [vmem:[%s2704 + $0x1c] sm:$0xf]
        %v2713 = vld [vmem:[%s2704 + $0x20] sm:$0xf]
        %v2714 = vld [vmem:[%s2704 + $0x24] sm:$0xf]
        %v2715 = vld [vmem:[%s2704 + $0x28] sm:$0xf]
        %v2716 = vld [vmem:[%s2704 + $0x2c] sm:$0xf]
        %v2717 = vld [vmem:[%s2704 + $0x30] sm:$0xf]
        %v2718 = vld [vmem:[%s2704 + $0x34] sm:$0xf]
        %v2719 = vld [vmem:[%s2704 + $0x38] sm:$0xf]
        %v2720 = vld [vmem:[%s2704 + $0x3c] sm:$0xf]
        %v2721 = vld [vmem:[%s2704 + $0x40] sm:$0xf]
        %v2722 = vld [vmem:[%s2704 + $0x44] sm:$0xf]
        %v2723 = vld [vmem:[%s2704 + $0x48] sm:$0xf]
        %v2724 = vld [vmem:[%s2704 + $0x4c] sm:$0xf]
        %v2725 = vld [vmem:[%s2704 + $0x50] sm:$0xf]
        %v2726 = vld [vmem:[%s2704 + $0x54] sm:$0xf]
        %v2727 = vld [vmem:[%s2704 + $0x58] sm:$0xf]
        %v2728 = vld [vmem:[%s2704 + $0x5c] sm:$0xf]
        %v2729 = vld [vmem:[%s2704 + $0x60] sm:$0xf]
        %v2730 = vld [vmem:[%s2704 + $0x64] sm:$0xf]
        %v2731 = vld [vmem:[%s2704 + $0x68] sm:$0xf]
        %v2732 = vld [vmem:[%s2704 + $0x6c] sm:$0xf]
        %v2733 = vld [vmem:[%s2704 + $0x70] sm:$0xf]
        %v2734 = vld [vmem:[%s2704 + $0x74] sm:$0xf]
        %v2735 = vld [vmem:[%s2704 + $0x78] sm:$0xf]
        %v2736 = vld [vmem:[%s2704 + $0x7c] sm:$0xf]
        %v2737 = vld [vmem:[%s2704 + $0x80] sm:$0xf]
        %v2738 = vld [vmem:[%s2704 + $0x84] sm:$0xf]
        %v2739 = vld [vmem:[%s2704 + $0x88] sm:$0xf]
        %v2740 = vld [vmem:[%s2704 + $0x8c] sm:$0xf]
        %v2741 = vld [vmem:[%s2704 + $0x90] sm:$0xf]
        %v2742 = vld [vmem:[%s2704 + $0x94] sm:$0xf]
        %v2743 = vld [vmem:[%s2704 + $0x98] sm:$0xf]
        %v2744 = vld [vmem:[%s2704 + $0x9c] sm:$0xf]
        %v2745 = vld [vmem:[%s2704 + $0xa0] sm:$0xf]
        %v2746 = vld [vmem:[%s2704 + $0xa4] sm:$0xf]
        %v2747 = vld [vmem:[%s2704 + $0xa8] sm:$0xf]
        %v2748 = vld [vmem:[%s2704 + $0xac] sm:$0xf]
        %v2749 = vld [vmem:[%s2704 + $0xb0] sm:$0xf]
        %v2750 = vld [vmem:[%s2704 + $0xb4] sm:$0xf]
        %v2751 = vld [vmem:[%s2704 + $0xb8] sm:$0xf]
        %v2752 = vld [vmem:[%s2704 + $0xbc] sm:$0xf]
        %v2801 = vunpack.c.l.b16 %v2705
        %v2802 = vunpack.c.l.b16 %v2706
        %v2803 = vunpack.c.l.b16 %v2707
        %v2804 = vunpack.c.l.b16 %v2708
        %v2805 = vunpack.c.l.b16 %v2709
        %v2806 = vunpack.c.l.b16 %v2710
        %v2807 = vunpack.c.l.b16 %v2711
        %v2808 = vunpack.c.l.b16 %v2712
        %v2809 = vunpack.c.l.b16 %v2713
        %v2810 = vunpack.c.l.b16 %v2714
        %v2811 = vunpack.c.l.b16 %v2715
        %v2812 = vunpack.c.l.b16 %v2716
        %v2813 = vunpack.c.l.b16 %v2717
        %v2814 = vunpack.c.l.b16 %v2718
        %v2815 = vunpack.c.l.b16 %v2719
        %v2816 = vunpack.c.l.b16 %v2720
        %v2817 = vunpack.c.l.b16 %v2721
        %v2818 = vunpack.c.l.b16 %v2722
        %v2819 = vunpack.c.l.b16 %v2723
        %v2820 = vunpack.c.l.b16 %v2724
        %v2821 = vunpack.c.l.b16 %v2725
        %v2822 = vunpack.c.l.b16 %v2726
        %v2823 = vunpack.c.l.b16 %v2727
        %v2824 = vunpack.c.l.b16 %v2728
        %v2825 = vunpack.c.l.b16 %v2729
        %v2826 = vunpack.c.l.b16 %v2730
        %v2827 = vunpack.c.l.b16 %v2731
        %v2828 = vunpack.c.l.b16 %v2732
        %v2829 = vunpack.c.l.b16 %v2733
        %v2830 = vunpack.c.l.b16 %v2734
        %v2831 = vunpack.c.l.b16 %v2735
        %v2832 = vunpack.c.l.b16 %v2736
        %v2833 = vunpack.c.l.b16 %v2737
        %v2834 = vunpack.c.l.b16 %v2738
        %v2835 = vunpack.c.l.b16 %v2739
        %v2836 = vunpack.c.l.b16 %v2740
        %v2837 = vunpack.c.l.b16 %v2741
        %v2838 = vunpack.c.l.b16 %v2742
        %v2839 = vunpack.c.l.b16 %v2743
        %v2840 = vunpack.c.l.b16 %v2744
        %v2841 = vunpack.c.l.b16 %v2745
        %v2842 = vunpack.c.l.b16 %v2746
        %v2843 = vunpack.c.l.b16 %v2747
        %v2844 = vunpack.c.l.b16 %v2748
        %v2845 = vunpack.c.l.b16 %v2749
        %v2846 = vunpack.c.l.b16 %v2750
        %v2847 = vunpack.c.l.b16 %v2751
        %v2848 = vunpack.c.l.b16 %v2752
        %v2849 = vpack.c.b16 %v2802, %v2801
        %v2850 = vpack.c.b16 %v2804, %v2803
        %v2851 = vpack.c.b16 %v2806, %v2805
        %v2852 = vpack.c.b16 %v2808, %v2807
        %v2853 = vpack.c.b16 %v2810, %v2809
        %v2854 = vpack.c.b16 %v2812, %v2811
        %v2855 = vpack.c.b16 %v2814, %v2813
        %v2856 = vpack.c.b16 %v2816, %v2815
        %v2857 = vpack.c.b16 %v2818, %v2817
        %v2858 = vpack.c.b16 %v2820, %v2819
        %v2859 = vpack.c.b16 %v2822, %v2821
        %v2860 = vpack.c.b16 %v2824, %v2823
        %v2861 = vpack.c.b16 %v2826, %v2825
        %v2862 = vpack.c.b16 %v2828, %v2827
        %v2863 = vpack.c.b16 %v2830, %v2829
        %v2864 = vpack.c.b16 %v2832, %v2831
        %v2865 = vpack.c.b16 %v2834, %v2833
        %v2866 = vpack.c.b16 %v2836, %v2835
        %v2867 = vpack.c.b16 %v2838, %v2837
        %v2868 = vpack.c.b16 %v2840, %v2839
        %v2869 = vpack.c.b16 %v2842, %v2841
        %v2870 = vpack.c.b16 %v2844, %v2843
        %v2871 = vpack.c.b16 %v2846, %v2845
        %v2872 = vpack.c.b16 %v2848, %v2847
        %2897 = vmatprep.subr.bf16.mxu0 0
        %2898 = vmatpush1.bf16.msra.mxu0 %v2849
        %2899 = vmatprep.subr.bf16.mxu0 0
        %2900 = vmatpush1.bf16.msra.mxu0 %v2850
        %2901 = vmatprep.subr.bf16.mxu0 0
        %2902 = vmatpush1.bf16.msra.mxu0 %v2851
        %2903 = vmatprep.subr.bf16.mxu0 0
        %2904 = vmatpush1.bf16.msra.mxu0 %v2852
        %2905 = vmatprep.subr.bf16.mxu0 0
        %2906 = vmatpush1.bf16.msra.mxu0 %v2853
        %2907 = vmatprep.subr.bf16.mxu0 0
        %2908 = vmatpush1.bf16.msra.mxu0 %v2854
        %2909 = vmatprep.subr.bf16.mxu0 0
        %2910 = vmatpush1.bf16.msra.mxu0 %v2855
        %2911 = vmatprep.subr.bf16.mxu0 0
        %2912 = vmatpush1.bf16.msra.mxu0 %v2856
        %2913 = vmatprep.subr.bf16.mxu0 0
        %2914 = vmatpush1.bf16.msra.mxu0 %v2857
        %2915 = vmatprep.subr.bf16.mxu0 0
        %2916 = vmatpush1.bf16.msra.mxu0 %v2858
        %2917 = vmatprep.subr.bf16.mxu0 0
        %2918 = vmatpush1.bf16.msra.mxu0 %v2859
        %2919 = vmatprep.subr.bf16.mxu0 0
        %2920 = vmatpush1.bf16.msra.mxu0 %v2860
        %2921 = vmatprep.subr.bf16.mxu0 0
        %2922 = vmatpush1.bf16.msra.mxu0 %v2861
        %2923 = vmatprep.subr.bf16.mxu0 0
        %2924 = vmatpush1.bf16.msra.mxu0 %v2862
        %2925 = vmatprep.subr.bf16.mxu0 0
        %2926 = vmatpush1.bf16.msra.mxu0 %v2863
        %2927 = vmatprep.subr.bf16.mxu0 0
        %2928 = vmatpush1.bf16.msra.mxu0 %v2864
        %2929 = vmatprep.mubr.bf16.mxu0 %v2657
        %2930 = vmatmul.mubr.bf16.gmra.mrb[0].mxu0 %v2656
        %v2931 = vpop.f32.mrb[0].mxu0
        %v2932 = vadd.f32 0.0, %v2931
        %v2933 = vpop.f32.mrb[0].mxu0
        %v2934 = vpop.f32.mrb[0].mxu0
        %v2935 = vadd.f32 0.0, %v2934
        %v2936 = vpop.f32.mrb[0].mxu0
        %2937 = vmatprep.mubr.bf16.mxu0 %v2660
        %2938 = vmatmul.mubr.bf16.gmra.mrb[0].mxu0 %v2659
        %v2939 = vpop.f32.mrb[0].mxu0
        %v2940 = vadd.f32 0.0, %v2939
        %v2941 = vpop.f32.mrb[0].mxu0
        %v2942 = vpop.f32.mrb[0].mxu0
        %v2943 = vadd.f32 0.0, %v2942
        %v2944 = vpop.f32.mrb[0].mxu0
        %2945 = vmatprep.mubr.bf16.mxu0 %v2663
        %2946 = vmatmul.mubr.bf16.gmra.mrb[0].mxu0 %v2662
        %v2947 = vpop.f32.mrb[0].mxu0
        %v2948 = vadd.f32 0.0, %v2947
        %v2949 = vpop.f32.mrb[0].mxu0
        %v2950 = vpop.f32.mrb[0].mxu0
        %v2951 = vadd.f32 0.0, %v2950
        %v2952 = vpop.f32.mrb[0].mxu0
        %2953 = vmatprep.mubr.bf16.mxu0 %v2666
        %2954 = vmatmul.mubr.bf16.gmra.mrb[0].mxu0 %v2665
        %v2955 = vpop.f32.mrb[0].mxu0
        %v2956 = vadd.f32 0.0, %v2955
        %v2957 = vpop.f32.mrb[0].mxu0
        %v2958 = vpop.f32.mrb[0].mxu0
        %v2959 = vadd.f32 0.0, %v2958
        %v2960 = vpop.f32.mrb[0].mxu0
        %2961 = vmatprep.mubr.bf16.mxu0 %v2669
        %2962 = vmatmul.mubr.bf16.gmra.mrb[0].mxu0 %v2668
        %v2963 = vpop.f32.mrb[0].mxu0
        %v2964 = vadd.f32 0.0, %v2963
        %v2965 = vpop.f32.mrb[0].mxu0
        %v2966 = vpop.f32.mrb[0].mxu0
        %v2967 = vadd.f32 0.0, %v2966
        %v2968 = vpop.f32.mrb[0].mxu0
        %2969 = vmatprep.mubr.bf16.mxu0 %v2672
        %2970 = vmatmul.mubr.bf16.gmra.mrb[0].mxu0 %v2671
        %v2971 = vpop.f32.mrb[0].mxu0
        %v2972 = vadd.f32 0.0, %v2971
        %v2973 = vpop.f32.mrb[0].mxu0
        %v2974 = vpop.f32.mrb[0].mxu0
        %v2975 = vadd.f32 0.0, %v2974
        %v2976 = vpop.f32.mrb[0].mxu0
        %2977 = vmatprep.mubr.bf16.mxu0 %v2675
        %2978 = vmatmul.mubr.bf16.gmra.mrb[0].mxu0 %v2674
        %v2979 = vpop.f32.mrb[0].mxu0
        %v2980 = vadd.f32 0.0, %v2979
        %v2981 = vpop.f32.mrb[0].mxu0
        %v2982 = vpop.f32.mrb[0].mxu0
        %v2983 = vadd.f32 0.0, %v2982
        %v2984 = vpop.f32.mrb[0].mxu0
        %2985 = vmatprep.mubr.bf16.mxu0 %v2678
        %2986 = vmatmul.mubr.bf16.gmra.mrb[0].mxu0 %v2677
        %v2987 = vpop.f32.mrb[0].mxu0
        %v2988 = vadd.f32 0.0, %v2987
        %v2989 = vpop.f32.mrb[0].mxu0
        %v2990 = vpop.f32.mrb[0].mxu0
        %v2991 = vadd.f32 0.0, %v2990
        %v2992 = vpop.f32.mrb[0].mxu0
        %2993 = vmatprep.mubr.bf16.mxu0 %v2681
        %2994 = vmatmul.mubr.bf16.gmra.mrb[0].mxu0 %v2680
        %v2995 = vpop.f32.mrb[0].mxu0
        %v2996 = vadd.f32 0.0, %v2995
        %v2997 = vpop.f32.mrb[0].mxu0
        %v2998 = vpop.f32.mrb[0].mxu0
        %v2999 = vadd.f32 0.0, %v2998
        %v3000 = vpop.f32.mrb[0].mxu0
        %3001 = vmatprep.mubr.bf16.mxu0 %v2684
        %3002 = vmatmul.mubr.bf16.gmra.mrb[0].mxu0 %v2683
        %v3003 = vpop.f32.mrb[0].mxu0
        %v3004 = vadd.f32 0.0, %v3003
        %v3005 = vpop.f32.mrb[0].mxu0
        %v3006 = vpop.f32.mrb[0].mxu0
        %v3007 = vadd.f32 0.0, %v3006
        %v3008 = vpop.f32.mrb[0].mxu0
        %3009 = vmatprep.mubr.bf16.mxu0 %v2687
        %3010 = vmatmul.mubr.bf16.gmra.mrb[0].mxu0 %v2686
        %v3011 = vpop.f32.mrb[0].mxu0
        %v3012 = vadd.f32 0.0, %v3011
        %v3013 = vpop.f32.mrb[0].mxu0
        %v3014 = vpop.f32.mrb[0].mxu0
        %v3015 = vadd.f32 0.0, %v3014
        %v3016 = vpop.f32.mrb[0].mxu0
        %3017 = vmatprep.mubr.bf16.mxu0 %v2690
        %3018 = vmatmul.mubr.bf16.gmra.mrb[0].mxu0 %v2689
        %v3019 = vpop.f32.mrb[0].mxu0
        %v3020 = vadd.f32 0.0, %v3019
        %v3021 = vpop.f32.mrb[0].mxu0
        %v3022 = vpop.f32.mrb[0].mxu0
        %v3023 = vadd.f32 0.0, %v3022
        %v3024 = vpop.f32.mrb[0].mxu0
        %3025 = vmatprep.mubr.bf16.mxu0 %v2693
        %3026 = vmatmul.mubr.bf16.gmra.mrb[0].mxu0 %v2692
        %v3027 = vpop.f32.mrb[0].mxu0
        %v3028 = vadd.f32 0.0, %v3027
        %v3029 = vpop.f32.mrb[0].mxu0
        %v3030 = vpop.f32.mrb[0].mxu0
        %v3031 = vadd.f32 0.0, %v3030
        %v3032 = vpop.f32.mrb[0].mxu0
        %3033 = vmatprep.mubr.bf16.mxu0 %v2696
        %3034 = vmatmul.mubr.bf16.gmra.mrb[0].mxu0 %v2695
        %v3035 = vpop.f32.mrb[0].mxu0
        %v3036 = vadd.f32 0.0, %v3035
        %v3037 = vpop.f32.mrb[0].mxu0
        %v3038 = vpop.f32.mrb[0].mxu0
        %v3039 = vadd.f32 0.0, %v3038
        %v3040 = vpop.f32.mrb[0].mxu0
        %3041 = vmatprep.mubr.bf16.mxu0 %v2699
        %3042 = vmatmul.mubr.bf16.gmra.mrb[0].mxu0 %v2698
        %v3043 = vpop.f32.mrb[0].mxu0
        %v3044 = vadd.f32 0.0, %v3043
        %v3045 = vpop.f32.mrb[0].mxu0
        %v3046 = vpop.f32.mrb[0].mxu0
        %v3047 = vadd.f32 0.0, %v3046
        %v3048 = vpop.f32.mrb[0].mxu0
        %3049 = vmatprep.mubr.bf16.mxu0 %v2702
        %3050 = vmatmul.mubr.bf16.gmra.mrb[0].mxu0 %v2701
        %v3051 = vpop.f32.mrb[0].mxu0
        %v3052 = vadd.f32 0.0, %v3051
        %v3053 = vpop.f32.mrb[0].mxu0
        %v3054 = vpop.f32.mrb[0].mxu0
        %v3055 = vadd.f32 0.0, %v3054
        %v3056 = vpop.f32.mrb[0].mxu0
        %3057 = vdwg.mxu0
        %3058 = vmatprep.subr.bf16.mxu0 0
        %3059 = vmatpush1.bf16.msra.mxu0 %v2865
        %3060 = vmatprep.subr.bf16.mxu0 0
        %3061 = vmatpush1.bf16.msra.mxu0 %v2866
        %3062 = vmatprep.subr.bf16.mxu0 0
        %3063 = vmatpush1.bf16.msra.mxu0 %v2867
        %3064 = vmatprep.subr.bf16.mxu0 0
        %3065 = vmatpush1.bf16.msra.mxu0 %v2868
        %3066 = vmatprep.subr.bf16.mxu0 0
        %3067 = vmatpush1.bf16.msra.mxu0 %v2869
        %3068 = vmatprep.subr.bf16.mxu0 0
        %3069 = vmatpush1.bf16.msra.mxu0 %v2870
        %3070 = vmatprep.subr.bf16.mxu0 0
        %3071 = vmatpush1.bf16.msra.mxu0 %v2871
        %3072 = vmatprep.subr.bf16.mxu0 0
        %3073 = vmatpush1.bf16.msra.mxu0 %v2872
        %3074 = vmatprep.subr.bf16.mxu0 0
        %3075 = vmatpush1.bf16.msra.mxu0 0
        %3076 = vmatprep.subr.bf16.mxu0 0
        %3077 = vmatpush1.bf16.msra.mxu0 0
        %3078 = vmatprep.subr.bf16.mxu0 0
        %3079 = vmatpush1.bf16.msra.mxu0 0
        %3080 = vmatprep.subr.bf16.mxu0 0
        %3081 = vmatpush1.bf16.msra.mxu0 0
        %3082 = vmatprep.subr.bf16.mxu0 0
        %3083 = vmatpush1.bf16.msra.mxu0 0
        %3084 = vmatprep.subr.bf16.mxu0 0
        %3085 = vmatpush1.bf16.msra.mxu0 0
        %3086 = vmatprep.subr.bf16.mxu0 0
        %3087 = vmatpush1.bf16.msra.mxu0 0
        %3088 = vmatprep.subr.bf16.mxu0 0
        %3089 = vmatpush1.bf16.msra.mxu0 0
        %3090 = vmatprep.mubr.bf16.mxu0 0
        %3091 = vmatmul.mubr.bf16.gmra.mrb[0].mxu0 %v2658
        %v3092 = vpop.f32.mrb[0].mxu0
        %v3093 = vadd.f32 %v2932, %v3092
        %v3094 = vpop.f32.mrb[0].mxu0
        %v3095 = vpop.f32.mrb[0].mxu0
        %v3096 = vadd.f32 %v2935, %v3095
        %v3097 = vpop.f32.mrb[0].mxu0
        %3098 = vmatprep.mubr.bf16.mxu0 0
        %3099 = vmatmul.mubr.bf16.gmra.mrb[0].mxu0 %v2661
        %v3100 = vpop.f32.mrb[0].mxu0
        %v3101 = vadd.f32 %v2940, %v3100
        %v3102 = vpop.f32.mrb[0].mxu0
        %v3103 = vpop.f32.mrb[0].mxu0
        %v3104 = vadd.f32 %v2943, %v3103
        %v3105 = vpop.f32.mrb[0].mxu0
        %3106 = vmatprep.mubr.bf16.mxu0 0
        %3107 = vmatmul.mubr.bf16.gmra.mrb[0].mxu0 %v2664
        %v3108 = vpop.f32.mrb[0].mxu0
        %v3109 = vadd.f32 %v2948, %v3108
        %v3110 = vpop.f32.mrb[0].mxu0
        %v3111 = vpop.f32.mrb[0].mxu0
        %v3112 = vadd.f32 %v2951, %v3111
        %v3113 = vpop.f32.mrb[0].mxu0
        %3114 = vmatprep.mubr.bf16.mxu0 0
        %3115 = vmatmul.mubr.bf16.gmra.mrb[0].mxu0 %v2667
        %v3116 = vpop.f32.mrb[0].mxu0
        %v3117 = vadd.f32 %v2956, %v3116
        %v3118 = vpop.f32.mrb[0].mxu0
        %v3119 = vpop.f32.mrb[0].mxu0
        %v3120 = vadd.f32 %v2959, %v3119
        %v3121 = vpop.f32.mrb[0].mxu0
        %3122 = vmatprep.mubr.bf16.mxu0 0
        %3123 = vmatmul.mubr.bf16.gmra.mrb[0].mxu0 %v2670
        %v3124 = vpop.f32.mrb[0].mxu0
        %v3125 = vadd.f32 %v2964, %v3124
        %v3126 = vpop.f32.mrb[0].mxu0
        %v3127 = vpop.f32.mrb[0].mxu0
        %v3128 = vadd.f32 %v2967, %v3127
        %v3129 = vpop.f32.mrb[0].mxu0
        %3130 = vmatprep.mubr.bf16.mxu0 0
        %3131 = vmatmul.mubr.bf16.gmra.mrb[0].mxu0 %v2673
        %v3132 = vpop.f32.mrb[0].mxu0
        %v3133 = vadd.f32 %v2972, %v3132
        %v3134 = vpop.f32.mrb[0].mxu0
        %v3135 = vpop.f32.mrb[0].mxu0
        %v3136 = vadd.f32 %v2975, %v3135
        %v3137 = vpop.f32.mrb[0].mxu0
        %3138 = vmatprep.mubr.bf16.mxu0 0
        %3139 = vmatmul.mubr.bf16.gmra.mrb[0].mxu0 %v2676
        %v3140 = vpop.f32.mrb[0].mxu0
        %v3141 = vadd.f32 %v2980, %v3140
        %v3142 = vpop.f32.mrb[0].mxu0
        %v3143 = vpop.f32.mrb[0].mxu0
        %v3144 = vadd.f32 %v2983, %v3143
        %v3145 = vpop.f32.mrb[0].mxu0
        %3146 = vmatprep.mubr.bf16.mxu0 0
        %3147 = vmatmul.mubr.bf16.gmra.mrb[0].mxu0 %v2679
        %v3148 = vpop.f32.mrb[0].mxu0
        %v3149 = vadd.f32 %v2988, %v3148
        %v3150 = vpop.f32.mrb[0].mxu0
        %v3151 = vpop.f32.mrb[0].mxu0
        %v3152 = vadd.f32 %v2991, %v3151
        %v3153 = vpop.f32.mrb[0].mxu0
        %3154 = vmatprep.mubr.bf16.mxu0 0
        %3155 = vmatmul.mubr.bf16.gmra.mrb[0].mxu0 %v2682
        %v3156 = vpop.f32.mrb[0].mxu0
        %v3157 = vadd.f32 %v2996, %v3156
        %v3158 = vpop.f32.mrb[0].mxu0
        %v3159 = vpop.f32.mrb[0].mxu0
        %v3160 = vadd.f32 %v2999, %v3159
        %v3161 = vpop.f32.mrb[0].mxu0
        %3162 = vmatprep.mubr.bf16.mxu0 0
        %3163 = vmatmul.mubr.bf16.gmra.mrb[0].mxu0 %v2685
        %v3164 = vpop.f32.mrb[0].mxu0
        %v3165 = vadd.f32 %v3004, %v3164
        %v3166 = vpop.f32.mrb[0].mxu0
        %v3167 = vpop.f32.mrb[0].mxu0
        %v3168 = vadd.f32 %v3007, %v3167
        %v3169 = vpop.f32.mrb[0].mxu0
        %3170 = vmatprep.mubr.bf16.mxu0 0
        %3171 = vmatmul.mubr.bf16.gmra.mrb[0].mxu0 %v2688
        %v3172 = vpop.f32.mrb[0].mxu0
        %v3173 = vadd.f32 %v3012, %v3172
        %v3174 = vpop.f32.mrb[0].mxu0
        %v3175 = vpop.f32.mrb[0].mxu0
        %v3176 = vadd.f32 %v3015, %v3175
        %v3177 = vpop.f32.mrb[0].mxu0
        %3178 = vmatprep.mubr.bf16.mxu0 0
        %3179 = vmatmul.mubr.bf16.gmra.mrb[0].mxu0 %v2691
        %v3180 = vpop.f32.mrb[0].mxu0
        %v3181 = vadd.f32 %v3020, %v3180
        %v3182 = vpop.f32.mrb[0].mxu0
        %v3183 = vpop.f32.mrb[0].mxu0
        %v3184 = vadd.f32 %v3023, %v3183
        %v3185 = vpop.f32.mrb[0].mxu0
        %3186 = vmatprep.mubr.bf16.mxu0 0
        %3187 = vmatmul.mubr.bf16.gmra.mrb[0].mxu0 %v2694
        %v3188 = vpop.f32.mrb[0].mxu0
        %v3189 = vadd.f32 %v3028, %v3188
        %v3190 = vpop.f32.mrb[0].mxu0
        %v3191 = vpop.f32.mrb[0].mxu0
        %v3192 = vadd.f32 %v3031, %v3191
        %v3193 = vpop.f32.mrb[0].mxu0
        %3194 = vmatprep.mubr.bf16.mxu0 0
        %3195 = vmatmul.mubr.bf16.gmra.mrb[0].mxu0 %v2697
        %v3196 = vpop.f32.mrb[0].mxu0
        %v3197 = vadd.f32 %v3036, %v3196
        %v3198 = vpop.f32.mrb[0].mxu0
        %v3199 = vpop.f32.mrb[0].mxu0
        %v3200 = vadd.f32 %v3039, %v3199
        %v3201 = vpop.f32.mrb[0].mxu0
        %3202 = vmatprep.mubr.bf16.mxu0 0
        %3203 = vmatmul.mubr.bf16.gmra.mrb[0].mxu0 %v2700
        %v3204 = vpop.f32.mrb[0].mxu0
        %v3205 = vadd.f32 %v3044, %v3204
        %v3206 = vpop.f32.mrb[0].mxu0
        %v3207 = vpop.f32.mrb[0].mxu0
        %v3208 = vadd.f32 %v3047, %v3207
        %v3209 = vpop.f32.mrb[0].mxu0
        %3210 = vmatprep.mubr.bf16.mxu0 0
        %3211 = vmatmul.mubr.bf16.gmra.mrb[0].mxu0 %v2703
        %v3212 = vpop.f32.mrb[0].mxu0
        %v3213 = vadd.f32 %v3052, %v3212
        %v3214 = vpop.f32.mrb[0].mxu0
        %v3215 = vpop.f32.mrb[0].mxu0
        %v3216 = vadd.f32 %v3055, %v3215
        %v3217 = vpop.f32.mrb[0].mxu0
        %3218 = vdwg.mxu0
        %v3267 = vunpack.c.l.b16 %v1808
        %v3268 = vunpack.c.l.b16 %v1809
        %v3269 = vunpack.c.l.b16 %v1810
        %v3270 = vunpack.c.l.b16 %v1811
        %v3271 = vunpack.c.l.b16 %v1812
        %v3272 = vunpack.c.l.b16 %v1813
        %v3273 = vunpack.c.l.b16 %v1814
        %v3274 = vunpack.c.l.b16 %v1815
        %v3275 = vunpack.c.l.b16 %v1816
        %v3276 = vunpack.c.l.b16 %v1817
        %v3277 = vunpack.c.l.b16 %v1818
        %v3278 = vunpack.c.l.b16 %v1819
        %v3279 = vunpack.c.l.b16 %v1820
        %v3280 = vunpack.c.l.b16 %v1821
        %v3281 = vunpack.c.l.b16 %v1822
        %v3282 = vunpack.c.l.b16 %v1823
        %v3283 = vunpack.c.l.b16 %v1824
        %v3284 = vunpack.c.l.b16 %v1825
        %v3285 = vunpack.c.l.b16 %v1826
        %v3286 = vunpack.c.l.b16 %v1827
        %v3287 = vunpack.c.l.b16 %v1828
        %v3288 = vunpack.c.l.b16 %v1829
        %v3289 = vunpack.c.l.b16 %v1830
        %v3290 = vunpack.c.l.b16 %v1831
        %v3291 = vunpack.c.l.b16 %v1832
        %v3292 = vunpack.c.l.b16 %v1833
        %v3293 = vunpack.c.l.b16 %v1834
        %v3294 = vunpack.c.l.b16 %v1835
        %v3295 = vunpack.c.l.b16 %v1836
        %v3296 = vunpack.c.l.b16 %v1837
        %v3297 = vunpack.c.l.b16 %v1838
        %v3298 = vunpack.c.l.b16 %v1839
        %v3299 = vunpack.c.l.b16 %v1840
        %v3300 = vunpack.c.l.b16 %v1841
        %v3301 = vunpack.c.l.b16 %v1842
        %v3302 = vunpack.c.l.b16 %v1843
        %v3303 = vunpack.c.l.b16 %v1844
        %v3304 = vunpack.c.l.b16 %v1845
        %v3305 = vunpack.c.l.b16 %v1846
        %v3306 = vunpack.c.l.b16 %v1847
        %v3307 = vunpack.c.l.b16 %v1848
        %v3308 = vunpack.c.l.b16 %v1849
        %v3309 = vunpack.c.l.b16 %v1850
        %v3310 = vunpack.c.l.b16 %v1851
        %v3311 = vunpack.c.l.b16 %v1852
        %v3312 = vunpack.c.l.b16 %v1853
        %v3313 = vunpack.c.l.b16 %v1854
        %v3314 = vunpack.c.l.b16 %v1855
        %v3315 = vpack.c.b16 %v3268, %v3267
        %v3316 = vpack.c.b16 %v3270, %v3269
        %v3317 = vpack.c.b16 %v3272, %v3271
        %v3318 = vpack.c.b16 %v3274, %v3273
        %v3319 = vpack.c.b16 %v3276, %v3275
        %v3320 = vpack.c.b16 %v3278, %v3277
        %v3321 = vpack.c.b16 %v3280, %v3279
        %v3322 = vpack.c.b16 %v3282, %v3281
        %v3323 = vpack.c.b16 %v3284, %v3283
        %v3324 = vpack.c.b16 %v3286, %v3285
        %v3325 = vpack.c.b16 %v3288, %v3287
        %v3326 = vpack.c.b16 %v3290, %v3289
        %v3327 = vpack.c.b16 %v3292, %v3291
        %v3328 = vpack.c.b16 %v3294, %v3293
        %v3329 = vpack.c.b16 %v3296, %v3295
        %v3330 = vpack.c.b16 %v3298, %v3297
        %v3331 = vpack.c.b16 %v3300, %v3299
        %v3332 = vpack.c.b16 %v3302, %v3301
        %v3333 = vpack.c.b16 %v3304, %v3303
        %v3334 = vpack.c.b16 %v3306, %v3305
        %v3335 = vpack.c.b16 %v3308, %v3307
        %v3336 = vpack.c.b16 %v3310, %v3309
        %v3337 = vpack.c.b16 %v3312, %v3311
        %v3338 = vpack.c.b16 %v3314, %v3313
        %3363 = vmatprep.subr.bf16.mxu0 0
        %3364 = vmatpush1.bf16.msra.mxu0 %v3315
        %3365 = vmatprep.subr.bf16.mxu0 0
        %3366 = vmatpush1.bf16.msra.mxu0 %v3316
        %3367 = vmatprep.subr.bf16.mxu0 0
        %3368 = vmatpush1.bf16.msra.mxu0 %v3317
        %3369 = vmatprep.subr.bf16.mxu0 0
        %3370 = vmatpush1.bf16.msra.mxu0 %v3318
        %3371 = vmatprep.subr.bf16.mxu0 0
        %3372 = vmatpush1.bf16.msra.mxu0 %v3319
        %3373 = vmatprep.subr.bf16.mxu0 0
        %3374 = vmatpush1.bf16.msra.mxu0 %v3320
        %3375 = vmatprep.subr.bf16.mxu0 0
        %3376 = vmatpush1.bf16.msra.mxu0 %v3321
        %3377 = vmatprep.subr.bf16.mxu0 0
        %3378 = vmatpush1.bf16.msra.mxu0 %v3322
        %3379 = vmatprep.subr.bf16.mxu0 0
        %3380 = vmatpush1.bf16.msra.mxu0 %v3323
        %3381 = vmatprep.subr.bf16.mxu0 0
        %3382 = vmatpush1.bf16.msra.mxu0 %v3324
        %3383 = vmatprep.subr.bf16.mxu0 0
        %3384 = vmatpush1.bf16.msra.mxu0 %v3325
        %3385 = vmatprep.subr.bf16.mxu0 0
        %3386 = vmatpush1.bf16.msra.mxu0 %v3326
        %3387 = vmatprep.subr.bf16.mxu0 0
        %3388 = vmatpush1.bf16.msra.mxu0 %v3327
        %3389 = vmatprep.subr.bf16.mxu0 0
        %3390 = vmatpush1.bf16.msra.mxu0 %v3328
        %3391 = vmatprep.subr.bf16.mxu0 0
        %3392 = vmatpush1.bf16.msra.mxu0 %v3329
        %3393 = vmatprep.subr.bf16.mxu0 0
        %3394 = vmatpush1.bf16.msra.mxu0 %v3330
        %3395 = vmatprep.mubr.bf16.mxu0 %v1761
        %3396 = vmatmul.mubr.bf16.gmra.mrb[0].mxu0 %v1760
        %v3397 = vpop.f32.mrb[0].mxu0
        %v3398 = vadd.f32 %v3093, %v3397
        %v3399 = vpop.f32.mrb[0].mxu0
        %v3400 = vpop.f32.mrb[0].mxu0
        %v3401 = vadd.f32 %v3096, %v3400
        %v3402 = vpop.f32.mrb[0].mxu0
        %3403 = vmatprep.mubr.bf16.mxu0 %v1764
        %3404 = vmatmul.mubr.bf16.gmra.mrb[0].mxu0 %v1763
        %v3405 = vpop.f32.mrb[0].mxu0
        %v3406 = vadd.f32 %v3101, %v3405
        %v3407 = vpop.f32.mrb[0].mxu0
        %v3408 = vpop.f32.mrb[0].mxu0
        %v3409 = vadd.f32 %v3104, %v3408
        %v3410 = vpop.f32.mrb[0].mxu0
        %3411 = vmatprep.mubr.bf16.mxu0 %v1767
        %3412 = vmatmul.mubr.bf16.gmra.mrb[0].mxu0 %v1766
        %v3413 = vpop.f32.mrb[0].mxu0
        %v3414 = vadd.f32 %v3109, %v3413
        %v3415 = vpop.f32.mrb[0].mxu0
        %v3416 = vpop.f32.mrb[0].mxu0
        %v3417 = vadd.f32 %v3112, %v3416
        %v3418 = vpop.f32.mrb[0].mxu0
        %3419 = vmatprep.mubr.bf16.mxu0 %v1770
        %3420 = vmatmul.mubr.bf16.gmra.mrb[0].mxu0 %v1769
        %v3421 = vpop.f32.mrb[0].mxu0
        %v3422 = vadd.f32 %v3117, %v3421
        %v3423 = vpop.f32.mrb[0].mxu0
        %v3424 = vpop.f32.mrb[0].mxu0
        %v3425 = vadd.f32 %v3120, %v3424
        %v3426 = vpop.f32.mrb[0].mxu0
        %3427 = vmatprep.mubr.bf16.mxu0 %v1773
        %3428 = vmatmul.mubr.bf16.gmra.mrb[0].mxu0 %v1772
        %v3429 = vpop.f32.mrb[0].mxu0
        %v3430 = vadd.f32 %v3125, %v3429
        %v3431 = vpop.f32.mrb[0].mxu0
        %v3432 = vpop.f32.mrb[0].mxu0
        %v3433 = vadd.f32 %v3128, %v3432
        %v3434 = vpop.f32.mrb[0].mxu0
        %3435 = vmatprep.mubr.bf16.mxu0 %v1776
        %3436 = vmatmul.mubr.bf16.gmra.mrb[0].mxu0 %v1775
        %v3437 = vpop.f32.mrb[0].mxu0
        %v3438 = vadd.f32 %v3133, %v3437
        %v3439 = vpop.f32.mrb[0].mxu0
        %v3440 = vpop.f32.mrb[0].mxu0
        %v3441 = vadd.f32 %v3136, %v3440
        %v3442 = vpop.f32.mrb[0].mxu0
        %3443 = vmatprep.mubr.bf16.mxu0 %v1779
        %3444 = vmatmul.mubr.bf16.gmra.mrb[0].mxu0 %v1778
        %v3445 = vpop.f32.mrb[0].mxu0
        %v3446 = vadd.f32 %v3141, %v3445
        %v3447 = vpop.f32.mrb[0].mxu0
        %v3448 = vpop.f32.mrb[0].mxu0
        %v3449 = vadd.f32 %v3144, %v3448
        %v3450 = vpop.f32.mrb[0].mxu0
        %3451 = vmatprep.mubr.bf16.mxu0 %v1782
        %3452 = vmatmul.mubr.bf16.gmra.mrb[0].mxu0 %v1781
        %v3453 = vpop.f32.mrb[0].mxu0
        %v3454 = vadd.f32 %v3149, %v3453
        %v3455 = vpop.f32.mrb[0].mxu0
        %v3456 = vpop.f32.mrb[0].mxu0
        %v3457 = vadd.f32 %v3152, %v3456
        %v3458 = vpop.f32.mrb[0].mxu0
        %3459 = vmatprep.mubr.bf16.mxu0 %v1785
        %3460 = vmatmul.mubr.bf16.gmra.mrb[0].mxu0 %v1784
        %v3461 = vpop.f32.mrb[0].mxu0
        %v3462 = vadd.f32 %v3157, %v3461
        %v3463 = vpop.f32.mrb[0].mxu0
        %v3464 = vpop.f32.mrb[0].mxu0
        %v3465 = vadd.f32 %v3160, %v3464
        %v3466 = vpop.f32.mrb[0].mxu0
        %3467 = vmatprep.mubr.bf16.mxu0 %v1788
        %3468 = vmatmul.mubr.bf16.gmra.mrb[0].mxu0 %v1787
        %v3469 = vpop.f32.mrb[0].mxu0
        %v3470 = vadd.f32 %v3165, %v3469
        %v3471 = vpop.f32.mrb[0].mxu0
        %v3472 = vpop.f32.mrb[0].mxu0
        %v3473 = vadd.f32 %v3168, %v3472
        %v3474 = vpop.f32.mrb[0].mxu0
        %3475 = vmatprep.mubr.bf16.mxu0 %v1791
        %3476 = vmatmul.mubr.bf16.gmra.mrb[0].mxu0 %v1790
        %v3477 = vpop.f32.mrb[0].mxu0
        %v3478 = vadd.f32 %v3173, %v3477
        %v3479 = vpop.f32.mrb[0].mxu0
        %v3480 = vpop.f32.mrb[0].mxu0
        %v3481 = vadd.f32 %v3176, %v3480
        %v3482 = vpop.f32.mrb[0].mxu0
        %3483 = vmatprep.mubr.bf16.mxu0 %v1794
        %3484 = vmatmul.mubr.bf16.gmra.mrb[0].mxu0 %v1793
        %v3485 = vpop.f32.mrb[0].mxu0
        %v3486 = vadd.f32 %v3181, %v3485
        %v3487 = vpop.f32.mrb[0].mxu0
        %v3488 = vpop.f32.mrb[0].mxu0
        %v3489 = vadd.f32 %v3184, %v3488
        %v3490 = vpop.f32.mrb[0].mxu0
        %3491 = vmatprep.mubr.bf16.mxu0 %v1797
        %3492 = vmatmul.mubr.bf16.gmra.mrb[0].mxu0 %v1796
        %v3493 = vpop.f32.mrb[0].mxu0
        %v3494 = vadd.f32 %v3189, %v3493
        %v3495 = vpop.f32.mrb[0].mxu0
        %v3496 = vpop.f32.mrb[0].mxu0
        %v3497 = vadd.f32 %v3192, %v3496
        %v3498 = vpop.f32.mrb[0].mxu0
        %3499 = vmatprep.mubr.bf16.mxu0 %v1800
        %3500 = vmatmul.mubr.bf16.gmra.mrb[0].mxu0 %v1799
        %v3501 = vpop.f32.mrb[0].mxu0
        %v3502 = vadd.f32 %v3197, %v3501
        %v3503 = vpop.f32.mrb[0].mxu0
        %v3504 = vpop.f32.mrb[0].mxu0
        %v3505 = vadd.f32 %v3200, %v3504
        %v3506 = vpop.f32.mrb[0].mxu0
        %3507 = vmatprep.mubr.bf16.mxu0 %v1803
        %3508 = vmatmul.mubr.bf16.gmra.mrb[0].mxu0 %v1802
        %v3509 = vpop.f32.mrb[0].mxu0
        %v3510 = vadd.f32 %v3205, %v3509
        %v3511 = vpop.f32.mrb[0].mxu0
        %v3512 = vpop.f32.mrb[0].mxu0
        %v3513 = vadd.f32 %v3208, %v3512
        %v3514 = vpop.f32.mrb[0].mxu0
        %3515 = vmatprep.mubr.bf16.mxu0 %v1806
        %3516 = vmatmul.mubr.bf16.gmra.mrb[0].mxu0 %v1805
        %v3517 = vpop.f32.mrb[0].mxu0
        %v3518 = vadd.f32 %v3213, %v3517
        %v3519 = vpop.f32.mrb[0].mxu0
        %v3520 = vpop.f32.mrb[0].mxu0
        %v3521 = vadd.f32 %v3216, %v3520
        %v3522 = vpop.f32.mrb[0].mxu0
        %3523 = vdwg.mxu0
        %3524 = vmatprep.subr.bf16.mxu0 0
        %3525 = vmatpush1.bf16.msra.mxu0 %v3331
        %3526 = vmatprep.subr.bf16.mxu0 0
        %3527 = vmatpush1.bf16.msra.mxu0 %v3332
        %3528 = vmatprep.subr.bf16.mxu0 0
        %3529 = vmatpush1.bf16.msra.mxu0 %v3333
        %3530 = vmatprep.subr.bf16.mxu0 0
        %3531 = vmatpush1.bf16.msra.mxu0 %v3334
        %3532 = vmatprep.subr.bf16.mxu0 0
        %3533 = vmatpush1.bf16.msra.mxu0 %v3335
        %3534 = vmatprep.subr.bf16.mxu0 0
        %3535 = vmatpush1.bf16.msra.mxu0 %v3336
        %3536 = vmatprep.subr.bf16.mxu0 0
        %3537 = vmatpush1.bf16.msra.mxu0 %v3337
        %3538 = vmatprep.subr.bf16.mxu0 0
        %3539 = vmatpush1.bf16.msra.mxu0 %v3338
        %3540 = vmatprep.subr.bf16.mxu0 0
        %3541 = vmatpush1.bf16.msra.mxu0 0
        %3542 = vmatprep.subr.bf16.mxu0 0
        %3543 = vmatpush1.bf16.msra.mxu0 0
        %3544 = vmatprep.subr.bf16.mxu0 0
        %3545 = vmatpush1.bf16.msra.mxu0 0
        %3546 = vmatprep.subr.bf16.mxu0 0
        %3547 = vmatpush1.bf16.msra.mxu0 0
        %3548 = vmatprep.subr.bf16.mxu0 0
        %3549 = vmatpush1.bf16.msra.mxu0 0
        %3550 = vmatprep.subr.bf16.mxu0 0
        %3551 = vmatpush1.bf16.msra.mxu0 0
        %3552 = vmatprep.subr.bf16.mxu0 0
        %3553 = vmatpush1.bf16.msra.mxu0 0
        %3554 = vmatprep.subr.bf16.mxu0 0
        %3555 = vmatpush1.bf16.msra.mxu0 0
        %3556 = vmatprep.mubr.bf16.mxu0 0
        %3557 = vmatmul.mubr.bf16.gmra.mrb[0].mxu0 %v1762
        %v3558 = vpop.f32.mrb[0].mxu0
        %v3559 = vadd.f32 %v3398, %v3558
        %v3560 = vpop.f32.mrb[0].mxu0
        %v3561 = vpop.f32.mrb[0].mxu0
        %v3562 = vadd.f32 %v3401, %v3561
        %v3563 = vpop.f32.mrb[0].mxu0
        %3564 = vmatprep.mubr.bf16.mxu0 0
        %3565 = vmatmul.mubr.bf16.gmra.mrb[0].mxu0 %v1765
        %v3566 = vpop.f32.mrb[0].mxu0
        %v3567 = vadd.f32 %v3406, %v3566
        %v3568 = vpop.f32.mrb[0].mxu0
        %v3569 = vpop.f32.mrb[0].mxu0
        %v3570 = vadd.f32 %v3409, %v3569
        %v3571 = vpop.f32.mrb[0].mxu0
        %3572 = vmatprep.mubr.bf16.mxu0 0
        %3573 = vmatmul.mubr.bf16.gmra.mrb[0].mxu0 %v1768
        %v3574 = vpop.f32.mrb[0].mxu0
        %v3575 = vadd.f32 %v3414, %v3574
        %v3576 = vpop.f32.mrb[0].mxu0
        %v3577 = vpop.f32.mrb[0].mxu0
        %v3578 = vadd.f32 %v3417, %v3577
        %v3579 = vpop.f32.mrb[0].mxu0
        %3580 = vmatprep.mubr.bf16.mxu0 0
        %3581 = vmatmul.mubr.bf16.gmra.mrb[0].mxu0 %v1771
        %v3582 = vpop.f32.mrb[0].mxu0
        %v3583 = vadd.f32 %v3422, %v3582
        %v3584 = vpop.f32.mrb[0].mxu0
        %v3585 = vpop.f32.mrb[0].mxu0
        %v3586 = vadd.f32 %v3425, %v3585
        %v3587 = vpop.f32.mrb[0].mxu0
        %3588 = vmatprep.mubr.bf16.mxu0 0
        %3589 = vmatmul.mubr.bf16.gmra.mrb[0].mxu0 %v1774
        %v3590 = vpop.f32.mrb[0].mxu0
        %v3591 = vadd.f32 %v3430, %v3590
        %v3592 = vpop.f32.mrb[0].mxu0
        %v3593 = vpop.f32.mrb[0].mxu0
        %v3594 = vadd.f32 %v3433, %v3593
        %v3595 = vpop.f32.mrb[0].mxu0
        %3596 = vmatprep.mubr.bf16.mxu0 0
        %3597 = vmatmul.mubr.bf16.gmra.mrb[0].mxu0 %v1777
        %v3598 = vpop.f32.mrb[0].mxu0
        %v3599 = vadd.f32 %v3438, %v3598
        %v3600 = vpop.f32.mrb[0].mxu0
        %v3601 = vpop.f32.mrb[0].mxu0
        %v3602 = vadd.f32 %v3441, %v3601
        %v3603 = vpop.f32.mrb[0].mxu0
        %3604 = vmatprep.mubr.bf16.mxu0 0
        %3605 = vmatmul.mubr.bf16.gmra.mrb[0].mxu0 %v1780
        %v3606 = vpop.f32.mrb[0].mxu0
        %v3607 = vadd.f32 %v3446, %v3606
        %v3608 = vpop.f32.mrb[0].mxu0
        %v3609 = vpop.f32.mrb[0].mxu0
        %v3610 = vadd.f32 %v3449, %v3609
        %v3611 = vpop.f32.mrb[0].mxu0
        %3612 = vmatprep.mubr.bf16.mxu0 0
        %3613 = vmatmul.mubr.bf16.gmra.mrb[0].mxu0 %v1783
        %v3614 = vpop.f32.mrb[0].mxu0
        %v3615 = vadd.f32 %v3454, %v3614
        %v3616 = vpop.f32.mrb[0].mxu0
        %v3617 = vpop.f32.mrb[0].mxu0
        %v3618 = vadd.f32 %v3457, %v3617
        %v3619 = vpop.f32.mrb[0].mxu0
        %3620 = vmatprep.mubr.bf16.mxu0 0
        %3621 = vmatmul.mubr.bf16.gmra.mrb[0].mxu0 %v1786
        %v3622 = vpop.f32.mrb[0].mxu0
        %v3623 = vadd.f32 %v3462, %v3622
        %v3624 = vpop.f32.mrb[0].mxu0
        %v3625 = vpop.f32.mrb[0].mxu0
        %v3626 = vadd.f32 %v3465, %v3625
        %v3627 = vpop.f32.mrb[0].mxu0
        %3628 = vmatprep.mubr.bf16.mxu0 0
        %3629 = vmatmul.mubr.bf16.gmra.mrb[0].mxu0 %v1789
        %v3630 = vpop.f32.mrb[0].mxu0
        %v3631 = vadd.f32 %v3470, %v3630
        %v3632 = vpop.f32.mrb[0].mxu0
        %v3633 = vpop.f32.mrb[0].mxu0
        %v3634 = vadd.f32 %v3473, %v3633
        %v3635 = vpop.f32.mrb[0].mxu0
        %3636 = vmatprep.mubr.bf16.mxu0 0
        %3637 = vmatmul.mubr.bf16.gmra.mrb[0].mxu0 %v1792
        %v3638 = vpop.f32.mrb[0].mxu0
        %v3639 = vadd.f32 %v3478, %v3638
        %v3640 = vpop.f32.mrb[0].mxu0
        %v3641 = vpop.f32.mrb[0].mxu0
        %v3642 = vadd.f32 %v3481, %v3641
        %v3643 = vpop.f32.mrb[0].mxu0
        %3644 = vmatprep.mubr.bf16.mxu0 0
        %3645 = vmatmul.mubr.bf16.gmra.mrb[0].mxu0 %v1795
        %v3646 = vpop.f32.mrb[0].mxu0
        %v3647 = vadd.f32 %v3486, %v3646
        %v3648 = vpop.f32.mrb[0].mxu0
        %v3649 = vpop.f32.mrb[0].mxu0
        %v3650 = vadd.f32 %v3489, %v3649
        %v3651 = vpop.f32.mrb[0].mxu0
        %3652 = vmatprep.mubr.bf16.mxu0 0
        %3653 = vmatmul.mubr.bf16.gmra.mrb[0].mxu0 %v1798
        %v3654 = vpop.f32.mrb[0].mxu0
        %v3655 = vadd.f32 %v3494, %v3654
        %v3656 = vpop.f32.mrb[0].mxu0
        %v3657 = vpop.f32.mrb[0].mxu0
        %v3658 = vadd.f32 %v3497, %v3657
        %v3659 = vpop.f32.mrb[0].mxu0
        %3660 = vmatprep.mubr.bf16.mxu0 0
        %3661 = vmatmul.mubr.bf16.gmra.mrb[0].mxu0 %v1801
        %v3662 = vpop.f32.mrb[0].mxu0
        %v3663 = vadd.f32 %v3502, %v3662
        %v3664 = vpop.f32.mrb[0].mxu0
        %v3665 = vpop.f32.mrb[0].mxu0
        %v3666 = vadd.f32 %v3505, %v3665
        %v3667 = vpop.f32.mrb[0].mxu0
        %3668 = vmatprep.mubr.bf16.mxu0 0
        %3669 = vmatmul.mubr.bf16.gmra.mrb[0].mxu0 %v1804
        %v3670 = vpop.f32.mrb[0].mxu0
        %v3671 = vadd.f32 %v3510, %v3670
        %v3672 = vpop.f32.mrb[0].mxu0
        %v3673 = vpop.f32.mrb[0].mxu0
        %v3674 = vadd.f32 %v3513, %v3673
        %v3675 = vpop.f32.mrb[0].mxu0
        %3676 = vmatprep.mubr.bf16.mxu0 0
        %3677 = vmatmul.mubr.bf16.gmra.mrb[0].mxu0 %v1807
        %v3678 = vpop.f32.mrb[0].mxu0
        %v3679 = vadd.f32 %v3518, %v3678
        %v3680 = vpop.f32.mrb[0].mxu0
        %v3681 = vpop.f32.mrb[0].mxu0
        %v3682 = vadd.f32 %v3521, %v3681
        %v3683 = vpop.f32.mrb[0].mxu0
        %3684 = vdwg.mxu0
        %s3685 = scalar_lea.vmem [#allocation2], 24
        %v3686 = vld [vmem:[%s3685] sm:$0xf]
        %v3687 = vld [vmem:[%s3685 + $0x4] sm:$0xf]
        %v3688 = vld [vmem:[%s3685 + $0xc] sm:$0xf]
        %v3689 = vld [vmem:[%s3685 + $0x10] sm:$0xf]
        %v3690 = vld [vmem:[%s3685 + $0x18] sm:$0xf]
        %v3691 = vld [vmem:[%s3685 + $0x1c] sm:$0xf]
        %v3692 = vld [vmem:[%s3685 + $0x24] sm:$0xf]
        %v3693 = vld [vmem:[%s3685 + $0x28] sm:$0xf]
        %v3694 = vld [vmem:[%s3685 + $0x30] sm:$0xf]
        %v3695 = vld [vmem:[%s3685 + $0x34] sm:$0xf]
        %v3696 = vld [vmem:[%s3685 + $0x3c] sm:$0xf]
        %v3697 = vld [vmem:[%s3685 + $0x40] sm:$0xf]
        %v3698 = vld [vmem:[%s3685 + $0x48] sm:$0xf]
        %v3699 = vld [vmem:[%s3685 + $0x4c] sm:$0xf]
        %v3700 = vld [vmem:[%s3685 + $0x54] sm:$0xf]
        %v3701 = vld [vmem:[%s3685 + $0x58] sm:$0xf]
        %v3702 = vld [vmem:[%s3685 + $0x60] sm:$0xf]
        %v3703 = vld [vmem:[%s3685 + $0x64] sm:$0xf]
        %v3704 = vld [vmem:[%s3685 + $0x6c] sm:$0xf]
        %v3705 = vld [vmem:[%s3685 + $0x70] sm:$0xf]
        %v3706 = vld [vmem:[%s3685 + $0x78] sm:$0xf]
        %v3707 = vld [vmem:[%s3685 + $0x7c] sm:$0xf]
        %v3708 = vld [vmem:[%s3685 + $0x84] sm:$0xf]
        %v3709 = vld [vmem:[%s3685 + $0x88] sm:$0xf]
        %v3710 = vld [vmem:[%s3685 + $0x90] sm:$0xf]
        %v3711 = vld [vmem:[%s3685 + $0x94] sm:$0xf]
        %v3712 = vld [vmem:[%s3685 + $0x9c] sm:$0xf]
        %v3713 = vld [vmem:[%s3685 + $0xa0] sm:$0xf]
        %v3714 = vld [vmem:[%s3685 + $0xa8] sm:$0xf]
        %v3715 = vld [vmem:[%s3685 + $0xac] sm:$0xf]
        %v3716 = vld [vmem:[%s3685 + $0xb4] sm:$0xf]
        %v3717 = vld [vmem:[%s3685 + $0xb8] sm:$0xf]
        %v3750 = vunpack.c.l.b16 %v3686
        %v3751 = vunpack.c.l.b16 %v3687
        %v3752 = vunpack.c.l.b16 %v3688
        %v3753 = vunpack.c.l.b16 %v3689
        %v3754 = vunpack.c.l.b16 %v3690
        %v3755 = vunpack.c.l.b16 %v3691
        %v3756 = vunpack.c.l.b16 %v3692
        %v3757 = vunpack.c.l.b16 %v3693
        %v3758 = vunpack.c.l.b16 %v3694
        %v3759 = vunpack.c.l.b16 %v3695
        %v3760 = vunpack.c.l.b16 %v3696
        %v3761 = vunpack.c.l.b16 %v3697
        %v3762 = vunpack.c.l.b16 %v3698
        %v3763 = vunpack.c.l.b16 %v3699
        %v3764 = vunpack.c.l.b16 %v3700
        %v3765 = vunpack.c.l.b16 %v3701
        %v3766 = vunpack.c.l.b16 %v3702
        %v3767 = vunpack.c.l.b16 %v3703
        %v3768 = vunpack.c.l.b16 %v3704
        %v3769 = vunpack.c.l.b16 %v3705
        %v3770 = vunpack.c.l.b16 %v3706
        %v3771 = vunpack.c.l.b16 %v3707
        %v3772 = vunpack.c.l.b16 %v3708
        %v3773 = vunpack.c.l.b16 %v3709
        %v3774 = vunpack.c.l.b16 %v3710
        %v3775 = vunpack.c.l.b16 %v3711
        %v3776 = vunpack.c.l.b16 %v3712
        %v3777 = vunpack.c.l.b16 %v3713
        %v3778 = vunpack.c.l.b16 %v3714
        %v3779 = vunpack.c.l.b16 %v3715
        %v3780 = vunpack.c.l.b16 %v3716
        %v3781 = vunpack.c.l.b16 %v3717
        %v3782 = vpack.c.b16 %v3751, %v3750
        %v3783 = vpack.c.b16 %v3753, %v3752
        %v3784 = vpack.c.b16 %v3755, %v3754
        %v3785 = vpack.c.b16 %v3757, %v3756
        %v3786 = vpack.c.b16 %v3759, %v3758
        %v3787 = vpack.c.b16 %v3761, %v3760
        %v3788 = vpack.c.b16 %v3763, %v3762
        %v3789 = vpack.c.b16 %v3765, %v3764
        %v3790 = vpack.c.b16 %v3767, %v3766
        %v3791 = vpack.c.b16 %v3769, %v3768
        %v3792 = vpack.c.b16 %v3771, %v3770
        %v3793 = vpack.c.b16 %v3773, %v3772
        %v3794 = vpack.c.b16 %v3775, %v3774
        %v3795 = vpack.c.b16 %v3777, %v3776
        %v3796 = vpack.c.b16 %v3779, %v3778
        %v3797 = vpack.c.b16 %v3781, %v3780
        %3814 = vst [vmem:[#allocation3] sm:$0xff] %v3782
        %3815 = vst [vmem:[#allocation3 + $0x18] sm:$0xff] %v3783
        %3816 = vst [vmem:[#allocation3 + $0x30] sm:$0xff] %v3784
        %3817 = vst [vmem:[#allocation3 + $0x48] sm:$0xff] %v3785
        %3818 = vst [vmem:[#allocation3 + $0x60] sm:$0xff] %v3786
        %3819 = vst [vmem:[#allocation3 + $0x78] sm:$0xff] %v3787
        %3820 = vst [vmem:[#allocation3 + $0x90] sm:$0xff] %v3788
        %3821 = vst [vmem:[#allocation3 + $0xa8] sm:$0xff] %v3789
        %3822 = vst [vmem:[#allocation3 + $0xc0] sm:$0xff] %v3790
        %3823 = vst [vmem:[#allocation3 + $0xd8] sm:$0xff] %v3791
        %3824 = vst [vmem:[#allocation3 + $0xf0] sm:$0xff] %v3792
        %3825 = vst [vmem:[#allocation3 + $0x108] sm:$0xff] %v3793
        %3826 = vst [vmem:[#allocation3 + $0x120] sm:$0xff] %v3794
        %3827 = vst [vmem:[#allocation3 + $0x138] sm:$0xff] %v3795
        %3828 = vst [vmem:[#allocation3 + $0x150] sm:$0xff] %v3796
        %3829 = vst [vmem:[#allocation3 + $0x168] sm:$0xff] %v3797
        %v3830 = vld [vmem:[%s3685] sm:$0xf]
        %v3831 = vld [vmem:[%s3685 + $0x4] sm:$0xf]
        %v3832 = vld [vmem:[%s3685 + $0x8] sm:$0x1]
        %v3833 = vld [vmem:[%s3685 + $0xc] sm:$0xf]
        %v3834 = vld [vmem:[%s3685 + $0x10] sm:$0xf]
        %v3835 = vld [vmem:[%s3685 + $0x14] sm:$0x1]
        %v3836 = vld [vmem:[%s3685 + $0x18] sm:$0xf]
        %v3837 = vld [vmem:[%s3685 + $0x1c] sm:$0xf]
        %v3838 = vld [vmem:[%s3685 + $0x20] sm:$0x1]
        %v3839 = vld [vmem:[%s3685 + $0x24] sm:$0xf]
        %v3840 = vld [vmem:[%s3685 + $0x28] sm:$0xf]
        %v3841 = vld [vmem:[%s3685 + $0x2c] sm:$0x1]
        %v3842 = vld [vmem:[%s3685 + $0x30] sm:$0xf]
        %v3843 = vld [vmem:[%s3685 + $0x34] sm:$0xf]
        %v3844 = vld [vmem:[%s3685 + $0x38] sm:$0x1]
        %v3845 = vld [vmem:[%s3685 + $0x3c] sm:$0xf]
        %v3846 = vld [vmem:[%s3685 + $0x40] sm:$0xf]
        %v3847 = vld [vmem:[%s3685 + $0x44] sm:$0x1]
        %v3848 = vld [vmem:[%s3685 + $0x48] sm:$0xf]
        %v3849 = vld [vmem:[%s3685 + $0x4c] sm:$0xf]
        %v3850 = vld [vmem:[%s3685 + $0x50] sm:$0x1]
        %v3851 = vld [vmem:[%s3685 + $0x54] sm:$0xf]
        %v3852 = vld [vmem:[%s3685 + $0x58] sm:$0xf]
        %v3853 = vld [vmem:[%s3685 + $0x5c] sm:$0x1]
        %v3854 = vld [vmem:[%s3685 + $0x60] sm:$0xf]
        %v3855 = vld [vmem:[%s3685 + $0x64] sm:$0xf]
        %v3856 = vld [vmem:[%s3685 + $0x68] sm:$0x1]
        %v3857 = vld [vmem:[%s3685 + $0x6c] sm:$0xf]
        %v3858 = vld [vmem:[%s3685 + $0x70] sm:$0xf]
        %v3859 = vld [vmem:[%s3685 + $0x74] sm:$0x1]
        %v3860 = vld [vmem:[%s3685 + $0x78] sm:$0xf]
        %v3861 = vld [vmem:[%s3685 + $0x7c] sm:$0xf]
        %v3862 = vld [vmem:[%s3685 + $0x80] sm:$0x1]
        %v3863 = vld [vmem:[%s3685 + $0x84] sm:$0xf]
        %v3864 = vld [vmem:[%s3685 + $0x88] sm:$0xf]
        %v3865 = vld [vmem:[%s3685 + $0x8c] sm:$0x1]
        %v3866 = vld [vmem:[%s3685 + $0x90] sm:$0xf]
        %v3867 = vld [vmem:[%s3685 + $0x94] sm:$0xf]
        %v3868 = vld [vmem:[%s3685 + $0x98] sm:$0x1]
        %v3869 = vld [vmem:[%s3685 + $0x9c] sm:$0xf]
        %v3870 = vld [vmem:[%s3685 + $0xa0] sm:$0xf]
        %v3871 = vld [vmem:[%s3685 + $0xa4] sm:$0x1]
        %v3872 = vld [vmem:[%s3685 + $0xa8] sm:$0xf]
        %v3873 = vld [vmem:[%s3685 + $0xac] sm:$0xf]
        %v3874 = vld [vmem:[%s3685 + $0xb0] sm:$0x1]
        %v3875 = vld [vmem:[%s3685 + $0xb4] sm:$0xf]
        %v3876 = vld [vmem:[%s3685 + $0xb8] sm:$0xf]
        %v3877 = vld [vmem:[%s3685 + $0xbc] sm:$0x1]
        %v3926 = vunpack.c.l.b16 %v3830
        %v3927 = vunpack.c.l.b16 %v3831
        %v3928 = vunpack.c.l.b16 %v3832
        %v3929 = vunpack.c.l.b16 %v3833
        %v3930 = vunpack.c.l.b16 %v3834
        %v3931 = vunpack.c.l.b16 %v3835
        %v3932 = vunpack.c.l.b16 %v3836
        %v3933 = vunpack.c.l.b16 %v3837
        %v3934 = vunpack.c.l.b16 %v3838
        %v3935 = vunpack.c.l.b16 %v3839
        %v3936 = vunpack.c.l.b16 %v3840
        %v3937 = vunpack.c.l.b16 %v3841
        %v3938 = vunpack.c.l.b16 %v3842
        %v3939 = vunpack.c.l.b16 %v3843
        %v3940 = vunpack.c.l.b16 %v3844
        %v3941 = vunpack.c.l.b16 %v3845
        %v3942 = vunpack.c.l.b16 %v3846
        %v3943 = vunpack.c.l.b16 %v3847
        %v3944 = vunpack.c.l.b16 %v3848
        %v3945 = vunpack.c.l.b16 %v3849
        %v3946 = vunpack.c.l.b16 %v3850
        %v3947 = vunpack.c.l.b16 %v3851
        %v3948 = vunpack.c.l.b16 %v3852
        %v3949 = vunpack.c.l.b16 %v3853
        %v3950 = vunpack.c.l.b16 %v3854
        %v3951 = vunpack.c.l.b16 %v3855
        %v3952 = vunpack.c.l.b16 %v3856
        %v3953 = vunpack.c.l.b16 %v3857
        %v3954 = vunpack.c.l.b16 %v3858
        %v3955 = vunpack.c.l.b16 %v3859
        %v3956 = vunpack.c.l.b16 %v3860
        %v3957 = vunpack.c.l.b16 %v3861
        %v3958 = vunpack.c.l.b16 %v3862
        %v3959 = vunpack.c.l.b16 %v3863
        %v3960 = vunpack.c.l.b16 %v3864
        %v3961 = vunpack.c.l.b16 %v3865
        %v3962 = vunpack.c.l.b16 %v3866
        %v3963 = vunpack.c.l.b16 %v3867
        %v3964 = vunpack.c.l.b16 %v3868
        %v3965 = vunpack.c.l.b16 %v3869
        %v3966 = vunpack.c.l.b16 %v3870
        %v3967 = vunpack.c.l.b16 %v3871
        %v3968 = vunpack.c.l.b16 %v3872
        %v3969 = vunpack.c.l.b16 %v3873
        %v3970 = vunpack.c.l.b16 %v3874
        %v3971 = vunpack.c.l.b16 %v3875
        %v3972 = vunpack.c.l.b16 %v3876
        %v3973 = vunpack.c.l.b16 %v3877
        %v3974 = vpack.c.b16 %v3927, %v3926
        %v3975 = vpack.c.b16 %v3928, %v3928
        %v3976 = vpack.c.b16 %v3930, %v3929
        %v3977 = vpack.c.b16 %v3931, %v3931
        %v3978 = vpack.c.b16 %v3933, %v3932
        %v3979 = vpack.c.b16 %v3934, %v3934
        %v3980 = vpack.c.b16 %v3936, %v3935
        %v3981 = vpack.c.b16 %v3937, %v3937
        %v3982 = vpack.c.b16 %v3939, %v3938
        %v3983 = vpack.c.b16 %v3940, %v3940
        %v3984 = vpack.c.b16 %v3942, %v3941
        %v3985 = vpack.c.b16 %v3943, %v3943
        %v3986 = vpack.c.b16 %v3945, %v3944
        %v3987 = vpack.c.b16 %v3946, %v3946
        %v3988 = vpack.c.b16 %v3948, %v3947
        %v3989 = vpack.c.b16 %v3949, %v3949
        %v3990 = vpack.c.b16 %v3951, %v3950
        %v3991 = vpack.c.b16 %v3952, %v3952
        %v3992 = vpack.c.b16 %v3954, %v3953
        %v3993 = vpack.c.b16 %v3955, %v3955
        %v3994 = vpack.c.b16 %v3957, %v3956
        %v3995 = vpack.c.b16 %v3958, %v3958
        %v3996 = vpack.c.b16 %v3960, %v3959
        %v3997 = vpack.c.b16 %v3961, %v3961
        %v3998 = vpack.c.b16 %v3963, %v3962
        %v3999 = vpack.c.b16 %v3964, %v3964
        %v4000 = vpack.c.b16 %v3966, %v3965
        %v4001 = vpack.c.b16 %v3967, %v3967
        %v4002 = vpack.c.b16 %v3969, %v3968
        %v4003 = vpack.c.b16 %v3970, %v3970
        %v4004 = vpack.c.b16 %v3972, %v3971
        %v4005 = vpack.c.b16 %v3973, %v3973
        %v4007 = vshrl.u32 %v3974, 16
        %v4009 = vshll.u32 %v3974, 16
        %v4011 = vrot.slane %v4009, 1
        %v4012 = vor.u32 %v4007, %v4011
        %v4014 = vshll.u32 %v3975, 16
        %v4016 = vrot.slane %v4014, 1
        %v4017 = vsel %vm1278, %v4012, %v4016
        %v4019 = vshrl.u32 %v3976, 16
        %v4021 = vshll.u32 %v3976, 16
        %v4023 = vrot.slane %v4021, 1
        %v4024 = vor.u32 %v4019, %v4023
        %v4026 = vshll.u32 %v3977, 16
        %v4028 = vrot.slane %v4026, 1
        %v4029 = vsel %vm1278, %v4024, %v4028
        %v4031 = vshrl.u32 %v3978, 16
        %v4033 = vshll.u32 %v3978, 16
        %v4035 = vrot.slane %v4033, 1
        %v4036 = vor.u32 %v4031, %v4035
        %v4038 = vshll.u32 %v3979, 16
        %v4040 = vrot.slane %v4038, 1
        %v4041 = vsel %vm1278, %v4036, %v4040
        %v4043 = vshrl.u32 %v3980, 16
        %v4045 = vshll.u32 %v3980, 16
        %v4047 = vrot.slane %v4045, 1
        %v4048 = vor.u32 %v4043, %v4047
        %v4050 = vshll.u32 %v3981, 16
        %v4052 = vrot.slane %v4050, 1
        %v4053 = vsel %vm1278, %v4048, %v4052
        %v4055 = vshrl.u32 %v3982, 16
        %v4057 = vshll.u32 %v3982, 16
        %v4059 = vrot.slane %v4057, 1
        %v4060 = vor.u32 %v4055, %v4059
        %v4062 = vshll.u32 %v3983, 16
        %v4064 = vrot.slane %v4062, 1
        %v4065 = vsel %vm1278, %v4060, %v4064
        %v4067 = vshrl.u32 %v3984, 16
        %v4069 = vshll.u32 %v3984, 16
        %v4071 = vrot.slane %v4069, 1
        %v4072 = vor.u32 %v4067, %v4071
        %v4074 = vshll.u32 %v3985, 16
        %v4076 = vrot.slane %v4074, 1
        %v4077 = vsel %vm1278, %v4072, %v4076
        %v4079 = vshrl.u32 %v3986, 16
        %v4081 = vshll.u32 %v3986, 16
        %v4083 = vrot.slane %v4081, 1
        %v4084 = vor.u32 %v4079, %v4083
        %v4086 = vshll.u32 %v3987, 16
        %v4088 = vrot.slane %v4086, 1
        %v4089 = vsel %vm1278, %v4084, %v4088
        %v4091 = vshrl.u32 %v3988, 16
        %v4093 = vshll.u32 %v3988, 16
        %v4095 = vrot.slane %v4093, 1
        %v4096 = vor.u32 %v4091, %v4095
        %v4098 = vshll.u32 %v3989, 16
        %v4100 = vrot.slane %v4098, 1
        %v4101 = vsel %vm1278, %v4096, %v4100
        %v4103 = vshrl.u32 %v3990, 16
        %v4105 = vshll.u32 %v3990, 16
        %v4107 = vrot.slane %v4105, 1
        %v4108 = vor.u32 %v4103, %v4107
        %v4110 = vshll.u32 %v3991, 16
        %v4112 = vrot.slane %v4110, 1
        %v4113 = vsel %vm1278, %v4108, %v4112
        %v4115 = vshrl.u32 %v3992, 16
        %v4117 = vshll.u32 %v3992, 16
        %v4119 = vrot.slane %v4117, 1
        %v4120 = vor.u32 %v4115, %v4119
        %v4122 = vshll.u32 %v3993, 16
        %v4124 = vrot.slane %v4122, 1
        %v4125 = vsel %vm1278, %v4120, %v4124
        %v4127 = vshrl.u32 %v3994, 16
        %v4129 = vshll.u32 %v3994, 16
        %v4131 = vrot.slane %v4129, 1
        %v4132 = vor.u32 %v4127, %v4131
        %v4134 = vshll.u32 %v3995, 16
        %v4136 = vrot.slane %v4134, 1
        %v4137 = vsel %vm1278, %v4132, %v4136
        %v4139 = vshrl.u32 %v3996, 16
        %v4141 = vshll.u32 %v3996, 16
        %v4143 = vrot.slane %v4141, 1
        %v4144 = vor.u32 %v4139, %v4143
        %v4146 = vshll.u32 %v3997, 16
        %v4148 = vrot.slane %v4146, 1
        %v4149 = vsel %vm1278, %v4144, %v4148
        %v4151 = vshrl.u32 %v3998, 16
        %v4153 = vshll.u32 %v3998, 16
        %v4155 = vrot.slane %v4153, 1
        %v4156 = vor.u32 %v4151, %v4155
        %v4158 = vshll.u32 %v3999, 16
        %v4160 = vrot.slane %v4158, 1
        %v4161 = vsel %vm1278, %v4156, %v4160
        %v4163 = vshrl.u32 %v4000, 16
        %v4165 = vshll.u32 %v4000, 16
        %v4167 = vrot.slane %v4165, 1
        %v4168 = vor.u32 %v4163, %v4167
        %v4170 = vshll.u32 %v4001, 16
        %v4172 = vrot.slane %v4170, 1
        %v4173 = vsel %vm1278, %v4168, %v4172
        %v4175 = vshrl.u32 %v4002, 16
        %v4177 = vshll.u32 %v4002, 16
        %v4179 = vrot.slane %v4177, 1
        %v4180 = vor.u32 %v4175, %v4179
        %v4182 = vshll.u32 %v4003, 16
        %v4184 = vrot.slane %v4182, 1
        %v4185 = vsel %vm1278, %v4180, %v4184
        %v4187 = vshrl.u32 %v4004, 16
        %v4189 = vshll.u32 %v4004, 16
        %v4191 = vrot.slane %v4189, 1
        %v4192 = vor.u32 %v4187, %v4191
        %v4194 = vshll.u32 %v4005, 16
        %v4196 = vrot.slane %v4194, 1
        %v4197 = vsel %vm1278, %v4192, %v4196
        %4214 = vst [vmem:[#allocation3 + $0x8] sm:$0xff] %v4017
        %4215 = vst [vmem:[#allocation3 + $0x20] sm:$0xff] %v4029
        %4216 = vst [vmem:[#allocation3 + $0x38] sm:$0xff] %v4041
        %4217 = vst [vmem:[#allocation3 + $0x50] sm:$0xff] %v4053
        %4218 = vst [vmem:[#allocation3 + $0x68] sm:$0xff] %v4065
        %4219 = vst [vmem:[#allocation3 + $0x80] sm:$0xff] %v4077
        %4220 = vst [vmem:[#allocation3 + $0x98] sm:$0xff] %v4089
        %4221 = vst [vmem:[#allocation3 + $0xb0] sm:$0xff] %v4101
        %4222 = vst [vmem:[#allocation3 + $0xc8] sm:$0xff] %v4113
        %4223 = vst [vmem:[#allocation3 + $0xe0] sm:$0xff] %v4125
        %4224 = vst [vmem:[#allocation3 + $0xf8] sm:$0xff] %v4137
        %4225 = vst [vmem:[#allocation3 + $0x110] sm:$0xff] %v4149
        %4226 = vst [vmem:[#allocation3 + $0x128] sm:$0xff] %v4161
        %4227 = vst [vmem:[#allocation3 + $0x140] sm:$0xff] %v4173
        %4228 = vst [vmem:[#allocation3 + $0x158] sm:$0xff] %v4185
        %4229 = vst [vmem:[#allocation3 + $0x170] sm:$0xff] %v4197
        %v4230 = vld [vmem:[%s3685] sm:$0xe]
        %v4231 = vld [vmem:[%s3685 + $0x4] sm:$0xf]
        %v4232 = vld [vmem:[%s3685 + $0x8] sm:$0x1]
        %v4233 = vld [vmem:[%s3685 + $0xc] sm:$0xe]
        %v4234 = vld [vmem:[%s3685 + $0x10] sm:$0xf]
        %v4235 = vld [vmem:[%s3685 + $0x14] sm:$0x1]
        %v4236 = vld [vmem:[%s3685 + $0x18] sm:$0xe]
        %v4237 = vld [vmem:[%s3685 + $0x1c] sm:$0xf]
        %v4238 = vld [vmem:[%s3685 + $0x20] sm:$0x1]
        %v4239 = vld [vmem:[%s3685 + $0x24] sm:$0xe]
        %v4240 = vld [vmem:[%s3685 + $0x28] sm:$0xf]
        %v4241 = vld [vmem:[%s3685 + $0x2c] sm:$0x1]
        %v4242 = vld [vmem:[%s3685 + $0x30] sm:$0xe]
        %v4243 = vld [vmem:[%s3685 + $0x34] sm:$0xf]
        %v4244 = vld [vmem:[%s3685 + $0x38] sm:$0x1]
        %v4245 = vld [vmem:[%s3685 + $0x3c] sm:$0xe]
        %v4246 = vld [vmem:[%s3685 + $0x40] sm:$0xf]
        %v4247 = vld [vmem:[%s3685 + $0x44] sm:$0x1]
        %v4248 = vld [vmem:[%s3685 + $0x48] sm:$0xe]
        %v4249 = vld [vmem:[%s3685 + $0x4c] sm:$0xf]
        %v4250 = vld [vmem:[%s3685 + $0x50] sm:$0x1]
        %v4251 = vld [vmem:[%s3685 + $0x54] sm:$0xe]
        %v4252 = vld [vmem:[%s3685 + $0x58] sm:$0xf]
        %v4253 = vld [vmem:[%s3685 + $0x5c] sm:$0x1]
        %v4254 = vld [vmem:[%s3685 + $0x60] sm:$0xe]
        %v4255 = vld [vmem:[%s3685 + $0x64] sm:$0xf]
        %v4256 = vld [vmem:[%s3685 + $0x68] sm:$0x1]
        %v4257 = vld [vmem:[%s3685 + $0x6c] sm:$0xe]
        %v4258 = vld [vmem:[%s3685 + $0x70] sm:$0xf]
        %v4259 = vld [vmem:[%s3685 + $0x74] sm:$0x1]
        %v4260 = vld [vmem:[%s3685 + $0x78] sm:$0xe]
        %v4261 = vld [vmem:[%s3685 + $0x7c] sm:$0xf]
        %v4262 = vld [vmem:[%s3685 + $0x80] sm:$0x1]
        %v4263 = vld [vmem:[%s3685 + $0x84] sm:$0xe]
        %v4264 = vld [vmem:[%s3685 + $0x88] sm:$0xf]
        %v4265 = vld [vmem:[%s3685 + $0x8c] sm:$0x1]
        %v4266 = vld [vmem:[%s3685 + $0x90] sm:$0xe]
        %v4267 = vld [vmem:[%s3685 + $0x94] sm:$0xf]
        %v4268 = vld [vmem:[%s3685 + $0x98] sm:$0x1]
        %v4269 = vld [vmem:[%s3685 + $0x9c] sm:$0xe]
        %v4270 = vld [vmem:[%s3685 + $0xa0] sm:$0xf]
        %v4271 = vld [vmem:[%s3685 + $0xa4] sm:$0x1]
        %v4272 = vld [vmem:[%s3685 + $0xa8] sm:$0xe]
        %v4273 = vld [vmem:[%s3685 + $0xac] sm:$0xf]
        %v4274 = vld [vmem:[%s3685 + $0xb0] sm:$0x1]
        %v4275 = vld [vmem:[%s3685 + $0xb4] sm:$0xe]
        %v4276 = vld [vmem:[%s3685 + $0xb8] sm:$0xf]
        %v4277 = vld [vmem:[%s3685 + $0xbc] sm:$0x1]
        %v4326 = vunpack.c.l.b16 %v4230
        %v4327 = vunpack.c.l.b16 %v4231
        %v4328 = vunpack.c.l.b16 %v4232
        %v4329 = vunpack.c.l.b16 %v4233
        %v4330 = vunpack.c.l.b16 %v4234
        %v4331 = vunpack.c.l.b16 %v4235
        %v4332 = vunpack.c.l.b16 %v4236
        %v4333 = vunpack.c.l.b16 %v4237
        %v4334 = vunpack.c.l.b16 %v4238
        %v4335 = vunpack.c.l.b16 %v4239
        %v4336 = vunpack.c.l.b16 %v4240
        %v4337 = vunpack.c.l.b16 %v4241
        %v4338 = vunpack.c.l.b16 %v4242
        %v4339 = vunpack.c.l.b16 %v4243
        %v4340 = vunpack.c.l.b16 %v4244
        %v4341 = vunpack.c.l.b16 %v4245
        %v4342 = vunpack.c.l.b16 %v4246
        %v4343 = vunpack.c.l.b16 %v4247
        %v4344 = vunpack.c.l.b16 %v4248
        %v4345 = vunpack.c.l.b16 %v4249
        %v4346 = vunpack.c.l.b16 %v4250
        %v4347 = vunpack.c.l.b16 %v4251
        %v4348 = vunpack.c.l.b16 %v4252
        %v4349 = vunpack.c.l.b16 %v4253
        %v4350 = vunpack.c.l.b16 %v4254
        %v4351 = vunpack.c.l.b16 %v4255
        %v4352 = vunpack.c.l.b16 %v4256
        %v4353 = vunpack.c.l.b16 %v4257
        %v4354 = vunpack.c.l.b16 %v4258
        %v4355 = vunpack.c.l.b16 %v4259
        %v4356 = vunpack.c.l.b16 %v4260
        %v4357 = vunpack.c.l.b16 %v4261
        %v4358 = vunpack.c.l.b16 %v4262
        %v4359 = vunpack.c.l.b16 %v4263
        %v4360 = vunpack.c.l.b16 %v4264
        %v4361 = vunpack.c.l.b16 %v4265
        %v4362 = vunpack.c.l.b16 %v4266
        %v4363 = vunpack.c.l.b16 %v4267
        %v4364 = vunpack.c.l.b16 %v4268
        %v4365 = vunpack.c.l.b16 %v4269
        %v4366 = vunpack.c.l.b16 %v4270
        %v4367 = vunpack.c.l.b16 %v4271
        %v4368 = vunpack.c.l.b16 %v4272
        %v4369 = vunpack.c.l.b16 %v4273
        %v4370 = vunpack.c.l.b16 %v4274
        %v4371 = vunpack.c.l.b16 %v4275
        %v4372 = vunpack.c.l.b16 %v4276
        %v4373 = vunpack.c.l.b16 %v4277
        %v4374 = vpack.c.b16 %v4327, %v4326
        %v4375 = vpack.c.b16 %v4328, %v4328
        %v4376 = vpack.c.b16 %v4330, %v4329
        %v4377 = vpack.c.b16 %v4331, %v4331
        %v4378 = vpack.c.b16 %v4333, %v4332
        %v4379 = vpack.c.b16 %v4334, %v4334
        %v4380 = vpack.c.b16 %v4336, %v4335
        %v4381 = vpack.c.b16 %v4337, %v4337
        %v4382 = vpack.c.b16 %v4339, %v4338
        %v4383 = vpack.c.b16 %v4340, %v4340
        %v4384 = vpack.c.b16 %v4342, %v4341
        %v4385 = vpack.c.b16 %v4343, %v4343
        %v4386 = vpack.c.b16 %v4345, %v4344
        %v4387 = vpack.c.b16 %v4346, %v4346
        %v4388 = vpack.c.b16 %v4348, %v4347
        %v4389 = vpack.c.b16 %v4349, %v4349
        %v4390 = vpack.c.b16 %v4351, %v4350
        %v4391 = vpack.c.b16 %v4352, %v4352
        %v4392 = vpack.c.b16 %v4354, %v4353
        %v4393 = vpack.c.b16 %v4355, %v4355
        %v4394 = vpack.c.b16 %v4357, %v4356
        %v4395 = vpack.c.b16 %v4358, %v4358
        %v4396 = vpack.c.b16 %v4360, %v4359
        %v4397 = vpack.c.b16 %v4361, %v4361
        %v4398 = vpack.c.b16 %v4363, %v4362
        %v4399 = vpack.c.b16 %v4364, %v4364
        %v4400 = vpack.c.b16 %v4366, %v4365
        %v4401 = vpack.c.b16 %v4367, %v4367
        %v4402 = vpack.c.b16 %v4369, %v4368
        %v4403 = vpack.c.b16 %v4370, %v4370
        %v4404 = vpack.c.b16 %v4372, %v4371
        %v4405 = vpack.c.b16 %v4373, %v4373
        %v4406 = vrot.slane %v4374, 1
        %v4407 = vrot.slane %v4375, 1
        %v4408 = vsel %vm1679, %v4406, %v4407
        %v4409 = vrot.slane %v4376, 1
        %v4410 = vrot.slane %v4377, 1
        %v4411 = vsel %vm1679, %v4409, %v4410
        %v4412 = vrot.slane %v4378, 1
        %v4413 = vrot.slane %v4379, 1
        %v4414 = vsel %vm1679, %v4412, %v4413
        %v4415 = vrot.slane %v4380, 1
        %v4416 = vrot.slane %v4381, 1
        %v4417 = vsel %vm1679, %v4415, %v4416
        %v4418 = vrot.slane %v4382, 1
        %v4419 = vrot.slane %v4383, 1
        %v4420 = vsel %vm1679, %v4418, %v4419
        %v4421 = vrot.slane %v4384, 1
        %v4422 = vrot.slane %v4385, 1
        %v4423 = vsel %vm1679, %v4421, %v4422
        %v4424 = vrot.slane %v4386, 1
        %v4425 = vrot.slane %v4387, 1
        %v4426 = vsel %vm1679, %v4424, %v4425
        %v4427 = vrot.slane %v4388, 1
        %v4428 = vrot.slane %v4389, 1
        %v4429 = vsel %vm1679, %v4427, %v4428
        %v4430 = vrot.slane %v4390, 1
        %v4431 = vrot.slane %v4391, 1
        %v4432 = vsel %vm1679, %v4430, %v4431
        %v4433 = vrot.slane %v4392, 1
        %v4434 = vrot.slane %v4393, 1
        %v4435 = vsel %vm1679, %v4433, %v4434
        %v4436 = vrot.slane %v4394, 1
        %v4437 = vrot.slane %v4395, 1
        %v4438 = vsel %vm1679, %v4436, %v4437
        %v4439 = vrot.slane %v4396, 1
        %v4440 = vrot.slane %v4397, 1
        %v4441 = vsel %vm1679, %v4439, %v4440
        %v4442 = vrot.slane %v4398, 1
        %v4443 = vrot.slane %v4399, 1
        %v4444 = vsel %vm1679, %v4442, %v4443
        %v4445 = vrot.slane %v4400, 1
        %v4446 = vrot.slane %v4401, 1
        %v4447 = vsel %vm1679, %v4445, %v4446
        %v4448 = vrot.slane %v4402, 1
        %v4449 = vrot.slane %v4403, 1
        %v4450 = vsel %vm1679, %v4448, %v4449
        %v4451 = vrot.slane %v4404, 1
        %v4452 = vrot.slane %v4405, 1
        %v4453 = vsel %vm1679, %v4451, %v4452
        %4470 = vst [vmem:[#allocation3 + $0x10] sm:$0xff] %v4408
        %4471 = vst [vmem:[#allocation3 + $0x28] sm:$0xff] %v4411
        %4472 = vst [vmem:[#allocation3 + $0x40] sm:$0xff] %v4414
        %4473 = vst [vmem:[#allocation3 + $0x58] sm:$0xff] %v4417
        %4474 = vst [vmem:[#allocation3 + $0x70] sm:$0xff] %v4420
        %4475 = vst [vmem:[#allocation3 + $0x88] sm:$0xff] %v4423
        %4476 = vst [vmem:[#allocation3 + $0xa0] sm:$0xff] %v4426
        %4477 = vst [vmem:[#allocation3 + $0xb8] sm:$0xff] %v4429
        %4478 = vst [vmem:[#allocation3 + $0xd0] sm:$0xff] %v4432
        %4479 = vst [vmem:[#allocation3 + $0xe8] sm:$0xff] %v4435
        %4480 = vst [vmem:[#allocation3 + $0x100] sm:$0xff] %v4438
        %4481 = vst [vmem:[#allocation3 + $0x118] sm:$0xff] %v4441
        %4482 = vst [vmem:[#allocation3 + $0x130] sm:$0xff] %v4444
        %4483 = vst [vmem:[#allocation3 + $0x148] sm:$0xff] %v4447
        %4484 = vst [vmem:[#allocation3 + $0x160] sm:$0xff] %v4450
        %4485 = vst [vmem:[#allocation3 + $0x178] sm:$0xff] %v4453
        %v4486 = vld [vmem:[#allocation3] sm:$0xff]
        %v4487 = vld [vmem:[#allocation3 + $0x8] sm:$0xff]
        %v4488 = vld [vmem:[#allocation3 + $0x10] sm:$0xff]
        %v4489 = vld [vmem:[#allocation3 + $0x18] sm:$0xff]
        %v4490 = vld [vmem:[#allocation3 + $0x20] sm:$0xff]
        %v4491 = vld [vmem:[#allocation3 + $0x28] sm:$0xff]
        %v4492 = vld [vmem:[#allocation3 + $0x30] sm:$0xff]
        %v4493 = vld [vmem:[#allocation3 + $0x38] sm:$0xff]
        %v4494 = vld [vmem:[#allocation3 + $0x40] sm:$0xff]
        %v4495 = vld [vmem:[#allocation3 + $0x48] sm:$0xff]
        %v4496 = vld [vmem:[#allocation3 + $0x50] sm:$0xff]
        %v4497 = vld [vmem:[#allocation3 + $0x58] sm:$0xff]
        %v4498 = vld [vmem:[#allocation3 + $0x60] sm:$0xff]
        %v4499 = vld [vmem:[#allocation3 + $0x68] sm:$0xff]
        %v4500 = vld [vmem:[#allocation3 + $0x70] sm:$0xff]
        %v4501 = vld [vmem:[#allocation3 + $0x78] sm:$0xff]
        %v4502 = vld [vmem:[#allocation3 + $0x80] sm:$0xff]
        %v4503 = vld [vmem:[#allocation3 + $0x88] sm:$0xff]
        %v4504 = vld [vmem:[#allocation3 + $0x90] sm:$0xff]
        %v4505 = vld [vmem:[#allocation3 + $0x98] sm:$0xff]
        %v4506 = vld [vmem:[#allocation3 + $0xa0] sm:$0xff]
        %v4507 = vld [vmem:[#allocation3 + $0xa8] sm:$0xff]
        %v4508 = vld [vmem:[#allocation3 + $0xb0] sm:$0xff]
        %v4509 = vld [vmem:[#allocation3 + $0xb8] sm:$0xff]
        %v4510 = vld [vmem:[#allocation3 + $0xc0] sm:$0xff]
        %v4511 = vld [vmem:[#allocation3 + $0xc8] sm:$0xff]
        %v4512 = vld [vmem:[#allocation3 + $0xd0] sm:$0xff]
        %v4513 = vld [vmem:[#allocation3 + $0xd8] sm:$0xff]
        %v4514 = vld [vmem:[#allocation3 + $0xe0] sm:$0xff]
        %v4515 = vld [vmem:[#allocation3 + $0xe8] sm:$0xff]
        %v4516 = vld [vmem:[#allocation3 + $0xf0] sm:$0xff]
        %v4517 = vld [vmem:[#allocation3 + $0xf8] sm:$0xff]
        %v4518 = vld [vmem:[#allocation3 + $0x100] sm:$0xff]
        %v4519 = vld [vmem:[#allocation3 + $0x108] sm:$0xff]
        %v4520 = vld [vmem:[#allocation3 + $0x110] sm:$0xff]
        %v4521 = vld [vmem:[#allocation3 + $0x118] sm:$0xff]
        %v4522 = vld [vmem:[#allocation3 + $0x120] sm:$0xff]
        %v4523 = vld [vmem:[#allocation3 + $0x128] sm:$0xff]
        %v4524 = vld [vmem:[#allocation3 + $0x130] sm:$0xff]
        %v4525 = vld [vmem:[#allocation3 + $0x138] sm:$0xff]
        %v4526 = vld [vmem:[#allocation3 + $0x140] sm:$0xff]
        %v4527 = vld [vmem:[#allocation3 + $0x148] sm:$0xff]
        %v4528 = vld [vmem:[#allocation3 + $0x150] sm:$0xff]
        %v4529 = vld [vmem:[#allocation3 + $0x158] sm:$0xff]
        %v4530 = vld [vmem:[#allocation3 + $0x160] sm:$0xff]
        %v4531 = vld [vmem:[#allocation3 + $0x168] sm:$0xff]
        %v4532 = vld [vmem:[#allocation3 + $0x170] sm:$0xff]
        %v4533 = vld [vmem:[#allocation3 + $0x178] sm:$0xff]
        %s4534 = scalar_lea.vmem [#allocation7], 384
        %v4535 = vld [vmem:[%s4534] sm:$0xf]
        %v4536 = vld [vmem:[%s4534 + $0x4] sm:$0xf]
        %v4537 = vld [vmem:[%s4534 + $0x8] sm:$0xf]
        %v4538 = vld [vmem:[%s4534 + $0xc] sm:$0xf]
        %v4539 = vld [vmem:[%s4534 + $0x10] sm:$0xf]
        %v4540 = vld [vmem:[%s4534 + $0x14] sm:$0xf]
        %v4541 = vld [vmem:[%s4534 + $0x18] sm:$0xf]
        %v4542 = vld [vmem:[%s4534 + $0x1c] sm:$0xf]
        %v4543 = vld [vmem:[%s4534 + $0x20] sm:$0xf]
        %v4544 = vld [vmem:[%s4534 + $0x24] sm:$0xf]
        %v4545 = vld [vmem:[%s4534 + $0x28] sm:$0xf]
        %v4546 = vld [vmem:[%s4534 + $0x2c] sm:$0xf]
        %v4547 = vld [vmem:[%s4534 + $0x30] sm:$0xf]
        %v4548 = vld [vmem:[%s4534 + $0x34] sm:$0xf]
        %v4549 = vld [vmem:[%s4534 + $0x38] sm:$0xf]
        %v4550 = vld [vmem:[%s4534 + $0x3c] sm:$0xf]
        %v4551 = vld [vmem:[%s4534 + $0x40] sm:$0xf]
        %v4552 = vld [vmem:[%s4534 + $0x44] sm:$0xf]
        %v4553 = vld [vmem:[%s4534 + $0x48] sm:$0xf]
        %v4554 = vld [vmem:[%s4534 + $0x4c] sm:$0xf]
        %v4555 = vld [vmem:[%s4534 + $0x50] sm:$0xf]
        %v4556 = vld [vmem:[%s4534 + $0x54] sm:$0xf]
        %v4557 = vld [vmem:[%s4534 + $0x58] sm:$0xf]
        %v4558 = vld [vmem:[%s4534 + $0x5c] sm:$0xf]
        %v4559 = vld [vmem:[%s4534 + $0x60] sm:$0xf]
        %v4560 = vld [vmem:[%s4534 + $0x64] sm:$0xf]
        %v4561 = vld [vmem:[%s4534 + $0x68] sm:$0xf]
        %v4562 = vld [vmem:[%s4534 + $0x6c] sm:$0xf]
        %v4563 = vld [vmem:[%s4534 + $0x70] sm:$0xf]
        %v4564 = vld [vmem:[%s4534 + $0x74] sm:$0xf]
        %v4565 = vld [vmem:[%s4534 + $0x78] sm:$0xf]
        %v4566 = vld [vmem:[%s4534 + $0x7c] sm:$0xf]
        %v4567 = vld [vmem:[%s4534 + $0x80] sm:$0xf]
        %v4568 = vld [vmem:[%s4534 + $0x84] sm:$0xf]
        %v4569 = vld [vmem:[%s4534 + $0x88] sm:$0xf]
        %v4570 = vld [vmem:[%s4534 + $0x8c] sm:$0xf]
        %v4571 = vld [vmem:[%s4534 + $0x90] sm:$0xf]
        %v4572 = vld [vmem:[%s4534 + $0x94] sm:$0xf]
        %v4573 = vld [vmem:[%s4534 + $0x98] sm:$0xf]
        %v4574 = vld [vmem:[%s4534 + $0x9c] sm:$0xf]
        %v4575 = vld [vmem:[%s4534 + $0xa0] sm:$0xf]
        %v4576 = vld [vmem:[%s4534 + $0xa4] sm:$0xf]
        %v4577 = vld [vmem:[%s4534 + $0xa8] sm:$0xf]
        %v4578 = vld [vmem:[%s4534 + $0xac] sm:$0xf]
        %v4579 = vld [vmem:[%s4534 + $0xb0] sm:$0xf]
        %v4580 = vld [vmem:[%s4534 + $0xb4] sm:$0xf]
        %v4581 = vld [vmem:[%s4534 + $0xb8] sm:$0xf]
        %v4582 = vld [vmem:[%s4534 + $0xbc] sm:$0xf]
        %v4631 = vunpack.c.l.b16 %v4535
        %v4632 = vunpack.c.l.b16 %v4536
        %v4633 = vunpack.c.l.b16 %v4537
        %v4634 = vunpack.c.l.b16 %v4538
        %v4635 = vunpack.c.l.b16 %v4539
        %v4636 = vunpack.c.l.b16 %v4540
        %v4637 = vunpack.c.l.b16 %v4541
        %v4638 = vunpack.c.l.b16 %v4542
        %v4639 = vunpack.c.l.b16 %v4543
        %v4640 = vunpack.c.l.b16 %v4544
        %v4641 = vunpack.c.l.b16 %v4545
        %v4642 = vunpack.c.l.b16 %v4546
        %v4643 = vunpack.c.l.b16 %v4547
        %v4644 = vunpack.c.l.b16 %v4548
        %v4645 = vunpack.c.l.b16 %v4549
        %v4646 = vunpack.c.l.b16 %v4550
        %v4647 = vunpack.c.l.b16 %v4551
        %v4648 = vunpack.c.l.b16 %v4552
        %v4649 = vunpack.c.l.b16 %v4553
        %v4650 = vunpack.c.l.b16 %v4554
        %v4651 = vunpack.c.l.b16 %v4555
        %v4652 = vunpack.c.l.b16 %v4556
        %v4653 = vunpack.c.l.b16 %v4557
        %v4654 = vunpack.c.l.b16 %v4558
        %v4655 = vunpack.c.l.b16 %v4559
        %v4656 = vunpack.c.l.b16 %v4560
        %v4657 = vunpack.c.l.b16 %v4561
        %v4658 = vunpack.c.l.b16 %v4562
        %v4659 = vunpack.c.l.b16 %v4563
        %v4660 = vunpack.c.l.b16 %v4564
        %v4661 = vunpack.c.l.b16 %v4565
        %v4662 = vunpack.c.l.b16 %v4566
        %v4663 = vunpack.c.l.b16 %v4567
        %v4664 = vunpack.c.l.b16 %v4568
        %v4665 = vunpack.c.l.b16 %v4569
        %v4666 = vunpack.c.l.b16 %v4570
        %v4667 = vunpack.c.l.b16 %v4571
        %v4668 = vunpack.c.l.b16 %v4572
        %v4669 = vunpack.c.l.b16 %v4573
        %v4670 = vunpack.c.l.b16 %v4574
        %v4671 = vunpack.c.l.b16 %v4575
        %v4672 = vunpack.c.l.b16 %v4576
        %v4673 = vunpack.c.l.b16 %v4577
        %v4674 = vunpack.c.l.b16 %v4578
        %v4675 = vunpack.c.l.b16 %v4579
        %v4676 = vunpack.c.l.b16 %v4580
        %v4677 = vunpack.c.l.b16 %v4581
        %v4678 = vunpack.c.l.b16 %v4582
        %v4679 = vpack.c.b16 %v4632, %v4631
        %v4680 = vpack.c.b16 %v4634, %v4633
        %v4681 = vpack.c.b16 %v4636, %v4635
        %v4682 = vpack.c.b16 %v4638, %v4637
        %v4683 = vpack.c.b16 %v4640, %v4639
        %v4684 = vpack.c.b16 %v4642, %v4641
        %v4685 = vpack.c.b16 %v4644, %v4643
        %v4686 = vpack.c.b16 %v4646, %v4645
        %v4687 = vpack.c.b16 %v4648, %v4647
        %v4688 = vpack.c.b16 %v4650, %v4649
        %v4689 = vpack.c.b16 %v4652, %v4651
        %v4690 = vpack.c.b16 %v4654, %v4653
        %v4691 = vpack.c.b16 %v4656, %v4655
        %v4692 = vpack.c.b16 %v4658, %v4657
        %v4693 = vpack.c.b16 %v4660, %v4659
        %v4694 = vpack.c.b16 %v4662, %v4661
        %v4695 = vpack.c.b16 %v4664, %v4663
        %v4696 = vpack.c.b16 %v4666, %v4665
        %v4697 = vpack.c.b16 %v4668, %v4667
        %v4698 = vpack.c.b16 %v4670, %v4669
        %v4699 = vpack.c.b16 %v4672, %v4671
        %v4700 = vpack.c.b16 %v4674, %v4673
        %v4701 = vpack.c.b16 %v4676, %v4675
        %v4702 = vpack.c.b16 %v4678, %v4677
        %4727 = vmatprep.subr.bf16.mxu0 0
        %4728 = vmatpush1.bf16.msra.mxu0 %v4679
        %4729 = vmatprep.subr.bf16.mxu0 0
        %4730 = vmatpush1.bf16.msra.mxu0 %v4680
        %4731 = vmatprep.subr.bf16.mxu0 0
        %4732 = vmatpush1.bf16.msra.mxu0 %v4681
        %4733 = vmatprep.subr.bf16.mxu0 0
        %4734 = vmatpush1.bf16.msra.mxu0 %v4682
        %4735 = vmatprep.subr.bf16.mxu0 0
        %4736 = vmatpush1.bf16.msra.mxu0 %v4683
        %4737 = vmatprep.subr.bf16.mxu0 0
        %4738 = vmatpush1.bf16.msra.mxu0 %v4684
        %4739 = vmatprep.subr.bf16.mxu0 0
        %4740 = vmatpush1.bf16.msra.mxu0 %v4685
        %4741 = vmatprep.subr.bf16.mxu0 0
        %4742 = vmatpush1.bf16.msra.mxu0 %v4686
        %4743 = vmatprep.subr.bf16.mxu0 0
        %4744 = vmatpush1.bf16.msra.mxu0 %v4687
        %4745 = vmatprep.subr.bf16.mxu0 0
        %4746 = vmatpush1.bf16.msra.mxu0 %v4688
        %4747 = vmatprep.subr.bf16.mxu0 0
        %4748 = vmatpush1.bf16.msra.mxu0 %v4689
        %4749 = vmatprep.subr.bf16.mxu0 0
        %4750 = vmatpush1.bf16.msra.mxu0 %v4690
        %4751 = vmatprep.subr.bf16.mxu0 0
        %4752 = vmatpush1.bf16.msra.mxu0 %v4691
        %4753 = vmatprep.subr.bf16.mxu0 0
        %4754 = vmatpush1.bf16.msra.mxu0 %v4692
        %4755 = vmatprep.subr.bf16.mxu0 0
        %4756 = vmatpush1.bf16.msra.mxu0 %v4693
        %4757 = vmatprep.subr.bf16.mxu0 0
        %4758 = vmatpush1.bf16.msra.mxu0 %v4694
        %4759 = vmatprep.mubr.bf16.mxu0 %v4487
        %4760 = vmatmul.mubr.bf16.gmra.mrb[0].mxu0 %v4486
        %v4761 = vpop.f32.mrb[0].mxu0
        %v4762 = vadd.f32 0.0, %v4761
        %v4763 = vpop.f32.mrb[0].mxu0
        %v4764 = vpop.f32.mrb[0].mxu0
        %v4765 = vadd.f32 0.0, %v4764
        %v4766 = vpop.f32.mrb[0].mxu0
        %4767 = vmatprep.mubr.bf16.mxu0 %v4490
        %4768 = vmatmul.mubr.bf16.gmra.mrb[0].mxu0 %v4489
        %v4769 = vpop.f32.mrb[0].mxu0
        %v4770 = vadd.f32 0.0, %v4769
        %v4771 = vpop.f32.mrb[0].mxu0
        %v4772 = vpop.f32.mrb[0].mxu0
        %v4773 = vadd.f32 0.0, %v4772
        %v4774 = vpop.f32.mrb[0].mxu0
        %4775 = vmatprep.mubr.bf16.mxu0 %v4493
        %4776 = vmatmul.mubr.bf16.gmra.mrb[0].mxu0 %v4492
        %v4777 = vpop.f32.mrb[0].mxu0
        %v4778 = vadd.f32 0.0, %v4777
        %v4779 = vpop.f32.mrb[0].mxu0
        %v4780 = vpop.f32.mrb[0].mxu0
        %v4781 = vadd.f32 0.0, %v4780
        %v4782 = vpop.f32.mrb[0].mxu0
        %4783 = vmatprep.mubr.bf16.mxu0 %v4496
        %4784 = vmatmul.mubr.bf16.gmra.mrb[0].mxu0 %v4495
        %v4785 = vpop.f32.mrb[0].mxu0
        %v4786 = vadd.f32 0.0, %v4785
        %v4787 = vpop.f32.mrb[0].mxu0
        %v4788 = vpop.f32.mrb[0].mxu0
        %v4789 = vadd.f32 0.0, %v4788
        %v4790 = vpop.f32.mrb[0].mxu0
        %4791 = vmatprep.mubr.bf16.mxu0 %v4499
        %4792 = vmatmul.mubr.bf16.gmra.mrb[0].mxu0 %v4498
        %v4793 = vpop.f32.mrb[0].mxu0
        %v4794 = vadd.f32 0.0, %v4793
        %v4795 = vpop.f32.mrb[0].mxu0
        %v4796 = vpop.f32.mrb[0].mxu0
        %v4797 = vadd.f32 0.0, %v4796
        %v4798 = vpop.f32.mrb[0].mxu0
        %4799 = vmatprep.mubr.bf16.mxu0 %v4502
        %4800 = vmatmul.mubr.bf16.gmra.mrb[0].mxu0 %v4501
        %v4801 = vpop.f32.mrb[0].mxu0
        %v4802 = vadd.f32 0.0, %v4801
        %v4803 = vpop.f32.mrb[0].mxu0
        %v4804 = vpop.f32.mrb[0].mxu0
        %v4805 = vadd.f32 0.0, %v4804
        %v4806 = vpop.f32.mrb[0].mxu0
        %4807 = vmatprep.mubr.bf16.mxu0 %v4505
        %4808 = vmatmul.mubr.bf16.gmra.mrb[0].mxu0 %v4504
        %v4809 = vpop.f32.mrb[0].mxu0
        %v4810 = vadd.f32 0.0, %v4809
        %v4811 = vpop.f32.mrb[0].mxu0
        %v4812 = vpop.f32.mrb[0].mxu0
        %v4813 = vadd.f32 0.0, %v4812
        %v4814 = vpop.f32.mrb[0].mxu0
        %4815 = vmatprep.mubr.bf16.mxu0 %v4508
        %4816 = vmatmul.mubr.bf16.gmra.mrb[0].mxu0 %v4507
        %v4817 = vpop.f32.mrb[0].mxu0
        %v4818 = vadd.f32 0.0, %v4817
        %v4819 = vpop.f32.mrb[0].mxu0
        %v4820 = vpop.f32.mrb[0].mxu0
        %v4821 = vadd.f32 0.0, %v4820
        %v4822 = vpop.f32.mrb[0].mxu0
        %4823 = vmatprep.mubr.bf16.mxu0 %v4511
        %4824 = vmatmul.mubr.bf16.gmra.mrb[0].mxu0 %v4510
        %v4825 = vpop.f32.mrb[0].mxu0
        %v4826 = vadd.f32 0.0, %v4825
        %v4827 = vpop.f32.mrb[0].mxu0
        %v4828 = vpop.f32.mrb[0].mxu0
        %v4829 = vadd.f32 0.0, %v4828
        %v4830 = vpop.f32.mrb[0].mxu0
        %4831 = vmatprep.mubr.bf16.mxu0 %v4514
        %4832 = vmatmul.mubr.bf16.gmra.mrb[0].mxu0 %v4513
        %v4833 = vpop.f32.mrb[0].mxu0
        %v4834 = vadd.f32 0.0, %v4833
        %v4835 = vpop.f32.mrb[0].mxu0
        %v4836 = vpop.f32.mrb[0].mxu0
        %v4837 = vadd.f32 0.0, %v4836
        %v4838 = vpop.f32.mrb[0].mxu0
        %4839 = vmatprep.mubr.bf16.mxu0 %v4517
        %4840 = vmatmul.mubr.bf16.gmra.mrb[0].mxu0 %v4516
        %v4841 = vpop.f32.mrb[0].mxu0
        %v4842 = vadd.f32 0.0, %v4841
        %v4843 = vpop.f32.mrb[0].mxu0
        %v4844 = vpop.f32.mrb[0].mxu0
        %v4845 = vadd.f32 0.0, %v4844
        %v4846 = vpop.f32.mrb[0].mxu0
        %4847 = vmatprep.mubr.bf16.mxu0 %v4520
        %4848 = vmatmul.mubr.bf16.gmra.mrb[0].mxu0 %v4519
        %v4849 = vpop.f32.mrb[0].mxu0
        %v4850 = vadd.f32 0.0, %v4849
        %v4851 = vpop.f32.mrb[0].mxu0
        %v4852 = vpop.f32.mrb[0].mxu0
        %v4853 = vadd.f32 0.0, %v4852
        %v4854 = vpop.f32.mrb[0].mxu0
        %4855 = vmatprep.mubr.bf16.mxu0 %v4523
        %4856 = vmatmul.mubr.bf16.gmra.mrb[0].mxu0 %v4522
        %v4857 = vpop.f32.mrb[0].mxu0
        %v4858 = vadd.f32 0.0, %v4857
        %v4859 = vpop.f32.mrb[0].mxu0
        %v4860 = vpop.f32.mrb[0].mxu0
        %v4861 = vadd.f32 0.0, %v4860
        %v4862 = vpop.f32.mrb[0].mxu0
        %4863 = vmatprep.mubr.bf16.mxu0 %v4526
        %4864 = vmatmul.mubr.bf16.gmra.mrb[0].mxu0 %v4525
        %v4865 = vpop.f32.mrb[0].mxu0
        %v4866 = vadd.f32 0.0, %v4865
        %v4867 = vpop.f32.mrb[0].mxu0
        %v4868 = vpop.f32.mrb[0].mxu0
        %v4869 = vadd.f32 0.0, %v4868
        %v4870 = vpop.f32.mrb[0].mxu0
        %4871 = vmatprep.mubr.bf16.mxu0 %v4529
        %4872 = vmatmul.mubr.bf16.gmra.mrb[0].mxu0 %v4528
        %v4873 = vpop.f32.mrb[0].mxu0
        %v4874 = vadd.f32 0.0, %v4873
        %v4875 = vpop.f32.mrb[0].mxu0
        %v4876 = vpop.f32.mrb[0].mxu0
        %v4877 = vadd.f32 0.0, %v4876
        %v4878 = vpop.f32.mrb[0].mxu0
        %4879 = vmatprep.mubr.bf16.mxu0 %v4532
        %4880 = vmatmul.mubr.bf16.gmra.mrb[0].mxu0 %v4531
        %v4881 = vpop.f32.mrb[0].mxu0
        %v4882 = vadd.f32 0.0, %v4881
        %v4883 = vpop.f32.mrb[0].mxu0
        %v4884 = vpop.f32.mrb[0].mxu0
        %v4885 = vadd.f32 0.0, %v4884
        %v4886 = vpop.f32.mrb[0].mxu0
        %4887 = vdwg.mxu0
        %4888 = vmatprep.subr.bf16.mxu0 0
        %4889 = vmatpush1.bf16.msra.mxu0 %v4695
        %4890 = vmatprep.subr.bf16.mxu0 0
        %4891 = vmatpush1.bf16.msra.mxu0 %v4696
        %4892 = vmatprep.subr.bf16.mxu0 0
        %4893 = vmatpush1.bf16.msra.mxu0 %v4697
        %4894 = vmatprep.subr.bf16.mxu0 0
        %4895 = vmatpush1.bf16.msra.mxu0 %v4698
        %4896 = vmatprep.subr.bf16.mxu0 0
        %4897 = vmatpush1.bf16.msra.mxu0 %v4699
        %4898 = vmatprep.subr.bf16.mxu0 0
        %4899 = vmatpush1.bf16.msra.mxu0 %v4700
        %4900 = vmatprep.subr.bf16.mxu0 0
        %4901 = vmatpush1.bf16.msra.mxu0 %v4701
        %4902 = vmatprep.subr.bf16.mxu0 0
        %4903 = vmatpush1.bf16.msra.mxu0 %v4702
        %4904 = vmatprep.subr.bf16.mxu0 0
        %4905 = vmatpush1.bf16.msra.mxu0 0
        %4906 = vmatprep.subr.bf16.mxu0 0
        %4907 = vmatpush1.bf16.msra.mxu0 0
        %4908 = vmatprep.subr.bf16.mxu0 0
        %4909 = vmatpush1.bf16.msra.mxu0 0
        %4910 = vmatprep.subr.bf16.mxu0 0
        %4911 = vmatpush1.bf16.msra.mxu0 0
        %4912 = vmatprep.subr.bf16.mxu0 0
        %4913 = vmatpush1.bf16.msra.mxu0 0
        %4914 = vmatprep.subr.bf16.mxu0 0
        %4915 = vmatpush1.bf16.msra.mxu0 0
        %4916 = vmatprep.subr.bf16.mxu0 0
        %4917 = vmatpush1.bf16.msra.mxu0 0
        %4918 = vmatprep.subr.bf16.mxu0 0
        %4919 = vmatpush1.bf16.msra.mxu0 0
        %4920 = vmatprep.mubr.bf16.mxu0 0
        %4921 = vmatmul.mubr.bf16.gmra.mrb[0].mxu0 %v4488
        %v4922 = vpop.f32.mrb[0].mxu0
        %v4923 = vadd.f32 %v4762, %v4922
        %v4924 = vpop.f32.mrb[0].mxu0
        %v4925 = vpop.f32.mrb[0].mxu0
        %v4926 = vadd.f32 %v4765, %v4925
        %v4927 = vpop.f32.mrb[0].mxu0
        %4928 = vmatprep.mubr.bf16.mxu0 0
        %4929 = vmatmul.mubr.bf16.gmra.mrb[0].mxu0 %v4491
        %v4930 = vpop.f32.mrb[0].mxu0
        %v4931 = vadd.f32 %v4770, %v4930
        %v4932 = vpop.f32.mrb[0].mxu0
        %v4933 = vpop.f32.mrb[0].mxu0
        %v4934 = vadd.f32 %v4773, %v4933
        %v4935 = vpop.f32.mrb[0].mxu0
        %4936 = vmatprep.mubr.bf16.mxu0 0
        %4937 = vmatmul.mubr.bf16.gmra.mrb[0].mxu0 %v4494
        %v4938 = vpop.f32.mrb[0].mxu0
        %v4939 = vadd.f32 %v4778, %v4938
        %v4940 = vpop.f32.mrb[0].mxu0
        %v4941 = vpop.f32.mrb[0].mxu0
        %v4942 = vadd.f32 %v4781, %v4941
        %v4943 = vpop.f32.mrb[0].mxu0
        %4944 = vmatprep.mubr.bf16.mxu0 0
        %4945 = vmatmul.mubr.bf16.gmra.mrb[0].mxu0 %v4497
        %v4946 = vpop.f32.mrb[0].mxu0
        %v4947 = vadd.f32 %v4786, %v4946
        %v4948 = vpop.f32.mrb[0].mxu0
        %v4949 = vpop.f32.mrb[0].mxu0
        %v4950 = vadd.f32 %v4789, %v4949
        %v4951 = vpop.f32.mrb[0].mxu0
        %4952 = vmatprep.mubr.bf16.mxu0 0
        %4953 = vmatmul.mubr.bf16.gmra.mrb[0].mxu0 %v4500
        %v4954 = vpop.f32.mrb[0].mxu0
        %v4955 = vadd.f32 %v4794, %v4954
        %v4956 = vpop.f32.mrb[0].mxu0
        %v4957 = vpop.f32.mrb[0].mxu0
        %v4958 = vadd.f32 %v4797, %v4957
        %v4959 = vpop.f32.mrb[0].mxu0
        %4960 = vmatprep.mubr.bf16.mxu0 0
        %4961 = vmatmul.mubr.bf16.gmra.mrb[0].mxu0 %v4503
        %v4962 = vpop.f32.mrb[0].mxu0
        %v4963 = vadd.f32 %v4802, %v4962
        %v4964 = vpop.f32.mrb[0].mxu0
        %v4965 = vpop.f32.mrb[0].mxu0
        %v4966 = vadd.f32 %v4805, %v4965
        %v4967 = vpop.f32.mrb[0].mxu0
        %4968 = vmatprep.mubr.bf16.mxu0 0
        %4969 = vmatmul.mubr.bf16.gmra.mrb[0].mxu0 %v4506
        %v4970 = vpop.f32.mrb[0].mxu0
        %v4971 = vadd.f32 %v4810, %v4970
        %v4972 = vpop.f32.mrb[0].mxu0
        %v4973 = vpop.f32.mrb[0].mxu0
        %v4974 = vadd.f32 %v4813, %v4973
        %v4975 = vpop.f32.mrb[0].mxu0
        %4976 = vmatprep.mubr.bf16.mxu0 0
        %4977 = vmatmul.mubr.bf16.gmra.mrb[0].mxu0 %v4509
        %v4978 = vpop.f32.mrb[0].mxu0
        %v4979 = vadd.f32 %v4818, %v4978
        %v4980 = vpop.f32.mrb[0].mxu0
        %v4981 = vpop.f32.mrb[0].mxu0
        %v4982 = vadd.f32 %v4821, %v4981
        %v4983 = vpop.f32.mrb[0].mxu0
        %4984 = vmatprep.mubr.bf16.mxu0 0
        %4985 = vmatmul.mubr.bf16.gmra.mrb[0].mxu0 %v4512
        %v4986 = vpop.f32.mrb[0].mxu0
        %v4987 = vadd.f32 %v4826, %v4986
        %v4988 = vpop.f32.mrb[0].mxu0
        %v4989 = vpop.f32.mrb[0].mxu0
        %v4990 = vadd.f32 %v4829, %v4989
        %v4991 = vpop.f32.mrb[0].mxu0
        %4992 = vmatprep.mubr.bf16.mxu0 0
        %4993 = vmatmul.mubr.bf16.gmra.mrb[0].mxu0 %v4515
        %v4994 = vpop.f32.mrb[0].mxu0
        %v4995 = vadd.f32 %v4834, %v4994
        %v4996 = vpop.f32.mrb[0].mxu0
        %v4997 = vpop.f32.mrb[0].mxu0
        %v4998 = vadd.f32 %v4837, %v4997
        %v4999 = vpop.f32.mrb[0].mxu0
        %5000 = vmatprep.mubr.bf16.mxu0 0
        %5001 = vmatmul.mubr.bf16.gmra.mrb[0].mxu0 %v4518
        %v5002 = vpop.f32.mrb[0].mxu0
        %v5003 = vadd.f32 %v4842, %v5002
        %v5004 = vpop.f32.mrb[0].mxu0
        %v5005 = vpop.f32.mrb[0].mxu0
        %v5006 = vadd.f32 %v4845, %v5005
        %v5007 = vpop.f32.mrb[0].mxu0
        %5008 = vmatprep.mubr.bf16.mxu0 0
        %5009 = vmatmul.mubr.bf16.gmra.mrb[0].mxu0 %v4521
        %v5010 = vpop.f32.mrb[0].mxu0
        %v5011 = vadd.f32 %v4850, %v5010
        %v5012 = vpop.f32.mrb[0].mxu0
        %v5013 = vpop.f32.mrb[0].mxu0
        %v5014 = vadd.f32 %v4853, %v5013
        %v5015 = vpop.f32.mrb[0].mxu0
        %5016 = vmatprep.mubr.bf16.mxu0 0
        %5017 = vmatmul.mubr.bf16.gmra.mrb[0].mxu0 %v4524
        %v5018 = vpop.f32.mrb[0].mxu0
        %v5019 = vadd.f32 %v4858, %v5018
        %v5020 = vpop.f32.mrb[0].mxu0
        %v5021 = vpop.f32.mrb[0].mxu0
        %v5022 = vadd.f32 %v4861, %v5021
        %v5023 = vpop.f32.mrb[0].mxu0
        %5024 = vmatprep.mubr.bf16.mxu0 0
        %5025 = vmatmul.mubr.bf16.gmra.mrb[0].mxu0 %v4527
        %v5026 = vpop.f32.mrb[0].mxu0
        %v5027 = vadd.f32 %v4866, %v5026
        %v5028 = vpop.f32.mrb[0].mxu0
        %v5029 = vpop.f32.mrb[0].mxu0
        %v5030 = vadd.f32 %v4869, %v5029
        %v5031 = vpop.f32.mrb[0].mxu0
        %5032 = vmatprep.mubr.bf16.mxu0 0
        %5033 = vmatmul.mubr.bf16.gmra.mrb[0].mxu0 %v4530
        %v5034 = vpop.f32.mrb[0].mxu0
        %v5035 = vadd.f32 %v4874, %v5034
        %v5036 = vpop.f32.mrb[0].mxu0
        %v5037 = vpop.f32.mrb[0].mxu0
        %v5038 = vadd.f32 %v4877, %v5037
        %v5039 = vpop.f32.mrb[0].mxu0
        %5040 = vmatprep.mubr.bf16.mxu0 0
        %5041 = vmatmul.mubr.bf16.gmra.mrb[0].mxu0 %v4533
        %v5042 = vpop.f32.mrb[0].mxu0
        %v5043 = vadd.f32 %v4882, %v5042
        %v5044 = vpop.f32.mrb[0].mxu0
        %v5045 = vpop.f32.mrb[0].mxu0
        %v5046 = vadd.f32 %v4885, %v5045
        %v5047 = vpop.f32.mrb[0].mxu0
        %5048 = vdwg.mxu0
        %v5049 = vadd.f32 %v3559, %v4923
        %v5050 = vadd.f32 %v3562, %v4926
        %v5051 = vadd.f32 %v3567, %v4931
        %v5052 = vadd.f32 %v3570, %v4934
        %v5053 = vadd.f32 %v3575, %v4939
        %v5054 = vadd.f32 %v3578, %v4942
        %v5055 = vadd.f32 %v3583, %v4947
        %v5056 = vadd.f32 %v3586, %v4950
        %v5057 = vadd.f32 %v3591, %v4955
        %v5058 = vadd.f32 %v3594, %v4958
        %v5059 = vadd.f32 %v3599, %v4963
        %v5060 = vadd.f32 %v3602, %v4966
        %v5061 = vadd.f32 %v3607, %v4971
        %v5062 = vadd.f32 %v3610, %v4974
        %v5063 = vadd.f32 %v3615, %v4979
        %v5064 = vadd.f32 %v3618, %v4982
        %v5065 = vadd.f32 %v3623, %v4987
        %v5066 = vadd.f32 %v3626, %v4990
        %v5067 = vadd.f32 %v3631, %v4995
        %v5068 = vadd.f32 %v3634, %v4998
        %v5069 = vadd.f32 %v3639, %v5003
        %v5070 = vadd.f32 %v3642, %v5006
        %v5071 = vadd.f32 %v3647, %v5011
        %v5072 = vadd.f32 %v3650, %v5014
        %v5073 = vadd.f32 %v3655, %v5019
        %v5074 = vadd.f32 %v3658, %v5022
        %v5075 = vadd.f32 %v3663, %v5027
        %v5076 = vadd.f32 %v3666, %v5030
        %v5077 = vadd.f32 %v3671, %v5035
        %v5078 = vadd.f32 %v3674, %v5038
        %v5079 = vadd.f32 %v3679, %v5043
        %v5080 = vadd.f32 %v3682, %v5046
        %v5081 = vld [vmem:[%s2] sm:$0x1]
        %v5083 = vlaneseq
        %v5084 = vshrl.u32 %v5083, 7
        %v5085 = vsub.s32 0, %v5084
        %v5086 = vrot.slane %v5081, %v5085
        %v5088 = vadd.f32 %v5049, %v5086
        %v5089 = vadd.f32 %v5050, %v5086
        %v5090 = vadd.f32 %v5051, %v5086
        %v5091 = vadd.f32 %v5052, %v5086
        %v5092 = vadd.f32 %v5053, %v5086
        %v5093 = vadd.f32 %v5054, %v5086
        %v5094 = vadd.f32 %v5055, %v5086
        %v5095 = vadd.f32 %v5056, %v5086
        %v5096 = vadd.f32 %v5057, %v5086
        %v5097 = vadd.f32 %v5058, %v5086
        %v5098 = vadd.f32 %v5059, %v5086
        %v5099 = vadd.f32 %v5060, %v5086
        %v5100 = vadd.f32 %v5061, %v5086
        %v5101 = vadd.f32 %v5062, %v5086
        %v5102 = vadd.f32 %v5063, %v5086
        %v5103 = vadd.f32 %v5064, %v5086
        %v5104 = vadd.f32 %v5065, %v5086
        %v5105 = vadd.f32 %v5066, %v5086
        %v5106 = vadd.f32 %v5067, %v5086
        %v5107 = vadd.f32 %v5068, %v5086
        %v5108 = vadd.f32 %v5069, %v5086
        %v5109 = vadd.f32 %v5070, %v5086
        %v5110 = vadd.f32 %v5071, %v5086
        %v5111 = vadd.f32 %v5072, %v5086
        %v5112 = vadd.f32 %v5073, %v5086
        %v5113 = vadd.f32 %v5074, %v5086
        %v5114 = vadd.f32 %v5075, %v5086
        %v5115 = vadd.f32 %v5076, %v5086
        %v5116 = vadd.f32 %v5077, %v5086
        %v5117 = vadd.f32 %v5078, %v5086
        %v5118 = vadd.f32 %v5079, %v5086
        %v5119 = vadd.f32 %v5080, %v5086
        %v5120 = vmul.f32 %v5088, 0.2
        %v5121 = vmul.f32 %v5089, 0.2
        %v5122 = vmul.f32 %v5090, 0.2
        %v5123 = vmul.f32 %v5091, 0.2
        %v5124 = vmul.f32 %v5092, 0.2
        %v5125 = vmul.f32 %v5093, 0.2
        %v5126 = vmul.f32 %v5094, 0.2
        %v5127 = vmul.f32 %v5095, 0.2
        %v5128 = vmul.f32 %v5096, 0.2
        %v5129 = vmul.f32 %v5097, 0.2
        %v5130 = vmul.f32 %v5098, 0.2
        %v5131 = vmul.f32 %v5099, 0.2
        %v5132 = vmul.f32 %v5100, 0.2
        %v5133 = vmul.f32 %v5101, 0.2
        %v5134 = vmul.f32 %v5102, 0.2
        %v5135 = vmul.f32 %v5103, 0.2
        %v5136 = vmul.f32 %v5104, 0.2
        %v5137 = vmul.f32 %v5105, 0.2
        %v5138 = vmul.f32 %v5106, 0.2
        %v5139 = vmul.f32 %v5107, 0.2
        %v5140 = vmul.f32 %v5108, 0.2
        %v5141 = vmul.f32 %v5109, 0.2
        %v5142 = vmul.f32 %v5110, 0.2
        %v5143 = vmul.f32 %v5111, 0.2
        %v5144 = vmul.f32 %v5112, 0.2
        %v5145 = vmul.f32 %v5113, 0.2
        %v5146 = vmul.f32 %v5114, 0.2
        %v5147 = vmul.f32 %v5115, 0.2
        %v5148 = vmul.f32 %v5116, 0.2
        %v5149 = vmul.f32 %v5117, 0.2
        %v5150 = vmul.f32 %v5118, 0.2
        %v5151 = vmul.f32 %v5119, 0.2
        %v5152 = vmax.f32 %v5088, %v5120
        %v5153 = vmax.f32 %v5089, %v5121
        %v5154 = vmax.f32 %v5090, %v5122
        %v5155 = vmax.f32 %v5091, %v5123
        %v5156 = vmax.f32 %v5092, %v5124
        %v5157 = vmax.f32 %v5093, %v5125
        %v5158 = vmax.f32 %v5094, %v5126
        %v5159 = vmax.f32 %v5095, %v5127
        %v5160 = vmax.f32 %v5096, %v5128
        %v5161 = vmax.f32 %v5097, %v5129
        %v5162 = vmax.f32 %v5098, %v5130
        %v5163 = vmax.f32 %v5099, %v5131
        %v5164 = vmax.f32 %v5100, %v5132
        %v5165 = vmax.f32 %v5101, %v5133
        %v5166 = vmax.f32 %v5102, %v5134
        %v5167 = vmax.f32 %v5103, %v5135
        %v5168 = vmax.f32 %v5104, %v5136
        %v5169 = vmax.f32 %v5105, %v5137
        %v5170 = vmax.f32 %v5106, %v5138
        %v5171 = vmax.f32 %v5107, %v5139
        %v5172 = vmax.f32 %v5108, %v5140
        %v5173 = vmax.f32 %v5109, %v5141
        %v5174 = vmax.f32 %v5110, %v5142
        %v5175 = vmax.f32 %v5111, %v5143
        %v5176 = vmax.f32 %v5112, %v5144
        %v5177 = vmax.f32 %v5113, %v5145
        %v5178 = vmax.f32 %v5114, %v5146
        %v5179 = vmax.f32 %v5115, %v5147
        %v5180 = vmax.f32 %v5116, %v5148
        %v5181 = vmax.f32 %v5117, %v5149
        %v5182 = vmax.f32 %v5118, %v5150
        %v5183 = vmax.f32 %v5119, %v5151
        %v5184 = vpack.c.bf16 %v5153, %v5152
        %v5185 = vpack.c.bf16 %v5155, %v5154
        %v5186 = vpack.c.bf16 %v5157, %v5156
        %v5187 = vpack.c.bf16 %v5159, %v5158
        %v5188 = vpack.c.bf16 %v5161, %v5160
        %v5189 = vpack.c.bf16 %v5163, %v5162
        %v5190 = vpack.c.bf16 %v5165, %v5164
        %v5191 = vpack.c.bf16 %v5167, %v5166
        %v5192 = vpack.c.bf16 %v5169, %v5168
        %v5193 = vpack.c.bf16 %v5171, %v5170
        %v5194 = vpack.c.bf16 %v5173, %v5172
        %v5195 = vpack.c.bf16 %v5175, %v5174
        %v5196 = vpack.c.bf16 %v5177, %v5176
        %v5197 = vpack.c.bf16 %v5179, %v5178
        %v5198 = vpack.c.bf16 %v5181, %v5180
        %v5199 = vpack.c.bf16 %v5183, %v5182
        %v5216 = vunpack.c.l.b16 %v5184
        %v5217 = vunpack.c.h.b16 %v5184
        %v5218 = vunpack.c.l.b16 %v5185
        %v5219 = vunpack.c.h.b16 %v5185
        %v5220 = vunpack.c.l.b16 %v5186
        %v5221 = vunpack.c.h.b16 %v5186
        %v5222 = vunpack.c.l.b16 %v5187
        %v5223 = vunpack.c.h.b16 %v5187
        %v5224 = vunpack.c.l.b16 %v5188
        %v5225 = vunpack.c.h.b16 %v5188
        %v5226 = vunpack.c.l.b16 %v5189
        %v5227 = vunpack.c.h.b16 %v5189
        %v5228 = vunpack.c.l.b16 %v5190
        %v5229 = vunpack.c.h.b16 %v5190
        %v5230 = vunpack.c.l.b16 %v5191
        %v5231 = vunpack.c.h.b16 %v5191
        %v5232 = vunpack.c.l.b16 %v5192
        %v5233 = vunpack.c.h.b16 %v5192
        %v5234 = vunpack.c.l.b16 %v5193
        %v5235 = vunpack.c.h.b16 %v5193
        %v5236 = vunpack.c.l.b16 %v5194
        %v5237 = vunpack.c.h.b16 %v5194
        %v5238 = vunpack.c.l.b16 %v5195
        %v5239 = vunpack.c.h.b16 %v5195
        %v5240 = vunpack.c.l.b16 %v5196
        %v5241 = vunpack.c.h.b16 %v5196
        %v5242 = vunpack.c.l.b16 %v5197
        %v5243 = vunpack.c.h.b16 %v5197
        %v5244 = vunpack.c.l.b16 %v5198
        %v5245 = vunpack.c.h.b16 %v5198
        %v5246 = vunpack.c.l.b16 %v5199
        %v5247 = vunpack.c.h.b16 %v5199
        %v5248 = vpack.c.b16 %v5216, %v5216
        %v5249 = vpack.c.b16 %v5217, %v5217
        %v5250 = vpack.c.b16 %v5218, %v5218
        %v5251 = vpack.c.b16 %v5219, %v5219
        %v5252 = vpack.c.b16 %v5220, %v5220
        %v5253 = vpack.c.b16 %v5221, %v5221
        %v5254 = vpack.c.b16 %v5222, %v5222
        %v5255 = vpack.c.b16 %v5223, %v5223
        %v5256 = vpack.c.b16 %v5224, %v5224
        %v5257 = vpack.c.b16 %v5225, %v5225
        %v5258 = vpack.c.b16 %v5226, %v5226
        %v5259 = vpack.c.b16 %v5227, %v5227
        %v5260 = vpack.c.b16 %v5228, %v5228
        %v5261 = vpack.c.b16 %v5229, %v5229
        %v5262 = vpack.c.b16 %v5230, %v5230
        %v5263 = vpack.c.b16 %v5231, %v5231
        %v5264 = vpack.c.b16 %v5232, %v5232
        %v5265 = vpack.c.b16 %v5233, %v5233
        %v5266 = vpack.c.b16 %v5234, %v5234
        %v5267 = vpack.c.b16 %v5235, %v5235
        %v5268 = vpack.c.b16 %v5236, %v5236
        %v5269 = vpack.c.b16 %v5237, %v5237
        %v5270 = vpack.c.b16 %v5238, %v5238
        %v5271 = vpack.c.b16 %v5239, %v5239
        %v5272 = vpack.c.b16 %v5240, %v5240
        %v5273 = vpack.c.b16 %v5241, %v5241
        %v5274 = vpack.c.b16 %v5242, %v5242
        %v5275 = vpack.c.b16 %v5243, %v5243
        %v5276 = vpack.c.b16 %v5244, %v5244
        %v5277 = vpack.c.b16 %v5245, %v5245
        %v5278 = vpack.c.b16 %v5246, %v5246
        %v5279 = vpack.c.b16 %v5247, %v5247
        %v5281 = vshrl.u32 %v5248, 16
        %v5283 = vrot.slane %v5281, 7
        %v5284 = vshll.u32 %v5248, 16
        %v5286 = vor.u32 %v5283, %v5284
        %v5287 = vrot.slane %v5283, 4
        %v5289 = vshrl.u32 %v5249, 16
        %v5291 = vrot.slane %v5289, 7
        %v5292 = vshll.u32 %v5249, 16
        %v5294 = vor.u32 %v5291, %v5292
        %v5295 = vsel %vm522, %v5287, %v5294
        %v5296 = vrot.slane %v5291, 4
        %v5298 = vshrl.u32 %v5250, 16
        %v5300 = vrot.slane %v5298, 7
        %v5301 = vshll.u32 %v5250, 16
        %v5303 = vor.u32 %v5300, %v5301
        %v5304 = vrot.slane %v5300, 4
        %v5306 = vshrl.u32 %v5251, 16
        %v5308 = vrot.slane %v5306, 7
        %v5309 = vshll.u32 %v5251, 16
        %v5311 = vor.u32 %v5308, %v5309
        %v5312 = vsel %vm522, %v5304, %v5311
        %v5313 = vrot.slane %v5308, 4
        %v5315 = vshrl.u32 %v5252, 16
        %v5317 = vrot.slane %v5315, 7
        %v5318 = vshll.u32 %v5252, 16
        %v5320 = vor.u32 %v5317, %v5318
        %v5321 = vrot.slane %v5317, 4
        %v5323 = vshrl.u32 %v5253, 16
        %v5325 = vrot.slane %v5323, 7
        %v5326 = vshll.u32 %v5253, 16
        %v5328 = vor.u32 %v5325, %v5326
        %v5329 = vsel %vm522, %v5321, %v5328
        %v5330 = vrot.slane %v5325, 4
        %v5332 = vshrl.u32 %v5254, 16
        %v5334 = vrot.slane %v5332, 7
        %v5335 = vshll.u32 %v5254, 16
        %v5337 = vor.u32 %v5334, %v5335
        %v5338 = vrot.slane %v5334, 4
        %v5340 = vshrl.u32 %v5255, 16
        %v5342 = vrot.slane %v5340, 7
        %v5343 = vshll.u32 %v5255, 16
        %v5345 = vor.u32 %v5342, %v5343
        %v5346 = vsel %vm522, %v5338, %v5345
        %v5347 = vrot.slane %v5342, 4
        %v5349 = vshrl.u32 %v5256, 16
        %v5351 = vrot.slane %v5349, 7
        %v5352 = vshll.u32 %v5256, 16
        %v5354 = vor.u32 %v5351, %v5352
        %v5355 = vrot.slane %v5351, 4
        %v5357 = vshrl.u32 %v5257, 16
        %v5359 = vrot.slane %v5357, 7
        %v5360 = vshll.u32 %v5257, 16
        %v5362 = vor.u32 %v5359, %v5360
        %v5363 = vsel %vm522, %v5355, %v5362
        %v5364 = vrot.slane %v5359, 4
        %v5366 = vshrl.u32 %v5258, 16
        %v5368 = vrot.slane %v5366, 7
        %v5369 = vshll.u32 %v5258, 16
        %v5371 = vor.u32 %v5368, %v5369
        %v5372 = vrot.slane %v5368, 4
        %v5374 = vshrl.u32 %v5259, 16
        %v5376 = vrot.slane %v5374, 7
        %v5377 = vshll.u32 %v5259, 16
        %v5379 = vor.u32 %v5376, %v5377
        %v5380 = vsel %vm522, %v5372, %v5379
        %v5381 = vrot.slane %v5376, 4
        %v5383 = vshrl.u32 %v5260, 16
        %v5385 = vrot.slane %v5383, 7
        %v5386 = vshll.u32 %v5260, 16
        %v5388 = vor.u32 %v5385, %v5386
        %v5389 = vrot.slane %v5385, 4
        %v5391 = vshrl.u32 %v5261, 16
        %v5393 = vrot.slane %v5391, 7
        %v5394 = vshll.u32 %v5261, 16
        %v5396 = vor.u32 %v5393, %v5394
        %v5397 = vsel %vm522, %v5389, %v5396
        %v5398 = vrot.slane %v5393, 4
        %v5400 = vshrl.u32 %v5262, 16
        %v5402 = vrot.slane %v5400, 7
        %v5403 = vshll.u32 %v5262, 16
        %v5405 = vor.u32 %v5402, %v5403
        %v5406 = vrot.slane %v5402, 4
        %v5408 = vshrl.u32 %v5263, 16
        %v5410 = vrot.slane %v5408, 7
        %v5411 = vshll.u32 %v5263, 16
        %v5413 = vor.u32 %v5410, %v5411
        %v5414 = vsel %vm522, %v5406, %v5413
        %v5415 = vrot.slane %v5410, 4
        %v5417 = vshrl.u32 %v5264, 16
        %v5419 = vrot.slane %v5417, 7
        %v5420 = vshll.u32 %v5264, 16
        %v5422 = vor.u32 %v5419, %v5420
        %v5423 = vrot.slane %v5419, 4
        %v5425 = vshrl.u32 %v5265, 16
        %v5427 = vrot.slane %v5425, 7
        %v5428 = vshll.u32 %v5265, 16
        %v5430 = vor.u32 %v5427, %v5428
        %v5431 = vsel %vm522, %v5423, %v5430
        %v5432 = vrot.slane %v5427, 4
        %v5434 = vshrl.u32 %v5266, 16
        %v5436 = vrot.slane %v5434, 7
        %v5437 = vshll.u32 %v5266, 16
        %v5439 = vor.u32 %v5436, %v5437
        %v5440 = vrot.slane %v5436, 4
        %v5442 = vshrl.u32 %v5267, 16
        %v5444 = vrot.slane %v5442, 7
        %v5445 = vshll.u32 %v5267, 16
        %v5447 = vor.u32 %v5444, %v5445
        %v5448 = vsel %vm522, %v5440, %v5447
        %v5449 = vrot.slane %v5444, 4
        %v5451 = vshrl.u32 %v5268, 16
        %v5453 = vrot.slane %v5451, 7
        %v5454 = vshll.u32 %v5268, 16
        %v5456 = vor.u32 %v5453, %v5454
        %v5457 = vrot.slane %v5453, 4
        %v5459 = vshrl.u32 %v5269, 16
        %v5461 = vrot.slane %v5459, 7
        %v5462 = vshll.u32 %v5269, 16
        %v5464 = vor.u32 %v5461, %v5462
        %v5465 = vsel %vm522, %v5457, %v5464
        %v5466 = vrot.slane %v5461, 4
        %v5468 = vshrl.u32 %v5270, 16
        %v5470 = vrot.slane %v5468, 7
        %v5471 = vshll.u32 %v5270, 16
        %v5473 = vor.u32 %v5470, %v5471
        %v5474 = vrot.slane %v5470, 4
        %v5476 = vshrl.u32 %v5271, 16
        %v5478 = vrot.slane %v5476, 7
        %v5479 = vshll.u32 %v5271, 16
        %v5481 = vor.u32 %v5478, %v5479
        %v5482 = vsel %vm522, %v5474, %v5481
        %v5483 = vrot.slane %v5478, 4
        %v5485 = vshrl.u32 %v5272, 16
        %v5487 = vrot.slane %v5485, 7
        %v5488 = vshll.u32 %v5272, 16
        %v5490 = vor.u32 %v5487, %v5488
        %v5491 = vrot.slane %v5487, 4
        %v5493 = vshrl.u32 %v5273, 16
        %v5495 = vrot.slane %v5493, 7
        %v5496 = vshll.u32 %v5273, 16
        %v5498 = vor.u32 %v5495, %v5496
        %v5499 = vsel %vm522, %v5491, %v5498
        %v5500 = vrot.slane %v5495, 4
        %v5502 = vshrl.u32 %v5274, 16
        %v5504 = vrot.slane %v5502, 7
        %v5505 = vshll.u32 %v5274, 16
        %v5507 = vor.u32 %v5504, %v5505
        %v5508 = vrot.slane %v5504, 4
        %v5510 = vshrl.u32 %v5275, 16
        %v5512 = vrot.slane %v5510, 7
        %v5513 = vshll.u32 %v5275, 16
        %v5515 = vor.u32 %v5512, %v5513
        %v5516 = vsel %vm522, %v5508, %v5515
        %v5517 = vrot.slane %v5512, 4
        %v5519 = vshrl.u32 %v5276, 16
        %v5521 = vrot.slane %v5519, 7
        %v5522 = vshll.u32 %v5276, 16
        %v5524 = vor.u32 %v5521, %v5522
        %v5525 = vrot.slane %v5521, 4
        %v5527 = vshrl.u32 %v5277, 16
        %v5529 = vrot.slane %v5527, 7
        %v5530 = vshll.u32 %v5277, 16
        %v5532 = vor.u32 %v5529, %v5530
        %v5533 = vsel %vm522, %v5525, %v5532
        %v5534 = vrot.slane %v5529, 4
        %v5536 = vshrl.u32 %v5278, 16
        %v5538 = vrot.slane %v5536, 7
        %v5539 = vshll.u32 %v5278, 16
        %v5541 = vor.u32 %v5538, %v5539
        %v5542 = vrot.slane %v5538, 4
        %v5544 = vshrl.u32 %v5279, 16
        %v5546 = vrot.slane %v5544, 7
        %v5547 = vshll.u32 %v5279, 16
        %v5549 = vor.u32 %v5546, %v5547
        %v5550 = vsel %vm522, %v5542, %v5549
        %v5551 = vrot.slane %v5546, 4
        %v5600 = vld [vmem:[%s843] sm:$0xf]
        %v5601 = vsel %vm845, %v5286, %v5600
        %5602 = vst [vmem:[%s843] sm:$0xf] %v5601
        %5603 = vst [vmem:[%s843 + $0x4] sm:$0xf] %v5295
        %v5604 = vld [vmem:[%s843 + $0x8] sm:$0x1]
        %v5605 = vsel %vm282, %v5296, %v5604
        %5606 = vst [vmem:[%s843 + $0x8] sm:$0x1] %v5605
        %v5607 = vld [vmem:[%s843 + $0xc] sm:$0xf]
        %v5608 = vsel %vm845, %v5303, %v5607
        %5609 = vst [vmem:[%s843 + $0xc] sm:$0xf] %v5608
        %5610 = vst [vmem:[%s843 + $0x10] sm:$0xf] %v5312
        %v5611 = vld [vmem:[%s843 + $0x14] sm:$0x1]
        %v5612 = vsel %vm282, %v5313, %v5611
        %5613 = vst [vmem:[%s843 + $0x14] sm:$0x1] %v5612
        %v5614 = vld [vmem:[%s843 + $0x18] sm:$0xf]
        %v5615 = vsel %vm845, %v5320, %v5614
        %5616 = vst [vmem:[%s843 + $0x18] sm:$0xf] %v5615
        %5617 = vst [vmem:[%s843 + $0x1c] sm:$0xf] %v5329
        %v5618 = vld [vmem:[%s843 + $0x20] sm:$0x1]
        %v5619 = vsel %vm282, %v5330, %v5618
        %5620 = vst [vmem:[%s843 + $0x20] sm:$0x1] %v5619
        %v5621 = vld [vmem:[%s843 + $0x24] sm:$0xf]
        %v5622 = vsel %vm845, %v5337, %v5621
        %5623 = vst [vmem:[%s843 + $0x24] sm:$0xf] %v5622
        %5624 = vst [vmem:[%s843 + $0x28] sm:$0xf] %v5346
        %v5625 = vld [vmem:[%s843 + $0x2c] sm:$0x1]
        %v5626 = vsel %vm282, %v5347, %v5625
        %5627 = vst [vmem:[%s843 + $0x2c] sm:$0x1] %v5626
        %v5628 = vld [vmem:[%s843 + $0x30] sm:$0xf]
        %v5629 = vsel %vm845, %v5354, %v5628
        %5630 = vst [vmem:[%s843 + $0x30] sm:$0xf] %v5629
        %5631 = vst [vmem:[%s843 + $0x34] sm:$0xf] %v5363
        %v5632 = vld [vmem:[%s843 + $0x38] sm:$0x1]
        %v5633 = vsel %vm282, %v5364, %v5632
        %5634 = vst [vmem:[%s843 + $0x38] sm:$0x1] %v5633
        %v5635 = vld [vmem:[%s843 + $0x3c] sm:$0xf]
        %v5636 = vsel %vm845, %v5371, %v5635
        %5637 = vst [vmem:[%s843 + $0x3c] sm:$0xf] %v5636
        %5638 = vst [vmem:[%s843 + $0x40] sm:$0xf] %v5380
        %v5639 = vld [vmem:[%s843 + $0x44] sm:$0x1]
        %v5640 = vsel %vm282, %v5381, %v5639
        %5641 = vst [vmem:[%s843 + $0x44] sm:$0x1] %v5640
        %v5642 = vld [vmem:[%s843 + $0x48] sm:$0xf]
        %v5643 = vsel %vm845, %v5388, %v5642
        %5644 = vst [vmem:[%s843 + $0x48] sm:$0xf] %v5643
        %5645 = vst [vmem:[%s843 + $0x4c] sm:$0xf] %v5397
        %v5646 = vld [vmem:[%s843 + $0x50] sm:$0x1]
        %v5647 = vsel %vm282, %v5398, %v5646
        %5648 = vst [vmem:[%s843 + $0x50] sm:$0x1] %v5647
        %v5649 = vld [vmem:[%s843 + $0x54] sm:$0xf]
        %v5650 = vsel %vm845, %v5405, %v5649
        %5651 = vst [vmem:[%s843 + $0x54] sm:$0xf] %v5650
        %5652 = vst [vmem:[%s843 + $0x58] sm:$0xf] %v5414
        %v5653 = vld [vmem:[%s843 + $0x5c] sm:$0x1]
        %v5654 = vsel %vm282, %v5415, %v5653
        %5655 = vst [vmem:[%s843 + $0x5c] sm:$0x1] %v5654
        %v5656 = vld [vmem:[%s843 + $0x60] sm:$0xf]
        %v5657 = vsel %vm845, %v5422, %v5656
        %5658 = vst [vmem:[%s843 + $0x60] sm:$0xf] %v5657
        %5659 = vst [vmem:[%s843 + $0x64] sm:$0xf] %v5431
        %v5660 = vld [vmem:[%s843 + $0x68] sm:$0x1]
        %v5661 = vsel %vm282, %v5432, %v5660
        %5662 = vst [vmem:[%s843 + $0x68] sm:$0x1] %v5661
        %v5663 = vld [vmem:[%s843 + $0x6c] sm:$0xf]
        %v5664 = vsel %vm845, %v5439, %v5663
        %5665 = vst [vmem:[%s843 + $0x6c] sm:$0xf] %v5664
        %5666 = vst [vmem:[%s843 + $0x70] sm:$0xf] %v5448
        %v5667 = vld [vmem:[%s843 + $0x74] sm:$0x1]
        %v5668 = vsel %vm282, %v5449, %v5667
        %5669 = vst [vmem:[%s843 + $0x74] sm:$0x1] %v5668
        %v5670 = vld [vmem:[%s843 + $0x78] sm:$0xf]
        %v5671 = vsel %vm845, %v5456, %v5670
        %5672 = vst [vmem:[%s843 + $0x78] sm:$0xf] %v5671
        %5673 = vst [vmem:[%s843 + $0x7c] sm:$0xf] %v5465
        %v5674 = vld [vmem:[%s843 + $0x80] sm:$0x1]
        %v5675 = vsel %vm282, %v5466, %v5674
        %5676 = vst [vmem:[%s843 + $0x80] sm:$0x1] %v5675
        %v5677 = vld [vmem:[%s843 + $0x84] sm:$0xf]
        %v5678 = vsel %vm845, %v5473, %v5677
        %5679 = vst [vmem:[%s843 + $0x84] sm:$0xf] %v5678
        %5680 = vst [vmem:[%s843 + $0x88] sm:$0xf] %v5482
        %v5681 = vld [vmem:[%s843 + $0x8c] sm:$0x1]
        %v5682 = vsel %vm282, %v5483, %v5681
        %5683 = vst [vmem:[%s843 + $0x8c] sm:$0x1] %v5682
        %v5684 = vld [vmem:[%s843 + $0x90] sm:$0xf]
        %v5685 = vsel %vm845, %v5490, %v5684
        %5686 = vst [vmem:[%s843 + $0x90] sm:$0xf] %v5685
        %5687 = vst [vmem:[%s843 + $0x94] sm:$0xf] %v5499
        %v5688 = vld [vmem:[%s843 + $0x98] sm:$0x1]
        %v5689 = vsel %vm282, %v5500, %v5688
        %5690 = vst [vmem:[%s843 + $0x98] sm:$0x1] %v5689
        %v5691 = vld [vmem:[%s843 + $0x9c] sm:$0xf]
        %v5692 = vsel %vm845, %v5507, %v5691
        %5693 = vst [vmem:[%s843 + $0x9c] sm:$0xf] %v5692
        %5694 = vst [vmem:[%s843 + $0xa0] sm:$0xf] %v5516
        %v5695 = vld [vmem:[%s843 + $0xa4] sm:$0x1]
        %v5696 = vsel %vm282, %v5517, %v5695
        %5697 = vst [vmem:[%s843 + $0xa4] sm:$0x1] %v5696
        %v5698 = vld [vmem:[%s843 + $0xa8] sm:$0xf]
        %v5699 = vsel %vm845, %v5524, %v5698
        %5700 = vst [vmem:[%s843 + $0xa8] sm:$0xf] %v5699
        %5701 = vst [vmem:[%s843 + $0xac] sm:$0xf] %v5533
        %v5702 = vld [vmem:[%s843 + $0xb0] sm:$0x1]
        %v5703 = vsel %vm282, %v5534, %v5702
        %5704 = vst [vmem:[%s843 + $0xb0] sm:$0x1] %v5703
        %v5705 = vld [vmem:[%s843 + $0xb4] sm:$0xf]
        %v5706 = vsel %vm845, %v5541, %v5705
        %5707 = vst [vmem:[%s843 + $0xb4] sm:$0xf] %v5706
        %5708 = vst [vmem:[%s843 + $0xb8] sm:$0xf] %v5550
        %v5709 = vld [vmem:[%s843 + $0xbc] sm:$0x1]
        %v5710 = vsel %vm282, %v5551, %v5709
        %5711 = vst [vmem:[%s843 + $0xbc] sm:$0x1] %v5710
        %v5712 = vld [vmem:[#allocation2] sm:$0xf]
        %v5713 = vld [vmem:[#allocation2 + $0x4] sm:$0xf]
        %v5714 = vld [vmem:[#allocation2 + $0xc] sm:$0xf]
        %v5715 = vld [vmem:[#allocation2 + $0x10] sm:$0xf]
        %v5716 = vld [vmem:[#allocation2 + $0x18] sm:$0xf]
        %v5717 = vld [vmem:[#allocation2 + $0x1c] sm:$0xf]
        %v5718 = vld [vmem:[#allocation2 + $0x24] sm:$0xf]
        %v5719 = vld [vmem:[#allocation2 + $0x28] sm:$0xf]
        %v5720 = vld [vmem:[#allocation2 + $0x30] sm:$0xf]
        %v5721 = vld [vmem:[#allocation2 + $0x34] sm:$0xf]
        %v5722 = vld [vmem:[#allocation2 + $0x3c] sm:$0xf]
        %v5723 = vld [vmem:[#allocation2 + $0x40] sm:$0xf]
        %v5724 = vld [vmem:[#allocation2 + $0x48] sm:$0xf]
        %v5725 = vld [vmem:[#allocation2 + $0x4c] sm:$0xf]
        %v5726 = vld [vmem:[#allocation2 + $0x54] sm:$0xf]
        %v5727 = vld [vmem:[#allocation2 + $0x58] sm:$0xf]
        %v5728 = vld [vmem:[#allocation2 + $0x60] sm:$0xf]
        %v5729 = vld [vmem:[#allocation2 + $0x64] sm:$0xf]
        %v5730 = vld [vmem:[#allocation2 + $0x6c] sm:$0xf]
        %v5731 = vld [vmem:[#allocation2 + $0x70] sm:$0xf]
        %v5732 = vld [vmem:[#allocation2 + $0x78] sm:$0xf]
        %v5733 = vld [vmem:[#allocation2 + $0x7c] sm:$0xf]
        %v5734 = vld [vmem:[#allocation2 + $0x84] sm:$0xf]
        %v5735 = vld [vmem:[#allocation2 + $0x88] sm:$0xf]
        %v5736 = vld [vmem:[#allocation2 + $0x90] sm:$0xf]
        %v5737 = vld [vmem:[#allocation2 + $0x94] sm:$0xf]
        %v5738 = vld [vmem:[#allocation2 + $0x9c] sm:$0xf]
        %v5739 = vld [vmem:[#allocation2 + $0xa0] sm:$0xf]
        %v5740 = vld [vmem:[#allocation2 + $0xa8] sm:$0xf]
        %v5741 = vld [vmem:[#allocation2 + $0xac] sm:$0xf]
        %v5742 = vld [vmem:[#allocation2 + $0xb4] sm:$0xf]
        %v5743 = vld [vmem:[#allocation2 + $0xb8] sm:$0xf]
        %v5776 = vunpack.c.l.b16 %v5712
        %v5777 = vunpack.c.l.b16 %v5713
        %v5778 = vunpack.c.l.b16 %v5714
        %v5779 = vunpack.c.l.b16 %v5715
        %v5780 = vunpack.c.l.b16 %v5716
        %v5781 = vunpack.c.l.b16 %v5717
        %v5782 = vunpack.c.l.b16 %v5718
        %v5783 = vunpack.c.l.b16 %v5719
        %v5784 = vunpack.c.l.b16 %v5720
        %v5785 = vunpack.c.l.b16 %v5721
        %v5786 = vunpack.c.l.b16 %v5722
        %v5787 = vunpack.c.l.b16 %v5723
        %v5788 = vunpack.c.l.b16 %v5724
        %v5789 = vunpack.c.l.b16 %v5725
        %v5790 = vunpack.c.l.b16 %v5726
        %v5791 = vunpack.c.l.b16 %v5727
        %v5792 = vunpack.c.l.b16 %v5728
        %v5793 = vunpack.c.l.b16 %v5729
        %v5794 = vunpack.c.l.b16 %v5730
        %v5795 = vunpack.c.l.b16 %v5731
        %v5796 = vunpack.c.l.b16 %v5732
        %v5797 = vunpack.c.l.b16 %v5733
        %v5798 = vunpack.c.l.b16 %v5734
        %v5799 = vunpack.c.l.b16 %v5735
        %v5800 = vunpack.c.l.b16 %v5736
        %v5801 = vunpack.c.l.b16 %v5737
        %v5802 = vunpack.c.l.b16 %v5738
        %v5803 = vunpack.c.l.b16 %v5739
        %v5804 = vunpack.c.l.b16 %v5740
        %v5805 = vunpack.c.l.b16 %v5741
        %v5806 = vunpack.c.l.b16 %v5742
        %v5807 = vunpack.c.l.b16 %v5743
        %v5808 = vpack.c.b16 %v5777, %v5776
        %v5809 = vpack.c.b16 %v5779, %v5778
        %v5810 = vpack.c.b16 %v5781, %v5780
        %v5811 = vpack.c.b16 %v5783, %v5782
        %v5812 = vpack.c.b16 %v5785, %v5784
        %v5813 = vpack.c.b16 %v5787, %v5786
        %v5814 = vpack.c.b16 %v5789, %v5788
        %v5815 = vpack.c.b16 %v5791, %v5790
        %v5816 = vpack.c.b16 %v5793, %v5792
        %v5817 = vpack.c.b16 %v5795, %v5794
        %v5818 = vpack.c.b16 %v5797, %v5796
        %v5819 = vpack.c.b16 %v5799, %v5798
        %v5820 = vpack.c.b16 %v5801, %v5800
        %v5821 = vpack.c.b16 %v5803, %v5802
        %v5822 = vpack.c.b16 %v5805, %v5804
        %v5823 = vpack.c.b16 %v5807, %v5806
        %5840 = vst [vmem:[#allocation3] sm:$0xff] %v5808
        %5841 = vst [vmem:[#allocation3 + $0x18] sm:$0xff] %v5809
        %5842 = vst [vmem:[#allocation3 + $0x30] sm:$0xff] %v5810
        %5843 = vst [vmem:[#allocation3 + $0x48] sm:$0xff] %v5811
        %5844 = vst [vmem:[#allocation3 + $0x60] sm:$0xff] %v5812
        %5845 = vst [vmem:[#allocation3 + $0x78] sm:$0xff] %v5813
        %5846 = vst [vmem:[#allocation3 + $0x90] sm:$0xff] %v5814
        %5847 = vst [vmem:[#allocation3 + $0xa8] sm:$0xff] %v5815
        %5848 = vst [vmem:[#allocation3 + $0xc0] sm:$0xff] %v5816
        %5849 = vst [vmem:[#allocation3 + $0xd8] sm:$0xff] %v5817
        %5850 = vst [vmem:[#allocation3 + $0xf0] sm:$0xff] %v5818
        %5851 = vst [vmem:[#allocation3 + $0x108] sm:$0xff] %v5819
        %5852 = vst [vmem:[#allocation3 + $0x120] sm:$0xff] %v5820
        %5853 = vst [vmem:[#allocation3 + $0x138] sm:$0xff] %v5821
        %5854 = vst [vmem:[#allocation3 + $0x150] sm:$0xff] %v5822
        %5855 = vst [vmem:[#allocation3 + $0x168] sm:$0xff] %v5823
        %v5856 = vld [vmem:[#allocation2] sm:$0xf]
        %v5857 = vld [vmem:[#allocation2 + $0x4] sm:$0xf]
        %v5858 = vld [vmem:[#allocation2 + $0x8] sm:$0x1]
        %v5859 = vld [vmem:[#allocation2 + $0xc] sm:$0xf]
        %v5860 = vld [vmem:[#allocation2 + $0x10] sm:$0xf]
        %v5861 = vld [vmem:[#allocation2 + $0x14] sm:$0x1]
        %v5862 = vld [vmem:[#allocation2 + $0x18] sm:$0xf]
        %v5863 = vld [vmem:[#allocation2 + $0x1c] sm:$0xf]
        %v5864 = vld [vmem:[#allocation2 + $0x20] sm:$0x1]
        %v5865 = vld [vmem:[#allocation2 + $0x24] sm:$0xf]
        %v5866 = vld [vmem:[#allocation2 + $0x28] sm:$0xf]
        %v5867 = vld [vmem:[#allocation2 + $0x2c] sm:$0x1]
        %v5868 = vld [vmem:[#allocation2 + $0x30] sm:$0xf]
        %v5869 = vld [vmem:[#allocation2 + $0x34] sm:$0xf]
        %v5870 = vld [vmem:[#allocation2 + $0x38] sm:$0x1]
        %v5871 = vld [vmem:[#allocation2 + $0x3c] sm:$0xf]
        %v5872 = vld [vmem:[#allocation2 + $0x40] sm:$0xf]
        %v5873 = vld [vmem:[#allocation2 + $0x44] sm:$0x1]
        %v5874 = vld [vmem:[#allocation2 + $0x48] sm:$0xf]
        %v5875 = vld [vmem:[#allocation2 + $0x4c] sm:$0xf]
        %v5876 = vld [vmem:[#allocation2 + $0x50] sm:$0x1]
        %v5877 = vld [vmem:[#allocation2 + $0x54] sm:$0xf]
        %v5878 = vld [vmem:[#allocation2 + $0x58] sm:$0xf]
        %v5879 = vld [vmem:[#allocation2 + $0x5c] sm:$0x1]
        %v5880 = vld [vmem:[#allocation2 + $0x60] sm:$0xf]
        %v5881 = vld [vmem:[#allocation2 + $0x64] sm:$0xf]
        %v5882 = vld [vmem:[#allocation2 + $0x68] sm:$0x1]
        %v5883 = vld [vmem:[#allocation2 + $0x6c] sm:$0xf]
        %v5884 = vld [vmem:[#allocation2 + $0x70] sm:$0xf]
        %v5885 = vld [vmem:[#allocation2 + $0x74] sm:$0x1]
        %v5886 = vld [vmem:[#allocation2 + $0x78] sm:$0xf]
        %v5887 = vld [vmem:[#allocation2 + $0x7c] sm:$0xf]
        %v5888 = vld [vmem:[#allocation2 + $0x80] sm:$0x1]
        %v5889 = vld [vmem:[#allocation2 + $0x84] sm:$0xf]
        %v5890 = vld [vmem:[#allocation2 + $0x88] sm:$0xf]
        %v5891 = vld [vmem:[#allocation2 + $0x8c] sm:$0x1]
        %v5892 = vld [vmem:[#allocation2 + $0x90] sm:$0xf]
        %v5893 = vld [vmem:[#allocation2 + $0x94] sm:$0xf]
        %v5894 = vld [vmem:[#allocation2 + $0x98] sm:$0x1]
        %v5895 = vld [vmem:[#allocation2 + $0x9c] sm:$0xf]
        %v5896 = vld [vmem:[#allocation2 + $0xa0] sm:$0xf]
        %v5897 = vld [vmem:[#allocation2 + $0xa4] sm:$0x1]
        %v5898 = vld [vmem:[#allocation2 + $0xa8] sm:$0xf]
        %v5899 = vld [vmem:[#allocation2 + $0xac] sm:$0xf]
        %v5900 = vld [vmem:[#allocation2 + $0xb0] sm:$0x1]
        %v5901 = vld [vmem:[#allocation2 + $0xb4] sm:$0xf]
        %v5902 = vld [vmem:[#allocation2 + $0xb8] sm:$0xf]
        %v5903 = vld [vmem:[#allocation2 + $0xbc] sm:$0x1]
        %v5952 = vunpack.c.l.b16 %v5856
        %v5953 = vunpack.c.l.b16 %v5857
        %v5954 = vunpack.c.l.b16 %v5858
        %v5955 = vunpack.c.l.b16 %v5859
        %v5956 = vunpack.c.l.b16 %v5860
        %v5957 = vunpack.c.l.b16 %v5861
        %v5958 = vunpack.c.l.b16 %v5862
        %v5959 = vunpack.c.l.b16 %v5863
        %v5960 = vunpack.c.l.b16 %v5864
        %v5961 = vunpack.c.l.b16 %v5865
        %v5962 = vunpack.c.l.b16 %v5866
        %v5963 = vunpack.c.l.b16 %v5867
        %v5964 = vunpack.c.l.b16 %v5868
        %v5965 = vunpack.c.l.b16 %v5869
        %v5966 = vunpack.c.l.b16 %v5870
        %v5967 = vunpack.c.l.b16 %v5871
        %v5968 = vunpack.c.l.b16 %v5872
        %v5969 = vunpack.c.l.b16 %v5873
        %v5970 = vunpack.c.l.b16 %v5874
        %v5971 = vunpack.c.l.b16 %v5875
        %v5972 = vunpack.c.l.b16 %v5876
        %v5973 = vunpack.c.l.b16 %v5877
        %v5974 = vunpack.c.l.b16 %v5878
        %v5975 = vunpack.c.l.b16 %v5879
        %v5976 = vunpack.c.l.b16 %v5880
        %v5977 = vunpack.c.l.b16 %v5881
        %v5978 = vunpack.c.l.b16 %v5882
        %v5979 = vunpack.c.l.b16 %v5883
        %v5980 = vunpack.c.l.b16 %v5884
        %v5981 = vunpack.c.l.b16 %v5885
        %v5982 = vunpack.c.l.b16 %v5886
        %v5983 = vunpack.c.l.b16 %v5887
        %v5984 = vunpack.c.l.b16 %v5888
        %v5985 = vunpack.c.l.b16 %v5889
        %v5986 = vunpack.c.l.b16 %v5890
        %v5987 = vunpack.c.l.b16 %v5891
        %v5988 = vunpack.c.l.b16 %v5892
        %v5989 = vunpack.c.l.b16 %v5893
        %v5990 = vunpack.c.l.b16 %v5894
        %v5991 = vunpack.c.l.b16 %v5895
        %v5992 = vunpack.c.l.b16 %v5896
        %v5993 = vunpack.c.l.b16 %v5897
        %v5994 = vunpack.c.l.b16 %v5898
        %v5995 = vunpack.c.l.b16 %v5899
        %v5996 = vunpack.c.l.b16 %v5900
        %v5997 = vunpack.c.l.b16 %v5901
        %v5998 = vunpack.c.l.b16 %v5902
        %v5999 = vunpack.c.l.b16 %v5903
        %v6000 = vpack.c.b16 %v5953, %v5952
        %v6001 = vpack.c.b16 %v5954, %v5954
        %v6002 = vpack.c.b16 %v5956, %v5955
        %v6003 = vpack.c.b16 %v5957, %v5957
        %v6004 = vpack.c.b16 %v5959, %v5958
        %v6005 = vpack.c.b16 %v5960, %v5960
        %v6006 = vpack.c.b16 %v5962, %v5961
        %v6007 = vpack.c.b16 %v5963, %v5963
        %v6008 = vpack.c.b16 %v5965, %v5964
        %v6009 = vpack.c.b16 %v5966, %v5966
        %v6010 = vpack.c.b16 %v5968, %v5967
        %v6011 = vpack.c.b16 %v5969, %v5969
        %v6012 = vpack.c.b16 %v5971, %v5970
        %v6013 = vpack.c.b16 %v5972, %v5972
        %v6014 = vpack.c.b16 %v5974, %v5973
        %v6015 = vpack.c.b16 %v5975, %v5975
        %v6016 = vpack.c.b16 %v5977, %v5976
        %v6017 = vpack.c.b16 %v5978, %v5978
        %v6018 = vpack.c.b16 %v5980, %v5979
        %v6019 = vpack.c.b16 %v5981, %v5981
        %v6020 = vpack.c.b16 %v5983, %v5982
        %v6021 = vpack.c.b16 %v5984, %v5984
        %v6022 = vpack.c.b16 %v5986, %v5985
        %v6023 = vpack.c.b16 %v5987, %v5987
        %v6024 = vpack.c.b16 %v5989, %v5988
        %v6025 = vpack.c.b16 %v5990, %v5990
        %v6026 = vpack.c.b16 %v5992, %v5991
        %v6027 = vpack.c.b16 %v5993, %v5993
        %v6028 = vpack.c.b16 %v5995, %v5994
        %v6029 = vpack.c.b16 %v5996, %v5996
        %v6030 = vpack.c.b16 %v5998, %v5997
        %v6031 = vpack.c.b16 %v5999, %v5999
        %v6033 = vshrl.u32 %v6000, 16
        %v6035 = vshll.u32 %v6000, 16
        %v6037 = vrot.slane %v6035, 1
        %v6038 = vor.u32 %v6033, %v6037
        %v6040 = vshll.u32 %v6001, 16
        %v6042 = vrot.slane %v6040, 1
        %v6043 = vsel %vm1278, %v6038, %v6042
        %v6045 = vshrl.u32 %v6002, 16
        %v6047 = vshll.u32 %v6002, 16
        %v6049 = vrot.slane %v6047, 1
        %v6050 = vor.u32 %v6045, %v6049
        %v6052 = vshll.u32 %v6003, 16
        %v6054 = vrot.slane %v6052, 1
        %v6055 = vsel %vm1278, %v6050, %v6054
        %v6057 = vshrl.u32 %v6004, 16
        %v6059 = vshll.u32 %v6004, 16
        %v6061 = vrot.slane %v6059, 1
        %v6062 = vor.u32 %v6057, %v6061
        %v6064 = vshll.u32 %v6005, 16
        %v6066 = vrot.slane %v6064, 1
        %v6067 = vsel %vm1278, %v6062, %v6066
        %v6069 = vshrl.u32 %v6006, 16
        %v6071 = vshll.u32 %v6006, 16
        %v6073 = vrot.slane %v6071, 1
        %v6074 = vor.u32 %v6069, %v6073
        %v6076 = vshll.u32 %v6007, 16
        %v6078 = vrot.slane %v6076, 1
        %v6079 = vsel %vm1278, %v6074, %v6078
        %v6081 = vshrl.u32 %v6008, 16
        %v6083 = vshll.u32 %v6008, 16
        %v6085 = vrot.slane %v6083, 1
        %v6086 = vor.u32 %v6081, %v6085
        %v6088 = vshll.u32 %v6009, 16
        %v6090 = vrot.slane %v6088, 1
        %v6091 = vsel %vm1278, %v6086, %v6090
        %v6093 = vshrl.u32 %v6010, 16
        %v6095 = vshll.u32 %v6010, 16
        %v6097 = vrot.slane %v6095, 1
        %v6098 = vor.u32 %v6093, %v6097
        %v6100 = vshll.u32 %v6011, 16
        %v6102 = vrot.slane %v6100, 1
        %v6103 = vsel %vm1278, %v6098, %v6102
        %v6105 = vshrl.u32 %v6012, 16
        %v6107 = vshll.u32 %v6012, 16
        %v6109 = vrot.slane %v6107, 1
        %v6110 = vor.u32 %v6105, %v6109
        %v6112 = vshll.u32 %v6013, 16
        %v6114 = vrot.slane %v6112, 1
        %v6115 = vsel %vm1278, %v6110, %v6114
        %v6117 = vshrl.u32 %v6014, 16
        %v6119 = vshll.u32 %v6014, 16
        %v6121 = vrot.slane %v6119, 1
        %v6122 = vor.u32 %v6117, %v6121
        %v6124 = vshll.u32 %v6015, 16
        %v6126 = vrot.slane %v6124, 1
        %v6127 = vsel %vm1278, %v6122, %v6126
        %v6129 = vshrl.u32 %v6016, 16
        %v6131 = vshll.u32 %v6016, 16
        %v6133 = vrot.slane %v6131, 1
        %v6134 = vor.u32 %v6129, %v6133
        %v6136 = vshll.u32 %v6017, 16
        %v6138 = vrot.slane %v6136, 1
        %v6139 = vsel %vm1278, %v6134, %v6138
        %v6141 = vshrl.u32 %v6018, 16
        %v6143 = vshll.u32 %v6018, 16
        %v6145 = vrot.slane %v6143, 1
        %v6146 = vor.u32 %v6141, %v6145
        %v6148 = vshll.u32 %v6019, 16
        %v6150 = vrot.slane %v6148, 1
        %v6151 = vsel %vm1278, %v6146, %v6150
        %v6153 = vshrl.u32 %v6020, 16
        %v6155 = vshll.u32 %v6020, 16
        %v6157 = vrot.slane %v6155, 1
        %v6158 = vor.u32 %v6153, %v6157
        %v6160 = vshll.u32 %v6021, 16
        %v6162 = vrot.slane %v6160, 1
        %v6163 = vsel %vm1278, %v6158, %v6162
        %v6165 = vshrl.u32 %v6022, 16
        %v6167 = vshll.u32 %v6022, 16
        %v6169 = vrot.slane %v6167, 1
        %v6170 = vor.u32 %v6165, %v6169
        %v6172 = vshll.u32 %v6023, 16
        %v6174 = vrot.slane %v6172, 1
        %v6175 = vsel %vm1278, %v6170, %v6174
        %v6177 = vshrl.u32 %v6024, 16
        %v6179 = vshll.u32 %v6024, 16
        %v6181 = vrot.slane %v6179, 1
        %v6182 = vor.u32 %v6177, %v6181
        %v6184 = vshll.u32 %v6025, 16
        %v6186 = vrot.slane %v6184, 1
        %v6187 = vsel %vm1278, %v6182, %v6186
        %v6189 = vshrl.u32 %v6026, 16
        %v6191 = vshll.u32 %v6026, 16
        %v6193 = vrot.slane %v6191, 1
        %v6194 = vor.u32 %v6189, %v6193
        %v6196 = vshll.u32 %v6027, 16
        %v6198 = vrot.slane %v6196, 1
        %v6199 = vsel %vm1278, %v6194, %v6198
        %v6201 = vshrl.u32 %v6028, 16
        %v6203 = vshll.u32 %v6028, 16
        %v6205 = vrot.slane %v6203, 1
        %v6206 = vor.u32 %v6201, %v6205
        %v6208 = vshll.u32 %v6029, 16
        %v6210 = vrot.slane %v6208, 1
        %v6211 = vsel %vm1278, %v6206, %v6210
        %v6213 = vshrl.u32 %v6030, 16
        %v6215 = vshll.u32 %v6030, 16
        %v6217 = vrot.slane %v6215, 1
        %v6218 = vor.u32 %v6213, %v6217
        %v6220 = vshll.u32 %v6031, 16
        %v6222 = vrot.slane %v6220, 1
        %v6223 = vsel %vm1278, %v6218, %v6222
        %6240 = vst [vmem:[#allocation3 + $0x8] sm:$0xff] %v6043
        %6241 = vst [vmem:[#allocation3 + $0x20] sm:$0xff] %v6055
        %6242 = vst [vmem:[#allocation3 + $0x38] sm:$0xff] %v6067
        %6243 = vst [vmem:[#allocation3 + $0x50] sm:$0xff] %v6079
        %6244 = vst [vmem:[#allocation3 + $0x68] sm:$0xff] %v6091
        %6245 = vst [vmem:[#allocation3 + $0x80] sm:$0xff] %v6103
        %6246 = vst [vmem:[#allocation3 + $0x98] sm:$0xff] %v6115
        %6247 = vst [vmem:[#allocation3 + $0xb0] sm:$0xff] %v6127
        %6248 = vst [vmem:[#allocation3 + $0xc8] sm:$0xff] %v6139
        %6249 = vst [vmem:[#allocation3 + $0xe0] sm:$0xff] %v6151
        %6250 = vst [vmem:[#allocation3 + $0xf8] sm:$0xff] %v6163
        %6251 = vst [vmem:[#allocation3 + $0x110] sm:$0xff] %v6175
        %6252 = vst [vmem:[#allocation3 + $0x128] sm:$0xff] %v6187
        %6253 = vst [vmem:[#allocation3 + $0x140] sm:$0xff] %v6199
        %6254 = vst [vmem:[#allocation3 + $0x158] sm:$0xff] %v6211
        %6255 = vst [vmem:[#allocation3 + $0x170] sm:$0xff] %v6223
        %v6256 = vld [vmem:[#allocation2] sm:$0xe]
        %v6257 = vld [vmem:[#allocation2 + $0x4] sm:$0xf]
        %v6258 = vld [vmem:[#allocation2 + $0x8] sm:$0x1]
        %v6259 = vld [vmem:[#allocation2 + $0xc] sm:$0xe]
        %v6260 = vld [vmem:[#allocation2 + $0x10] sm:$0xf]
        %v6261 = vld [vmem:[#allocation2 + $0x14] sm:$0x1]
        %v6262 = vld [vmem:[#allocation2 + $0x18] sm:$0xe]
        %v6263 = vld [vmem:[#allocation2 + $0x1c] sm:$0xf]
        %v6264 = vld [vmem:[#allocation2 + $0x20] sm:$0x1]
        %v6265 = vld [vmem:[#allocation2 + $0x24] sm:$0xe]
        %v6266 = vld [vmem:[#allocation2 + $0x28] sm:$0xf]
        %v6267 = vld [vmem:[#allocation2 + $0x2c] sm:$0x1]
        %v6268 = vld [vmem:[#allocation2 + $0x30] sm:$0xe]
        %v6269 = vld [vmem:[#allocation2 + $0x34] sm:$0xf]
        %v6270 = vld [vmem:[#allocation2 + $0x38] sm:$0x1]
        %v6271 = vld [vmem:[#allocation2 + $0x3c] sm:$0xe]
        %v6272 = vld [vmem:[#allocation2 + $0x40] sm:$0xf]
        %v6273 = vld [vmem:[#allocation2 + $0x44] sm:$0x1]
        %v6274 = vld [vmem:[#allocation2 + $0x48] sm:$0xe]
        %v6275 = vld [vmem:[#allocation2 + $0x4c] sm:$0xf]
        %v6276 = vld [vmem:[#allocation2 + $0x50] sm:$0x1]
        %v6277 = vld [vmem:[#allocation2 + $0x54] sm:$0xe]
        %v6278 = vld [vmem:[#allocation2 + $0x58] sm:$0xf]
        %v6279 = vld [vmem:[#allocation2 + $0x5c] sm:$0x1]
        %v6280 = vld [vmem:[#allocation2 + $0x60] sm:$0xe]
        %v6281 = vld [vmem:[#allocation2 + $0x64] sm:$0xf]
        %v6282 = vld [vmem:[#allocation2 + $0x68] sm:$0x1]
        %v6283 = vld [vmem:[#allocation2 + $0x6c] sm:$0xe]
        %v6284 = vld [vmem:[#allocation2 + $0x70] sm:$0xf]
        %v6285 = vld [vmem:[#allocation2 + $0x74] sm:$0x1]
        %v6286 = vld [vmem:[#allocation2 + $0x78] sm:$0xe]
        %v6287 = vld [vmem:[#allocation2 + $0x7c] sm:$0xf]
        %v6288 = vld [vmem:[#allocation2 + $0x80] sm:$0x1]
        %v6289 = vld [vmem:[#allocation2 + $0x84] sm:$0xe]
        %v6290 = vld [vmem:[#allocation2 + $0x88] sm:$0xf]
        %v6291 = vld [vmem:[#allocation2 + $0x8c] sm:$0x1]
        %v6292 = vld [vmem:[#allocation2 + $0x90] sm:$0xe]
        %v6293 = vld [vmem:[#allocation2 + $0x94] sm:$0xf]
        %v6294 = vld [vmem:[#allocation2 + $0x98] sm:$0x1]
        %v6295 = vld [vmem:[#allocation2 + $0x9c] sm:$0xe]
        %v6296 = vld [vmem:[#allocation2 + $0xa0] sm:$0xf]
        %v6297 = vld [vmem:[#allocation2 + $0xa4] sm:$0x1]
        %v6298 = vld [vmem:[#allocation2 + $0xa8] sm:$0xe]
        %v6299 = vld [vmem:[#allocation2 + $0xac] sm:$0xf]
        %v6300 = vld [vmem:[#allocation2 + $0xb0] sm:$0x1]
        %v6301 = vld [vmem:[#allocation2 + $0xb4] sm:$0xe]
        %v6302 = vld [vmem:[#allocation2 + $0xb8] sm:$0xf]
        %v6303 = vld [vmem:[#allocation2 + $0xbc] sm:$0x1]
        %v6352 = vunpack.c.l.b16 %v6256
        %v6353 = vunpack.c.l.b16 %v6257
        %v6354 = vunpack.c.l.b16 %v6258
        %v6355 = vunpack.c.l.b16 %v6259
        %v6356 = vunpack.c.l.b16 %v6260
        %v6357 = vunpack.c.l.b16 %v6261
        %v6358 = vunpack.c.l.b16 %v6262
        %v6359 = vunpack.c.l.b16 %v6263
        %v6360 = vunpack.c.l.b16 %v6264
        %v6361 = vunpack.c.l.b16 %v6265
        %v6362 = vunpack.c.l.b16 %v6266
        %v6363 = vunpack.c.l.b16 %v6267
        %v6364 = vunpack.c.l.b16 %v6268
        %v6365 = vunpack.c.l.b16 %v6269
        %v6366 = vunpack.c.l.b16 %v6270
        %v6367 = vunpack.c.l.b16 %v6271
        %v6368 = vunpack.c.l.b16 %v6272
        %v6369 = vunpack.c.l.b16 %v6273
        %v6370 = vunpack.c.l.b16 %v6274
        %v6371 = vunpack.c.l.b16 %v6275
        %v6372 = vunpack.c.l.b16 %v6276
        %v6373 = vunpack.c.l.b16 %v6277
        %v6374 = vunpack.c.l.b16 %v6278
        %v6375 = vunpack.c.l.b16 %v6279
        %v6376 = vunpack.c.l.b16 %v6280
        %v6377 = vunpack.c.l.b16 %v6281
        %v6378 = vunpack.c.l.b16 %v6282
        %v6379 = vunpack.c.l.b16 %v6283
        %v6380 = vunpack.c.l.b16 %v6284
        %v6381 = vunpack.c.l.b16 %v6285
        %v6382 = vunpack.c.l.b16 %v6286
        %v6383 = vunpack.c.l.b16 %v6287
        %v6384 = vunpack.c.l.b16 %v6288
        %v6385 = vunpack.c.l.b16 %v6289
        %v6386 = vunpack.c.l.b16 %v6290
        %v6387 = vunpack.c.l.b16 %v6291
        %v6388 = vunpack.c.l.b16 %v6292
        %v6389 = vunpack.c.l.b16 %v6293
        %v6390 = vunpack.c.l.b16 %v6294
        %v6391 = vunpack.c.l.b16 %v6295
        %v6392 = vunpack.c.l.b16 %v6296
        %v6393 = vunpack.c.l.b16 %v6297
        %v6394 = vunpack.c.l.b16 %v6298
        %v6395 = vunpack.c.l.b16 %v6299
        %v6396 = vunpack.c.l.b16 %v6300
        %v6397 = vunpack.c.l.b16 %v6301
        %v6398 = vunpack.c.l.b16 %v6302
        %v6399 = vunpack.c.l.b16 %v6303
        %v6400 = vpack.c.b16 %v6353, %v6352
        %v6401 = vpack.c.b16 %v6354, %v6354
        %v6402 = vpack.c.b16 %v6356, %v6355
        %v6403 = vpack.c.b16 %v6357, %v6357
        %v6404 = vpack.c.b16 %v6359, %v6358
        %v6405 = vpack.c.b16 %v6360, %v6360
        %v6406 = vpack.c.b16 %v6362, %v6361
        %v6407 = vpack.c.b16 %v6363, %v6363
        %v6408 = vpack.c.b16 %v6365, %v6364
        %v6409 = vpack.c.b16 %v6366, %v6366
        %v6410 = vpack.c.b16 %v6368, %v6367
        %v6411 = vpack.c.b16 %v6369, %v6369
        %v6412 = vpack.c.b16 %v6371, %v6370
        %v6413 = vpack.c.b16 %v6372, %v6372
        %v6414 = vpack.c.b16 %v6374, %v6373
        %v6415 = vpack.c.b16 %v6375, %v6375
        %v6416 = vpack.c.b16 %v6377, %v6376
        %v6417 = vpack.c.b16 %v6378, %v6378
        %v6418 = vpack.c.b16 %v6380, %v6379
        %v6419 = vpack.c.b16 %v6381, %v6381
        %v6420 = vpack.c.b16 %v6383, %v6382
        %v6421 = vpack.c.b16 %v6384, %v6384
        %v6422 = vpack.c.b16 %v6386, %v6385
        %v6423 = vpack.c.b16 %v6387, %v6387
        %v6424 = vpack.c.b16 %v6389, %v6388
        %v6425 = vpack.c.b16 %v6390, %v6390
        %v6426 = vpack.c.b16 %v6392, %v6391
        %v6427 = vpack.c.b16 %v6393, %v6393
        %v6428 = vpack.c.b16 %v6395, %v6394
        %v6429 = vpack.c.b16 %v6396, %v6396
        %v6430 = vpack.c.b16 %v6398, %v6397
        %v6431 = vpack.c.b16 %v6399, %v6399
        %v6432 = vrot.slane %v6400, 1
        %v6433 = vrot.slane %v6401, 1
        %v6434 = vsel %vm1679, %v6432, %v6433
        %v6435 = vrot.slane %v6402, 1
        %v6436 = vrot.slane %v6403, 1
        %v6437 = vsel %vm1679, %v6435, %v6436
        %v6438 = vrot.slane %v6404, 1
        %v6439 = vrot.slane %v6405, 1
        %v6440 = vsel %vm1679, %v6438, %v6439
        %v6441 = vrot.slane %v6406, 1
        %v6442 = vrot.slane %v6407, 1
        %v6443 = vsel %vm1679, %v6441, %v6442
        %v6444 = vrot.slane %v6408, 1
        %v6445 = vrot.slane %v6409, 1
        %v6446 = vsel %vm1679, %v6444, %v6445
        %v6447 = vrot.slane %v6410, 1
        %v6448 = vrot.slane %v6411, 1
        %v6449 = vsel %vm1679, %v6447, %v6448
        %v6450 = vrot.slane %v6412, 1
        %v6451 = vrot.slane %v6413, 1
        %v6452 = vsel %vm1679, %v6450, %v6451
        %v6453 = vrot.slane %v6414, 1
        %v6454 = vrot.slane %v6415, 1
        %v6455 = vsel %vm1679, %v6453, %v6454
        %v6456 = vrot.slane %v6416, 1
        %v6457 = vrot.slane %v6417, 1
        %v6458 = vsel %vm1679, %v6456, %v6457
        %v6459 = vrot.slane %v6418, 1
        %v6460 = vrot.slane %v6419, 1
        %v6461 = vsel %vm1679, %v6459, %v6460
        %v6462 = vrot.slane %v6420, 1
        %v6463 = vrot.slane %v6421, 1
        %v6464 = vsel %vm1679, %v6462, %v6463
        %v6465 = vrot.slane %v6422, 1
        %v6466 = vrot.slane %v6423, 1
        %v6467 = vsel %vm1679, %v6465, %v6466
        %v6468 = vrot.slane %v6424, 1
        %v6469 = vrot.slane %v6425, 1
        %v6470 = vsel %vm1679, %v6468, %v6469
        %v6471 = vrot.slane %v6426, 1
        %v6472 = vrot.slane %v6427, 1
        %v6473 = vsel %vm1679, %v6471, %v6472
        %v6474 = vrot.slane %v6428, 1
        %v6475 = vrot.slane %v6429, 1
        %v6476 = vsel %vm1679, %v6474, %v6475
        %v6477 = vrot.slane %v6430, 1
        %v6478 = vrot.slane %v6431, 1
        %v6479 = vsel %vm1679, %v6477, %v6478
        %6496 = vst [vmem:[#allocation3 + $0x10] sm:$0xff] %v6434
        %6497 = vst [vmem:[#allocation3 + $0x28] sm:$0xff] %v6437
        %6498 = vst [vmem:[#allocation3 + $0x40] sm:$0xff] %v6440
        %6499 = vst [vmem:[#allocation3 + $0x58] sm:$0xff] %v6443
        %6500 = vst [vmem:[#allocation3 + $0x70] sm:$0xff] %v6446
        %6501 = vst [vmem:[#allocation3 + $0x88] sm:$0xff] %v6449
        %6502 = vst [vmem:[#allocation3 + $0xa0] sm:$0xff] %v6452
        %6503 = vst [vmem:[#allocation3 + $0xb8] sm:$0xff] %v6455
        %6504 = vst [vmem:[#allocation3 + $0xd0] sm:$0xff] %v6458
        %6505 = vst [vmem:[#allocation3 + $0xe8] sm:$0xff] %v6461
        %6506 = vst [vmem:[#allocation3 + $0x100] sm:$0xff] %v6464
        %6507 = vst [vmem:[#allocation3 + $0x118] sm:$0xff] %v6467
        %6508 = vst [vmem:[#allocation3 + $0x130] sm:$0xff] %v6470
        %6509 = vst [vmem:[#allocation3 + $0x148] sm:$0xff] %v6473
        %6510 = vst [vmem:[#allocation3 + $0x160] sm:$0xff] %v6476
        %6511 = vst [vmem:[#allocation3 + $0x178] sm:$0xff] %v6479
        %v6512 = vld [vmem:[#allocation3] sm:$0xff]
        %v6513 = vld [vmem:[#allocation3 + $0x8] sm:$0xff]
        %v6514 = vld [vmem:[#allocation3 + $0x10] sm:$0xff]
        %v6515 = vld [vmem:[#allocation3 + $0x18] sm:$0xff]
        %v6516 = vld [vmem:[#allocation3 + $0x20] sm:$0xff]
        %v6517 = vld [vmem:[#allocation3 + $0x28] sm:$0xff]
        %v6518 = vld [vmem:[#allocation3 + $0x30] sm:$0xff]
        %v6519 = vld [vmem:[#allocation3 + $0x38] sm:$0xff]
        %v6520 = vld [vmem:[#allocation3 + $0x40] sm:$0xff]
        %v6521 = vld [vmem:[#allocation3 + $0x48] sm:$0xff]
        %v6522 = vld [vmem:[#allocation3 + $0x50] sm:$0xff]
        %v6523 = vld [vmem:[#allocation3 + $0x58] sm:$0xff]
        %v6524 = vld [vmem:[#allocation3 + $0x60] sm:$0xff]
        %v6525 = vld [vmem:[#allocation3 + $0x68] sm:$0xff]
        %v6526 = vld [vmem:[#allocation3 + $0x70] sm:$0xff]
        %v6527 = vld [vmem:[#allocation3 + $0x78] sm:$0xff]
        %v6528 = vld [vmem:[#allocation3 + $0x80] sm:$0xff]
        %v6529 = vld [vmem:[#allocation3 + $0x88] sm:$0xff]
        %v6530 = vld [vmem:[#allocation3 + $0x90] sm:$0xff]
        %v6531 = vld [vmem:[#allocation3 + $0x98] sm:$0xff]
        %v6532 = vld [vmem:[#allocation3 + $0xa0] sm:$0xff]
        %v6533 = vld [vmem:[#allocation3 + $0xa8] sm:$0xff]
        %v6534 = vld [vmem:[#allocation3 + $0xb0] sm:$0xff]
        %v6535 = vld [vmem:[#allocation3 + $0xb8] sm:$0xff]
        %v6536 = vld [vmem:[#allocation3 + $0xc0] sm:$0xff]
        %v6537 = vld [vmem:[#allocation3 + $0xc8] sm:$0xff]
        %v6538 = vld [vmem:[#allocation3 + $0xd0] sm:$0xff]
        %v6539 = vld [vmem:[#allocation3 + $0xd8] sm:$0xff]
        %v6540 = vld [vmem:[#allocation3 + $0xe0] sm:$0xff]
        %v6541 = vld [vmem:[#allocation3 + $0xe8] sm:$0xff]
        %v6542 = vld [vmem:[#allocation3 + $0xf0] sm:$0xff]
        %v6543 = vld [vmem:[#allocation3 + $0xf8] sm:$0xff]
        %v6544 = vld [vmem:[#allocation3 + $0x100] sm:$0xff]
        %v6545 = vld [vmem:[#allocation3 + $0x108] sm:$0xff]
        %v6546 = vld [vmem:[#allocation3 + $0x110] sm:$0xff]
        %v6547 = vld [vmem:[#allocation3 + $0x118] sm:$0xff]
        %v6548 = vld [vmem:[#allocation3 + $0x120] sm:$0xff]
        %v6549 = vld [vmem:[#allocation3 + $0x128] sm:$0xff]
        %v6550 = vld [vmem:[#allocation3 + $0x130] sm:$0xff]
        %v6551 = vld [vmem:[#allocation3 + $0x138] sm:$0xff]
        %v6552 = vld [vmem:[#allocation3 + $0x140] sm:$0xff]
        %v6553 = vld [vmem:[#allocation3 + $0x148] sm:$0xff]
        %v6554 = vld [vmem:[#allocation3 + $0x150] sm:$0xff]
        %v6555 = vld [vmem:[#allocation3 + $0x158] sm:$0xff]
        %v6556 = vld [vmem:[#allocation3 + $0x160] sm:$0xff]
        %v6557 = vld [vmem:[#allocation3 + $0x168] sm:$0xff]
        %v6558 = vld [vmem:[#allocation3 + $0x170] sm:$0xff]
        %v6559 = vld [vmem:[#allocation3 + $0x178] sm:$0xff]
        %v6560 = vld [vmem:[#allocation9] sm:$0xf]
        %v6561 = vld [vmem:[#allocation9 + $0x4] sm:$0xf]
        %v6562 = vld [vmem:[#allocation9 + $0x8] sm:$0xf]
        %v6563 = vld [vmem:[#allocation9 + $0xc] sm:$0xf]
        %v6564 = vld [vmem:[#allocation9 + $0x10] sm:$0xf]
        %v6565 = vld [vmem:[#allocation9 + $0x14] sm:$0xf]
        %v6566 = vld [vmem:[#allocation9 + $0x18] sm:$0xf]
        %v6567 = vld [vmem:[#allocation9 + $0x1c] sm:$0xf]
        %v6568 = vld [vmem:[#allocation9 + $0x20] sm:$0xf]
        %v6569 = vld [vmem:[#allocation9 + $0x24] sm:$0xf]
        %v6570 = vld [vmem:[#allocation9 + $0x28] sm:$0xf]
        %v6571 = vld [vmem:[#allocation9 + $0x2c] sm:$0xf]
        %v6572 = vld [vmem:[#allocation9 + $0x30] sm:$0xf]
        %v6573 = vld [vmem:[#allocation9 + $0x34] sm:$0xf]
        %v6574 = vld [vmem:[#allocation9 + $0x38] sm:$0xf]
        %v6575 = vld [vmem:[#allocation9 + $0x3c] sm:$0xf]
        %v6576 = vld [vmem:[#allocation9 + $0x40] sm:$0xf]
        %v6577 = vld [vmem:[#allocation9 + $0x44] sm:$0xf]
        %v6578 = vld [vmem:[#allocation9 + $0x48] sm:$0xf]
        %v6579 = vld [vmem:[#allocation9 + $0x4c] sm:$0xf]
        %v6580 = vld [vmem:[#allocation9 + $0x50] sm:$0xf]
        %v6581 = vld [vmem:[#allocation9 + $0x54] sm:$0xf]
        %v6582 = vld [vmem:[#allocation9 + $0x58] sm:$0xf]
        %v6583 = vld [vmem:[#allocation9 + $0x5c] sm:$0xf]
        %v6584 = vld [vmem:[#allocation9 + $0x60] sm:$0xf]
        %v6585 = vld [vmem:[#allocation9 + $0x64] sm:$0xf]
        %v6586 = vld [vmem:[#allocation9 + $0x68] sm:$0xf]
        %v6587 = vld [vmem:[#allocation9 + $0x6c] sm:$0xf]
        %v6588 = vld [vmem:[#allocation9 + $0x70] sm:$0xf]
        %v6589 = vld [vmem:[#allocation9 + $0x74] sm:$0xf]
        %v6590 = vld [vmem:[#allocation9 + $0x78] sm:$0xf]
        %v6591 = vld [vmem:[#allocation9 + $0x7c] sm:$0xf]
        %v6592 = vld [vmem:[#allocation9 + $0x80] sm:$0xf]
        %v6593 = vld [vmem:[#allocation9 + $0x84] sm:$0xf]
        %v6594 = vld [vmem:[#allocation9 + $0x88] sm:$0xf]
        %v6595 = vld [vmem:[#allocation9 + $0x8c] sm:$0xf]
        %v6596 = vld [vmem:[#allocation9 + $0x90] sm:$0xf]
        %v6597 = vld [vmem:[#allocation9 + $0x94] sm:$0xf]
        %v6598 = vld [vmem:[#allocation9 + $0x98] sm:$0xf]
        %v6599 = vld [vmem:[#allocation9 + $0x9c] sm:$0xf]
        %v6600 = vld [vmem:[#allocation9 + $0xa0] sm:$0xf]
        %v6601 = vld [vmem:[#allocation9 + $0xa4] sm:$0xf]
        %v6602 = vld [vmem:[#allocation9 + $0xa8] sm:$0xf]
        %v6603 = vld [vmem:[#allocation9 + $0xac] sm:$0xf]
        %v6604 = vld [vmem:[#allocation9 + $0xb0] sm:$0xf]
        %v6605 = vld [vmem:[#allocation9 + $0xb4] sm:$0xf]
        %v6606 = vld [vmem:[#allocation9 + $0xb8] sm:$0xf]
        %v6607 = vld [vmem:[#allocation9 + $0xbc] sm:$0xf]
        %v6608 = vld [vmem:[%s843] sm:$0xf]
        %v6609 = vld [vmem:[%s843 + $0x4] sm:$0xf]
        %v6610 = vld [vmem:[%s843 + $0xc] sm:$0xf]
        %v6611 = vld [vmem:[%s843 + $0x10] sm:$0xf]
        %v6612 = vld [vmem:[%s843 + $0x18] sm:$0xf]
        %v6613 = vld [vmem:[%s843 + $0x1c] sm:$0xf]
        %v6614 = vld [vmem:[%s843 + $0x24] sm:$0xf]
        %v6615 = vld [vmem:[%s843 + $0x28] sm:$0xf]
        %v6616 = vld [vmem:[%s843 + $0x30] sm:$0xf]
        %v6617 = vld [vmem:[%s843 + $0x34] sm:$0xf]
        %v6618 = vld [vmem:[%s843 + $0x3c] sm:$0xf]
        %v6619 = vld [vmem:[%s843 + $0x40] sm:$0xf]
        %v6620 = vld [vmem:[%s843 + $0x48] sm:$0xf]
        %v6621 = vld [vmem:[%s843 + $0x4c] sm:$0xf]
        %v6622 = vld [vmem:[%s843 + $0x54] sm:$0xf]
        %v6623 = vld [vmem:[%s843 + $0x58] sm:$0xf]
        %v6624 = vld [vmem:[%s843 + $0x60] sm:$0xf]
        %v6625 = vld [vmem:[%s843 + $0x64] sm:$0xf]
        %v6626 = vld [vmem:[%s843 + $0x6c] sm:$0xf]
        %v6627 = vld [vmem:[%s843 + $0x70] sm:$0xf]
        %v6628 = vld [vmem:[%s843 + $0x78] sm:$0xf]
        %v6629 = vld [vmem:[%s843 + $0x7c] sm:$0xf]
        %v6630 = vld [vmem:[%s843 + $0x84] sm:$0xf]
        %v6631 = vld [vmem:[%s843 + $0x88] sm:$0xf]
        %v6632 = vld [vmem:[%s843 + $0x90] sm:$0xf]
        %v6633 = vld [vmem:[%s843 + $0x94] sm:$0xf]
        %v6634 = vld [vmem:[%s843 + $0x9c] sm:$0xf]
        %v6635 = vld [vmem:[%s843 + $0xa0] sm:$0xf]
        %v6636 = vld [vmem:[%s843 + $0xa8] sm:$0xf]
        %v6637 = vld [vmem:[%s843 + $0xac] sm:$0xf]
        %v6638 = vld [vmem:[%s843 + $0xb4] sm:$0xf]
        %v6639 = vld [vmem:[%s843 + $0xb8] sm:$0xf]
        %v6672 = vunpack.c.l.b16 %v6608
        %v6673 = vunpack.c.l.b16 %v6609
        %v6674 = vunpack.c.l.b16 %v6610
        %v6675 = vunpack.c.l.b16 %v6611
        %v6676 = vunpack.c.l.b16 %v6612
        %v6677 = vunpack.c.l.b16 %v6613
        %v6678 = vunpack.c.l.b16 %v6614
        %v6679 = vunpack.c.l.b16 %v6615
        %v6680 = vunpack.c.l.b16 %v6616
        %v6681 = vunpack.c.l.b16 %v6617
        %v6682 = vunpack.c.l.b16 %v6618
        %v6683 = vunpack.c.l.b16 %v6619
        %v6684 = vunpack.c.l.b16 %v6620
        %v6685 = vunpack.c.l.b16 %v6621
        %v6686 = vunpack.c.l.b16 %v6622
        %v6687 = vunpack.c.l.b16 %v6623
        %v6688 = vunpack.c.l.b16 %v6624
        %v6689 = vunpack.c.l.b16 %v6625
        %v6690 = vunpack.c.l.b16 %v6626
        %v6691 = vunpack.c.l.b16 %v6627
        %v6692 = vunpack.c.l.b16 %v6628
        %v6693 = vunpack.c.l.b16 %v6629
        %v6694 = vunpack.c.l.b16 %v6630
        %v6695 = vunpack.c.l.b16 %v6631
        %v6696 = vunpack.c.l.b16 %v6632
        %v6697 = vunpack.c.l.b16 %v6633
        %v6698 = vunpack.c.l.b16 %v6634
        %v6699 = vunpack.c.l.b16 %v6635
        %v6700 = vunpack.c.l.b16 %v6636
        %v6701 = vunpack.c.l.b16 %v6637
        %v6702 = vunpack.c.l.b16 %v6638
        %v6703 = vunpack.c.l.b16 %v6639
        %v6704 = vpack.c.b16 %v6673, %v6672
        %v6705 = vpack.c.b16 %v6675, %v6674
        %v6706 = vpack.c.b16 %v6677, %v6676
        %v6707 = vpack.c.b16 %v6679, %v6678
        %v6708 = vpack.c.b16 %v6681, %v6680
        %v6709 = vpack.c.b16 %v6683, %v6682
        %v6710 = vpack.c.b16 %v6685, %v6684
        %v6711 = vpack.c.b16 %v6687, %v6686
        %v6712 = vpack.c.b16 %v6689, %v6688
        %v6713 = vpack.c.b16 %v6691, %v6690
        %v6714 = vpack.c.b16 %v6693, %v6692
        %v6715 = vpack.c.b16 %v6695, %v6694
        %v6716 = vpack.c.b16 %v6697, %v6696
        %v6717 = vpack.c.b16 %v6699, %v6698
        %v6718 = vpack.c.b16 %v6701, %v6700
        %v6719 = vpack.c.b16 %v6703, %v6702
        %6736 = vst [vmem:[#allocation3] sm:$0xff] %v6704
        %6737 = vst [vmem:[#allocation3 + $0x18] sm:$0xff] %v6705
        %6738 = vst [vmem:[#allocation3 + $0x30] sm:$0xff] %v6706
        %6739 = vst [vmem:[#allocation3 + $0x48] sm:$0xff] %v6707
        %6740 = vst [vmem:[#allocation3 + $0x60] sm:$0xff] %v6708
        %6741 = vst [vmem:[#allocation3 + $0x78] sm:$0xff] %v6709
        %6742 = vst [vmem:[#allocation3 + $0x90] sm:$0xff] %v6710
        %6743 = vst [vmem:[#allocation3 + $0xa8] sm:$0xff] %v6711
        %6744 = vst [vmem:[#allocation3 + $0xc0] sm:$0xff] %v6712
        %6745 = vst [vmem:[#allocation3 + $0xd8] sm:$0xff] %v6713
        %6746 = vst [vmem:[#allocation3 + $0xf0] sm:$0xff] %v6714
        %6747 = vst [vmem:[#allocation3 + $0x108] sm:$0xff] %v6715
        %6748 = vst [vmem:[#allocation3 + $0x120] sm:$0xff] %v6716
        %6749 = vst [vmem:[#allocation3 + $0x138] sm:$0xff] %v6717
        %6750 = vst [vmem:[#allocation3 + $0x150] sm:$0xff] %v6718
        %6751 = vst [vmem:[#allocation3 + $0x168] sm:$0xff] %v6719
        %v6752 = vld [vmem:[%s843] sm:$0xf]
        %v6753 = vld [vmem:[%s843 + $0x4] sm:$0xf]
        %v6754 = vld [vmem:[%s843 + $0x8] sm:$0x1]
        %v6755 = vld [vmem:[%s843 + $0xc] sm:$0xf]
        %v6756 = vld [vmem:[%s843 + $0x10] sm:$0xf]
        %v6757 = vld [vmem:[%s843 + $0x14] sm:$0x1]
        %v6758 = vld [vmem:[%s843 + $0x18] sm:$0xf]
        %v6759 = vld [vmem:[%s843 + $0x1c] sm:$0xf]
        %v6760 = vld [vmem:[%s843 + $0x20] sm:$0x1]
        %v6761 = vld [vmem:[%s843 + $0x24] sm:$0xf]
        %v6762 = vld [vmem:[%s843 + $0x28] sm:$0xf]
        %v6763 = vld [vmem:[%s843 + $0x2c] sm:$0x1]
        %v6764 = vld [vmem:[%s843 + $0x30] sm:$0xf]
        %v6765 = vld [vmem:[%s843 + $0x34] sm:$0xf]
        %v6766 = vld [vmem:[%s843 + $0x38] sm:$0x1]
        %v6767 = vld [vmem:[%s843 + $0x3c] sm:$0xf]
        %v6768 = vld [vmem:[%s843 + $0x40] sm:$0xf]
        %v6769 = vld [vmem:[%s843 + $0x44] sm:$0x1]
        %v6770 = vld [vmem:[%s843 + $0x48] sm:$0xf]
        %v6771 = vld [vmem:[%s843 + $0x4c] sm:$0xf]
        %v6772 = vld [vmem:[%s843 + $0x50] sm:$0x1]
        %v6773 = vld [vmem:[%s843 + $0x54] sm:$0xf]
        %v6774 = vld [vmem:[%s843 + $0x58] sm:$0xf]
        %v6775 = vld [vmem:[%s843 + $0x5c] sm:$0x1]
        %v6776 = vld [vmem:[%s843 + $0x60] sm:$0xf]
        %v6777 = vld [vmem:[%s843 + $0x64] sm:$0xf]
        %v6778 = vld [vmem:[%s843 + $0x68] sm:$0x1]
        %v6779 = vld [vmem:[%s843 + $0x6c] sm:$0xf]
        %v6780 = vld [vmem:[%s843 + $0x70] sm:$0xf]
        %v6781 = vld [vmem:[%s843 + $0x74] sm:$0x1]
        %v6782 = vld [vmem:[%s843 + $0x78] sm:$0xf]
        %v6783 = vld [vmem:[%s843 + $0x7c] sm:$0xf]
        %v6784 = vld [vmem:[%s843 + $0x80] sm:$0x1]
        %v6785 = vld [vmem:[%s843 + $0x84] sm:$0xf]
        %v6786 = vld [vmem:[%s843 + $0x88] sm:$0xf]
        %v6787 = vld [vmem:[%s843 + $0x8c] sm:$0x1]
        %v6788 = vld [vmem:[%s843 + $0x90] sm:$0xf]
        %v6789 = vld [vmem:[%s843 + $0x94] sm:$0xf]
        %v6790 = vld [vmem:[%s843 + $0x98] sm:$0x1]
        %v6791 = vld [vmem:[%s843 + $0x9c] sm:$0xf]
        %v6792 = vld [vmem:[%s843 + $0xa0] sm:$0xf]
        %v6793 = vld [vmem:[%s843 + $0xa4] sm:$0x1]
        %v6794 = vld [vmem:[%s843 + $0xa8] sm:$0xf]
        %v6795 = vld [vmem:[%s843 + $0xac] sm:$0xf]
        %v6796 = vld [vmem:[%s843 + $0xb0] sm:$0x1]
        %v6797 = vld [vmem:[%s843 + $0xb4] sm:$0xf]
        %v6798 = vld [vmem:[%s843 + $0xb8] sm:$0xf]
        %v6799 = vld [vmem:[%s843 + $0xbc] sm:$0x1]
        %v6848 = vunpack.c.l.b16 %v6752
        %v6849 = vunpack.c.l.b16 %v6753
        %v6850 = vunpack.c.l.b16 %v6754
        %v6851 = vunpack.c.l.b16 %v6755
        %v6852 = vunpack.c.l.b16 %v6756
        %v6853 = vunpack.c.l.b16 %v6757
        %v6854 = vunpack.c.l.b16 %v6758
        %v6855 = vunpack.c.l.b16 %v6759
        %v6856 = vunpack.c.l.b16 %v6760
        %v6857 = vunpack.c.l.b16 %v6761
        %v6858 = vunpack.c.l.b16 %v6762
        %v6859 = vunpack.c.l.b16 %v6763
        %v6860 = vunpack.c.l.b16 %v6764
        %v6861 = vunpack.c.l.b16 %v6765
        %v6862 = vunpack.c.l.b16 %v6766
        %v6863 = vunpack.c.l.b16 %v6767
        %v6864 = vunpack.c.l.b16 %v6768
        %v6865 = vunpack.c.l.b16 %v6769
        %v6866 = vunpack.c.l.b16 %v6770
        %v6867 = vunpack.c.l.b16 %v6771
        %v6868 = vunpack.c.l.b16 %v6772
        %v6869 = vunpack.c.l.b16 %v6773
        %v6870 = vunpack.c.l.b16 %v6774
        %v6871 = vunpack.c.l.b16 %v6775
        %v6872 = vunpack.c.l.b16 %v6776
        %v6873 = vunpack.c.l.b16 %v6777
        %v6874 = vunpack.c.l.b16 %v6778
        %v6875 = vunpack.c.l.b16 %v6779
        %v6876 = vunpack.c.l.b16 %v6780
        %v6877 = vunpack.c.l.b16 %v6781
        %v6878 = vunpack.c.l.b16 %v6782
        %v6879 = vunpack.c.l.b16 %v6783
        %v6880 = vunpack.c.l.b16 %v6784
        %v6881 = vunpack.c.l.b16 %v6785
        %v6882 = vunpack.c.l.b16 %v6786
        %v6883 = vunpack.c.l.b16 %v6787
        %v6884 = vunpack.c.l.b16 %v6788
        %v6885 = vunpack.c.l.b16 %v6789
        %v6886 = vunpack.c.l.b16 %v6790
        %v6887 = vunpack.c.l.b16 %v6791
        %v6888 = vunpack.c.l.b16 %v6792
        %v6889 = vunpack.c.l.b16 %v6793
        %v6890 = vunpack.c.l.b16 %v6794
        %v6891 = vunpack.c.l.b16 %v6795
        %v6892 = vunpack.c.l.b16 %v6796
        %v6893 = vunpack.c.l.b16 %v6797
        %v6894 = vunpack.c.l.b16 %v6798
        %v6895 = vunpack.c.l.b16 %v6799
        %v6896 = vpack.c.b16 %v6849, %v6848
        %v6897 = vpack.c.b16 %v6850, %v6850
        %v6898 = vpack.c.b16 %v6852, %v6851
        %v6899 = vpack.c.b16 %v6853, %v6853
        %v6900 = vpack.c.b16 %v6855, %v6854
        %v6901 = vpack.c.b16 %v6856, %v6856
        %v6902 = vpack.c.b16 %v6858, %v6857
        %v6903 = vpack.c.b16 %v6859, %v6859
        %v6904 = vpack.c.b16 %v6861, %v6860
        %v6905 = vpack.c.b16 %v6862, %v6862
        %v6906 = vpack.c.b16 %v6864, %v6863
        %v6907 = vpack.c.b16 %v6865, %v6865
        %v6908 = vpack.c.b16 %v6867, %v6866
        %v6909 = vpack.c.b16 %v6868, %v6868
        %v6910 = vpack.c.b16 %v6870, %v6869
        %v6911 = vpack.c.b16 %v6871, %v6871
        %v6912 = vpack.c.b16 %v6873, %v6872
        %v6913 = vpack.c.b16 %v6874, %v6874
        %v6914 = vpack.c.b16 %v6876, %v6875
        %v6915 = vpack.c.b16 %v6877, %v6877
        %v6916 = vpack.c.b16 %v6879, %v6878
        %v6917 = vpack.c.b16 %v6880, %v6880
        %v6918 = vpack.c.b16 %v6882, %v6881
        %v6919 = vpack.c.b16 %v6883, %v6883
        %v6920 = vpack.c.b16 %v6885, %v6884
        %v6921 = vpack.c.b16 %v6886, %v6886
        %v6922 = vpack.c.b16 %v6888, %v6887
        %v6923 = vpack.c.b16 %v6889, %v6889
        %v6924 = vpack.c.b16 %v6891, %v6890
        %v6925 = vpack.c.b16 %v6892, %v6892
        %v6926 = vpack.c.b16 %v6894, %v6893
        %v6927 = vpack.c.b16 %v6895, %v6895
        %v6929 = vshrl.u32 %v6896, 16
        %v6931 = vshll.u32 %v6896, 16
        %v6933 = vrot.slane %v6931, 1
        %v6934 = vor.u32 %v6929, %v6933
        %v6936 = vshll.u32 %v6897, 16
        %v6938 = vrot.slane %v6936, 1
        %v6939 = vsel %vm1278, %v6934, %v6938
        %v6941 = vshrl.u32 %v6898, 16
        %v6943 = vshll.u32 %v6898, 16
        %v6945 = vrot.slane %v6943, 1
        %v6946 = vor.u32 %v6941, %v6945
        %v6948 = vshll.u32 %v6899, 16
        %v6950 = vrot.slane %v6948, 1
        %v6951 = vsel %vm1278, %v6946, %v6950
        %v6953 = vshrl.u32 %v6900, 16
        %v6955 = vshll.u32 %v6900, 16
        %v6957 = vrot.slane %v6955, 1
        %v6958 = vor.u32 %v6953, %v6957
        %v6960 = vshll.u32 %v6901, 16
        %v6962 = vrot.slane %v6960, 1
        %v6963 = vsel %vm1278, %v6958, %v6962
        %v6965 = vshrl.u32 %v6902, 16
        %v6967 = vshll.u32 %v6902, 16
        %v6969 = vrot.slane %v6967, 1
        %v6970 = vor.u32 %v6965, %v6969
        %v6972 = vshll.u32 %v6903, 16
        %v6974 = vrot.slane %v6972, 1
        %v6975 = vsel %vm1278, %v6970, %v6974
        %v6977 = vshrl.u32 %v6904, 16
        %v6979 = vshll.u32 %v6904, 16
        %v6981 = vrot.slane %v6979, 1
        %v6982 = vor.u32 %v6977, %v6981
        %v6984 = vshll.u32 %v6905, 16
        %v6986 = vrot.slane %v6984, 1
        %v6987 = vsel %vm1278, %v6982, %v6986
        %v6989 = vshrl.u32 %v6906, 16
        %v6991 = vshll.u32 %v6906, 16
        %v6993 = vrot.slane %v6991, 1
        %v6994 = vor.u32 %v6989, %v6993
        %v6996 = vshll.u32 %v6907, 16
        %v6998 = vrot.slane %v6996, 1
        %v6999 = vsel %vm1278, %v6994, %v6998
        %v7001 = vshrl.u32 %v6908, 16
        %v7003 = vshll.u32 %v6908, 16
        %v7005 = vrot.slane %v7003, 1
        %v7006 = vor.u32 %v7001, %v7005
        %v7008 = vshll.u32 %v6909, 16
        %v7010 = vrot.slane %v7008, 1
        %v7011 = vsel %vm1278, %v7006, %v7010
        %v7013 = vshrl.u32 %v6910, 16
        %v7015 = vshll.u32 %v6910, 16
        %v7017 = vrot.slane %v7015, 1
        %v7018 = vor.u32 %v7013, %v7017
        %v7020 = vshll.u32 %v6911, 16
        %v7022 = vrot.slane %v7020, 1
        %v7023 = vsel %vm1278, %v7018, %v7022
        %v7025 = vshrl.u32 %v6912, 16
        %v7027 = vshll.u32 %v6912, 16
        %v7029 = vrot.slane %v7027, 1
        %v7030 = vor.u32 %v7025, %v7029
        %v7032 = vshll.u32 %v6913, 16
        %v7034 = vrot.slane %v7032, 1
        %v7035 = vsel %vm1278, %v7030, %v7034
        %v7037 = vshrl.u32 %v6914, 16
        %v7039 = vshll.u32 %v6914, 16
        %v7041 = vrot.slane %v7039, 1
        %v7042 = vor.u32 %v7037, %v7041
        %v7044 = vshll.u32 %v6915, 16
        %v7046 = vrot.slane %v7044, 1
        %v7047 = vsel %vm1278, %v7042, %v7046
        %v7049 = vshrl.u32 %v6916, 16
        %v7051 = vshll.u32 %v6916, 16
        %v7053 = vrot.slane %v7051, 1
        %v7054 = vor.u32 %v7049, %v7053
        %v7056 = vshll.u32 %v6917, 16
        %v7058 = vrot.slane %v7056, 1
        %v7059 = vsel %vm1278, %v7054, %v7058
        %v7061 = vshrl.u32 %v6918, 16
        %v7063 = vshll.u32 %v6918, 16
        %v7065 = vrot.slane %v7063, 1
        %v7066 = vor.u32 %v7061, %v7065
        %v7068 = vshll.u32 %v6919, 16
        %v7070 = vrot.slane %v7068, 1
        %v7071 = vsel %vm1278, %v7066, %v7070
        %v7073 = vshrl.u32 %v6920, 16
        %v7075 = vshll.u32 %v6920, 16
        %v7077 = vrot.slane %v7075, 1
        %v7078 = vor.u32 %v7073, %v7077
        %v7080 = vshll.u32 %v6921, 16
        %v7082 = vrot.slane %v7080, 1
        %v7083 = vsel %vm1278, %v7078, %v7082
        %v7085 = vshrl.u32 %v6922, 16
        %v7087 = vshll.u32 %v6922, 16
        %v7089 = vrot.slane %v7087, 1
        %v7090 = vor.u32 %v7085, %v7089
        %v7092 = vshll.u32 %v6923, 16
        %v7094 = vrot.slane %v7092, 1
        %v7095 = vsel %vm1278, %v7090, %v7094
        %v7097 = vshrl.u32 %v6924, 16
        %v7099 = vshll.u32 %v6924, 16
        %v7101 = vrot.slane %v7099, 1
        %v7102 = vor.u32 %v7097, %v7101
        %v7104 = vshll.u32 %v6925, 16
        %v7106 = vrot.slane %v7104, 1
        %v7107 = vsel %vm1278, %v7102, %v7106
        %v7109 = vshrl.u32 %v6926, 16
        %v7111 = vshll.u32 %v6926, 16
        %v7113 = vrot.slane %v7111, 1
        %v7114 = vor.u32 %v7109, %v7113
        %v7116 = vshll.u32 %v6927, 16
        %v7118 = vrot.slane %v7116, 1
        %v7119 = vsel %vm1278, %v7114, %v7118
        %7136 = vst [vmem:[#allocation3 + $0x8] sm:$0xff] %v6939
        %7137 = vst [vmem:[#allocation3 + $0x20] sm:$0xff] %v6951
        %7138 = vst [vmem:[#allocation3 + $0x38] sm:$0xff] %v6963
        %7139 = vst [vmem:[#allocation3 + $0x50] sm:$0xff] %v6975
        %7140 = vst [vmem:[#allocation3 + $0x68] sm:$0xff] %v6987
        %7141 = vst [vmem:[#allocation3 + $0x80] sm:$0xff] %v6999
        %7142 = vst [vmem:[#allocation3 + $0x98] sm:$0xff] %v7011
        %7143 = vst [vmem:[#allocation3 + $0xb0] sm:$0xff] %v7023
        %7144 = vst [vmem:[#allocation3 + $0xc8] sm:$0xff] %v7035
        %7145 = vst [vmem:[#allocation3 + $0xe0] sm:$0xff] %v7047
        %7146 = vst [vmem:[#allocation3 + $0xf8] sm:$0xff] %v7059
        %7147 = vst [vmem:[#allocation3 + $0x110] sm:$0xff] %v7071
        %7148 = vst [vmem:[#allocation3 + $0x128] sm:$0xff] %v7083
        %7149 = vst [vmem:[#allocation3 + $0x140] sm:$0xff] %v7095
        %7150 = vst [vmem:[#allocation3 + $0x158] sm:$0xff] %v7107
        %7151 = vst [vmem:[#allocation3 + $0x170] sm:$0xff] %v7119
        %v7152 = vld [vmem:[%s843] sm:$0xe]
        %v7153 = vld [vmem:[%s843 + $0x4] sm:$0xf]
        %v7154 = vld [vmem:[%s843 + $0x8] sm:$0x1]
        %v7155 = vld [vmem:[%s843 + $0xc] sm:$0xe]
        %v7156 = vld [vmem:[%s843 + $0x10] sm:$0xf]
        %v7157 = vld [vmem:[%s843 + $0x14] sm:$0x1]
        %v7158 = vld [vmem:[%s843 + $0x18] sm:$0xe]
        %v7159 = vld [vmem:[%s843 + $0x1c] sm:$0xf]
        %v7160 = vld [vmem:[%s843 + $0x20] sm:$0x1]
        %v7161 = vld [vmem:[%s843 + $0x24] sm:$0xe]
        %v7162 = vld [vmem:[%s843 + $0x28] sm:$0xf]
        %v7163 = vld [vmem:[%s843 + $0x2c] sm:$0x1]
        %v7164 = vld [vmem:[%s843 + $0x30] sm:$0xe]
        %v7165 = vld [vmem:[%s843 + $0x34] sm:$0xf]
        %v7166 = vld [vmem:[%s843 + $0x38] sm:$0x1]
        %v7167 = vld [vmem:[%s843 + $0x3c] sm:$0xe]
        %v7168 = vld [vmem:[%s843 + $0x40] sm:$0xf]
        %v7169 = vld [vmem:[%s843 + $0x44] sm:$0x1]
        %v7170 = vld [vmem:[%s843 + $0x48] sm:$0xe]
        %v7171 = vld [vmem:[%s843 + $0x4c] sm:$0xf]
        %v7172 = vld [vmem:[%s843 + $0x50] sm:$0x1]
        %v7173 = vld [vmem:[%s843 + $0x54] sm:$0xe]
        %v7174 = vld [vmem:[%s843 + $0x58] sm:$0xf]
        %v7175 = vld [vmem:[%s843 + $0x5c] sm:$0x1]
        %v7176 = vld [vmem:[%s843 + $0x60] sm:$0xe]
        %v7177 = vld [vmem:[%s843 + $0x64] sm:$0xf]
        %v7178 = vld [vmem:[%s843 + $0x68] sm:$0x1]
        %v7179 = vld [vmem:[%s843 + $0x6c] sm:$0xe]
        %v7180 = vld [vmem:[%s843 + $0x70] sm:$0xf]
        %v7181 = vld [vmem:[%s843 + $0x74] sm:$0x1]
        %v7182 = vld [vmem:[%s843 + $0x78] sm:$0xe]
        %v7183 = vld [vmem:[%s843 + $0x7c] sm:$0xf]
        %v7184 = vld [vmem:[%s843 + $0x80] sm:$0x1]
        %v7185 = vld [vmem:[%s843 + $0x84] sm:$0xe]
        %v7186 = vld [vmem:[%s843 + $0x88] sm:$0xf]
        %v7187 = vld [vmem:[%s843 + $0x8c] sm:$0x1]
        %v7188 = vld [vmem:[%s843 + $0x90] sm:$0xe]
        %v7189 = vld [vmem:[%s843 + $0x94] sm:$0xf]
        %v7190 = vld [vmem:[%s843 + $0x98] sm:$0x1]
        %v7191 = vld [vmem:[%s843 + $0x9c] sm:$0xe]
        %v7192 = vld [vmem:[%s843 + $0xa0] sm:$0xf]
        %v7193 = vld [vmem:[%s843 + $0xa4] sm:$0x1]
        %v7194 = vld [vmem:[%s843 + $0xa8] sm:$0xe]
        %v7195 = vld [vmem:[%s843 + $0xac] sm:$0xf]
        %v7196 = vld [vmem:[%s843 + $0xb0] sm:$0x1]
        %v7197 = vld [vmem:[%s843 + $0xb4] sm:$0xe]
        %v7198 = vld [vmem:[%s843 + $0xb8] sm:$0xf]
        %v7199 = vld [vmem:[%s843 + $0xbc] sm:$0x1]
        %v7248 = vunpack.c.l.b16 %v7152
        %v7249 = vunpack.c.l.b16 %v7153
        %v7250 = vunpack.c.l.b16 %v7154
        %v7251 = vunpack.c.l.b16 %v7155
        %v7252 = vunpack.c.l.b16 %v7156
        %v7253 = vunpack.c.l.b16 %v7157
        %v7254 = vunpack.c.l.b16 %v7158
        %v7255 = vunpack.c.l.b16 %v7159
        %v7256 = vunpack.c.l.b16 %v7160
        %v7257 = vunpack.c.l.b16 %v7161
        %v7258 = vunpack.c.l.b16 %v7162
        %v7259 = vunpack.c.l.b16 %v7163
        %v7260 = vunpack.c.l.b16 %v7164
        %v7261 = vunpack.c.l.b16 %v7165
        %v7262 = vunpack.c.l.b16 %v7166
        %v7263 = vunpack.c.l.b16 %v7167
        %v7264 = vunpack.c.l.b16 %v7168
        %v7265 = vunpack.c.l.b16 %v7169
        %v7266 = vunpack.c.l.b16 %v7170
        %v7267 = vunpack.c.l.b16 %v7171
        %v7268 = vunpack.c.l.b16 %v7172
        %v7269 = vunpack.c.l.b16 %v7173
        %v7270 = vunpack.c.l.b16 %v7174
        %v7271 = vunpack.c.l.b16 %v7175
        %v7272 = vunpack.c.l.b16 %v7176
        %v7273 = vunpack.c.l.b16 %v7177
        %v7274 = vunpack.c.l.b16 %v7178
        %v7275 = vunpack.c.l.b16 %v7179
        %v7276 = vunpack.c.l.b16 %v7180
        %v7277 = vunpack.c.l.b16 %v7181
        %v7278 = vunpack.c.l.b16 %v7182
        %v7279 = vunpack.c.l.b16 %v7183
        %v7280 = vunpack.c.l.b16 %v7184
        %v7281 = vunpack.c.l.b16 %v7185
        %v7282 = vunpack.c.l.b16 %v7186
        %v7283 = vunpack.c.l.b16 %v7187
        %v7284 = vunpack.c.l.b16 %v7188
        %v7285 = vunpack.c.l.b16 %v7189
        %v7286 = vunpack.c.l.b16 %v7190
        %v7287 = vunpack.c.l.b16 %v7191
        %v7288 = vunpack.c.l.b16 %v7192
        %v7289 = vunpack.c.l.b16 %v7193
        %v7290 = vunpack.c.l.b16 %v7194
        %v7291 = vunpack.c.l.b16 %v7195
        %v7292 = vunpack.c.l.b16 %v7196
        %v7293 = vunpack.c.l.b16 %v7197
        %v7294 = vunpack.c.l.b16 %v7198
        %v7295 = vunpack.c.l.b16 %v7199
        %v7296 = vpack.c.b16 %v7249, %v7248
        %v7297 = vpack.c.b16 %v7250, %v7250
        %v7298 = vpack.c.b16 %v7252, %v7251
        %v7299 = vpack.c.b16 %v7253, %v7253
        %v7300 = vpack.c.b16 %v7255, %v7254
        %v7301 = vpack.c.b16 %v7256, %v7256
        %v7302 = vpack.c.b16 %v7258, %v7257
        %v7303 = vpack.c.b16 %v7259, %v7259
        %v7304 = vpack.c.b16 %v7261, %v7260
        %v7305 = vpack.c.b16 %v7262, %v7262
        %v7306 = vpack.c.b16 %v7264, %v7263
        %v7307 = vpack.c.b16 %v7265, %v7265
        %v7308 = vpack.c.b16 %v7267, %v7266
        %v7309 = vpack.c.b16 %v7268, %v7268
        %v7310 = vpack.c.b16 %v7270, %v7269
        %v7311 = vpack.c.b16 %v7271, %v7271
        %v7312 = vpack.c.b16 %v7273, %v7272
        %v7313 = vpack.c.b16 %v7274, %v7274
        %v7314 = vpack.c.b16 %v7276, %v7275
        %v7315 = vpack.c.b16 %v7277, %v7277
        %v7316 = vpack.c.b16 %v7279, %v7278
        %v7317 = vpack.c.b16 %v7280, %v7280
        %v7318 = vpack.c.b16 %v7282, %v7281
        %v7319 = vpack.c.b16 %v7283, %v7283
        %v7320 = vpack.c.b16 %v7285, %v7284
        %v7321 = vpack.c.b16 %v7286, %v7286
        %v7322 = vpack.c.b16 %v7288, %v7287
        %v7323 = vpack.c.b16 %v7289, %v7289
        %v7324 = vpack.c.b16 %v7291, %v7290
        %v7325 = vpack.c.b16 %v7292, %v7292
        %v7326 = vpack.c.b16 %v7294, %v7293
        %v7327 = vpack.c.b16 %v7295, %v7295
        %v7328 = vrot.slane %v7296, 1
        %v7329 = vrot.slane %v7297, 1
        %v7330 = vsel %vm1679, %v7328, %v7329
        %v7331 = vrot.slane %v7298, 1
        %v7332 = vrot.slane %v7299, 1
        %v7333 = vsel %vm1679, %v7331, %v7332
        %v7334 = vrot.slane %v7300, 1
        %v7335 = vrot.slane %v7301, 1
        %v7336 = vsel %vm1679, %v7334, %v7335
        %v7337 = vrot.slane %v7302, 1
        %v7338 = vrot.slane %v7303, 1
        %v7339 = vsel %vm1679, %v7337, %v7338
        %v7340 = vrot.slane %v7304, 1
        %v7341 = vrot.slane %v7305, 1
        %v7342 = vsel %vm1679, %v7340, %v7341
        %v7343 = vrot.slane %v7306, 1
        %v7344 = vrot.slane %v7307, 1
        %v7345 = vsel %vm1679, %v7343, %v7344
        %v7346 = vrot.slane %v7308, 1
        %v7347 = vrot.slane %v7309, 1
        %v7348 = vsel %vm1679, %v7346, %v7347
        %v7349 = vrot.slane %v7310, 1
        %v7350 = vrot.slane %v7311, 1
        %v7351 = vsel %vm1679, %v7349, %v7350
        %v7352 = vrot.slane %v7312, 1
        %v7353 = vrot.slane %v7313, 1
        %v7354 = vsel %vm1679, %v7352, %v7353
        %v7355 = vrot.slane %v7314, 1
        %v7356 = vrot.slane %v7315, 1
        %v7357 = vsel %vm1679, %v7355, %v7356
        %v7358 = vrot.slane %v7316, 1
        %v7359 = vrot.slane %v7317, 1
        %v7360 = vsel %vm1679, %v7358, %v7359
        %v7361 = vrot.slane %v7318, 1
        %v7362 = vrot.slane %v7319, 1
        %v7363 = vsel %vm1679, %v7361, %v7362
        %v7364 = vrot.slane %v7320, 1
        %v7365 = vrot.slane %v7321, 1
        %v7366 = vsel %vm1679, %v7364, %v7365
        %v7367 = vrot.slane %v7322, 1
        %v7368 = vrot.slane %v7323, 1
        %v7369 = vsel %vm1679, %v7367, %v7368
        %v7370 = vrot.slane %v7324, 1
        %v7371 = vrot.slane %v7325, 1
        %v7372 = vsel %vm1679, %v7370, %v7371
        %v7373 = vrot.slane %v7326, 1
        %v7374 = vrot.slane %v7327, 1
        %v7375 = vsel %vm1679, %v7373, %v7374
        %7392 = vst [vmem:[#allocation3 + $0x10] sm:$0xff] %v7330
        %7393 = vst [vmem:[#allocation3 + $0x28] sm:$0xff] %v7333
        %7394 = vst [vmem:[#allocation3 + $0x40] sm:$0xff] %v7336
        %7395 = vst [vmem:[#allocation3 + $0x58] sm:$0xff] %v7339
        %7396 = vst [vmem:[#allocation3 + $0x70] sm:$0xff] %v7342
        %7397 = vst [vmem:[#allocation3 + $0x88] sm:$0xff] %v7345
        %7398 = vst [vmem:[#allocation3 + $0xa0] sm:$0xff] %v7348
        %7399 = vst [vmem:[#allocation3 + $0xb8] sm:$0xff] %v7351
        %7400 = vst [vmem:[#allocation3 + $0xd0] sm:$0xff] %v7354
        %7401 = vst [vmem:[#allocation3 + $0xe8] sm:$0xff] %v7357
        %7402 = vst [vmem:[#allocation3 + $0x100] sm:$0xff] %v7360
        %7403 = vst [vmem:[#allocation3 + $0x118] sm:$0xff] %v7363
        %7404 = vst [vmem:[#allocation3 + $0x130] sm:$0xff] %v7366
        %7405 = vst [vmem:[#allocation3 + $0x148] sm:$0xff] %v7369
        %7406 = vst [vmem:[#allocation3 + $0x160] sm:$0xff] %v7372
        %7407 = vst [vmem:[#allocation3 + $0x178] sm:$0xff] %v7375
        %v7408 = vld [vmem:[#allocation3] sm:$0xff]
        %v7409 = vld [vmem:[#allocation3 + $0x8] sm:$0xff]
        %v7410 = vld [vmem:[#allocation3 + $0x10] sm:$0xff]
        %v7411 = vld [vmem:[#allocation3 + $0x18] sm:$0xff]
        %v7412 = vld [vmem:[#allocation3 + $0x20] sm:$0xff]
        %v7413 = vld [vmem:[#allocation3 + $0x28] sm:$0xff]
        %v7414 = vld [vmem:[#allocation3 + $0x30] sm:$0xff]
        %v7415 = vld [vmem:[#allocation3 + $0x38] sm:$0xff]
        %v7416 = vld [vmem:[#allocation3 + $0x40] sm:$0xff]
        %v7417 = vld [vmem:[#allocation3 + $0x48] sm:$0xff]
        %v7418 = vld [vmem:[#allocation3 + $0x50] sm:$0xff]
        %v7419 = vld [vmem:[#allocation3 + $0x58] sm:$0xff]
        %v7420 = vld [vmem:[#allocation3 + $0x60] sm:$0xff]
        %v7421 = vld [vmem:[#allocation3 + $0x68] sm:$0xff]
        %v7422 = vld [vmem:[#allocation3 + $0x70] sm:$0xff]
        %v7423 = vld [vmem:[#allocation3 + $0x78] sm:$0xff]
        %v7424 = vld [vmem:[#allocation3 + $0x80] sm:$0xff]
        %v7425 = vld [vmem:[#allocation3 + $0x88] sm:$0xff]
        %v7426 = vld [vmem:[#allocation3 + $0x90] sm:$0xff]
        %v7427 = vld [vmem:[#allocation3 + $0x98] sm:$0xff]
        %v7428 = vld [vmem:[#allocation3 + $0xa0] sm:$0xff]
        %v7429 = vld [vmem:[#allocation3 + $0xa8] sm:$0xff]
        %v7430 = vld [vmem:[#allocation3 + $0xb0] sm:$0xff]
        %v7431 = vld [vmem:[#allocation3 + $0xb8] sm:$0xff]
        %v7432 = vld [vmem:[#allocation3 + $0xc0] sm:$0xff]
        %v7433 = vld [vmem:[#allocation3 + $0xc8] sm:$0xff]
        %v7434 = vld [vmem:[#allocation3 + $0xd0] sm:$0xff]
        %v7435 = vld [vmem:[#allocation3 + $0xd8] sm:$0xff]
        %v7436 = vld [vmem:[#allocation3 + $0xe0] sm:$0xff]
        %v7437 = vld [vmem:[#allocation3 + $0xe8] sm:$0xff]
        %v7438 = vld [vmem:[#allocation3 + $0xf0] sm:$0xff]
        %v7439 = vld [vmem:[#allocation3 + $0xf8] sm:$0xff]
        %v7440 = vld [vmem:[#allocation3 + $0x100] sm:$0xff]
        %v7441 = vld [vmem:[#allocation3 + $0x108] sm:$0xff]
        %v7442 = vld [vmem:[#allocation3 + $0x110] sm:$0xff]
        %v7443 = vld [vmem:[#allocation3 + $0x118] sm:$0xff]
        %v7444 = vld [vmem:[#allocation3 + $0x120] sm:$0xff]
        %v7445 = vld [vmem:[#allocation3 + $0x128] sm:$0xff]
        %v7446 = vld [vmem:[#allocation3 + $0x130] sm:$0xff]
        %v7447 = vld [vmem:[#allocation3 + $0x138] sm:$0xff]
        %v7448 = vld [vmem:[#allocation3 + $0x140] sm:$0xff]
        %v7449 = vld [vmem:[#allocation3 + $0x148] sm:$0xff]
        %v7450 = vld [vmem:[#allocation3 + $0x150] sm:$0xff]
        %v7451 = vld [vmem:[#allocation3 + $0x158] sm:$0xff]
        %v7452 = vld [vmem:[#allocation3 + $0x160] sm:$0xff]
        %v7453 = vld [vmem:[#allocation3 + $0x168] sm:$0xff]
        %v7454 = vld [vmem:[#allocation3 + $0x170] sm:$0xff]
        %v7455 = vld [vmem:[#allocation3 + $0x178] sm:$0xff]
        %s7456 = scalar_lea.vmem [#allocation9], 192
        %v7457 = vld [vmem:[%s7456] sm:$0xf]
        %v7458 = vld [vmem:[%s7456 + $0x4] sm:$0xf]
        %v7459 = vld [vmem:[%s7456 + $0x8] sm:$0xf]
        %v7460 = vld [vmem:[%s7456 + $0xc] sm:$0xf]
        %v7461 = vld [vmem:[%s7456 + $0x10] sm:$0xf]
        %v7462 = vld [vmem:[%s7456 + $0x14] sm:$0xf]
        %v7463 = vld [vmem:[%s7456 + $0x18] sm:$0xf]
        %v7464 = vld [vmem:[%s7456 + $0x1c] sm:$0xf]
        %v7465 = vld [vmem:[%s7456 + $0x20] sm:$0xf]
        %v7466 = vld [vmem:[%s7456 + $0x24] sm:$0xf]
        %v7467 = vld [vmem:[%s7456 + $0x28] sm:$0xf]
        %v7468 = vld [vmem:[%s7456 + $0x2c] sm:$0xf]
        %v7469 = vld [vmem:[%s7456 + $0x30] sm:$0xf]
        %v7470 = vld [vmem:[%s7456 + $0x34] sm:$0xf]
        %v7471 = vld [vmem:[%s7456 + $0x38] sm:$0xf]
        %v7472 = vld [vmem:[%s7456 + $0x3c] sm:$0xf]
        %v7473 = vld [vmem:[%s7456 + $0x40] sm:$0xf]
        %v7474 = vld [vmem:[%s7456 + $0x44] sm:$0xf]
        %v7475 = vld [vmem:[%s7456 + $0x48] sm:$0xf]
        %v7476 = vld [vmem:[%s7456 + $0x4c] sm:$0xf]
        %v7477 = vld [vmem:[%s7456 + $0x50] sm:$0xf]
        %v7478 = vld [vmem:[%s7456 + $0x54] sm:$0xf]
        %v7479 = vld [vmem:[%s7456 + $0x58] sm:$0xf]
        %v7480 = vld [vmem:[%s7456 + $0x5c] sm:$0xf]
        %v7481 = vld [vmem:[%s7456 + $0x60] sm:$0xf]
        %v7482 = vld [vmem:[%s7456 + $0x64] sm:$0xf]
        %v7483 = vld [vmem:[%s7456 + $0x68] sm:$0xf]
        %v7484 = vld [vmem:[%s7456 + $0x6c] sm:$0xf]
        %v7485 = vld [vmem:[%s7456 + $0x70] sm:$0xf]
        %v7486 = vld [vmem:[%s7456 + $0x74] sm:$0xf]
        %v7487 = vld [vmem:[%s7456 + $0x78] sm:$0xf]
        %v7488 = vld [vmem:[%s7456 + $0x7c] sm:$0xf]
        %v7489 = vld [vmem:[%s7456 + $0x80] sm:$0xf]
        %v7490 = vld [vmem:[%s7456 + $0x84] sm:$0xf]
        %v7491 = vld [vmem:[%s7456 + $0x88] sm:$0xf]
        %v7492 = vld [vmem:[%s7456 + $0x8c] sm:$0xf]
        %v7493 = vld [vmem:[%s7456 + $0x90] sm:$0xf]
        %v7494 = vld [vmem:[%s7456 + $0x94] sm:$0xf]
        %v7495 = vld [vmem:[%s7456 + $0x98] sm:$0xf]
        %v7496 = vld [vmem:[%s7456 + $0x9c] sm:$0xf]
        %v7497 = vld [vmem:[%s7456 + $0xa0] sm:$0xf]
        %v7498 = vld [vmem:[%s7456 + $0xa4] sm:$0xf]
        %v7499 = vld [vmem:[%s7456 + $0xa8] sm:$0xf]
        %v7500 = vld [vmem:[%s7456 + $0xac] sm:$0xf]
        %v7501 = vld [vmem:[%s7456 + $0xb0] sm:$0xf]
        %v7502 = vld [vmem:[%s7456 + $0xb4] sm:$0xf]
        %v7503 = vld [vmem:[%s7456 + $0xb8] sm:$0xf]
        %v7504 = vld [vmem:[%s7456 + $0xbc] sm:$0xf]
        %v7553 = vunpack.c.l.b16 %v7457
        %v7554 = vunpack.c.l.b16 %v7458
        %v7555 = vunpack.c.l.b16 %v7459
        %v7556 = vunpack.c.l.b16 %v7460
        %v7557 = vunpack.c.l.b16 %v7461
        %v7558 = vunpack.c.l.b16 %v7462
        %v7559 = vunpack.c.l.b16 %v7463
        %v7560 = vunpack.c.l.b16 %v7464
        %v7561 = vunpack.c.l.b16 %v7465
        %v7562 = vunpack.c.l.b16 %v7466
        %v7563 = vunpack.c.l.b16 %v7467
        %v7564 = vunpack.c.l.b16 %v7468
        %v7565 = vunpack.c.l.b16 %v7469
        %v7566 = vunpack.c.l.b16 %v7470
        %v7567 = vunpack.c.l.b16 %v7471
        %v7568 = vunpack.c.l.b16 %v7472
        %v7569 = vunpack.c.l.b16 %v7473
        %v7570 = vunpack.c.l.b16 %v7474
        %v7571 = vunpack.c.l.b16 %v7475
        %v7572 = vunpack.c.l.b16 %v7476
        %v7573 = vunpack.c.l.b16 %v7477
        %v7574 = vunpack.c.l.b16 %v7478
        %v7575 = vunpack.c.l.b16 %v7479
        %v7576 = vunpack.c.l.b16 %v7480
        %v7577 = vunpack.c.l.b16 %v7481
        %v7578 = vunpack.c.l.b16 %v7482
        %v7579 = vunpack.c.l.b16 %v7483
        %v7580 = vunpack.c.l.b16 %v7484
        %v7581 = vunpack.c.l.b16 %v7485
        %v7582 = vunpack.c.l.b16 %v7486
        %v7583 = vunpack.c.l.b16 %v7487
        %v7584 = vunpack.c.l.b16 %v7488
        %v7585 = vunpack.c.l.b16 %v7489
        %v7586 = vunpack.c.l.b16 %v7490
        %v7587 = vunpack.c.l.b16 %v7491
        %v7588 = vunpack.c.l.b16 %v7492
        %v7589 = vunpack.c.l.b16 %v7493
        %v7590 = vunpack.c.l.b16 %v7494
        %v7591 = vunpack.c.l.b16 %v7495
        %v7592 = vunpack.c.l.b16 %v7496
        %v7593 = vunpack.c.l.b16 %v7497
        %v7594 = vunpack.c.l.b16 %v7498
        %v7595 = vunpack.c.l.b16 %v7499
        %v7596 = vunpack.c.l.b16 %v7500
        %v7597 = vunpack.c.l.b16 %v7501
        %v7598 = vunpack.c.l.b16 %v7502
        %v7599 = vunpack.c.l.b16 %v7503
        %v7600 = vunpack.c.l.b16 %v7504
        %v7601 = vpack.c.b16 %v7554, %v7553
        %v7602 = vpack.c.b16 %v7556, %v7555
        %v7603 = vpack.c.b16 %v7558, %v7557
        %v7604 = vpack.c.b16 %v7560, %v7559
        %v7605 = vpack.c.b16 %v7562, %v7561
        %v7606 = vpack.c.b16 %v7564, %v7563
        %v7607 = vpack.c.b16 %v7566, %v7565
        %v7608 = vpack.c.b16 %v7568, %v7567
        %v7609 = vpack.c.b16 %v7570, %v7569
        %v7610 = vpack.c.b16 %v7572, %v7571
        %v7611 = vpack.c.b16 %v7574, %v7573
        %v7612 = vpack.c.b16 %v7576, %v7575
        %v7613 = vpack.c.b16 %v7578, %v7577
        %v7614 = vpack.c.b16 %v7580, %v7579
        %v7615 = vpack.c.b16 %v7582, %v7581
        %v7616 = vpack.c.b16 %v7584, %v7583
        %v7617 = vpack.c.b16 %v7586, %v7585
        %v7618 = vpack.c.b16 %v7588, %v7587
        %v7619 = vpack.c.b16 %v7590, %v7589
        %v7620 = vpack.c.b16 %v7592, %v7591
        %v7621 = vpack.c.b16 %v7594, %v7593
        %v7622 = vpack.c.b16 %v7596, %v7595
        %v7623 = vpack.c.b16 %v7598, %v7597
        %v7624 = vpack.c.b16 %v7600, %v7599
        %7649 = vmatprep.subr.bf16.mxu0 0
        %7650 = vmatpush1.bf16.msra.mxu0 %v7601
        %7651 = vmatprep.subr.bf16.mxu0 0
        %7652 = vmatpush1.bf16.msra.mxu0 %v7602
        %7653 = vmatprep.subr.bf16.mxu0 0
        %7654 = vmatpush1.bf16.msra.mxu0 %v7603
        %7655 = vmatprep.subr.bf16.mxu0 0
        %7656 = vmatpush1.bf16.msra.mxu0 %v7604
        %7657 = vmatprep.subr.bf16.mxu0 0
        %7658 = vmatpush1.bf16.msra.mxu0 %v7605
        %7659 = vmatprep.subr.bf16.mxu0 0
        %7660 = vmatpush1.bf16.msra.mxu0 %v7606
        %7661 = vmatprep.subr.bf16.mxu0 0
        %7662 = vmatpush1.bf16.msra.mxu0 %v7607
        %7663 = vmatprep.subr.bf16.mxu0 0
        %7664 = vmatpush1.bf16.msra.mxu0 %v7608
        %7665 = vmatprep.subr.bf16.mxu0 0
        %7666 = vmatpush1.bf16.msra.mxu0 %v7609
        %7667 = vmatprep.subr.bf16.mxu0 0
        %7668 = vmatpush1.bf16.msra.mxu0 %v7610
        %7669 = vmatprep.subr.bf16.mxu0 0
        %7670 = vmatpush1.bf16.msra.mxu0 %v7611
        %7671 = vmatprep.subr.bf16.mxu0 0
        %7672 = vmatpush1.bf16.msra.mxu0 %v7612
        %7673 = vmatprep.subr.bf16.mxu0 0
        %7674 = vmatpush1.bf16.msra.mxu0 %v7613
        %7675 = vmatprep.subr.bf16.mxu0 0
        %7676 = vmatpush1.bf16.msra.mxu0 %v7614
        %7677 = vmatprep.subr.bf16.mxu0 0
        %7678 = vmatpush1.bf16.msra.mxu0 %v7615
        %7679 = vmatprep.subr.bf16.mxu0 0
        %7680 = vmatpush1.bf16.msra.mxu0 %v7616
        %7681 = vmatprep.mubr.bf16.mxu0 %v7409
        %7682 = vmatmul.mubr.bf16.gmra.mrb[0].mxu0 %v7408
        %v7683 = vpop.f32.mrb[0].mxu0
        %v7684 = vadd.f32 0.0, %v7683
        %v7685 = vpop.f32.mrb[0].mxu0
        %v7686 = vpop.f32.mrb[0].mxu0
        %v7687 = vadd.f32 0.0, %v7686
        %v7688 = vpop.f32.mrb[0].mxu0
        %7689 = vmatprep.mubr.bf16.mxu0 %v7412
        %7690 = vmatmul.mubr.bf16.gmra.mrb[0].mxu0 %v7411
        %v7691 = vpop.f32.mrb[0].mxu0
        %v7692 = vadd.f32 0.0, %v7691
        %v7693 = vpop.f32.mrb[0].mxu0
        %v7694 = vpop.f32.mrb[0].mxu0
        %v7695 = vadd.f32 0.0, %v7694
        %v7696 = vpop.f32.mrb[0].mxu0
        %7697 = vmatprep.mubr.bf16.mxu0 %v7415
        %7698 = vmatmul.mubr.bf16.gmra.mrb[0].mxu0 %v7414
        %v7699 = vpop.f32.mrb[0].mxu0
        %v7700 = vadd.f32 0.0, %v7699
        %v7701 = vpop.f32.mrb[0].mxu0
        %v7702 = vpop.f32.mrb[0].mxu0
        %v7703 = vadd.f32 0.0, %v7702
        %v7704 = vpop.f32.mrb[0].mxu0
        %7705 = vmatprep.mubr.bf16.mxu0 %v7418
        %7706 = vmatmul.mubr.bf16.gmra.mrb[0].mxu0 %v7417
        %v7707 = vpop.f32.mrb[0].mxu0
        %v7708 = vadd.f32 0.0, %v7707
        %v7709 = vpop.f32.mrb[0].mxu0
        %v7710 = vpop.f32.mrb[0].mxu0
        %v7711 = vadd.f32 0.0, %v7710
        %v7712 = vpop.f32.mrb[0].mxu0
        %7713 = vmatprep.mubr.bf16.mxu0 %v7421
        %7714 = vmatmul.mubr.bf16.gmra.mrb[0].mxu0 %v7420
        %v7715 = vpop.f32.mrb[0].mxu0
        %v7716 = vadd.f32 0.0, %v7715
        %v7717 = vpop.f32.mrb[0].mxu0
        %v7718 = vpop.f32.mrb[0].mxu0
        %v7719 = vadd.f32 0.0, %v7718
        %v7720 = vpop.f32.mrb[0].mxu0
        %7721 = vmatprep.mubr.bf16.mxu0 %v7424
        %7722 = vmatmul.mubr.bf16.gmra.mrb[0].mxu0 %v7423
        %v7723 = vpop.f32.mrb[0].mxu0
        %v7724 = vadd.f32 0.0, %v7723
        %v7725 = vpop.f32.mrb[0].mxu0
        %v7726 = vpop.f32.mrb[0].mxu0
        %v7727 = vadd.f32 0.0, %v7726
        %v7728 = vpop.f32.mrb[0].mxu0
        %7729 = vmatprep.mubr.bf16.mxu0 %v7427
        %7730 = vmatmul.mubr.bf16.gmra.mrb[0].mxu0 %v7426
        %v7731 = vpop.f32.mrb[0].mxu0
        %v7732 = vadd.f32 0.0, %v7731
        %v7733 = vpop.f32.mrb[0].mxu0
        %v7734 = vpop.f32.mrb[0].mxu0
        %v7735 = vadd.f32 0.0, %v7734
        %v7736 = vpop.f32.mrb[0].mxu0
        %7737 = vmatprep.mubr.bf16.mxu0 %v7430
        %7738 = vmatmul.mubr.bf16.gmra.mrb[0].mxu0 %v7429
        %v7739 = vpop.f32.mrb[0].mxu0
        %v7740 = vadd.f32 0.0, %v7739
        %v7741 = vpop.f32.mrb[0].mxu0
        %v7742 = vpop.f32.mrb[0].mxu0
        %v7743 = vadd.f32 0.0, %v7742
        %v7744 = vpop.f32.mrb[0].mxu0
        %7745 = vmatprep.mubr.bf16.mxu0 %v7433
        %7746 = vmatmul.mubr.bf16.gmra.mrb[0].mxu0 %v7432
        %v7747 = vpop.f32.mrb[0].mxu0
        %v7748 = vadd.f32 0.0, %v7747
        %v7749 = vpop.f32.mrb[0].mxu0
        %v7750 = vpop.f32.mrb[0].mxu0
        %v7751 = vadd.f32 0.0, %v7750
        %v7752 = vpop.f32.mrb[0].mxu0
        %7753 = vmatprep.mubr.bf16.mxu0 %v7436
        %7754 = vmatmul.mubr.bf16.gmra.mrb[0].mxu0 %v7435
        %v7755 = vpop.f32.mrb[0].mxu0
        %v7756 = vadd.f32 0.0, %v7755
        %v7757 = vpop.f32.mrb[0].mxu0
        %v7758 = vpop.f32.mrb[0].mxu0
        %v7759 = vadd.f32 0.0, %v7758
        %v7760 = vpop.f32.mrb[0].mxu0
        %7761 = vmatprep.mubr.bf16.mxu0 %v7439
        %7762 = vmatmul.mubr.bf16.gmra.mrb[0].mxu0 %v7438
        %v7763 = vpop.f32.mrb[0].mxu0
        %v7764 = vadd.f32 0.0, %v7763
        %v7765 = vpop.f32.mrb[0].mxu0
        %v7766 = vpop.f32.mrb[0].mxu0
        %v7767 = vadd.f32 0.0, %v7766
        %v7768 = vpop.f32.mrb[0].mxu0
        %7769 = vmatprep.mubr.bf16.mxu0 %v7442
        %7770 = vmatmul.mubr.bf16.gmra.mrb[0].mxu0 %v7441
        %v7771 = vpop.f32.mrb[0].mxu0
        %v7772 = vadd.f32 0.0, %v7771
        %v7773 = vpop.f32.mrb[0].mxu0
        %v7774 = vpop.f32.mrb[0].mxu0
        %v7775 = vadd.f32 0.0, %v7774
        %v7776 = vpop.f32.mrb[0].mxu0
        %7777 = vmatprep.mubr.bf16.mxu0 %v7445
        %7778 = vmatmul.mubr.bf16.gmra.mrb[0].mxu0 %v7444
        %v7779 = vpop.f32.mrb[0].mxu0
        %v7780 = vadd.f32 0.0, %v7779
        %v7781 = vpop.f32.mrb[0].mxu0
        %v7782 = vpop.f32.mrb[0].mxu0
        %v7783 = vadd.f32 0.0, %v7782
        %v7784 = vpop.f32.mrb[0].mxu0
        %7785 = vmatprep.mubr.bf16.mxu0 %v7448
        %7786 = vmatmul.mubr.bf16.gmra.mrb[0].mxu0 %v7447
        %v7787 = vpop.f32.mrb[0].mxu0
        %v7788 = vadd.f32 0.0, %v7787
        %v7789 = vpop.f32.mrb[0].mxu0
        %v7790 = vpop.f32.mrb[0].mxu0
        %v7791 = vadd.f32 0.0, %v7790
        %v7792 = vpop.f32.mrb[0].mxu0
        %7793 = vmatprep.mubr.bf16.mxu0 %v7451
        %7794 = vmatmul.mubr.bf16.gmra.mrb[0].mxu0 %v7450
        %v7795 = vpop.f32.mrb[0].mxu0
        %v7796 = vadd.f32 0.0, %v7795
        %v7797 = vpop.f32.mrb[0].mxu0
        %v7798 = vpop.f32.mrb[0].mxu0
        %v7799 = vadd.f32 0.0, %v7798
        %v7800 = vpop.f32.mrb[0].mxu0
        %7801 = vmatprep.mubr.bf16.mxu0 %v7454
        %7802 = vmatmul.mubr.bf16.gmra.mrb[0].mxu0 %v7453
        %v7803 = vpop.f32.mrb[0].mxu0
        %v7804 = vadd.f32 0.0, %v7803
        %v7805 = vpop.f32.mrb[0].mxu0
        %v7806 = vpop.f32.mrb[0].mxu0
        %v7807 = vadd.f32 0.0, %v7806
        %v7808 = vpop.f32.mrb[0].mxu0
        %7809 = vdwg.mxu0
        %7810 = vmatprep.subr.bf16.mxu0 0
        %7811 = vmatpush1.bf16.msra.mxu0 %v7617
        %7812 = vmatprep.subr.bf16.mxu0 0
        %7813 = vmatpush1.bf16.msra.mxu0 %v7618
        %7814 = vmatprep.subr.bf16.mxu0 0
        %7815 = vmatpush1.bf16.msra.mxu0 %v7619
        %7816 = vmatprep.subr.bf16.mxu0 0
        %7817 = vmatpush1.bf16.msra.mxu0 %v7620
        %7818 = vmatprep.subr.bf16.mxu0 0
        %7819 = vmatpush1.bf16.msra.mxu0 %v7621
        %7820 = vmatprep.subr.bf16.mxu0 0
        %7821 = vmatpush1.bf16.msra.mxu0 %v7622
        %7822 = vmatprep.subr.bf16.mxu0 0
        %7823 = vmatpush1.bf16.msra.mxu0 %v7623
        %7824 = vmatprep.subr.bf16.mxu0 0
        %7825 = vmatpush1.bf16.msra.mxu0 %v7624
        %7826 = vmatprep.subr.bf16.mxu0 0
        %7827 = vmatpush1.bf16.msra.mxu0 0
        %7828 = vmatprep.subr.bf16.mxu0 0
        %7829 = vmatpush1.bf16.msra.mxu0 0
        %7830 = vmatprep.subr.bf16.mxu0 0
        %7831 = vmatpush1.bf16.msra.mxu0 0
        %7832 = vmatprep.subr.bf16.mxu0 0
        %7833 = vmatpush1.bf16.msra.mxu0 0
        %7834 = vmatprep.subr.bf16.mxu0 0
        %7835 = vmatpush1.bf16.msra.mxu0 0
        %7836 = vmatprep.subr.bf16.mxu0 0
        %7837 = vmatpush1.bf16.msra.mxu0 0
        %7838 = vmatprep.subr.bf16.mxu0 0
        %7839 = vmatpush1.bf16.msra.mxu0 0
        %7840 = vmatprep.subr.bf16.mxu0 0
        %7841 = vmatpush1.bf16.msra.mxu0 0
        %7842 = vmatprep.mubr.bf16.mxu0 0
        %7843 = vmatmul.mubr.bf16.gmra.mrb[0].mxu0 %v7410
        %v7844 = vpop.f32.mrb[0].mxu0
        %v7845 = vadd.f32 %v7684, %v7844
        %v7846 = vpop.f32.mrb[0].mxu0
        %v7847 = vpop.f32.mrb[0].mxu0
        %v7848 = vadd.f32 %v7687, %v7847
        %v7849 = vpop.f32.mrb[0].mxu0
        %7850 = vmatprep.mubr.bf16.mxu0 0
        %7851 = vmatmul.mubr.bf16.gmra.mrb[0].mxu0 %v7413
        %v7852 = vpop.f32.mrb[0].mxu0
        %v7853 = vadd.f32 %v7692, %v7852
        %v7854 = vpop.f32.mrb[0].mxu0
        %v7855 = vpop.f32.mrb[0].mxu0
        %v7856 = vadd.f32 %v7695, %v7855
        %v7857 = vpop.f32.mrb[0].mxu0
        %7858 = vmatprep.mubr.bf16.mxu0 0
        %7859 = vmatmul.mubr.bf16.gmra.mrb[0].mxu0 %v7416
        %v7860 = vpop.f32.mrb[0].mxu0
        %v7861 = vadd.f32 %v7700, %v7860
        %v7862 = vpop.f32.mrb[0].mxu0
        %v7863 = vpop.f32.mrb[0].mxu0
        %v7864 = vadd.f32 %v7703, %v7863
        %v7865 = vpop.f32.mrb[0].mxu0
        %7866 = vmatprep.mubr.bf16.mxu0 0
        %7867 = vmatmul.mubr.bf16.gmra.mrb[0].mxu0 %v7419
        %v7868 = vpop.f32.mrb[0].mxu0
        %v7869 = vadd.f32 %v7708, %v7868
        %v7870 = vpop.f32.mrb[0].mxu0
        %v7871 = vpop.f32.mrb[0].mxu0
        %v7872 = vadd.f32 %v7711, %v7871
        %v7873 = vpop.f32.mrb[0].mxu0
        %7874 = vmatprep.mubr.bf16.mxu0 0
        %7875 = vmatmul.mubr.bf16.gmra.mrb[0].mxu0 %v7422
        %v7876 = vpop.f32.mrb[0].mxu0
        %v7877 = vadd.f32 %v7716, %v7876
        %v7878 = vpop.f32.mrb[0].mxu0
        %v7879 = vpop.f32.mrb[0].mxu0
        %v7880 = vadd.f32 %v7719, %v7879
        %v7881 = vpop.f32.mrb[0].mxu0
        %7882 = vmatprep.mubr.bf16.mxu0 0
        %7883 = vmatmul.mubr.bf16.gmra.mrb[0].mxu0 %v7425
        %v7884 = vpop.f32.mrb[0].mxu0
        %v7885 = vadd.f32 %v7724, %v7884
        %v7886 = vpop.f32.mrb[0].mxu0
        %v7887 = vpop.f32.mrb[0].mxu0
        %v7888 = vadd.f32 %v7727, %v7887
        %v7889 = vpop.f32.mrb[0].mxu0
        %7890 = vmatprep.mubr.bf16.mxu0 0
        %7891 = vmatmul.mubr.bf16.gmra.mrb[0].mxu0 %v7428
        %v7892 = vpop.f32.mrb[0].mxu0
        %v7893 = vadd.f32 %v7732, %v7892
        %v7894 = vpop.f32.mrb[0].mxu0
        %v7895 = vpop.f32.mrb[0].mxu0
        %v7896 = vadd.f32 %v7735, %v7895
        %v7897 = vpop.f32.mrb[0].mxu0
        %7898 = vmatprep.mubr.bf16.mxu0 0
        %7899 = vmatmul.mubr.bf16.gmra.mrb[0].mxu0 %v7431
        %v7900 = vpop.f32.mrb[0].mxu0
        %v7901 = vadd.f32 %v7740, %v7900
        %v7902 = vpop.f32.mrb[0].mxu0
        %v7903 = vpop.f32.mrb[0].mxu0
        %v7904 = vadd.f32 %v7743, %v7903
        %v7905 = vpop.f32.mrb[0].mxu0
        %7906 = vmatprep.mubr.bf16.mxu0 0
        %7907 = vmatmul.mubr.bf16.gmra.mrb[0].mxu0 %v7434
        %v7908 = vpop.f32.mrb[0].mxu0
        %v7909 = vadd.f32 %v7748, %v7908
        %v7910 = vpop.f32.mrb[0].mxu0
        %v7911 = vpop.f32.mrb[0].mxu0
        %v7912 = vadd.f32 %v7751, %v7911
        %v7913 = vpop.f32.mrb[0].mxu0
        %7914 = vmatprep.mubr.bf16.mxu0 0
        %7915 = vmatmul.mubr.bf16.gmra.mrb[0].mxu0 %v7437
        %v7916 = vpop.f32.mrb[0].mxu0
        %v7917 = vadd.f32 %v7756, %v7916
        %v7918 = vpop.f32.mrb[0].mxu0
        %v7919 = vpop.f32.mrb[0].mxu0
        %v7920 = vadd.f32 %v7759, %v7919
        %v7921 = vpop.f32.mrb[0].mxu0
        %7922 = vmatprep.mubr.bf16.mxu0 0
        %7923 = vmatmul.mubr.bf16.gmra.mrb[0].mxu0 %v7440
        %v7924 = vpop.f32.mrb[0].mxu0
        %v7925 = vadd.f32 %v7764, %v7924
        %v7926 = vpop.f32.mrb[0].mxu0
        %v7927 = vpop.f32.mrb[0].mxu0
        %v7928 = vadd.f32 %v7767, %v7927
        %v7929 = vpop.f32.mrb[0].mxu0
        %7930 = vmatprep.mubr.bf16.mxu0 0
        %7931 = vmatmul.mubr.bf16.gmra.mrb[0].mxu0 %v7443
        %v7932 = vpop.f32.mrb[0].mxu0
        %v7933 = vadd.f32 %v7772, %v7932
        %v7934 = vpop.f32.mrb[0].mxu0
        %v7935 = vpop.f32.mrb[0].mxu0
        %v7936 = vadd.f32 %v7775, %v7935
        %v7937 = vpop.f32.mrb[0].mxu0
        %7938 = vmatprep.mubr.bf16.mxu0 0
        %7939 = vmatmul.mubr.bf16.gmra.mrb[0].mxu0 %v7446
        %v7940 = vpop.f32.mrb[0].mxu0
        %v7941 = vadd.f32 %v7780, %v7940
        %v7942 = vpop.f32.mrb[0].mxu0
        %v7943 = vpop.f32.mrb[0].mxu0
        %v7944 = vadd.f32 %v7783, %v7943
        %v7945 = vpop.f32.mrb[0].mxu0
        %7946 = vmatprep.mubr.bf16.mxu0 0
        %7947 = vmatmul.mubr.bf16.gmra.mrb[0].mxu0 %v7449
        %v7948 = vpop.f32.mrb[0].mxu0
        %v7949 = vadd.f32 %v7788, %v7948
        %v7950 = vpop.f32.mrb[0].mxu0
        %v7951 = vpop.f32.mrb[0].mxu0
        %v7952 = vadd.f32 %v7791, %v7951
        %v7953 = vpop.f32.mrb[0].mxu0
        %7954 = vmatprep.mubr.bf16.mxu0 0
        %7955 = vmatmul.mubr.bf16.gmra.mrb[0].mxu0 %v7452
        %v7956 = vpop.f32.mrb[0].mxu0
        %v7957 = vadd.f32 %v7796, %v7956
        %v7958 = vpop.f32.mrb[0].mxu0
        %v7959 = vpop.f32.mrb[0].mxu0
        %v7960 = vadd.f32 %v7799, %v7959
        %v7961 = vpop.f32.mrb[0].mxu0
        %7962 = vmatprep.mubr.bf16.mxu0 0
        %7963 = vmatmul.mubr.bf16.gmra.mrb[0].mxu0 %v7455
        %v7964 = vpop.f32.mrb[0].mxu0
        %v7965 = vadd.f32 %v7804, %v7964
        %v7966 = vpop.f32.mrb[0].mxu0
        %v7967 = vpop.f32.mrb[0].mxu0
        %v7968 = vadd.f32 %v7807, %v7967
        %v7969 = vpop.f32.mrb[0].mxu0
        %7970 = vdwg.mxu0
        %v8019 = vunpack.c.l.b16 %v6560
        %v8020 = vunpack.c.l.b16 %v6561
        %v8021 = vunpack.c.l.b16 %v6562
        %v8022 = vunpack.c.l.b16 %v6563
        %v8023 = vunpack.c.l.b16 %v6564
        %v8024 = vunpack.c.l.b16 %v6565
        %v8025 = vunpack.c.l.b16 %v6566
        %v8026 = vunpack.c.l.b16 %v6567
        %v8027 = vunpack.c.l.b16 %v6568
        %v8028 = vunpack.c.l.b16 %v6569
        %v8029 = vunpack.c.l.b16 %v6570
        %v8030 = vunpack.c.l.b16 %v6571
        %v8031 = vunpack.c.l.b16 %v6572
        %v8032 = vunpack.c.l.b16 %v6573
        %v8033 = vunpack.c.l.b16 %v6574
        %v8034 = vunpack.c.l.b16 %v6575
        %v8035 = vunpack.c.l.b16 %v6576
        %v8036 = vunpack.c.l.b16 %v6577
        %v8037 = vunpack.c.l.b16 %v6578
        %v8038 = vunpack.c.l.b16 %v6579
        %v8039 = vunpack.c.l.b16 %v6580
        %v8040 = vunpack.c.l.b16 %v6581
        %v8041 = vunpack.c.l.b16 %v6582
        %v8042 = vunpack.c.l.b16 %v6583
        %v8043 = vunpack.c.l.b16 %v6584
        %v8044 = vunpack.c.l.b16 %v6585
        %v8045 = vunpack.c.l.b16 %v6586
        %v8046 = vunpack.c.l.b16 %v6587
        %v8047 = vunpack.c.l.b16 %v6588
        %v8048 = vunpack.c.l.b16 %v6589
        %v8049 = vunpack.c.l.b16 %v6590
        %v8050 = vunpack.c.l.b16 %v6591
        %v8051 = vunpack.c.l.b16 %v6592
        %v8052 = vunpack.c.l.b16 %v6593
        %v8053 = vunpack.c.l.b16 %v6594
        %v8054 = vunpack.c.l.b16 %v6595
        %v8055 = vunpack.c.l.b16 %v6596
        %v8056 = vunpack.c.l.b16 %v6597
        %v8057 = vunpack.c.l.b16 %v6598
        %v8058 = vunpack.c.l.b16 %v6599
        %v8059 = vunpack.c.l.b16 %v6600
        %v8060 = vunpack.c.l.b16 %v6601
        %v8061 = vunpack.c.l.b16 %v6602
        %v8062 = vunpack.c.l.b16 %v6603
        %v8063 = vunpack.c.l.b16 %v6604
        %v8064 = vunpack.c.l.b16 %v6605
        %v8065 = vunpack.c.l.b16 %v6606
        %v8066 = vunpack.c.l.b16 %v6607
        %v8067 = vpack.c.b16 %v8020, %v8019
        %v8068 = vpack.c.b16 %v8022, %v8021
        %v8069 = vpack.c.b16 %v8024, %v8023
        %v8070 = vpack.c.b16 %v8026, %v8025
        %v8071 = vpack.c.b16 %v8028, %v8027
        %v8072 = vpack.c.b16 %v8030, %v8029
        %v8073 = vpack.c.b16 %v8032, %v8031
        %v8074 = vpack.c.b16 %v8034, %v8033
        %v8075 = vpack.c.b16 %v8036, %v8035
        %v8076 = vpack.c.b16 %v8038, %v8037
        %v8077 = vpack.c.b16 %v8040, %v8039
        %v8078 = vpack.c.b16 %v8042, %v8041
        %v8079 = vpack.c.b16 %v8044, %v8043
        %v8080 = vpack.c.b16 %v8046, %v8045
        %v8081 = vpack.c.b16 %v8048, %v8047
        %v8082 = vpack.c.b16 %v8050, %v8049
        %v8083 = vpack.c.b16 %v8052, %v8051
        %v8084 = vpack.c.b16 %v8054, %v8053
        %v8085 = vpack.c.b16 %v8056, %v8055
        %v8086 = vpack.c.b16 %v8058, %v8057
        %v8087 = vpack.c.b16 %v8060, %v8059
        %v8088 = vpack.c.b16 %v8062, %v8061
        %v8089 = vpack.c.b16 %v8064, %v8063
        %v8090 = vpack.c.b16 %v8066, %v8065
        %8115 = vmatprep.subr.bf16.mxu0 0
        %8116 = vmatpush1.bf16.msra.mxu0 %v8067
        %8117 = vmatprep.subr.bf16.mxu0 0
        %8118 = vmatpush1.bf16.msra.mxu0 %v8068
        %8119 = vmatprep.subr.bf16.mxu0 0
        %8120 = vmatpush1.bf16.msra.mxu0 %v8069
        %8121 = vmatprep.subr.bf16.mxu0 0
        %8122 = vmatpush1.bf16.msra.mxu0 %v8070
        %8123 = vmatprep.subr.bf16.mxu0 0
        %8124 = vmatpush1.bf16.msra.mxu0 %v8071
        %8125 = vmatprep.subr.bf16.mxu0 0
        %8126 = vmatpush1.bf16.msra.mxu0 %v8072
        %8127 = vmatprep.subr.bf16.mxu0 0
        %8128 = vmatpush1.bf16.msra.mxu0 %v8073
        %8129 = vmatprep.subr.bf16.mxu0 0
        %8130 = vmatpush1.bf16.msra.mxu0 %v8074
        %8131 = vmatprep.subr.bf16.mxu0 0
        %8132 = vmatpush1.bf16.msra.mxu0 %v8075
        %8133 = vmatprep.subr.bf16.mxu0 0
        %8134 = vmatpush1.bf16.msra.mxu0 %v8076
        %8135 = vmatprep.subr.bf16.mxu0 0
        %8136 = vmatpush1.bf16.msra.mxu0 %v8077
        %8137 = vmatprep.subr.bf16.mxu0 0
        %8138 = vmatpush1.bf16.msra.mxu0 %v8078
        %8139 = vmatprep.subr.bf16.mxu0 0
        %8140 = vmatpush1.bf16.msra.mxu0 %v8079
        %8141 = vmatprep.subr.bf16.mxu0 0
        %8142 = vmatpush1.bf16.msra.mxu0 %v8080
        %8143 = vmatprep.subr.bf16.mxu0 0
        %8144 = vmatpush1.bf16.msra.mxu0 %v8081
        %8145 = vmatprep.subr.bf16.mxu0 0
        %8146 = vmatpush1.bf16.msra.mxu0 %v8082
        %8147 = vmatprep.mubr.bf16.mxu0 %v6513
        %8148 = vmatmul.mubr.bf16.gmra.mrb[0].mxu0 %v6512
        %v8149 = vpop.f32.mrb[0].mxu0
        %v8150 = vadd.f32 %v7845, %v8149
        %v8151 = vpop.f32.mrb[0].mxu0
        %v8152 = vpop.f32.mrb[0].mxu0
        %v8153 = vadd.f32 %v7848, %v8152
        %v8154 = vpop.f32.mrb[0].mxu0
        %8155 = vmatprep.mubr.bf16.mxu0 %v6516
        %8156 = vmatmul.mubr.bf16.gmra.mrb[0].mxu0 %v6515
        %v8157 = vpop.f32.mrb[0].mxu0
        %v8158 = vadd.f32 %v7853, %v8157
        %v8159 = vpop.f32.mrb[0].mxu0
        %v8160 = vpop.f32.mrb[0].mxu0
        %v8161 = vadd.f32 %v7856, %v8160
        %v8162 = vpop.f32.mrb[0].mxu0
        %8163 = vmatprep.mubr.bf16.mxu0 %v6519
        %8164 = vmatmul.mubr.bf16.gmra.mrb[0].mxu0 %v6518
        %v8165 = vpop.f32.mrb[0].mxu0
        %v8166 = vadd.f32 %v7861, %v8165
        %v8167 = vpop.f32.mrb[0].mxu0
        %v8168 = vpop.f32.mrb[0].mxu0
        %v8169 = vadd.f32 %v7864, %v8168
        %v8170 = vpop.f32.mrb[0].mxu0
        %8171 = vmatprep.mubr.bf16.mxu0 %v6522
        %8172 = vmatmul.mubr.bf16.gmra.mrb[0].mxu0 %v6521
        %v8173 = vpop.f32.mrb[0].mxu0
        %v8174 = vadd.f32 %v7869, %v8173
        %v8175 = vpop.f32.mrb[0].mxu0
        %v8176 = vpop.f32.mrb[0].mxu0
        %v8177 = vadd.f32 %v7872, %v8176
        %v8178 = vpop.f32.mrb[0].mxu0
        %8179 = vmatprep.mubr.bf16.mxu0 %v6525
        %8180 = vmatmul.mubr.bf16.gmra.mrb[0].mxu0 %v6524
        %v8181 = vpop.f32.mrb[0].mxu0
        %v8182 = vadd.f32 %v7877, %v8181
        %v8183 = vpop.f32.mrb[0].mxu0
        %v8184 = vpop.f32.mrb[0].mxu0
        %v8185 = vadd.f32 %v7880, %v8184
        %v8186 = vpop.f32.mrb[0].mxu0
        %8187 = vmatprep.mubr.bf16.mxu0 %v6528
        %8188 = vmatmul.mubr.bf16.gmra.mrb[0].mxu0 %v6527
        %v8189 = vpop.f32.mrb[0].mxu0
        %v8190 = vadd.f32 %v7885, %v8189
        %v8191 = vpop.f32.mrb[0].mxu0
        %v8192 = vpop.f32.mrb[0].mxu0
        %v8193 = vadd.f32 %v7888, %v8192
        %v8194 = vpop.f32.mrb[0].mxu0
        %8195 = vmatprep.mubr.bf16.mxu0 %v6531
        %8196 = vmatmul.mubr.bf16.gmra.mrb[0].mxu0 %v6530
        %v8197 = vpop.f32.mrb[0].mxu0
        %v8198 = vadd.f32 %v7893, %v8197
        %v8199 = vpop.f32.mrb[0].mxu0
        %v8200 = vpop.f32.mrb[0].mxu0
        %v8201 = vadd.f32 %v7896, %v8200
        %v8202 = vpop.f32.mrb[0].mxu0
        %8203 = vmatprep.mubr.bf16.mxu0 %v6534
        %8204 = vmatmul.mubr.bf16.gmra.mrb[0].mxu0 %v6533
        %v8205 = vpop.f32.mrb[0].mxu0
        %v8206 = vadd.f32 %v7901, %v8205
        %v8207 = vpop.f32.mrb[0].mxu0
        %v8208 = vpop.f32.mrb[0].mxu0
        %v8209 = vadd.f32 %v7904, %v8208
        %v8210 = vpop.f32.mrb[0].mxu0
        %8211 = vmatprep.mubr.bf16.mxu0 %v6537
        %8212 = vmatmul.mubr.bf16.gmra.mrb[0].mxu0 %v6536
        %v8213 = vpop.f32.mrb[0].mxu0
        %v8214 = vadd.f32 %v7909, %v8213
        %v8215 = vpop.f32.mrb[0].mxu0
        %v8216 = vpop.f32.mrb[0].mxu0
        %v8217 = vadd.f32 %v7912, %v8216
        %v8218 = vpop.f32.mrb[0].mxu0
        %8219 = vmatprep.mubr.bf16.mxu0 %v6540
        %8220 = vmatmul.mubr.bf16.gmra.mrb[0].mxu0 %v6539
        %v8221 = vpop.f32.mrb[0].mxu0
        %v8222 = vadd.f32 %v7917, %v8221
        %v8223 = vpop.f32.mrb[0].mxu0
        %v8224 = vpop.f32.mrb[0].mxu0
        %v8225 = vadd.f32 %v7920, %v8224
        %v8226 = vpop.f32.mrb[0].mxu0
        %8227 = vmatprep.mubr.bf16.mxu0 %v6543
        %8228 = vmatmul.mubr.bf16.gmra.mrb[0].mxu0 %v6542
        %v8229 = vpop.f32.mrb[0].mxu0
        %v8230 = vadd.f32 %v7925, %v8229
        %v8231 = vpop.f32.mrb[0].mxu0
        %v8232 = vpop.f32.mrb[0].mxu0
        %v8233 = vadd.f32 %v7928, %v8232
        %v8234 = vpop.f32.mrb[0].mxu0
        %8235 = vmatprep.mubr.bf16.mxu0 %v6546
        %8236 = vmatmul.mubr.bf16.gmra.mrb[0].mxu0 %v6545
        %v8237 = vpop.f32.mrb[0].mxu0
        %v8238 = vadd.f32 %v7933, %v8237
        %v8239 = vpop.f32.mrb[0].mxu0
        %v8240 = vpop.f32.mrb[0].mxu0
        %v8241 = vadd.f32 %v7936, %v8240
        %v8242 = vpop.f32.mrb[0].mxu0
        %8243 = vmatprep.mubr.bf16.mxu0 %v6549
        %8244 = vmatmul.mubr.bf16.gmra.mrb[0].mxu0 %v6548
        %v8245 = vpop.f32.mrb[0].mxu0
        %v8246 = vadd.f32 %v7941, %v8245
        %v8247 = vpop.f32.mrb[0].mxu0
        %v8248 = vpop.f32.mrb[0].mxu0
        %v8249 = vadd.f32 %v7944, %v8248
        %v8250 = vpop.f32.mrb[0].mxu0
        %8251 = vmatprep.mubr.bf16.mxu0 %v6552
        %8252 = vmatmul.mubr.bf16.gmra.mrb[0].mxu0 %v6551
        %v8253 = vpop.f32.mrb[0].mxu0
        %v8254 = vadd.f32 %v7949, %v8253
        %v8255 = vpop.f32.mrb[0].mxu0
        %v8256 = vpop.f32.mrb[0].mxu0
        %v8257 = vadd.f32 %v7952, %v8256
        %v8258 = vpop.f32.mrb[0].mxu0
        %8259 = vmatprep.mubr.bf16.mxu0 %v6555
        %8260 = vmatmul.mubr.bf16.gmra.mrb[0].mxu0 %v6554
        %v8261 = vpop.f32.mrb[0].mxu0
        %v8262 = vadd.f32 %v7957, %v8261
        %v8263 = vpop.f32.mrb[0].mxu0
        %v8264 = vpop.f32.mrb[0].mxu0
        %v8265 = vadd.f32 %v7960, %v8264
        %v8266 = vpop.f32.mrb[0].mxu0
        %8267 = vmatprep.mubr.bf16.mxu0 %v6558
        %8268 = vmatmul.mubr.bf16.gmra.mrb[0].mxu0 %v6557
        %v8269 = vpop.f32.mrb[0].mxu0
        %v8270 = vadd.f32 %v7965, %v8269
        %v8271 = vpop.f32.mrb[0].mxu0
        %v8272 = vpop.f32.mrb[0].mxu0
        %v8273 = vadd.f32 %v7968, %v8272
        %v8274 = vpop.f32.mrb[0].mxu0
        %8275 = vdwg.mxu0
        %8276 = vmatprep.subr.bf16.mxu0 0
        %8277 = vmatpush1.bf16.msra.mxu0 %v8083
        %8278 = vmatprep.subr.bf16.mxu0 0
        %8279 = vmatpush1.bf16.msra.mxu0 %v8084
        %8280 = vmatprep.subr.bf16.mxu0 0
        %8281 = vmatpush1.bf16.msra.mxu0 %v8085
        %8282 = vmatprep.subr.bf16.mxu0 0
        %8283 = vmatpush1.bf16.msra.mxu0 %v8086
        %8284 = vmatprep.subr.bf16.mxu0 0
        %8285 = vmatpush1.bf16.msra.mxu0 %v8087
        %8286 = vmatprep.subr.bf16.mxu0 0
        %8287 = vmatpush1.bf16.msra.mxu0 %v8088
        %8288 = vmatprep.subr.bf16.mxu0 0
        %8289 = vmatpush1.bf16.msra.mxu0 %v8089
        %8290 = vmatprep.subr.bf16.mxu0 0
        %8291 = vmatpush1.bf16.msra.mxu0 %v8090
        %8292 = vmatprep.subr.bf16.mxu0 0
        %8293 = vmatpush1.bf16.msra.mxu0 0
        %8294 = vmatprep.subr.bf16.mxu0 0
        %8295 = vmatpush1.bf16.msra.mxu0 0
        %8296 = vmatprep.subr.bf16.mxu0 0
        %8297 = vmatpush1.bf16.msra.mxu0 0
        %8298 = vmatprep.subr.bf16.mxu0 0
        %8299 = vmatpush1.bf16.msra.mxu0 0
        %8300 = vmatprep.subr.bf16.mxu0 0
        %8301 = vmatpush1.bf16.msra.mxu0 0
        %8302 = vmatprep.subr.bf16.mxu0 0
        %8303 = vmatpush1.bf16.msra.mxu0 0
        %8304 = vmatprep.subr.bf16.mxu0 0
        %8305 = vmatpush1.bf16.msra.mxu0 0
        %8306 = vmatprep.subr.bf16.mxu0 0
        %8307 = vmatpush1.bf16.msra.mxu0 0
        %8308 = vmatprep.mubr.bf16.mxu0 0
        %8309 = vmatmul.mubr.bf16.gmra.mrb[0].mxu0 %v6514
        %v8310 = vpop.f32.mrb[0].mxu0
        %v8311 = vadd.f32 %v8150, %v8310
        %v8312 = vpop.f32.mrb[0].mxu0
        %v8313 = vpop.f32.mrb[0].mxu0
        %v8314 = vadd.f32 %v8153, %v8313
        %v8315 = vpop.f32.mrb[0].mxu0
        %8316 = vmatprep.mubr.bf16.mxu0 0
        %8317 = vmatmul.mubr.bf16.gmra.mrb[0].mxu0 %v6517
        %v8318 = vpop.f32.mrb[0].mxu0
        %v8319 = vadd.f32 %v8158, %v8318
        %v8320 = vpop.f32.mrb[0].mxu0
        %v8321 = vpop.f32.mrb[0].mxu0
        %v8322 = vadd.f32 %v8161, %v8321
        %v8323 = vpop.f32.mrb[0].mxu0
        %8324 = vmatprep.mubr.bf16.mxu0 0
        %8325 = vmatmul.mubr.bf16.gmra.mrb[0].mxu0 %v6520
        %v8326 = vpop.f32.mrb[0].mxu0
        %v8327 = vadd.f32 %v8166, %v8326
        %v8328 = vpop.f32.mrb[0].mxu0
        %v8329 = vpop.f32.mrb[0].mxu0
        %v8330 = vadd.f32 %v8169, %v8329
        %v8331 = vpop.f32.mrb[0].mxu0
        %8332 = vmatprep.mubr.bf16.mxu0 0
        %8333 = vmatmul.mubr.bf16.gmra.mrb[0].mxu0 %v6523
        %v8334 = vpop.f32.mrb[0].mxu0
        %v8335 = vadd.f32 %v8174, %v8334
        %v8336 = vpop.f32.mrb[0].mxu0
        %v8337 = vpop.f32.mrb[0].mxu0
        %v8338 = vadd.f32 %v8177, %v8337
        %v8339 = vpop.f32.mrb[0].mxu0
        %8340 = vmatprep.mubr.bf16.mxu0 0
        %8341 = vmatmul.mubr.bf16.gmra.mrb[0].mxu0 %v6526
        %v8342 = vpop.f32.mrb[0].mxu0
        %v8343 = vadd.f32 %v8182, %v8342
        %v8344 = vpop.f32.mrb[0].mxu0
        %v8345 = vpop.f32.mrb[0].mxu0
        %v8346 = vadd.f32 %v8185, %v8345
        %v8347 = vpop.f32.mrb[0].mxu0
        %8348 = vmatprep.mubr.bf16.mxu0 0
        %8349 = vmatmul.mubr.bf16.gmra.mrb[0].mxu0 %v6529
        %v8350 = vpop.f32.mrb[0].mxu0
        %v8351 = vadd.f32 %v8190, %v8350
        %v8352 = vpop.f32.mrb[0].mxu0
        %v8353 = vpop.f32.mrb[0].mxu0
        %v8354 = vadd.f32 %v8193, %v8353
        %v8355 = vpop.f32.mrb[0].mxu0
        %8356 = vmatprep.mubr.bf16.mxu0 0
        %8357 = vmatmul.mubr.bf16.gmra.mrb[0].mxu0 %v6532
        %v8358 = vpop.f32.mrb[0].mxu0
        %v8359 = vadd.f32 %v8198, %v8358
        %v8360 = vpop.f32.mrb[0].mxu0
        %v8361 = vpop.f32.mrb[0].mxu0
        %v8362 = vadd.f32 %v8201, %v8361
        %v8363 = vpop.f32.mrb[0].mxu0
        %8364 = vmatprep.mubr.bf16.mxu0 0
        %8365 = vmatmul.mubr.bf16.gmra.mrb[0].mxu0 %v6535
        %v8366 = vpop.f32.mrb[0].mxu0
        %v8367 = vadd.f32 %v8206, %v8366
        %v8368 = vpop.f32.mrb[0].mxu0
        %v8369 = vpop.f32.mrb[0].mxu0
        %v8370 = vadd.f32 %v8209, %v8369
        %v8371 = vpop.f32.mrb[0].mxu0
        %8372 = vmatprep.mubr.bf16.mxu0 0
        %8373 = vmatmul.mubr.bf16.gmra.mrb[0].mxu0 %v6538
        %v8374 = vpop.f32.mrb[0].mxu0
        %v8375 = vadd.f32 %v8214, %v8374
        %v8376 = vpop.f32.mrb[0].mxu0
        %v8377 = vpop.f32.mrb[0].mxu0
        %v8378 = vadd.f32 %v8217, %v8377
        %v8379 = vpop.f32.mrb[0].mxu0
        %8380 = vmatprep.mubr.bf16.mxu0 0
        %8381 = vmatmul.mubr.bf16.gmra.mrb[0].mxu0 %v6541
        %v8382 = vpop.f32.mrb[0].mxu0
        %v8383 = vadd.f32 %v8222, %v8382
        %v8384 = vpop.f32.mrb[0].mxu0
        %v8385 = vpop.f32.mrb[0].mxu0
        %v8386 = vadd.f32 %v8225, %v8385
        %v8387 = vpop.f32.mrb[0].mxu0
        %8388 = vmatprep.mubr.bf16.mxu0 0
        %8389 = vmatmul.mubr.bf16.gmra.mrb[0].mxu0 %v6544
        %v8390 = vpop.f32.mrb[0].mxu0
        %v8391 = vadd.f32 %v8230, %v8390
        %v8392 = vpop.f32.mrb[0].mxu0
        %v8393 = vpop.f32.mrb[0].mxu0
        %v8394 = vadd.f32 %v8233, %v8393
        %v8395 = vpop.f32.mrb[0].mxu0
        %8396 = vmatprep.mubr.bf16.mxu0 0
        %8397 = vmatmul.mubr.bf16.gmra.mrb[0].mxu0 %v6547
        %v8398 = vpop.f32.mrb[0].mxu0
        %v8399 = vadd.f32 %v8238, %v8398
        %v8400 = vpop.f32.mrb[0].mxu0
        %v8401 = vpop.f32.mrb[0].mxu0
        %v8402 = vadd.f32 %v8241, %v8401
        %v8403 = vpop.f32.mrb[0].mxu0
        %8404 = vmatprep.mubr.bf16.mxu0 0
        %8405 = vmatmul.mubr.bf16.gmra.mrb[0].mxu0 %v6550
        %v8406 = vpop.f32.mrb[0].mxu0
        %v8407 = vadd.f32 %v8246, %v8406
        %v8408 = vpop.f32.mrb[0].mxu0
        %v8409 = vpop.f32.mrb[0].mxu0
        %v8410 = vadd.f32 %v8249, %v8409
        %v8411 = vpop.f32.mrb[0].mxu0
        %8412 = vmatprep.mubr.bf16.mxu0 0
        %8413 = vmatmul.mubr.bf16.gmra.mrb[0].mxu0 %v6553
        %v8414 = vpop.f32.mrb[0].mxu0
        %v8415 = vadd.f32 %v8254, %v8414
        %v8416 = vpop.f32.mrb[0].mxu0
        %v8417 = vpop.f32.mrb[0].mxu0
        %v8418 = vadd.f32 %v8257, %v8417
        %v8419 = vpop.f32.mrb[0].mxu0
        %8420 = vmatprep.mubr.bf16.mxu0 0
        %8421 = vmatmul.mubr.bf16.gmra.mrb[0].mxu0 %v6556
        %v8422 = vpop.f32.mrb[0].mxu0
        %v8423 = vadd.f32 %v8262, %v8422
        %v8424 = vpop.f32.mrb[0].mxu0
        %v8425 = vpop.f32.mrb[0].mxu0
        %v8426 = vadd.f32 %v8265, %v8425
        %v8427 = vpop.f32.mrb[0].mxu0
        %8428 = vmatprep.mubr.bf16.mxu0 0
        %8429 = vmatmul.mubr.bf16.gmra.mrb[0].mxu0 %v6559
        %v8430 = vpop.f32.mrb[0].mxu0
        %v8431 = vadd.f32 %v8270, %v8430
        %v8432 = vpop.f32.mrb[0].mxu0
        %v8433 = vpop.f32.mrb[0].mxu0
        %v8434 = vadd.f32 %v8273, %v8433
        %v8435 = vpop.f32.mrb[0].mxu0
        %8436 = vdwg.mxu0
        %v8437 = vld [vmem:[%s3685] sm:$0xf]
        %v8438 = vld [vmem:[%s3685 + $0x4] sm:$0xf]
        %v8439 = vld [vmem:[%s3685 + $0xc] sm:$0xf]
        %v8440 = vld [vmem:[%s3685 + $0x10] sm:$0xf]
        %v8441 = vld [vmem:[%s3685 + $0x18] sm:$0xf]
        %v8442 = vld [vmem:[%s3685 + $0x1c] sm:$0xf]
        %v8443 = vld [vmem:[%s3685 + $0x24] sm:$0xf]
        %v8444 = vld [vmem:[%s3685 + $0x28] sm:$0xf]
        %v8445 = vld [vmem:[%s3685 + $0x30] sm:$0xf]
        %v8446 = vld [vmem:[%s3685 + $0x34] sm:$0xf]
        %v8447 = vld [vmem:[%s3685 + $0x3c] sm:$0xf]
        %v8448 = vld [vmem:[%s3685 + $0x40] sm:$0xf]
        %v8449 = vld [vmem:[%s3685 + $0x48] sm:$0xf]
        %v8450 = vld [vmem:[%s3685 + $0x4c] sm:$0xf]
        %v8451 = vld [vmem:[%s3685 + $0x54] sm:$0xf]
        %v8452 = vld [vmem:[%s3685 + $0x58] sm:$0xf]
        %v8453 = vld [vmem:[%s3685 + $0x60] sm:$0xf]
        %v8454 = vld [vmem:[%s3685 + $0x64] sm:$0xf]
        %v8455 = vld [vmem:[%s3685 + $0x6c] sm:$0xf]
        %v8456 = vld [vmem:[%s3685 + $0x70] sm:$0xf]
        %v8457 = vld [vmem:[%s3685 + $0x78] sm:$0xf]
        %v8458 = vld [vmem:[%s3685 + $0x7c] sm:$0xf]
        %v8459 = vld [vmem:[%s3685 + $0x84] sm:$0xf]
        %v8460 = vld [vmem:[%s3685 + $0x88] sm:$0xf]
        %v8461 = vld [vmem:[%s3685 + $0x90] sm:$0xf]
        %v8462 = vld [vmem:[%s3685 + $0x94] sm:$0xf]
        %v8463 = vld [vmem:[%s3685 + $0x9c] sm:$0xf]
        %v8464 = vld [vmem:[%s3685 + $0xa0] sm:$0xf]
        %v8465 = vld [vmem:[%s3685 + $0xa8] sm:$0xf]
        %v8466 = vld [vmem:[%s3685 + $0xac] sm:$0xf]
        %v8467 = vld [vmem:[%s3685 + $0xb4] sm:$0xf]
        %v8468 = vld [vmem:[%s3685 + $0xb8] sm:$0xf]
        %v8501 = vunpack.c.l.b16 %v8437
        %v8502 = vunpack.c.l.b16 %v8438
        %v8503 = vunpack.c.l.b16 %v8439
        %v8504 = vunpack.c.l.b16 %v8440
        %v8505 = vunpack.c.l.b16 %v8441
        %v8506 = vunpack.c.l.b16 %v8442
        %v8507 = vunpack.c.l.b16 %v8443
        %v8508 = vunpack.c.l.b16 %v8444
        %v8509 = vunpack.c.l.b16 %v8445
        %v8510 = vunpack.c.l.b16 %v8446
        %v8511 = vunpack.c.l.b16 %v8447
        %v8512 = vunpack.c.l.b16 %v8448
        %v8513 = vunpack.c.l.b16 %v8449
        %v8514 = vunpack.c.l.b16 %v8450
        %v8515 = vunpack.c.l.b16 %v8451
        %v8516 = vunpack.c.l.b16 %v8452
        %v8517 = vunpack.c.l.b16 %v8453
        %v8518 = vunpack.c.l.b16 %v8454
        %v8519 = vunpack.c.l.b16 %v8455
        %v8520 = vunpack.c.l.b16 %v8456
        %v8521 = vunpack.c.l.b16 %v8457
        %v8522 = vunpack.c.l.b16 %v8458
        %v8523 = vunpack.c.l.b16 %v8459
        %v8524 = vunpack.c.l.b16 %v8460
        %v8525 = vunpack.c.l.b16 %v8461
        %v8526 = vunpack.c.l.b16 %v8462
        %v8527 = vunpack.c.l.b16 %v8463
        %v8528 = vunpack.c.l.b16 %v8464
        %v8529 = vunpack.c.l.b16 %v8465
        %v8530 = vunpack.c.l.b16 %v8466
        %v8531 = vunpack.c.l.b16 %v8467
        %v8532 = vunpack.c.l.b16 %v8468
        %v8533 = vpack.c.b16 %v8502, %v8501
        %v8534 = vpack.c.b16 %v8504, %v8503
        %v8535 = vpack.c.b16 %v8506, %v8505
        %v8536 = vpack.c.b16 %v8508, %v8507
        %v8537 = vpack.c.b16 %v8510, %v8509
        %v8538 = vpack.c.b16 %v8512, %v8511
        %v8539 = vpack.c.b16 %v8514, %v8513
        %v8540 = vpack.c.b16 %v8516, %v8515
        %v8541 = vpack.c.b16 %v8518, %v8517
        %v8542 = vpack.c.b16 %v8520, %v8519
        %v8543 = vpack.c.b16 %v8522, %v8521
        %v8544 = vpack.c.b16 %v8524, %v8523
        %v8545 = vpack.c.b16 %v8526, %v8525
        %v8546 = vpack.c.b16 %v8528, %v8527
        %v8547 = vpack.c.b16 %v8530, %v8529
        %v8548 = vpack.c.b16 %v8532, %v8531
        %8565 = vst [vmem:[#allocation3] sm:$0xff] %v8533
        %8566 = vst [vmem:[#allocation3 + $0x18] sm:$0xff] %v8534
        %8567 = vst [vmem:[#allocation3 + $0x30] sm:$0xff] %v8535
        %8568 = vst [vmem:[#allocation3 + $0x48] sm:$0xff] %v8536
        %8569 = vst [vmem:[#allocation3 + $0x60] sm:$0xff] %v8537
        %8570 = vst [vmem:[#allocation3 + $0x78] sm:$0xff] %v8538
        %8571 = vst [vmem:[#allocation3 + $0x90] sm:$0xff] %v8539
        %8572 = vst [vmem:[#allocation3 + $0xa8] sm:$0xff] %v8540
        %8573 = vst [vmem:[#allocation3 + $0xc0] sm:$0xff] %v8541
        %8574 = vst [vmem:[#allocation3 + $0xd8] sm:$0xff] %v8542
        %8575 = vst [vmem:[#allocation3 + $0xf0] sm:$0xff] %v8543
        %8576 = vst [vmem:[#allocation3 + $0x108] sm:$0xff] %v8544
        %8577 = vst [vmem:[#allocation3 + $0x120] sm:$0xff] %v8545
        %8578 = vst [vmem:[#allocation3 + $0x138] sm:$0xff] %v8546
        %8579 = vst [vmem:[#allocation3 + $0x150] sm:$0xff] %v8547
        %8580 = vst [vmem:[#allocation3 + $0x168] sm:$0xff] %v8548
        %v8581 = vld [vmem:[%s3685] sm:$0xf]
        %v8582 = vld [vmem:[%s3685 + $0x4] sm:$0xf]
        %v8583 = vld [vmem:[%s3685 + $0x8] sm:$0x1]
        %v8584 = vld [vmem:[%s3685 + $0xc] sm:$0xf]
        %v8585 = vld [vmem:[%s3685 + $0x10] sm:$0xf]
        %v8586 = vld [vmem:[%s3685 + $0x14] sm:$0x1]
        %v8587 = vld [vmem:[%s3685 + $0x18] sm:$0xf]
        %v8588 = vld [vmem:[%s3685 + $0x1c] sm:$0xf]
        %v8589 = vld [vmem:[%s3685 + $0x20] sm:$0x1]
        %v8590 = vld [vmem:[%s3685 + $0x24] sm:$0xf]
        %v8591 = vld [vmem:[%s3685 + $0x28] sm:$0xf]
        %v8592 = vld [vmem:[%s3685 + $0x2c] sm:$0x1]
        %v8593 = vld [vmem:[%s3685 + $0x30] sm:$0xf]
        %v8594 = vld [vmem:[%s3685 + $0x34] sm:$0xf]
        %v8595 = vld [vmem:[%s3685 + $0x38] sm:$0x1]
        %v8596 = vld [vmem:[%s3685 + $0x3c] sm:$0xf]
        %v8597 = vld [vmem:[%s3685 + $0x40] sm:$0xf]
        %v8598 = vld [vmem:[%s3685 + $0x44] sm:$0x1]
        %v8599 = vld [vmem:[%s3685 + $0x48] sm:$0xf]
        %v8600 = vld [vmem:[%s3685 + $0x4c] sm:$0xf]
        %v8601 = vld [vmem:[%s3685 + $0x50] sm:$0x1]
        %v8602 = vld [vmem:[%s3685 + $0x54] sm:$0xf]
        %v8603 = vld [vmem:[%s3685 + $0x58] sm:$0xf]
        %v8604 = vld [vmem:[%s3685 + $0x5c] sm:$0x1]
        %v8605 = vld [vmem:[%s3685 + $0x60] sm:$0xf]
        %v8606 = vld [vmem:[%s3685 + $0x64] sm:$0xf]
        %v8607 = vld [vmem:[%s3685 + $0x68] sm:$0x1]
        %v8608 = vld [vmem:[%s3685 + $0x6c] sm:$0xf]
        %v8609 = vld [vmem:[%s3685 + $0x70] sm:$0xf]
        %v8610 = vld [vmem:[%s3685 + $0x74] sm:$0x1]
        %v8611 = vld [vmem:[%s3685 + $0x78] sm:$0xf]
        %v8612 = vld [vmem:[%s3685 + $0x7c] sm:$0xf]
        %v8613 = vld [vmem:[%s3685 + $0x80] sm:$0x1]
        %v8614 = vld [vmem:[%s3685 + $0x84] sm:$0xf]
        %v8615 = vld [vmem:[%s3685 + $0x88] sm:$0xf]
        %v8616 = vld [vmem:[%s3685 + $0x8c] sm:$0x1]
        %v8617 = vld [vmem:[%s3685 + $0x90] sm:$0xf]
        %v8618 = vld [vmem:[%s3685 + $0x94] sm:$0xf]
        %v8619 = vld [vmem:[%s3685 + $0x98] sm:$0x1]
        %v8620 = vld [vmem:[%s3685 + $0x9c] sm:$0xf]
        %v8621 = vld [vmem:[%s3685 + $0xa0] sm:$0xf]
        %v8622 = vld [vmem:[%s3685 + $0xa4] sm:$0x1]
        %v8623 = vld [vmem:[%s3685 + $0xa8] sm:$0xf]
        %v8624 = vld [vmem:[%s3685 + $0xac] sm:$0xf]
        %v8625 = vld [vmem:[%s3685 + $0xb0] sm:$0x1]
        %v8626 = vld [vmem:[%s3685 + $0xb4] sm:$0xf]
        %v8627 = vld [vmem:[%s3685 + $0xb8] sm:$0xf]
        %v8628 = vld [vmem:[%s3685 + $0xbc] sm:$0x1]
        %v8677 = vunpack.c.l.b16 %v8581
        %v8678 = vunpack.c.l.b16 %v8582
        %v8679 = vunpack.c.l.b16 %v8583
        %v8680 = vunpack.c.l.b16 %v8584
        %v8681 = vunpack.c.l.b16 %v8585
        %v8682 = vunpack.c.l.b16 %v8586
        %v8683 = vunpack.c.l.b16 %v8587
        %v8684 = vunpack.c.l.b16 %v8588
        %v8685 = vunpack.c.l.b16 %v8589
        %v8686 = vunpack.c.l.b16 %v8590
        %v8687 = vunpack.c.l.b16 %v8591
        %v8688 = vunpack.c.l.b16 %v8592
        %v8689 = vunpack.c.l.b16 %v8593
        %v8690 = vunpack.c.l.b16 %v8594
        %v8691 = vunpack.c.l.b16 %v8595
        %v8692 = vunpack.c.l.b16 %v8596
        %v8693 = vunpack.c.l.b16 %v8597
        %v8694 = vunpack.c.l.b16 %v8598
        %v8695 = vunpack.c.l.b16 %v8599
        %v8696 = vunpack.c.l.b16 %v8600
        %v8697 = vunpack.c.l.b16 %v8601
        %v8698 = vunpack.c.l.b16 %v8602
        %v8699 = vunpack.c.l.b16 %v8603
        %v8700 = vunpack.c.l.b16 %v8604
        %v8701 = vunpack.c.l.b16 %v8605
        %v8702 = vunpack.c.l.b16 %v8606
        %v8703 = vunpack.c.l.b16 %v8607
        %v8704 = vunpack.c.l.b16 %v8608
        %v8705 = vunpack.c.l.b16 %v8609
        %v8706 = vunpack.c.l.b16 %v8610
        %v8707 = vunpack.c.l.b16 %v8611
        %v8708 = vunpack.c.l.b16 %v8612
        %v8709 = vunpack.c.l.b16 %v8613
        %v8710 = vunpack.c.l.b16 %v8614
        %v8711 = vunpack.c.l.b16 %v8615
        %v8712 = vunpack.c.l.b16 %v8616
        %v8713 = vunpack.c.l.b16 %v8617
        %v8714 = vunpack.c.l.b16 %v8618
        %v8715 = vunpack.c.l.b16 %v8619
        %v8716 = vunpack.c.l.b16 %v8620
        %v8717 = vunpack.c.l.b16 %v8621
        %v8718 = vunpack.c.l.b16 %v8622
        %v8719 = vunpack.c.l.b16 %v8623
        %v8720 = vunpack.c.l.b16 %v8624
        %v8721 = vunpack.c.l.b16 %v8625
        %v8722 = vunpack.c.l.b16 %v8626
        %v8723 = vunpack.c.l.b16 %v8627
        %v8724 = vunpack.c.l.b16 %v8628
        %v8725 = vpack.c.b16 %v8678, %v8677
        %v8726 = vpack.c.b16 %v8679, %v8679
        %v8727 = vpack.c.b16 %v8681, %v8680
        %v8728 = vpack.c.b16 %v8682, %v8682
        %v8729 = vpack.c.b16 %v8684, %v8683
        %v8730 = vpack.c.b16 %v8685, %v8685
        %v8731 = vpack.c.b16 %v8687, %v8686
        %v8732 = vpack.c.b16 %v8688, %v8688
        %v8733 = vpack.c.b16 %v8690, %v8689
        %v8734 = vpack.c.b16 %v8691, %v8691
        %v8735 = vpack.c.b16 %v8693, %v8692
        %v8736 = vpack.c.b16 %v8694, %v8694
        %v8737 = vpack.c.b16 %v8696, %v8695
        %v8738 = vpack.c.b16 %v8697, %v8697
        %v8739 = vpack.c.b16 %v8699, %v8698
        %v8740 = vpack.c.b16 %v8700, %v8700
        %v8741 = vpack.c.b16 %v8702, %v8701
        %v8742 = vpack.c.b16 %v8703, %v8703
        %v8743 = vpack.c.b16 %v8705, %v8704
        %v8744 = vpack.c.b16 %v8706, %v8706
        %v8745 = vpack.c.b16 %v8708, %v8707
        %v8746 = vpack.c.b16 %v8709, %v8709
        %v8747 = vpack.c.b16 %v8711, %v8710
        %v8748 = vpack.c.b16 %v8712, %v8712
        %v8749 = vpack.c.b16 %v8714, %v8713
        %v8750 = vpack.c.b16 %v8715, %v8715
        %v8751 = vpack.c.b16 %v8717, %v8716
        %v8752 = vpack.c.b16 %v8718, %v8718
        %v8753 = vpack.c.b16 %v8720, %v8719
        %v8754 = vpack.c.b16 %v8721, %v8721
        %v8755 = vpack.c.b16 %v8723, %v8722
        %v8756 = vpack.c.b16 %v8724, %v8724
        %v8758 = vshrl.u32 %v8725, 16
        %v8760 = vshll.u32 %v8725, 16
        %v8762 = vrot.slane %v8760, 1
        %v8763 = vor.u32 %v8758, %v8762
        %v8765 = vshll.u32 %v8726, 16
        %v8767 = vrot.slane %v8765, 1
        %v8768 = vsel %vm1278, %v8763, %v8767
        %v8770 = vshrl.u32 %v8727, 16
        %v8772 = vshll.u32 %v8727, 16
        %v8774 = vrot.slane %v8772, 1
        %v8775 = vor.u32 %v8770, %v8774
        %v8777 = vshll.u32 %v8728, 16
        %v8779 = vrot.slane %v8777, 1
        %v8780 = vsel %vm1278, %v8775, %v8779
        %v8782 = vshrl.u32 %v8729, 16
        %v8784 = vshll.u32 %v8729, 16
        %v8786 = vrot.slane %v8784, 1
        %v8787 = vor.u32 %v8782, %v8786
        %v8789 = vshll.u32 %v8730, 16
        %v8791 = vrot.slane %v8789, 1
        %v8792 = vsel %vm1278, %v8787, %v8791
        %v8794 = vshrl.u32 %v8731, 16
        %v8796 = vshll.u32 %v8731, 16
        %v8798 = vrot.slane %v8796, 1
        %v8799 = vor.u32 %v8794, %v8798
        %v8801 = vshll.u32 %v8732, 16
        %v8803 = vrot.slane %v8801, 1
        %v8804 = vsel %vm1278, %v8799, %v8803
        %v8806 = vshrl.u32 %v8733, 16
        %v8808 = vshll.u32 %v8733, 16
        %v8810 = vrot.slane %v8808, 1
        %v8811 = vor.u32 %v8806, %v8810
        %v8813 = vshll.u32 %v8734, 16
        %v8815 = vrot.slane %v8813, 1
        %v8816 = vsel %vm1278, %v8811, %v8815
        %v8818 = vshrl.u32 %v8735, 16
        %v8820 = vshll.u32 %v8735, 16
        %v8822 = vrot.slane %v8820, 1
        %v8823 = vor.u32 %v8818, %v8822
        %v8825 = vshll.u32 %v8736, 16
        %v8827 = vrot.slane %v8825, 1
        %v8828 = vsel %vm1278, %v8823, %v8827
        %v8830 = vshrl.u32 %v8737, 16
        %v8832 = vshll.u32 %v8737, 16
        %v8834 = vrot.slane %v8832, 1
        %v8835 = vor.u32 %v8830, %v8834
        %v8837 = vshll.u32 %v8738, 16
        %v8839 = vrot.slane %v8837, 1
        %v8840 = vsel %vm1278, %v8835, %v8839
        %v8842 = vshrl.u32 %v8739, 16
        %v8844 = vshll.u32 %v8739, 16
        %v8846 = vrot.slane %v8844, 1
        %v8847 = vor.u32 %v8842, %v8846
        %v8849 = vshll.u32 %v8740, 16
        %v8851 = vrot.slane %v8849, 1
        %v8852 = vsel %vm1278, %v8847, %v8851
        %v8854 = vshrl.u32 %v8741, 16
        %v8856 = vshll.u32 %v8741, 16
        %v8858 = vrot.slane %v8856, 1
        %v8859 = vor.u32 %v8854, %v8858
        %v8861 = vshll.u32 %v8742, 16
        %v8863 = vrot.slane %v8861, 1
        %v8864 = vsel %vm1278, %v8859, %v8863
        %v8866 = vshrl.u32 %v8743, 16
        %v8868 = vshll.u32 %v8743, 16
        %v8870 = vrot.slane %v8868, 1
        %v8871 = vor.u32 %v8866, %v8870
        %v8873 = vshll.u32 %v8744, 16
        %v8875 = vrot.slane %v8873, 1
        %v8876 = vsel %vm1278, %v8871, %v8875
        %v8878 = vshrl.u32 %v8745, 16
        %v8880 = vshll.u32 %v8745, 16
        %v8882 = vrot.slane %v8880, 1
        %v8883 = vor.u32 %v8878, %v8882
        %v8885 = vshll.u32 %v8746, 16
        %v8887 = vrot.slane %v8885, 1
        %v8888 = vsel %vm1278, %v8883, %v8887
        %v8890 = vshrl.u32 %v8747, 16
        %v8892 = vshll.u32 %v8747, 16
        %v8894 = vrot.slane %v8892, 1
        %v8895 = vor.u32 %v8890, %v8894
        %v8897 = vshll.u32 %v8748, 16
        %v8899 = vrot.slane %v8897, 1
        %v8900 = vsel %vm1278, %v8895, %v8899
        %v8902 = vshrl.u32 %v8749, 16
        %v8904 = vshll.u32 %v8749, 16
        %v8906 = vrot.slane %v8904, 1
        %v8907 = vor.u32 %v8902, %v8906
        %v8909 = vshll.u32 %v8750, 16
        %v8911 = vrot.slane %v8909, 1
        %v8912 = vsel %vm1278, %v8907, %v8911
        %v8914 = vshrl.u32 %v8751, 16
        %v8916 = vshll.u32 %v8751, 16
        %v8918 = vrot.slane %v8916, 1
        %v8919 = vor.u32 %v8914, %v8918
        %v8921 = vshll.u32 %v8752, 16
        %v8923 = vrot.slane %v8921, 1
        %v8924 = vsel %vm1278, %v8919, %v8923
        %v8926 = vshrl.u32 %v8753, 16
        %v8928 = vshll.u32 %v8753, 16
        %v8930 = vrot.slane %v8928, 1
        %v8931 = vor.u32 %v8926, %v8930
        %v8933 = vshll.u32 %v8754, 16
        %v8935 = vrot.slane %v8933, 1
        %v8936 = vsel %vm1278, %v8931, %v8935
        %v8938 = vshrl.u32 %v8755, 16
        %v8940 = vshll.u32 %v8755, 16
        %v8942 = vrot.slane %v8940, 1
        %v8943 = vor.u32 %v8938, %v8942
        %v8945 = vshll.u32 %v8756, 16
        %v8947 = vrot.slane %v8945, 1
        %v8948 = vsel %vm1278, %v8943, %v8947
        %8965 = vst [vmem:[#allocation3 + $0x8] sm:$0xff] %v8768
        %8966 = vst [vmem:[#allocation3 + $0x20] sm:$0xff] %v8780
        %8967 = vst [vmem:[#allocation3 + $0x38] sm:$0xff] %v8792
        %8968 = vst [vmem:[#allocation3 + $0x50] sm:$0xff] %v8804
        %8969 = vst [vmem:[#allocation3 + $0x68] sm:$0xff] %v8816
        %8970 = vst [vmem:[#allocation3 + $0x80] sm:$0xff] %v8828
        %8971 = vst [vmem:[#allocation3 + $0x98] sm:$0xff] %v8840
        %8972 = vst [vmem:[#allocation3 + $0xb0] sm:$0xff] %v8852
        %8973 = vst [vmem:[#allocation3 + $0xc8] sm:$0xff] %v8864
        %8974 = vst [vmem:[#allocation3 + $0xe0] sm:$0xff] %v8876
        %8975 = vst [vmem:[#allocation3 + $0xf8] sm:$0xff] %v8888
        %8976 = vst [vmem:[#allocation3 + $0x110] sm:$0xff] %v8900
        %8977 = vst [vmem:[#allocation3 + $0x128] sm:$0xff] %v8912
        %8978 = vst [vmem:[#allocation3 + $0x140] sm:$0xff] %v8924
        %8979 = vst [vmem:[#allocation3 + $0x158] sm:$0xff] %v8936
        %8980 = vst [vmem:[#allocation3 + $0x170] sm:$0xff] %v8948
        %v8981 = vld [vmem:[%s3685] sm:$0xe]
        %v8982 = vld [vmem:[%s3685 + $0x4] sm:$0xf]
        %v8983 = vld [vmem:[%s3685 + $0x8] sm:$0x1]
        %v8984 = vld [vmem:[%s3685 + $0xc] sm:$0xe]
        %v8985 = vld [vmem:[%s3685 + $0x10] sm:$0xf]
        %v8986 = vld [vmem:[%s3685 + $0x14] sm:$0x1]
        %v8987 = vld [vmem:[%s3685 + $0x18] sm:$0xe]
        %v8988 = vld [vmem:[%s3685 + $0x1c] sm:$0xf]
        %v8989 = vld [vmem:[%s3685 + $0x20] sm:$0x1]
        %v8990 = vld [vmem:[%s3685 + $0x24] sm:$0xe]
        %v8991 = vld [vmem:[%s3685 + $0x28] sm:$0xf]
        %v8992 = vld [vmem:[%s3685 + $0x2c] sm:$0x1]
        %v8993 = vld [vmem:[%s3685 + $0x30] sm:$0xe]
        %v8994 = vld [vmem:[%s3685 + $0x34] sm:$0xf]
        %v8995 = vld [vmem:[%s3685 + $0x38] sm:$0x1]
        %v8996 = vld [vmem:[%s3685 + $0x3c] sm:$0xe]
        %v8997 = vld [vmem:[%s3685 + $0x40] sm:$0xf]
        %v8998 = vld [vmem:[%s3685 + $0x44] sm:$0x1]
        %v8999 = vld [vmem:[%s3685 + $0x48] sm:$0xe]
        %v9000 = vld [vmem:[%s3685 + $0x4c] sm:$0xf]
        %v9001 = vld [vmem:[%s3685 + $0x50] sm:$0x1]
        %v9002 = vld [vmem:[%s3685 + $0x54] sm:$0xe]
        %v9003 = vld [vmem:[%s3685 + $0x58] sm:$0xf]
        %v9004 = vld [vmem:[%s3685 + $0x5c] sm:$0x1]
        %v9005 = vld [vmem:[%s3685 + $0x60] sm:$0xe]
        %v9006 = vld [vmem:[%s3685 + $0x64] sm:$0xf]
        %v9007 = vld [vmem:[%s3685 + $0x68] sm:$0x1]
        %v9008 = vld [vmem:[%s3685 + $0x6c] sm:$0xe]
        %v9009 = vld [vmem:[%s3685 + $0x70] sm:$0xf]
        %v9010 = vld [vmem:[%s3685 + $0x74] sm:$0x1]
        %v9011 = vld [vmem:[%s3685 + $0x78] sm:$0xe]
        %v9012 = vld [vmem:[%s3685 + $0x7c] sm:$0xf]
        %v9013 = vld [vmem:[%s3685 + $0x80] sm:$0x1]
        %v9014 = vld [vmem:[%s3685 + $0x84] sm:$0xe]
        %v9015 = vld [vmem:[%s3685 + $0x88] sm:$0xf]
        %v9016 = vld [vmem:[%s3685 + $0x8c] sm:$0x1]
        %v9017 = vld [vmem:[%s3685 + $0x90] sm:$0xe]
        %v9018 = vld [vmem:[%s3685 + $0x94] sm:$0xf]
        %v9019 = vld [vmem:[%s3685 + $0x98] sm:$0x1]
        %v9020 = vld [vmem:[%s3685 + $0x9c] sm:$0xe]
        %v9021 = vld [vmem:[%s3685 + $0xa0] sm:$0xf]
        %v9022 = vld [vmem:[%s3685 + $0xa4] sm:$0x1]
        %v9023 = vld [vmem:[%s3685 + $0xa8] sm:$0xe]
        %v9024 = vld [vmem:[%s3685 + $0xac] sm:$0xf]
        %v9025 = vld [vmem:[%s3685 + $0xb0] sm:$0x1]
        %v9026 = vld [vmem:[%s3685 + $0xb4] sm:$0xe]
        %v9027 = vld [vmem:[%s3685 + $0xb8] sm:$0xf]
        %v9028 = vld [vmem:[%s3685 + $0xbc] sm:$0x1]
        %v9077 = vunpack.c.l.b16 %v8981
        %v9078 = vunpack.c.l.b16 %v8982
        %v9079 = vunpack.c.l.b16 %v8983
        %v9080 = vunpack.c.l.b16 %v8984
        %v9081 = vunpack.c.l.b16 %v8985
        %v9082 = vunpack.c.l.b16 %v8986
        %v9083 = vunpack.c.l.b16 %v8987
        %v9084 = vunpack.c.l.b16 %v8988
        %v9085 = vunpack.c.l.b16 %v8989
        %v9086 = vunpack.c.l.b16 %v8990
        %v9087 = vunpack.c.l.b16 %v8991
        %v9088 = vunpack.c.l.b16 %v8992
        %v9089 = vunpack.c.l.b16 %v8993
        %v9090 = vunpack.c.l.b16 %v8994
        %v9091 = vunpack.c.l.b16 %v8995
        %v9092 = vunpack.c.l.b16 %v8996
        %v9093 = vunpack.c.l.b16 %v8997
        %v9094 = vunpack.c.l.b16 %v8998
        %v9095 = vunpack.c.l.b16 %v8999
        %v9096 = vunpack.c.l.b16 %v9000
        %v9097 = vunpack.c.l.b16 %v9001
        %v9098 = vunpack.c.l.b16 %v9002
        %v9099 = vunpack.c.l.b16 %v9003
        %v9100 = vunpack.c.l.b16 %v9004
        %v9101 = vunpack.c.l.b16 %v9005
        %v9102 = vunpack.c.l.b16 %v9006
        %v9103 = vunpack.c.l.b16 %v9007
        %v9104 = vunpack.c.l.b16 %v9008
        %v9105 = vunpack.c.l.b16 %v9009
        %v9106 = vunpack.c.l.b16 %v9010
        %v9107 = vunpack.c.l.b16 %v9011
        %v9108 = vunpack.c.l.b16 %v9012
        %v9109 = vunpack.c.l.b16 %v9013
        %v9110 = vunpack.c.l.b16 %v9014
        %v9111 = vunpack.c.l.b16 %v9015
        %v9112 = vunpack.c.l.b16 %v9016
        %v9113 = vunpack.c.l.b16 %v9017
        %v9114 = vunpack.c.l.b16 %v9018
        %v9115 = vunpack.c.l.b16 %v9019
        %v9116 = vunpack.c.l.b16 %v9020
        %v9117 = vunpack.c.l.b16 %v9021
        %v9118 = vunpack.c.l.b16 %v9022
        %v9119 = vunpack.c.l.b16 %v9023
        %v9120 = vunpack.c.l.b16 %v9024
        %v9121 = vunpack.c.l.b16 %v9025
        %v9122 = vunpack.c.l.b16 %v9026
        %v9123 = vunpack.c.l.b16 %v9027
        %v9124 = vunpack.c.l.b16 %v9028
        %v9125 = vpack.c.b16 %v9078, %v9077
        %v9126 = vpack.c.b16 %v9079, %v9079
        %v9127 = vpack.c.b16 %v9081, %v9080
        %v9128 = vpack.c.b16 %v9082, %v9082
        %v9129 = vpack.c.b16 %v9084, %v9083
        %v9130 = vpack.c.b16 %v9085, %v9085
        %v9131 = vpack.c.b16 %v9087, %v9086
        %v9132 = vpack.c.b16 %v9088, %v9088
        %v9133 = vpack.c.b16 %v9090, %v9089
        %v9134 = vpack.c.b16 %v9091, %v9091
        %v9135 = vpack.c.b16 %v9093, %v9092
        %v9136 = vpack.c.b16 %v9094, %v9094
        %v9137 = vpack.c.b16 %v9096, %v9095
        %v9138 = vpack.c.b16 %v9097, %v9097
        %v9139 = vpack.c.b16 %v9099, %v9098
        %v9140 = vpack.c.b16 %v9100, %v9100
        %v9141 = vpack.c.b16 %v9102, %v9101
        %v9142 = vpack.c.b16 %v9103, %v9103
        %v9143 = vpack.c.b16 %v9105, %v9104
        %v9144 = vpack.c.b16 %v9106, %v9106
        %v9145 = vpack.c.b16 %v9108, %v9107
        %v9146 = vpack.c.b16 %v9109, %v9109
        %v9147 = vpack.c.b16 %v9111, %v9110
        %v9148 = vpack.c.b16 %v9112, %v9112
        %v9149 = vpack.c.b16 %v9114, %v9113
        %v9150 = vpack.c.b16 %v9115, %v9115
        %v9151 = vpack.c.b16 %v9117, %v9116
        %v9152 = vpack.c.b16 %v9118, %v9118
        %v9153 = vpack.c.b16 %v9120, %v9119
        %v9154 = vpack.c.b16 %v9121, %v9121
        %v9155 = vpack.c.b16 %v9123, %v9122
        %v9156 = vpack.c.b16 %v9124, %v9124
        %v9157 = vrot.slane %v9125, 1
        %v9158 = vrot.slane %v9126, 1
        %v9159 = vsel %vm1679, %v9157, %v9158
        %v9160 = vrot.slane %v9127, 1
        %v9161 = vrot.slane %v9128, 1
        %v9162 = vsel %vm1679, %v9160, %v9161
        %v9163 = vrot.slane %v9129, 1
        %v9164 = vrot.slane %v9130, 1
        %v9165 = vsel %vm1679, %v9163, %v9164
        %v9166 = vrot.slane %v9131, 1
        %v9167 = vrot.slane %v9132, 1
        %v9168 = vsel %vm1679, %v9166, %v9167
        %v9169 = vrot.slane %v9133, 1
        %v9170 = vrot.slane %v9134, 1
        %v9171 = vsel %vm1679, %v9169, %v9170
        %v9172 = vrot.slane %v9135, 1
        %v9173 = vrot.slane %v9136, 1
        %v9174 = vsel %vm1679, %v9172, %v9173
        %v9175 = vrot.slane %v9137, 1
        %v9176 = vrot.slane %v9138, 1
        %v9177 = vsel %vm1679, %v9175, %v9176
        %v9178 = vrot.slane %v9139, 1
        %v9179 = vrot.slane %v9140, 1
        %v9180 = vsel %vm1679, %v9178, %v9179
        %v9181 = vrot.slane %v9141, 1
        %v9182 = vrot.slane %v9142, 1
        %v9183 = vsel %vm1679, %v9181, %v9182
        %v9184 = vrot.slane %v9143, 1
        %v9185 = vrot.slane %v9144, 1
        %v9186 = vsel %vm1679, %v9184, %v9185
        %v9187 = vrot.slane %v9145, 1
        %v9188 = vrot.slane %v9146, 1
        %v9189 = vsel %vm1679, %v9187, %v9188
        %v9190 = vrot.slane %v9147, 1
        %v9191 = vrot.slane %v9148, 1
        %v9192 = vsel %vm1679, %v9190, %v9191
        %v9193 = vrot.slane %v9149, 1
        %v9194 = vrot.slane %v9150, 1
        %v9195 = vsel %vm1679, %v9193, %v9194
        %v9196 = vrot.slane %v9151, 1
        %v9197 = vrot.slane %v9152, 1
        %v9198 = vsel %vm1679, %v9196, %v9197
        %v9199 = vrot.slane %v9153, 1
        %v9200 = vrot.slane %v9154, 1
        %v9201 = vsel %vm1679, %v9199, %v9200
        %v9202 = vrot.slane %v9155, 1
        %v9203 = vrot.slane %v9156, 1
        %v9204 = vsel %vm1679, %v9202, %v9203
        %9221 = vst [vmem:[#allocation3 + $0x10] sm:$0xff] %v9159
        %9222 = vst [vmem:[#allocation3 + $0x28] sm:$0xff] %v9162
        %9223 = vst [vmem:[#allocation3 + $0x40] sm:$0xff] %v9165
        %9224 = vst [vmem:[#allocation3 + $0x58] sm:$0xff] %v9168
        %9225 = vst [vmem:[#allocation3 + $0x70] sm:$0xff] %v9171
        %9226 = vst [vmem:[#allocation3 + $0x88] sm:$0xff] %v9174
        %9227 = vst [vmem:[#allocation3 + $0xa0] sm:$0xff] %v9177
        %9228 = vst [vmem:[#allocation3 + $0xb8] sm:$0xff] %v9180
        %9229 = vst [vmem:[#allocation3 + $0xd0] sm:$0xff] %v9183
        %9230 = vst [vmem:[#allocation3 + $0xe8] sm:$0xff] %v9186
        %9231 = vst [vmem:[#allocation3 + $0x100] sm:$0xff] %v9189
        %9232 = vst [vmem:[#allocation3 + $0x118] sm:$0xff] %v9192
        %9233 = vst [vmem:[#allocation3 + $0x130] sm:$0xff] %v9195
        %9234 = vst [vmem:[#allocation3 + $0x148] sm:$0xff] %v9198
        %9235 = vst [vmem:[#allocation3 + $0x160] sm:$0xff] %v9201
        %9236 = vst [vmem:[#allocation3 + $0x178] sm:$0xff] %v9204
        %v9237 = vld [vmem:[#allocation3] sm:$0xff]
        %v9238 = vld [vmem:[#allocation3 + $0x8] sm:$0xff]
        %v9239 = vld [vmem:[#allocation3 + $0x10] sm:$0xff]
        %v9240 = vld [vmem:[#allocation3 + $0x18] sm:$0xff]
        %v9241 = vld [vmem:[#allocation3 + $0x20] sm:$0xff]
        %v9242 = vld [vmem:[#allocation3 + $0x28] sm:$0xff]
        %v9243 = vld [vmem:[#allocation3 + $0x30] sm:$0xff]
        %v9244 = vld [vmem:[#allocation3 + $0x38] sm:$0xff]
        %v9245 = vld [vmem:[#allocation3 + $0x40] sm:$0xff]
        %v9246 = vld [vmem:[#allocation3 + $0x48] sm:$0xff]
        %v9247 = vld [vmem:[#allocation3 + $0x50] sm:$0xff]
        %v9248 = vld [vmem:[#allocation3 + $0x58] sm:$0xff]
        %v9249 = vld [vmem:[#allocation3 + $0x60] sm:$0xff]
        %v9250 = vld [vmem:[#allocation3 + $0x68] sm:$0xff]
        %v9251 = vld [vmem:[#allocation3 + $0x70] sm:$0xff]
        %v9252 = vld [vmem:[#allocation3 + $0x78] sm:$0xff]
        %v9253 = vld [vmem:[#allocation3 + $0x80] sm:$0xff]
        %v9254 = vld [vmem:[#allocation3 + $0x88] sm:$0xff]
        %v9255 = vld [vmem:[#allocation3 + $0x90] sm:$0xff]
        %v9256 = vld [vmem:[#allocation3 + $0x98] sm:$0xff]
        %v9257 = vld [vmem:[#allocation3 + $0xa0] sm:$0xff]
        %v9258 = vld [vmem:[#allocation3 + $0xa8] sm:$0xff]
        %v9259 = vld [vmem:[#allocation3 + $0xb0] sm:$0xff]
        %v9260 = vld [vmem:[#allocation3 + $0xb8] sm:$0xff]
        %v9261 = vld [vmem:[#allocation3 + $0xc0] sm:$0xff]
        %v9262 = vld [vmem:[#allocation3 + $0xc8] sm:$0xff]
        %v9263 = vld [vmem:[#allocation3 + $0xd0] sm:$0xff]
        %v9264 = vld [vmem:[#allocation3 + $0xd8] sm:$0xff]
        %v9265 = vld [vmem:[#allocation3 + $0xe0] sm:$0xff]
        %v9266 = vld [vmem:[#allocation3 + $0xe8] sm:$0xff]
        %v9267 = vld [vmem:[#allocation3 + $0xf0] sm:$0xff]
        %v9268 = vld [vmem:[#allocation3 + $0xf8] sm:$0xff]
        %v9269 = vld [vmem:[#allocation3 + $0x100] sm:$0xff]
        %v9270 = vld [vmem:[#allocation3 + $0x108] sm:$0xff]
        %v9271 = vld [vmem:[#allocation3 + $0x110] sm:$0xff]
        %v9272 = vld [vmem:[#allocation3 + $0x118] sm:$0xff]
        %v9273 = vld [vmem:[#allocation3 + $0x120] sm:$0xff]
        %v9274 = vld [vmem:[#allocation3 + $0x128] sm:$0xff]
        %v9275 = vld [vmem:[#allocation3 + $0x130] sm:$0xff]
        %v9276 = vld [vmem:[#allocation3 + $0x138] sm:$0xff]
        %v9277 = vld [vmem:[#allocation3 + $0x140] sm:$0xff]
        %v9278 = vld [vmem:[#allocation3 + $0x148] sm:$0xff]
        %v9279 = vld [vmem:[#allocation3 + $0x150] sm:$0xff]
        %v9280 = vld [vmem:[#allocation3 + $0x158] sm:$0xff]
        %v9281 = vld [vmem:[#allocation3 + $0x160] sm:$0xff]
        %v9282 = vld [vmem:[#allocation3 + $0x168] sm:$0xff]
        %v9283 = vld [vmem:[#allocation3 + $0x170] sm:$0xff]
        %v9284 = vld [vmem:[#allocation3 + $0x178] sm:$0xff]
        %s9285 = scalar_lea.vmem [#allocation9], 384
        %v9286 = vld [vmem:[%s9285] sm:$0xf]
        %v9287 = vld [vmem:[%s9285 + $0x4] sm:$0xf]
        %v9288 = vld [vmem:[%s9285 + $0x8] sm:$0xf]
        %v9289 = vld [vmem:[%s9285 + $0xc] sm:$0xf]
        %v9290 = vld [vmem:[%s9285 + $0x10] sm:$0xf]
        %v9291 = vld [vmem:[%s9285 + $0x14] sm:$0xf]
        %v9292 = vld [vmem:[%s9285 + $0x18] sm:$0xf]
        %v9293 = vld [vmem:[%s9285 + $0x1c] sm:$0xf]
        %v9294 = vld [vmem:[%s9285 + $0x20] sm:$0xf]
        %v9295 = vld [vmem:[%s9285 + $0x24] sm:$0xf]
        %v9296 = vld [vmem:[%s9285 + $0x28] sm:$0xf]
        %v9297 = vld [vmem:[%s9285 + $0x2c] sm:$0xf]
        %v9298 = vld [vmem:[%s9285 + $0x30] sm:$0xf]
        %v9299 = vld [vmem:[%s9285 + $0x34] sm:$0xf]
        %v9300 = vld [vmem:[%s9285 + $0x38] sm:$0xf]
        %v9301 = vld [vmem:[%s9285 + $0x3c] sm:$0xf]
        %v9302 = vld [vmem:[%s9285 + $0x40] sm:$0xf]
        %v9303 = vld [vmem:[%s9285 + $0x44] sm:$0xf]
        %v9304 = vld [vmem:[%s9285 + $0x48] sm:$0xf]
        %v9305 = vld [vmem:[%s9285 + $0x4c] sm:$0xf]
        %v9306 = vld [vmem:[%s9285 + $0x50] sm:$0xf]
        %v9307 = vld [vmem:[%s9285 + $0x54] sm:$0xf]
        %v9308 = vld [vmem:[%s9285 + $0x58] sm:$0xf]
        %v9309 = vld [vmem:[%s9285 + $0x5c] sm:$0xf]
        %v9310 = vld [vmem:[%s9285 + $0x60] sm:$0xf]
        %v9311 = vld [vmem:[%s9285 + $0x64] sm:$0xf]
        %v9312 = vld [vmem:[%s9285 + $0x68] sm:$0xf]
        %v9313 = vld [vmem:[%s9285 + $0x6c] sm:$0xf]
        %v9314 = vld [vmem:[%s9285 + $0x70] sm:$0xf]
        %v9315 = vld [vmem:[%s9285 + $0x74] sm:$0xf]
        %v9316 = vld [vmem:[%s9285 + $0x78] sm:$0xf]
        %v9317 = vld [vmem:[%s9285 + $0x7c] sm:$0xf]
        %v9318 = vld [vmem:[%s9285 + $0x80] sm:$0xf]
        %v9319 = vld [vmem:[%s9285 + $0x84] sm:$0xf]
        %v9320 = vld [vmem:[%s9285 + $0x88] sm:$0xf]
        %v9321 = vld [vmem:[%s9285 + $0x8c] sm:$0xf]
        %v9322 = vld [vmem:[%s9285 + $0x90] sm:$0xf]
        %v9323 = vld [vmem:[%s9285 + $0x94] sm:$0xf]
        %v9324 = vld [vmem:[%s9285 + $0x98] sm:$0xf]
        %v9325 = vld [vmem:[%s9285 + $0x9c] sm:$0xf]
        %v9326 = vld [vmem:[%s9285 + $0xa0] sm:$0xf]
        %v9327 = vld [vmem:[%s9285 + $0xa4] sm:$0xf]
        %v9328 = vld [vmem:[%s9285 + $0xa8] sm:$0xf]
        %v9329 = vld [vmem:[%s9285 + $0xac] sm:$0xf]
        %v9330 = vld [vmem:[%s9285 + $0xb0] sm:$0xf]
        %v9331 = vld [vmem:[%s9285 + $0xb4] sm:$0xf]
        %v9332 = vld [vmem:[%s9285 + $0xb8] sm:$0xf]
        %v9333 = vld [vmem:[%s9285 + $0xbc] sm:$0xf]
        %v9382 = vunpack.c.l.b16 %v9286
        %v9383 = vunpack.c.l.b16 %v9287
        %v9384 = vunpack.c.l.b16 %v9288
        %v9385 = vunpack.c.l.b16 %v9289
        %v9386 = vunpack.c.l.b16 %v9290
        %v9387 = vunpack.c.l.b16 %v9291
        %v9388 = vunpack.c.l.b16 %v9292
        %v9389 = vunpack.c.l.b16 %v9293
        %v9390 = vunpack.c.l.b16 %v9294
        %v9391 = vunpack.c.l.b16 %v9295
        %v9392 = vunpack.c.l.b16 %v9296
        %v9393 = vunpack.c.l.b16 %v9297
        %v9394 = vunpack.c.l.b16 %v9298
        %v9395 = vunpack.c.l.b16 %v9299
        %v9396 = vunpack.c.l.b16 %v9300
        %v9397 = vunpack.c.l.b16 %v9301
        %v9398 = vunpack.c.l.b16 %v9302
        %v9399 = vunpack.c.l.b16 %v9303
        %v9400 = vunpack.c.l.b16 %v9304
        %v9401 = vunpack.c.l.b16 %v9305
        %v9402 = vunpack.c.l.b16 %v9306
        %v9403 = vunpack.c.l.b16 %v9307
        %v9404 = vunpack.c.l.b16 %v9308
        %v9405 = vunpack.c.l.b16 %v9309
        %v9406 = vunpack.c.l.b16 %v9310
        %v9407 = vunpack.c.l.b16 %v9311
        %v9408 = vunpack.c.l.b16 %v9312
        %v9409 = vunpack.c.l.b16 %v9313
        %v9410 = vunpack.c.l.b16 %v9314
        %v9411 = vunpack.c.l.b16 %v9315
        %v9412 = vunpack.c.l.b16 %v9316
        %v9413 = vunpack.c.l.b16 %v9317
        %v9414 = vunpack.c.l.b16 %v9318
        %v9415 = vunpack.c.l.b16 %v9319
        %v9416 = vunpack.c.l.b16 %v9320
        %v9417 = vunpack.c.l.b16 %v9321
        %v9418 = vunpack.c.l.b16 %v9322
        %v9419 = vunpack.c.l.b16 %v9323
        %v9420 = vunpack.c.l.b16 %v9324
        %v9421 = vunpack.c.l.b16 %v9325
        %v9422 = vunpack.c.l.b16 %v9326
        %v9423 = vunpack.c.l.b16 %v9327
        %v9424 = vunpack.c.l.b16 %v9328
        %v9425 = vunpack.c.l.b16 %v9329
        %v9426 = vunpack.c.l.b16 %v9330
        %v9427 = vunpack.c.l.b16 %v9331
        %v9428 = vunpack.c.l.b16 %v9332
        %v9429 = vunpack.c.l.b16 %v9333
        %v9430 = vpack.c.b16 %v9383, %v9382
        %v9431 = vpack.c.b16 %v9385, %v9384
        %v9432 = vpack.c.b16 %v9387, %v9386
        %v9433 = vpack.c.b16 %v9389, %v9388
        %v9434 = vpack.c.b16 %v9391, %v9390
        %v9435 = vpack.c.b16 %v9393, %v9392
        %v9436 = vpack.c.b16 %v9395, %v9394
        %v9437 = vpack.c.b16 %v9397, %v9396
        %v9438 = vpack.c.b16 %v9399, %v9398
        %v9439 = vpack.c.b16 %v9401, %v9400
        %v9440 = vpack.c.b16 %v9403, %v9402
        %v9441 = vpack.c.b16 %v9405, %v9404
        %v9442 = vpack.c.b16 %v9407, %v9406
        %v9443 = vpack.c.b16 %v9409, %v9408
        %v9444 = vpack.c.b16 %v9411, %v9410
        %v9445 = vpack.c.b16 %v9413, %v9412
        %v9446 = vpack.c.b16 %v9415, %v9414
        %v9447 = vpack.c.b16 %v9417, %v9416
        %v9448 = vpack.c.b16 %v9419, %v9418
        %v9449 = vpack.c.b16 %v9421, %v9420
        %v9450 = vpack.c.b16 %v9423, %v9422
        %v9451 = vpack.c.b16 %v9425, %v9424
        %v9452 = vpack.c.b16 %v9427, %v9426
        %v9453 = vpack.c.b16 %v9429, %v9428
        %9478 = vmatprep.subr.bf16.mxu0 0
        %9479 = vmatpush1.bf16.msra.mxu0 %v9430
        %9480 = vmatprep.subr.bf16.mxu0 0
        %9481 = vmatpush1.bf16.msra.mxu0 %v9431
        %9482 = vmatprep.subr.bf16.mxu0 0
        %9483 = vmatpush1.bf16.msra.mxu0 %v9432
        %9484 = vmatprep.subr.bf16.mxu0 0
        %9485 = vmatpush1.bf16.msra.mxu0 %v9433
        %9486 = vmatprep.subr.bf16.mxu0 0
        %9487 = vmatpush1.bf16.msra.mxu0 %v9434
        %9488 = vmatprep.subr.bf16.mxu0 0
        %9489 = vmatpush1.bf16.msra.mxu0 %v9435
        %9490 = vmatprep.subr.bf16.mxu0 0
        %9491 = vmatpush1.bf16.msra.mxu0 %v9436
        %9492 = vmatprep.subr.bf16.mxu0 0
        %9493 = vmatpush1.bf16.msra.mxu0 %v9437
        %9494 = vmatprep.subr.bf16.mxu0 0
        %9495 = vmatpush1.bf16.msra.mxu0 %v9438
        %9496 = vmatprep.subr.bf16.mxu0 0
        %9497 = vmatpush1.bf16.msra.mxu0 %v9439
        %9498 = vmatprep.subr.bf16.mxu0 0
        %9499 = vmatpush1.bf16.msra.mxu0 %v9440
        %9500 = vmatprep.subr.bf16.mxu0 0
        %9501 = vmatpush1.bf16.msra.mxu0 %v9441
        %9502 = vmatprep.subr.bf16.mxu0 0
        %9503 = vmatpush1.bf16.msra.mxu0 %v9442
        %9504 = vmatprep.subr.bf16.mxu0 0
        %9505 = vmatpush1.bf16.msra.mxu0 %v9443
        %9506 = vmatprep.subr.bf16.mxu0 0
        %9507 = vmatpush1.bf16.msra.mxu0 %v9444
        %9508 = vmatprep.subr.bf16.mxu0 0
        %9509 = vmatpush1.bf16.msra.mxu0 %v9445
        %9510 = vmatprep.mubr.bf16.mxu0 %v9238
        %9511 = vmatmul.mubr.bf16.gmra.mrb[0].mxu0 %v9237
        %v9512 = vpop.f32.mrb[0].mxu0
        %v9513 = vadd.f32 0.0, %v9512
        %v9514 = vpop.f32.mrb[0].mxu0
        %v9515 = vpop.f32.mrb[0].mxu0
        %v9516 = vadd.f32 0.0, %v9515
        %v9517 = vpop.f32.mrb[0].mxu0
        %9518 = vmatprep.mubr.bf16.mxu0 %v9241
        %9519 = vmatmul.mubr.bf16.gmra.mrb[0].mxu0 %v9240
        %v9520 = vpop.f32.mrb[0].mxu0
        %v9521 = vadd.f32 0.0, %v9520
        %v9522 = vpop.f32.mrb[0].mxu0
        %v9523 = vpop.f32.mrb[0].mxu0
        %v9524 = vadd.f32 0.0, %v9523
        %v9525 = vpop.f32.mrb[0].mxu0
        %9526 = vmatprep.mubr.bf16.mxu0 %v9244
        %9527 = vmatmul.mubr.bf16.gmra.mrb[0].mxu0 %v9243
        %v9528 = vpop.f32.mrb[0].mxu0
        %v9529 = vadd.f32 0.0, %v9528
        %v9530 = vpop.f32.mrb[0].mxu0
        %v9531 = vpop.f32.mrb[0].mxu0
        %v9532 = vadd.f32 0.0, %v9531
        %v9533 = vpop.f32.mrb[0].mxu0
        %9534 = vmatprep.mubr.bf16.mxu0 %v9247
        %9535 = vmatmul.mubr.bf16.gmra.mrb[0].mxu0 %v9246
        %v9536 = vpop.f32.mrb[0].mxu0
        %v9537 = vadd.f32 0.0, %v9536
        %v9538 = vpop.f32.mrb[0].mxu0
        %v9539 = vpop.f32.mrb[0].mxu0
        %v9540 = vadd.f32 0.0, %v9539
        %v9541 = vpop.f32.mrb[0].mxu0
        %9542 = vmatprep.mubr.bf16.mxu0 %v9250
        %9543 = vmatmul.mubr.bf16.gmra.mrb[0].mxu0 %v9249
        %v9544 = vpop.f32.mrb[0].mxu0
        %v9545 = vadd.f32 0.0, %v9544
        %v9546 = vpop.f32.mrb[0].mxu0
        %v9547 = vpop.f32.mrb[0].mxu0
        %v9548 = vadd.f32 0.0, %v9547
        %v9549 = vpop.f32.mrb[0].mxu0
        %9550 = vmatprep.mubr.bf16.mxu0 %v9253
        %9551 = vmatmul.mubr.bf16.gmra.mrb[0].mxu0 %v9252
        %v9552 = vpop.f32.mrb[0].mxu0
        %v9553 = vadd.f32 0.0, %v9552
        %v9554 = vpop.f32.mrb[0].mxu0
        %v9555 = vpop.f32.mrb[0].mxu0
        %v9556 = vadd.f32 0.0, %v9555
        %v9557 = vpop.f32.mrb[0].mxu0
        %9558 = vmatprep.mubr.bf16.mxu0 %v9256
        %9559 = vmatmul.mubr.bf16.gmra.mrb[0].mxu0 %v9255
        %v9560 = vpop.f32.mrb[0].mxu0
        %v9561 = vadd.f32 0.0, %v9560
        %v9562 = vpop.f32.mrb[0].mxu0
        %v9563 = vpop.f32.mrb[0].mxu0
        %v9564 = vadd.f32 0.0, %v9563
        %v9565 = vpop.f32.mrb[0].mxu0
        %9566 = vmatprep.mubr.bf16.mxu0 %v9259
        %9567 = vmatmul.mubr.bf16.gmra.mrb[0].mxu0 %v9258
        %v9568 = vpop.f32.mrb[0].mxu0
        %v9569 = vadd.f32 0.0, %v9568
        %v9570 = vpop.f32.mrb[0].mxu0
        %v9571 = vpop.f32.mrb[0].mxu0
        %v9572 = vadd.f32 0.0, %v9571
        %v9573 = vpop.f32.mrb[0].mxu0
        %9574 = vmatprep.mubr.bf16.mxu0 %v9262
        %9575 = vmatmul.mubr.bf16.gmra.mrb[0].mxu0 %v9261
        %v9576 = vpop.f32.mrb[0].mxu0
        %v9577 = vadd.f32 0.0, %v9576
        %v9578 = vpop.f32.mrb[0].mxu0
        %v9579 = vpop.f32.mrb[0].mxu0
        %v9580 = vadd.f32 0.0, %v9579
        %v9581 = vpop.f32.mrb[0].mxu0
        %9582 = vmatprep.mubr.bf16.mxu0 %v9265
        %9583 = vmatmul.mubr.bf16.gmra.mrb[0].mxu0 %v9264
        %v9584 = vpop.f32.mrb[0].mxu0
        %v9585 = vadd.f32 0.0, %v9584
        %v9586 = vpop.f32.mrb[0].mxu0
        %v9587 = vpop.f32.mrb[0].mxu0
        %v9588 = vadd.f32 0.0, %v9587
        %v9589 = vpop.f32.mrb[0].mxu0
        %9590 = vmatprep.mubr.bf16.mxu0 %v9268
        %9591 = vmatmul.mubr.bf16.gmra.mrb[0].mxu0 %v9267
        %v9592 = vpop.f32.mrb[0].mxu0
        %v9593 = vadd.f32 0.0, %v9592
        %v9594 = vpop.f32.mrb[0].mxu0
        %v9595 = vpop.f32.mrb[0].mxu0
        %v9596 = vadd.f32 0.0, %v9595
        %v9597 = vpop.f32.mrb[0].mxu0
        %9598 = vmatprep.mubr.bf16.mxu0 %v9271
        %9599 = vmatmul.mubr.bf16.gmra.mrb[0].mxu0 %v9270
        %v9600 = vpop.f32.mrb[0].mxu0
        %v9601 = vadd.f32 0.0, %v9600
        %v9602 = vpop.f32.mrb[0].mxu0
        %v9603 = vpop.f32.mrb[0].mxu0
        %v9604 = vadd.f32 0.0, %v9603
        %v9605 = vpop.f32.mrb[0].mxu0
        %9606 = vmatprep.mubr.bf16.mxu0 %v9274
        %9607 = vmatmul.mubr.bf16.gmra.mrb[0].mxu0 %v9273
        %v9608 = vpop.f32.mrb[0].mxu0
        %v9609 = vadd.f32 0.0, %v9608
        %v9610 = vpop.f32.mrb[0].mxu0
        %v9611 = vpop.f32.mrb[0].mxu0
        %v9612 = vadd.f32 0.0, %v9611
        %v9613 = vpop.f32.mrb[0].mxu0
        %9614 = vmatprep.mubr.bf16.mxu0 %v9277
        %9615 = vmatmul.mubr.bf16.gmra.mrb[0].mxu0 %v9276
        %v9616 = vpop.f32.mrb[0].mxu0
        %v9617 = vadd.f32 0.0, %v9616
        %v9618 = vpop.f32.mrb[0].mxu0
        %v9619 = vpop.f32.mrb[0].mxu0
        %v9620 = vadd.f32 0.0, %v9619
        %v9621 = vpop.f32.mrb[0].mxu0
        %9622 = vmatprep.mubr.bf16.mxu0 %v9280
        %9623 = vmatmul.mubr.bf16.gmra.mrb[0].mxu0 %v9279
        %v9624 = vpop.f32.mrb[0].mxu0
        %v9625 = vadd.f32 0.0, %v9624
        %v9626 = vpop.f32.mrb[0].mxu0
        %v9627 = vpop.f32.mrb[0].mxu0
        %v9628 = vadd.f32 0.0, %v9627
        %v9629 = vpop.f32.mrb[0].mxu0
        %9630 = vmatprep.mubr.bf16.mxu0 %v9283
        %9631 = vmatmul.mubr.bf16.gmra.mrb[0].mxu0 %v9282
        %v9632 = vpop.f32.mrb[0].mxu0
        %v9633 = vadd.f32 0.0, %v9632
        %v9634 = vpop.f32.mrb[0].mxu0
        %v9635 = vpop.f32.mrb[0].mxu0
        %v9636 = vadd.f32 0.0, %v9635
        %v9637 = vpop.f32.mrb[0].mxu0
        %9638 = vdwg.mxu0
        %9639 = vmatprep.subr.bf16.mxu0 0
        %9640 = vmatpush1.bf16.msra.mxu0 %v9446
        %9641 = vmatprep.subr.bf16.mxu0 0
        %9642 = vmatpush1.bf16.msra.mxu0 %v9447
        %9643 = vmatprep.subr.bf16.mxu0 0
        %9644 = vmatpush1.bf16.msra.mxu0 %v9448
        %9645 = vmatprep.subr.bf16.mxu0 0
        %9646 = vmatpush1.bf16.msra.mxu0 %v9449
        %9647 = vmatprep.subr.bf16.mxu0 0
        %9648 = vmatpush1.bf16.msra.mxu0 %v9450
        %9649 = vmatprep.subr.bf16.mxu0 0
        %9650 = vmatpush1.bf16.msra.mxu0 %v9451
        %9651 = vmatprep.subr.bf16.mxu0 0
        %9652 = vmatpush1.bf16.msra.mxu0 %v9452
        %9653 = vmatprep.subr.bf16.mxu0 0
        %9654 = vmatpush1.bf16.msra.mxu0 %v9453
        %9655 = vmatprep.subr.bf16.mxu0 0
        %9656 = vmatpush1.bf16.msra.mxu0 0
        %9657 = vmatprep.subr.bf16.mxu0 0
        %9658 = vmatpush1.bf16.msra.mxu0 0
        %9659 = vmatprep.subr.bf16.mxu0 0
        %9660 = vmatpush1.bf16.msra.mxu0 0
        %9661 = vmatprep.subr.bf16.mxu0 0
        %9662 = vmatpush1.bf16.msra.mxu0 0
        %9663 = vmatprep.subr.bf16.mxu0 0
        %9664 = vmatpush1.bf16.msra.mxu0 0
        %9665 = vmatprep.subr.bf16.mxu0 0
        %9666 = vmatpush1.bf16.msra.mxu0 0
        %9667 = vmatprep.subr.bf16.mxu0 0
        %9668 = vmatpush1.bf16.msra.mxu0 0
        %9669 = vmatprep.subr.bf16.mxu0 0
        %9670 = vmatpush1.bf16.msra.mxu0 0
        %9671 = vmatprep.mubr.bf16.mxu0 0
        %9672 = vmatmul.mubr.bf16.gmra.mrb[0].mxu0 %v9239
        %v9673 = vpop.f32.mrb[0].mxu0
        %v9674 = vadd.f32 %v9513, %v9673
        %v9675 = vpop.f32.mrb[0].mxu0
        %v9676 = vpop.f32.mrb[0].mxu0
        %v9677 = vadd.f32 %v9516, %v9676
        %v9678 = vpop.f32.mrb[0].mxu0
        %9679 = vmatprep.mubr.bf16.mxu0 0
        %9680 = vmatmul.mubr.bf16.gmra.mrb[0].mxu0 %v9242
        %v9681 = vpop.f32.mrb[0].mxu0
        %v9682 = vadd.f32 %v9521, %v9681
        %v9683 = vpop.f32.mrb[0].mxu0
        %v9684 = vpop.f32.mrb[0].mxu0
        %v9685 = vadd.f32 %v9524, %v9684
        %v9686 = vpop.f32.mrb[0].mxu0
        %9687 = vmatprep.mubr.bf16.mxu0 0
        %9688 = vmatmul.mubr.bf16.gmra.mrb[0].mxu0 %v9245
        %v9689 = vpop.f32.mrb[0].mxu0
        %v9690 = vadd.f32 %v9529, %v9689
        %v9691 = vpop.f32.mrb[0].mxu0
        %v9692 = vpop.f32.mrb[0].mxu0
        %v9693 = vadd.f32 %v9532, %v9692
        %v9694 = vpop.f32.mrb[0].mxu0
        %9695 = vmatprep.mubr.bf16.mxu0 0
        %9696 = vmatmul.mubr.bf16.gmra.mrb[0].mxu0 %v9248
        %v9697 = vpop.f32.mrb[0].mxu0
        %v9698 = vadd.f32 %v9537, %v9697
        %v9699 = vpop.f32.mrb[0].mxu0
        %v9700 = vpop.f32.mrb[0].mxu0
        %v9701 = vadd.f32 %v9540, %v9700
        %v9702 = vpop.f32.mrb[0].mxu0
        %9703 = vmatprep.mubr.bf16.mxu0 0
        %9704 = vmatmul.mubr.bf16.gmra.mrb[0].mxu0 %v9251
        %v9705 = vpop.f32.mrb[0].mxu0
        %v9706 = vadd.f32 %v9545, %v9705
        %v9707 = vpop.f32.mrb[0].mxu0
        %v9708 = vpop.f32.mrb[0].mxu0
        %v9709 = vadd.f32 %v9548, %v9708
        %v9710 = vpop.f32.mrb[0].mxu0
        %9711 = vmatprep.mubr.bf16.mxu0 0
        %9712 = vmatmul.mubr.bf16.gmra.mrb[0].mxu0 %v9254
        %v9713 = vpop.f32.mrb[0].mxu0
        %v9714 = vadd.f32 %v9553, %v9713
        %v9715 = vpop.f32.mrb[0].mxu0
        %v9716 = vpop.f32.mrb[0].mxu0
        %v9717 = vadd.f32 %v9556, %v9716
        %v9718 = vpop.f32.mrb[0].mxu0
        %9719 = vmatprep.mubr.bf16.mxu0 0
        %9720 = vmatmul.mubr.bf16.gmra.mrb[0].mxu0 %v9257
        %v9721 = vpop.f32.mrb[0].mxu0
        %v9722 = vadd.f32 %v9561, %v9721
        %v9723 = vpop.f32.mrb[0].mxu0
        %v9724 = vpop.f32.mrb[0].mxu0
        %v9725 = vadd.f32 %v9564, %v9724
        %v9726 = vpop.f32.mrb[0].mxu0
        %9727 = vmatprep.mubr.bf16.mxu0 0
        %9728 = vmatmul.mubr.bf16.gmra.mrb[0].mxu0 %v9260
        %v9729 = vpop.f32.mrb[0].mxu0
        %v9730 = vadd.f32 %v9569, %v9729
        %v9731 = vpop.f32.mrb[0].mxu0
        %v9732 = vpop.f32.mrb[0].mxu0
        %v9733 = vadd.f32 %v9572, %v9732
        %v9734 = vpop.f32.mrb[0].mxu0
        %9735 = vmatprep.mubr.bf16.mxu0 0
        %9736 = vmatmul.mubr.bf16.gmra.mrb[0].mxu0 %v9263
        %v9737 = vpop.f32.mrb[0].mxu0
        %v9738 = vadd.f32 %v9577, %v9737
        %v9739 = vpop.f32.mrb[0].mxu0
        %v9740 = vpop.f32.mrb[0].mxu0
        %v9741 = vadd.f32 %v9580, %v9740
        %v9742 = vpop.f32.mrb[0].mxu0
        %9743 = vmatprep.mubr.bf16.mxu0 0
        %9744 = vmatmul.mubr.bf16.gmra.mrb[0].mxu0 %v9266
        %v9745 = vpop.f32.mrb[0].mxu0
        %v9746 = vadd.f32 %v9585, %v9745
        %v9747 = vpop.f32.mrb[0].mxu0
        %v9748 = vpop.f32.mrb[0].mxu0
        %v9749 = vadd.f32 %v9588, %v9748
        %v9750 = vpop.f32.mrb[0].mxu0
        %9751 = vmatprep.mubr.bf16.mxu0 0
        %9752 = vmatmul.mubr.bf16.gmra.mrb[0].mxu0 %v9269
        %v9753 = vpop.f32.mrb[0].mxu0
        %v9754 = vadd.f32 %v9593, %v9753
        %v9755 = vpop.f32.mrb[0].mxu0
        %v9756 = vpop.f32.mrb[0].mxu0
        %v9757 = vadd.f32 %v9596, %v9756
        %v9758 = vpop.f32.mrb[0].mxu0
        %9759 = vmatprep.mubr.bf16.mxu0 0
        %9760 = vmatmul.mubr.bf16.gmra.mrb[0].mxu0 %v9272
        %v9761 = vpop.f32.mrb[0].mxu0
        %v9762 = vadd.f32 %v9601, %v9761
        %v9763 = vpop.f32.mrb[0].mxu0
        %v9764 = vpop.f32.mrb[0].mxu0
        %v9765 = vadd.f32 %v9604, %v9764
        %v9766 = vpop.f32.mrb[0].mxu0
        %9767 = vmatprep.mubr.bf16.mxu0 0
        %9768 = vmatmul.mubr.bf16.gmra.mrb[0].mxu0 %v9275
        %v9769 = vpop.f32.mrb[0].mxu0
        %v9770 = vadd.f32 %v9609, %v9769
        %v9771 = vpop.f32.mrb[0].mxu0
        %v9772 = vpop.f32.mrb[0].mxu0
        %v9773 = vadd.f32 %v9612, %v9772
        %v9774 = vpop.f32.mrb[0].mxu0
        %9775 = vmatprep.mubr.bf16.mxu0 0
        %9776 = vmatmul.mubr.bf16.gmra.mrb[0].mxu0 %v9278
        %v9777 = vpop.f32.mrb[0].mxu0
        %v9778 = vadd.f32 %v9617, %v9777
        %v9779 = vpop.f32.mrb[0].mxu0
        %v9780 = vpop.f32.mrb[0].mxu0
        %v9781 = vadd.f32 %v9620, %v9780
        %v9782 = vpop.f32.mrb[0].mxu0
        %9783 = vmatprep.mubr.bf16.mxu0 0
        %9784 = vmatmul.mubr.bf16.gmra.mrb[0].mxu0 %v9281
        %v9785 = vpop.f32.mrb[0].mxu0
        %v9786 = vadd.f32 %v9625, %v9785
        %v9787 = vpop.f32.mrb[0].mxu0
        %v9788 = vpop.f32.mrb[0].mxu0
        %v9789 = vadd.f32 %v9628, %v9788
        %v9790 = vpop.f32.mrb[0].mxu0
        %9791 = vmatprep.mubr.bf16.mxu0 0
        %9792 = vmatmul.mubr.bf16.gmra.mrb[0].mxu0 %v9284
        %v9793 = vpop.f32.mrb[0].mxu0
        %v9794 = vadd.f32 %v9633, %v9793
        %v9795 = vpop.f32.mrb[0].mxu0
        %v9796 = vpop.f32.mrb[0].mxu0
        %v9797 = vadd.f32 %v9636, %v9796
        %v9798 = vpop.f32.mrb[0].mxu0
        %9799 = vdwg.mxu0
        %v9800 = vadd.f32 %v8311, %v9674
        %v9801 = vadd.f32 %v8314, %v9677
        %v9802 = vadd.f32 %v8319, %v9682
        %v9803 = vadd.f32 %v8322, %v9685
        %v9804 = vadd.f32 %v8327, %v9690
        %v9805 = vadd.f32 %v8330, %v9693
        %v9806 = vadd.f32 %v8335, %v9698
        %v9807 = vadd.f32 %v8338, %v9701
        %v9808 = vadd.f32 %v8343, %v9706
        %v9809 = vadd.f32 %v8346, %v9709
        %v9810 = vadd.f32 %v8351, %v9714
        %v9811 = vadd.f32 %v8354, %v9717
        %v9812 = vadd.f32 %v8359, %v9722
        %v9813 = vadd.f32 %v8362, %v9725
        %v9814 = vadd.f32 %v8367, %v9730
        %v9815 = vadd.f32 %v8370, %v9733
        %v9816 = vadd.f32 %v8375, %v9738
        %v9817 = vadd.f32 %v8378, %v9741
        %v9818 = vadd.f32 %v8383, %v9746
        %v9819 = vadd.f32 %v8386, %v9749
        %v9820 = vadd.f32 %v8391, %v9754
        %v9821 = vadd.f32 %v8394, %v9757
        %v9822 = vadd.f32 %v8399, %v9762
        %v9823 = vadd.f32 %v8402, %v9765
        %v9824 = vadd.f32 %v8407, %v9770
        %v9825 = vadd.f32 %v8410, %v9773
        %v9826 = vadd.f32 %v8415, %v9778
        %v9827 = vadd.f32 %v8418, %v9781
        %v9828 = vadd.f32 %v8423, %v9786
        %v9829 = vadd.f32 %v8426, %v9789
        %v9830 = vadd.f32 %v8431, %v9794
        %v9831 = vadd.f32 %v8434, %v9797
        %v9832 = vld [vmem:[%s4] sm:$0x1]
        %v9834 = vlaneseq
        %v9835 = vshrl.u32 %v9834, 7
        %v9836 = vsub.s32 0, %v9835
        %v9837 = vrot.slane %v9832, %v9836
        %v9839 = vadd.f32 %v9800, %v9837
        %v9840 = vadd.f32 %v9801, %v9837
        %v9841 = vadd.f32 %v9802, %v9837
        %v9842 = vadd.f32 %v9803, %v9837
        %v9843 = vadd.f32 %v9804, %v9837
        %v9844 = vadd.f32 %v9805, %v9837
        %v9845 = vadd.f32 %v9806, %v9837
        %v9846 = vadd.f32 %v9807, %v9837
        %v9847 = vadd.f32 %v9808, %v9837
        %v9848 = vadd.f32 %v9809, %v9837
        %v9849 = vadd.f32 %v9810, %v9837
        %v9850 = vadd.f32 %v9811, %v9837
        %v9851 = vadd.f32 %v9812, %v9837
        %v9852 = vadd.f32 %v9813, %v9837
        %v9853 = vadd.f32 %v9814, %v9837
        %v9854 = vadd.f32 %v9815, %v9837
        %v9855 = vadd.f32 %v9816, %v9837
        %v9856 = vadd.f32 %v9817, %v9837
        %v9857 = vadd.f32 %v9818, %v9837
        %v9858 = vadd.f32 %v9819, %v9837
        %v9859 = vadd.f32 %v9820, %v9837
        %v9860 = vadd.f32 %v9821, %v9837
        %v9861 = vadd.f32 %v9822, %v9837
        %v9862 = vadd.f32 %v9823, %v9837
        %v9863 = vadd.f32 %v9824, %v9837
        %v9864 = vadd.f32 %v9825, %v9837
        %v9865 = vadd.f32 %v9826, %v9837
        %v9866 = vadd.f32 %v9827, %v9837
        %v9867 = vadd.f32 %v9828, %v9837
        %v9868 = vadd.f32 %v9829, %v9837
        %v9869 = vadd.f32 %v9830, %v9837
        %v9870 = vadd.f32 %v9831, %v9837
        %v9871 = vld [vmem:[%s237] sm:$0xff]
        %v9872 = vld [vmem:[%s237 + $0x8] sm:$0xff]
        %v9873 = vld [vmem:[%s237 + $0x10] sm:$0xff]
        %v9874 = vld [vmem:[%s237 + $0x18] sm:$0xff]
        %v9875 = vld [vmem:[%s237 + $0x20] sm:$0xff]
        %v9876 = vld [vmem:[%s237 + $0x28] sm:$0xff]
        %v9877 = vld [vmem:[%s237 + $0x30] sm:$0xff]
        %v9878 = vld [vmem:[%s237 + $0x38] sm:$0xff]
        %v9879 = vld [vmem:[%s237 + $0x40] sm:$0xff]
        %v9880 = vld [vmem:[%s237 + $0x48] sm:$0xff]
        %v9881 = vld [vmem:[%s237 + $0x50] sm:$0xff]
        %v9882 = vld [vmem:[%s237 + $0x58] sm:$0xff]
        %v9883 = vld [vmem:[%s237 + $0x60] sm:$0xff]
        %v9884 = vld [vmem:[%s237 + $0x68] sm:$0xff]
        %v9885 = vld [vmem:[%s237 + $0x70] sm:$0xff]
        %v9886 = vld [vmem:[%s237 + $0x78] sm:$0xff]
        %v9887 = vld [vmem:[%s237 + $0x80] sm:$0xff]
        %v9888 = vld [vmem:[%s237 + $0x88] sm:$0xff]
        %v9889 = vld [vmem:[%s237 + $0x90] sm:$0xff]
        %v9890 = vld [vmem:[%s237 + $0x98] sm:$0xff]
        %v9891 = vld [vmem:[%s237 + $0xa0] sm:$0xff]
        %v9892 = vld [vmem:[%s237 + $0xa8] sm:$0xff]
        %v9893 = vld [vmem:[%s237 + $0xb0] sm:$0xff]
        %v9894 = vld [vmem:[%s237 + $0xb8] sm:$0xff]
        %v9895 = vld [vmem:[%s237 + $0xc0] sm:$0xff]
        %v9896 = vld [vmem:[%s237 + $0xc8] sm:$0xff]
        %v9897 = vld [vmem:[%s237 + $0xd0] sm:$0xff]
        %v9898 = vld [vmem:[%s237 + $0xd8] sm:$0xff]
        %v9899 = vld [vmem:[%s237 + $0xe0] sm:$0xff]
        %v9900 = vld [vmem:[%s237 + $0xe8] sm:$0xff]
        %v9901 = vld [vmem:[%s237 + $0xf0] sm:$0xff]
        %v9902 = vld [vmem:[%s237 + $0xf8] sm:$0xff]
        %v9903 = vadd.f32 %v9871, %v9839
        %v9904 = vadd.f32 %v9872, %v9840
        %v9905 = vadd.f32 %v9873, %v9841
        %v9906 = vadd.f32 %v9874, %v9842
        %v9907 = vadd.f32 %v9875, %v9843
        %v9908 = vadd.f32 %v9876, %v9844
        %v9909 = vadd.f32 %v9877, %v9845
        %v9910 = vadd.f32 %v9878, %v9846
        %v9911 = vadd.f32 %v9879, %v9847
        %v9912 = vadd.f32 %v9880, %v9848
        %v9913 = vadd.f32 %v9881, %v9849
        %v9914 = vadd.f32 %v9882, %v9850
        %v9915 = vadd.f32 %v9883, %v9851
        %v9916 = vadd.f32 %v9884, %v9852
        %v9917 = vadd.f32 %v9885, %v9853
        %v9918 = vadd.f32 %v9886, %v9854
        %v9919 = vadd.f32 %v9887, %v9855
        %v9920 = vadd.f32 %v9888, %v9856
        %v9921 = vadd.f32 %v9889, %v9857
        %v9922 = vadd.f32 %v9890, %v9858
        %v9923 = vadd.f32 %v9891, %v9859
        %v9924 = vadd.f32 %v9892, %v9860
        %v9925 = vadd.f32 %v9893, %v9861
        %v9926 = vadd.f32 %v9894, %v9862
        %v9927 = vadd.f32 %v9895, %v9863
        %v9928 = vadd.f32 %v9896, %v9864
        %v9929 = vadd.f32 %v9897, %v9865
        %v9930 = vadd.f32 %v9898, %v9866
        %v9931 = vadd.f32 %v9899, %v9867
        %v9932 = vadd.f32 %v9900, %v9868
        %v9933 = vadd.f32 %v9901, %v9869
        %v9934 = vadd.f32 %v9902, %v9870
        %9935 = vst [vmem:[%s271] sm:$0xff] %v9903
        %9936 = vst [vmem:[%s271 + $0x8] sm:$0xff] %v9904
        %9937 = vst [vmem:[%s271 + $0x10] sm:$0xff] %v9905
        %9938 = vst [vmem:[%s271 + $0x18] sm:$0xff] %v9906
        %9939 = vst [vmem:[%s271 + $0x20] sm:$0xff] %v9907
        %9940 = vst [vmem:[%s271 + $0x28] sm:$0xff] %v9908
        %9941 = vst [vmem:[%s271 + $0x30] sm:$0xff] %v9909
        %9942 = vst [vmem:[%s271 + $0x38] sm:$0xff] %v9910
        %9943 = vst [vmem:[%s271 + $0x40] sm:$0xff] %v9911
        %9944 = vst [vmem:[%s271 + $0x48] sm:$0xff] %v9912
        %9945 = vst [vmem:[%s271 + $0x50] sm:$0xff] %v9913
        %9946 = vst [vmem:[%s271 + $0x58] sm:$0xff] %v9914
        %9947 = vst [vmem:[%s271 + $0x60] sm:$0xff] %v9915
        %9948 = vst [vmem:[%s271 + $0x68] sm:$0xff] %v9916
        %9949 = vst [vmem:[%s271 + $0x70] sm:$0xff] %v9917
        %9950 = vst [vmem:[%s271 + $0x78] sm:$0xff] %v9918
        %9951 = vst [vmem:[%s271 + $0x80] sm:$0xff] %v9919
        %9952 = vst [vmem:[%s271 + $0x88] sm:$0xff] %v9920
        %9953 = vst [vmem:[%s271 + $0x90] sm:$0xff] %v9921
        %9954 = vst [vmem:[%s271 + $0x98] sm:$0xff] %v9922
        %9955 = vst [vmem:[%s271 + $0xa0] sm:$0xff] %v9923
        %9956 = vst [vmem:[%s271 + $0xa8] sm:$0xff] %v9924
        %9957 = vst [vmem:[%s271 + $0xb0] sm:$0xff] %v9925
        %9958 = vst [vmem:[%s271 + $0xb8] sm:$0xff] %v9926
        %9959 = vst [vmem:[%s271 + $0xc0] sm:$0xff] %v9927
        %9960 = vst [vmem:[%s271 + $0xc8] sm:$0xff] %v9928
        %9961 = vst [vmem:[%s271 + $0xd0] sm:$0xff] %v9929
        %9962 = vst [vmem:[%s271 + $0xd8] sm:$0xff] %v9930
        %9963 = vst [vmem:[%s271 + $0xe0] sm:$0xff] %v9931
        %9964 = vst [vmem:[%s271 + $0xe8] sm:$0xff] %v9932
        %9965 = vst [vmem:[%s271 + $0xf0] sm:$0xff] %v9933
        %9966 = vst [vmem:[%s271 + $0xf8] sm:$0xff] %v9934
        %s9967 = sand.u32 %s141, 1
        %s9968 = scalar_lea.sflag [#allocation6], %s9967
        %s9969 = sand.u32 %s141, 1
        %s9970 = smul.addr %s9969, 256
        %s9971 = scalar_lea.vmem [#allocation10], %s9970
        // Predicated region
        $region53: #{tpu_custom_call.1} parent=39 // pred_check
          %p9972 = pneg %p151
        $region54: #{tpu_custom_call.1} parent=39 // pred_check_branch
          %9974 = sbr.rel (%p9972) target = $region56
        $region55: #{tpu_custom_call.1} parent=39 // pred_region
          %s9976 = ssub.s32 4096, 4096
          %9977 = vsyncadd %s9968, %s9976
          %s9978 = smul.addr %s23, 32
          %s9979 = smul.addr %s9978, 128
          %s9980 = scalar_lea.hbm %s5, %s9979
          %s9981 = sshll.u32 %s9971, 4
          %s9982 = int_to_ptr.vmem [resolvable:$true] %s9981
          %9987 = dma.vmem_to_hbm [thread:$0]  %s9982, 4096, %s9980, %s9968, 128, 128, 8
        $region56: #{tpu_custom_call.1} parent=39 // pred_fallthru
          _
      $region40: #{tpu_custom_call.1} parent=5 // pred_fallthru
        _
      %p9988 = scmp.le.s32.totalorder 2, %s18
      // Predicated region
      $region57: #{tpu_custom_call.1} parent=5 // pred_check
        %p9989 = pneg %p9988
      $region58: #{tpu_custom_call.1} parent=5 // pred_check_branch
        %9991 = sbr.rel (%p9989) target = $region60
      $region59: #{tpu_custom_call.1} parent=5 // pred_region
        %s9992 = ssub.s32 %s18, 2
        // Predicated region
        $region61: #{tpu_custom_call.1} parent=59 // pred_check
          %p9993 = pneg %p157
        $region62: #{tpu_custom_call.1} parent=59 // pred_check_branch
          %9995 = sbr.rel (%p9993) target = $region64
        $region63: #{tpu_custom_call.1} parent=59 // pred_region
          %s9996 = sand.u32 %s142, 1
          %s9997 = scalar_lea.sflag [#allocation6], %s9996
          %s9998 = sand.u32 %s142, 1
          %s9999 = smul.addr %s9998, 256
          %s10000 = scalar_lea.vmem [#allocation10], %s9999
          %10001 = dma.done %s9997, 4096
        $region64: #{tpu_custom_call.1} parent=59 // pred_fallthru
          _
      $region60: #{tpu_custom_call.1} parent=5 // pred_fallthru
        _
    $region6: #{tpu_custom_call.1} parent=1 // loop_footer
      %s22 = sadd.s32 1, %s18
    $region7: #{tpu_custom_call.1} parent=1 // loop_footer_branch
      %17 = sbr.rel target = $region3
    $region8: #{tpu_custom_call.1} parent=1 // loop_exit
      _
    %10002 = vsyncpa [#allocation5], 1
    %s10003 = scalar_lea.sflag [#allocation5], 1
    %10004 = vsyncpa %s10003, 1
    %10005 = vsyncpa [#allocation8], 1
    %10006 = vsyncpa [#allocation6], 1
    %s10007 = scalar_lea.sflag [#allocation6], 1
    %10008 = vsyncpa %s10007, 1

</llo_original>
